<compile_context>
chip_gen: v5e
topology: v5e:2x2
jax: 0.10.0
libtpu: 0.0.40
codegen_flags: <defaults>
</compile_context>

<pallas_src>
import functools

import jax
import jax.numpy as jnp
from jax.experimental import pallas as pl
from jax.experimental.pallas import tpu as pltpu


# ---------------------------------------------------------------------------
# One bidirectional GRU layer (+ optional fused classifier epilogue).
# PyTorch GRU gate order (r, z, n):
#   r = sigmoid(Wir x + bir + Whr h + bhr)
#   z = sigmoid(Wiz x + biz + Whz h + bhz)
#   n = tanh  (Win x + bin + r * (Whn h + bhn))
#   h' = (1 - z) * n + z * h
# x is time-major and row-flattened: row index = t * batch + b.
# ---------------------------------------------------------------------------
def _bigru_layer_kernel(x_ref, wih_ref, bproj_ref, whh_ref, bhn_ref, *rest,
                        seq, batch, hidden, with_fc):
    if with_fc:
        wf_ref, wb_ref, bfc_ref, out_ref, logits_ref, gi_ref = rest
    else:
        out_ref, gi_ref = rest
    H = hidden

    # ---- hoisted input projection: one fused (S*B, D) @ (D, 3H) matmul per
    # ---- direction.  r/z biases have b_hh pre-folded; n keeps only b_in
    # ---- (b_hn is applied inside r * (W_hn h + b_hn) in the loop).
    x = x_ref[...]                                        # (S*B, D) bf16
    for d in range(2):
        gi_ref[d] = (jnp.dot(x, wih_ref[d],
                             preferred_element_type=jnp.float32)
                     + bproj_ref[d]).astype(gi_ref.dtype)  # bf16 (S*B, 3H)

    # loop-invariant recurrent weights / biases
    whh_f = whh_ref[0]
    whh_b = whh_ref[1]                                    # (H, 3H) bf16
    bhn_f = bhn_ref[0]
    bhn_b = bhn_ref[1]                                    # (1, H) f32

    def gate(gi, hg, bhn, h_prev):
        r = jax.nn.sigmoid(gi[:, :H] + hg[:, :H])
        z = jax.nn.sigmoid(gi[:, H:2 * H] + hg[:, H:2 * H])
        n = jnp.tanh(gi[:, 2 * H:] + r * (hg[:, 2 * H:] + bhn))
        return (1.0 - z) * n + z * h_prev

    def step(t, carry):
        h_f, h_b = carry                                  # (B, H) f32, vregs
        row_f = pl.multiple_of(t * batch, batch)
        row_b = pl.multiple_of((seq - 1 - t) * batch, batch)

        # Two independent fused (B, H) @ (H, 3H) matmuls issued back-to-back:
        # one direction's gate math hides the other's MXU latency.
        hg_f = jnp.dot(h_f.astype(jnp.bfloat16), whh_f,
                       preferred_element_type=jnp.float32)   # (B, 3H)
        hg_b = jnp.dot(h_b.astype(jnp.bfloat16), whh_b,
                       preferred_element_type=jnp.float32)

        gi_f = gi_ref[0, pl.ds(row_f, batch), :].astype(jnp.float32)
        gi_b = gi_ref[1, pl.ds(row_b, batch), :].astype(jnp.float32)

        h_f = gate(gi_f, hg_f, bhn_f, h_f)
        h_b = gate(gi_b, hg_b, bhn_b, h_b)

        # fwd in columns [0, H), bwd in [H, 2H); always stored at the
        # original time position.
        out_ref[pl.ds(row_f, batch), pl.ds(0, H)] = h_f.astype(out_ref.dtype)
        out_ref[pl.ds(row_b, batch), pl.ds(H, H)] = h_b.astype(out_ref.dtype)
        return h_f, h_b

    h0 = jnp.zeros((batch, H), jnp.float32)
    h_f, _ = jax.lax.fori_loop(0, seq, step, (h0, h0),
                               unroll=(seq if seq <= 16 else 4))

    if with_fc:
        # Classifier on out[:, -1, :]: forward part is the final forward
        # hidden (still in vregs); backward part is the backward hidden
        # stored at time S-1 (already resident in the VMEM output block).
        hb_last = out_ref[pl.ds((seq - 1) * batch, batch), pl.ds(H, H)]
        logits_ref[...] = (
            jnp.dot(h_f.astype(jnp.bfloat16), wf_ref[...],
                    preferred_element_type=jnp.float32)
            + jnp.dot(hb_last, wb_ref[...],
                      preferred_element_type=jnp.float32)
            + bfc_ref[...]).astype(logits_ref.dtype)


def _nbytes(a):
    return a.size * jnp.dtype(a.dtype).itemsize


def bigru_layer(x_flat, layer, hidden, *, seq, batch, fc=None):
    """x_flat: (S*B, D_in) bf16, time-major row-flattened (row = t*B + b).
    Returns (S*B, 2H) bf16 [fwd | bwd], stored at original time positions.
    If `fc` is given, also returns (B, num_classes) f32 logits."""
    rows, _ = x_flat.shape
    with_fc = fc is not None

    inputs = [x_flat, layer["w_ih"], layer["b_proj"], layer["w_hh"],
              layer["b_hn"]]
    out_shape = [jax.ShapeDtypeStruct((rows, 2 * hidden), jnp.bfloat16)]
    if with_fc:
        w_f, w_b, b_fc = fc
        inputs += [w_f, w_b, b_fc]
        out_shape.append(
            jax.ShapeDtypeStruct((batch, b_fc.shape[-1]), jnp.float32))

    # bf16 gi scratch halves both its VMEM footprint and the per-step load
    # bytes on the serial dependence chain.
    scratch = [pltpu.VMEM((2, rows, 3 * hidden), jnp.bfloat16)]

    needed = sum(_nbytes(a) for a in inputs)
    needed += rows * 2 * hidden * 2            # bf16 output block
    needed += 2 * rows * 3 * hidden * 2        # bf16 gi scratch
    if with_fc:
        needed += batch * b_fc.shape[-1] * 4
    # Explicit VMEM budget with headroom; capped below v7x's 64 MiB.  At
    # production sizes that would exceed this, tile the hoisted projection
    # over time chunks rather than growing the limit.
    vmem_limit = int(min(max(needed + (8 << 20), 32 << 20), 56 << 20))

    vmem_spec = lambda: pl.BlockSpec(memory_space=pltpu.MemorySpace.VMEM)
    kern = functools.partial(_bigru_layer_kernel, seq=seq, batch=batch,
                             hidden=hidden, with_fc=with_fc)
    return pl.pallas_call(
        kern,
        out_shape=tuple(out_shape) if with_fc else out_shape[0],
        in_specs=[vmem_spec() for _ in inputs],
        out_specs=(tuple(vmem_spec() for _ in out_shape) if with_fc
                   else vmem_spec()),
        scratch_shapes=scratch,
        compiler_params=pltpu.CompilerParams(vmem_limit_bytes=vmem_limit),
    )(*inputs)


# ---------------------------------------------------------------------------
# Parameter init (deterministic, PyTorch-like uniform(-1/sqrt(H), 1/sqrt(H))).
# Weights stay concatenated per gate-triplet (D|H, 3H) for single fused MXU
# matmuls, stacked per direction, bf16 for the MXU; biases stay f32 with
# b_ih + b_hh pre-folded for the r/z gates.
# ---------------------------------------------------------------------------
def init_params(key, vocab_size, embedding_dim, hidden, num_layers,
                num_classes):
    n_keys = 1 + num_layers * 2 * 4 + 2
    keys = iter(jax.random.split(key, n_keys))
    params = {}
    params["embedding"] = jax.random.normal(
        next(keys), (vocab_size, embedding_dim), jnp.float32)

    bound = 1.0 / jnp.sqrt(hidden)
    layers = []
    for layer in range(num_layers):
        in_dim = embedding_dim if layer == 0 else 2 * hidden
        w_ih_d, b_proj_d, w_hh_d, b_hn_d = [], [], [], []
        for _ in range(2):  # directions
            w_ih = jax.random.uniform(next(keys), (in_dim, 3 * hidden),
                                      jnp.float32, -bound, bound)
            w_hh = jax.random.uniform(next(keys), (hidden, 3 * hidden),
                                      jnp.float32, -bound, bound)
            b_ih = jax.random.uniform(next(keys), (3 * hidden,),
                                      jnp.float32, -bound, bound)
            b_hh = jax.random.uniform(next(keys), (3 * hidden,),
                                      jnp.float32, -bound, bound)
            # r, z: fold b_ih + b_hh.  n: only b_in goes into the projection;
            # b_hn is applied inside r * (W_hn h + b_hn) in the loop.
            b_proj = jnp.concatenate(
                [b_ih[:2 * hidden] + b_hh[:2 * hidden],
                 b_ih[2 * hidden:]]).reshape(1, 3 * hidden)
            w_ih_d.append(w_ih)
            w_hh_d.append(w_hh)
            b_proj_d.append(b_proj)
            b_hn_d.append(b_hh[2 * hidden:].reshape(1, hidden))
        layers.append(dict(
            w_ih=jnp.stack(w_ih_d).astype(jnp.bfloat16),    # (2, D, 3H)
            b_proj=jnp.stack(b_proj_d),                     # (2, 1, 3H) f32
            w_hh=jnp.stack(w_hh_d).astype(jnp.bfloat16),    # (2, H, 3H)
            b_hn=jnp.stack(b_hn_d),                         # (2, 1, H) f32
        ))
    params["gru_layers"] = layers

    fc_bound = 1.0 / jnp.sqrt(2 * hidden)
    w_fc = jax.random.uniform(next(keys), (2 * hidden, num_classes),
                              jnp.float32, -fc_bound, fc_bound)
    params["fc_w_fwd"] = w_fc[:hidden].astype(jnp.bfloat16)   # (H, C)
    params["fc_w_bwd"] = w_fc[hidden:].astype(jnp.bfloat16)   # (H, C)
    params["fc_b"] = jax.random.uniform(next(keys), (1, num_classes),
                                        jnp.float32, -fc_bound, fc_bound)
    return params


# ---------------------------------------------------------------------------
# Full forward pass (matches BiGRUNetwork.forward semantics).
# ---------------------------------------------------------------------------
def bigru_forward(tokens, params, hidden):
    # Embedding lookup (gather) kept in plain JAX glue.
    emb = jnp.take(params["embedding"], tokens, axis=0)      # (B, S, E) f32
    batch, seq, _ = emb.shape
    # Pad batch to a multiple of 16 so every per-step row slice of the bf16
    # gi scratch / output hits whole packed sublane tiles (dense vld/vst in
    # the hot recurrence).  Padded rows are zero and fully independent.
    batch_p = ((batch + 15) // 16) * 16
    if batch_p != batch:
        emb = jnp.pad(emb, ((0, batch_p - batch), (0, 0), (0, 0)))
    # time-major, row-flattened (row = t*B + b), bf16 MXU inputs
    x = jnp.transpose(emb, (1, 0, 2)).reshape(seq * batch_p, -1)
    x = x.astype(jnp.bfloat16)

    layers = params["gru_layers"]
    logits = None
    for li, layer in enumerate(layers):
        is_last = (li + 1 == len(layers))
        fc = ((params["fc_w_fwd"], params["fc_w_bwd"], params["fc_b"])
              if is_last else None)
        res = bigru_layer(x, layer, hidden, seq=seq, batch=batch_p, fc=fc)
        if is_last:
            _, logits = res
        else:
            x = res   # (S*B, 2H) bf16 feeds the next layer directly
    return logits[:batch]


if __name__ == "__main__":
    vocab_size = 50
    embedding_dim = 16
    hidden_units = 32
    num_layers = 2
    num_classes = 2
    batch, seq = 2, 8

    key = jax.random.PRNGKey(0)
    k_tok, k_par = jax.random.split(key)
    tokens = jax.random.randint(k_tok, (batch, seq), 0, vocab_size,
                                dtype=jnp.int32)
    params = init_params(k_par, vocab_size, embedding_dim, hidden_units,
                         num_layers, num_classes)

    fwd = jax.jit(functools.partial(bigru_forward, hidden=hidden_units))
    out = fwd(tokens, params)
    out = jax.block_until_ready(out)
    assert out.shape == (batch, num_classes)
    assert bool(jnp.all(jnp.isfinite(out)))
    print("KERNEL_OK")
</pallas_src>

<mosaic_0001>
module attributes {stable_mosaic.version = 11 : i64} {
  func.func @_bigru_layer_kernel(%arg0: memref<128x16xbf16, #tpu.memory_space<vmem>>, %arg1: memref<2x16x96xbf16, #tpu.memory_space<vmem>>, %arg2: memref<2x1x96xf32, #tpu.memory_space<vmem>>, %arg3: memref<2x32x96xbf16, #tpu.memory_space<vmem>>, %arg4: memref<2x1x32xf32, #tpu.memory_space<vmem>>, %arg5: memref<128x64xbf16, #tpu.memory_space<vmem>>, %arg6: memref<2x128x96xbf16, #tpu.memory_space<vmem>>) attributes {dimension_semantics = [], scalar_prefetch = 0 : i64, scratch_operands = 1 : i64, tpu.core_type = #tpu.core_type<tc>} {
    %c0 = arith.constant 0 : index
    %c0_0 = arith.constant 0 : index
    %0 = vector.load %arg0[%c0, %c0_0] : memref<128x16xbf16, #tpu.memory_space<vmem>>, vector<128x16xbf16>
    %c0_1 = arith.constant 0 : index
    %c0_2 = arith.constant 0 : index
    %c0_3 = arith.constant 0 : index
    %1 = vector.load %arg1[%c0_1, %c0_2, %c0_3] : memref<2x16x96xbf16, #tpu.memory_space<vmem>>, vector<1x16x96xbf16>
    %2 = vector.shape_cast %1 : vector<1x16x96xbf16> to vector<16x96xbf16>
    %cst = arith.constant dense<0.000000e+00> : vector<128x96xf32>
    %3 = tpu.matmul %0, %2, %cst {dimension_numbers = #tpu.dot_dimension_numbers<[1], [0], [0], [1], [0, 0, 1, 1], [], []>} : vector<128x16xbf16>, vector<16x96xbf16>, vector<128x96xf32> -> vector<128x96xf32>
    %c0_4 = arith.constant 0 : index
    %c0_5 = arith.constant 0 : index
    %c0_6 = arith.constant 0 : index
    %4 = vector.load %arg2[%c0_4, %c0_5, %c0_6] : memref<2x1x96xf32, #tpu.memory_space<vmem>>, vector<1x1x96xf32>
    %5 = vector.shape_cast %4 : vector<1x1x96xf32> to vector<1x96xf32>
    %6 = vector.broadcast %5 : vector<1x96xf32> to vector<128x96xf32>
    %7 = arith.addf %3, %6 : vector<128x96xf32>
    %8 = arith.truncf %7 : vector<128x96xf32> to vector<128x96xbf16>
    %c0_7 = arith.constant 0 : index
    %c0_8 = arith.constant 0 : index
    %c0_9 = arith.constant 0 : index
    %9 = vector.load %arg6[%c0_7, %c0_8, %c0_9] : memref<2x128x96xbf16, #tpu.memory_space<vmem>>, vector<1x128x96xbf16>
    %10 = vector.shape_cast %9 : vector<1x128x96xbf16> to vector<128x96xbf16>
    %11 = vector.shape_cast %8 : vector<128x96xbf16> to vector<1x128x96xbf16>
    tpu.vector_store %arg6[%c0_7, %c0_8, %c0_9], %11 {strides = array<i32>} : memref<2x128x96xbf16, #tpu.memory_space<vmem>>, vector<1x128x96xbf16>,
    %c1 = arith.constant 1 : index
    %c0_10 = arith.constant 0 : index
    %c0_11 = arith.constant 0 : index
    %12 = vector.load %arg1[%c1, %c0_10, %c0_11] : memref<2x16x96xbf16, #tpu.memory_space<vmem>>, vector<1x16x96xbf16>
    %13 = vector.shape_cast %12 : vector<1x16x96xbf16> to vector<16x96xbf16>
    %cst_12 = arith.constant dense<0.000000e+00> : vector<128x96xf32>
    %14 = tpu.matmul %0, %13, %cst_12 {dimension_numbers = #tpu.dot_dimension_numbers<[1], [0], [0], [1], [0, 0, 1, 1], [], []>} : vector<128x16xbf16>, vector<16x96xbf16>, vector<128x96xf32> -> vector<128x96xf32>
    %c1_13 = arith.constant 1 : index
    %c0_14 = arith.constant 0 : index
    %c0_15 = arith.constant 0 : index
    %15 = vector.load %arg2[%c1_13, %c0_14, %c0_15] : memref<2x1x96xf32, #tpu.memory_space<vmem>>, vector<1x1x96xf32>
    %16 = vector.shape_cast %15 : vector<1x1x96xf32> to vector<1x96xf32>
    %17 = vector.broadcast %16 : vector<1x96xf32> to vector<128x96xf32>
    %18 = arith.addf %14, %17 : vector<128x96xf32>
    %19 = arith.truncf %18 : vector<128x96xf32> to vector<128x96xbf16>
    %c1_16 = arith.constant 1 : index
    %c0_17 = arith.constant 0 : index
    %c0_18 = arith.constant 0 : index
    %20 = vector.load %arg6[%c1_16, %c0_17, %c0_18] : memref<2x128x96xbf16, #tpu.memory_space<vmem>>, vector<1x128x96xbf16>
    %21 = vector.shape_cast %20 : vector<1x128x96xbf16> to vector<128x96xbf16>
    %22 = vector.shape_cast %19 : vector<128x96xbf16> to vector<1x128x96xbf16>
    tpu.vector_store %arg6[%c1_16, %c0_17, %c0_18], %22 {strides = array<i32>} : memref<2x128x96xbf16, #tpu.memory_space<vmem>>, vector<1x128x96xbf16>,
    %c0_19 = arith.constant 0 : index
    %c0_20 = arith.constant 0 : index
    %c0_21 = arith.constant 0 : index
    %23 = vector.load %arg3[%c0_19, %c0_20, %c0_21] : memref<2x32x96xbf16, #tpu.memory_space<vmem>>, vector<1x32x96xbf16>
    %24 = vector.shape_cast %23 : vector<1x32x96xbf16> to vector<32x96xbf16>
    %c1_22 = arith.constant 1 : index
    %c0_23 = arith.constant 0 : index
    %c0_24 = arith.constant 0 : index
    %25 = vector.load %arg3[%c1_22, %c0_23, %c0_24] : memref<2x32x96xbf16, #tpu.memory_space<vmem>>, vector<1x32x96xbf16>
    %26 = vector.shape_cast %25 : vector<1x32x96xbf16> to vector<32x96xbf16>
    %c0_25 = arith.constant 0 : index
    %c0_26 = arith.constant 0 : index
    %c0_27 = arith.constant 0 : index
    %27 = vector.load %arg4[%c0_25, %c0_26, %c0_27] : memref<2x1x32xf32, #tpu.memory_space<vmem>>, vector<1x1x32xf32>
    %28 = vector.shape_cast %27 : vector<1x1x32xf32> to vector<1x32xf32>
    %c1_28 = arith.constant 1 : index
    %c0_29 = arith.constant 0 : index
    %c0_30 = arith.constant 0 : index
    %29 = vector.load %arg4[%c1_28, %c0_29, %c0_30] : memref<2x1x32xf32, #tpu.memory_space<vmem>>, vector<1x1x32xf32>
    %30 = vector.shape_cast %29 : vector<1x1x32xf32> to vector<1x32xf32>
    %cst_31 = arith.constant 0.000000e+00 : f32
    %31 = vector.broadcast %cst_31 : f32 to vector<16x32xf32>
    %c0_i32 = arith.constant 0 : i32
    %c16_i32 = arith.constant 16 : i32
    %32 = arith.muli %c0_i32, %c16_i32 : i32
    %33 = tpu.assume_multiple %32, 16 : i32
    %c7_i32 = arith.constant 7 : i32
    %34 = arith.subi %c7_i32, %c0_i32 : i32
    %c16_i32_32 = arith.constant 16 : i32
    %35 = arith.muli %34, %c16_i32_32 : i32
    %36 = tpu.assume_multiple %35, 16 : i32
    %37 = arith.truncf %31 : vector<16x32xf32> to vector<16x32xbf16>
    %cst_33 = arith.constant dense<0.000000e+00> : vector<16x96xf32>
    %38 = tpu.matmul %37, %24, %cst_33 {dimension_numbers = #tpu.dot_dimension_numbers<[1], [0], [0], [1], [0, 0, 1, 1], [], []>} : vector<16x32xbf16>, vector<32x96xbf16>, vector<16x96xf32> -> vector<16x96xf32>
    %39 = arith.truncf %31 : vector<16x32xf32> to vector<16x32xbf16>
    %cst_34 = arith.constant dense<0.000000e+00> : vector<16x96xf32>
    %40 = tpu.matmul %39, %26, %cst_34 {dimension_numbers = #tpu.dot_dimension_numbers<[1], [0], [0], [1], [0, 0, 1, 1], [], []>} : vector<16x32xbf16>, vector<32x96xbf16>, vector<16x96xf32> -> vector<16x96xf32>
    %c0_35 = arith.constant 0 : index
    %41 = arith.index_cast %33 : i32 to index
    %c0_36 = arith.constant 0 : index
    %42 = vector.load %arg6[%c0_35, %41, %c0_36] : memref<2x128x96xbf16, #tpu.memory_space<vmem>>, vector<1x16x96xbf16>
    %43 = vector.shape_cast %42 : vector<1x16x96xbf16> to vector<16x96xbf16>
    %44 = arith.extf %43 : vector<16x96xbf16> to vector<16x96xf32>
    %c1_37 = arith.constant 1 : index
    %45 = arith.index_cast %36 : i32 to index
    %c0_38 = arith.constant 0 : index
    %46 = vector.load %arg6[%c1_37, %45, %c0_38] : memref<2x128x96xbf16, #tpu.memory_space<vmem>>, vector<1x16x96xbf16>
    %47 = vector.shape_cast %46 : vector<1x16x96xbf16> to vector<16x96xbf16>
    %48 = arith.extf %47 : vector<16x96xbf16> to vector<16x96xf32>
    %49 = vector.extract_strided_slice %44 {offsets = [0, 0], sizes = [16, 32], strides = [1, 1]} : vector<16x96xf32> to vector<16x32xf32>
    %50 = vector.extract_strided_slice %38 {offsets = [0, 0], sizes = [16, 32], strides = [1, 1]} : vector<16x96xf32> to vector<16x32xf32>
    %51 = arith.addf %49, %50 : vector<16x32xf32>
    %52 = arith.negf %51 : vector<16x32xf32>
    %53 = math.exp %52 : vector<16x32xf32>
    %cst_39 = arith.constant 1.000000e+00 : f32
    %54 = vector.broadcast %cst_39 : f32 to vector<16x32xf32>
    %55 = arith.addf %54, %53 : vector<16x32xf32>
    %56 = arith.divf %54, %55 : vector<16x32xf32>
    %57 = vector.extract_strided_slice %44 {offsets = [0, 32], sizes = [16, 32], strides = [1, 1]} : vector<16x96xf32> to vector<16x32xf32>
    %58 = vector.extract_strided_slice %38 {offsets = [0, 32], sizes = [16, 32], strides = [1, 1]} : vector<16x96xf32> to vector<16x32xf32>
    %59 = arith.addf %57, %58 : vector<16x32xf32>
    %60 = arith.negf %59 : vector<16x32xf32>
    %61 = math.exp %60 : vector<16x32xf32>
    %cst_40 = arith.constant 1.000000e+00 : f32
    %62 = vector.broadcast %cst_40 : f32 to vector<16x32xf32>
    %63 = arith.addf %62, %61 : vector<16x32xf32>
    %64 = arith.divf %62, %63 : vector<16x32xf32>
    %65 = vector.extract_strided_slice %44 {offsets = [0, 64], sizes = [16, 32], strides = [1, 1]} : vector<16x96xf32> to vector<16x32xf32>
    %66 = vector.extract_strided_slice %38 {offsets = [0, 64], sizes = [16, 32], strides = [1, 1]} : vector<16x96xf32> to vector<16x32xf32>
    %67 = vector.broadcast %28 : vector<1x32xf32> to vector<16x32xf32>
    %68 = arith.addf %66, %67 : vector<16x32xf32>
    %69 = arith.mulf %56, %68 : vector<16x32xf32>
    %70 = arith.addf %65, %69 : vector<16x32xf32>
    %71 = math.tanh %70 : vector<16x32xf32>
    %cst_41 = arith.constant 1.000000e+00 : f32
    %72 = vector.broadcast %cst_41 : f32 to vector<16x32xf32>
    %73 = arith.subf %72, %64 : vector<16x32xf32>
    %74 = arith.mulf %73, %71 : vector<16x32xf32>
    %75 = arith.mulf %64, %31 : vector<16x32xf32>
    %76 = arith.addf %74, %75 : vector<16x32xf32>
    %77 = vector.extract_strided_slice %48 {offsets = [0, 0], sizes = [16, 32], strides = [1, 1]} : vector<16x96xf32> to vector<16x32xf32>
    %78 = vector.extract_strided_slice %40 {offsets = [0, 0], sizes = [16, 32], strides = [1, 1]} : vector<16x96xf32> to vector<16x32xf32>
    %79 = arith.addf %77, %78 : vector<16x32xf32>
    %80 = arith.negf %79 : vector<16x32xf32>
    %81 = math.exp %80 : vector<16x32xf32>
    %cst_42 = arith.constant 1.000000e+00 : f32
    %82 = vector.broadcast %cst_42 : f32 to vector<16x32xf32>
    %83 = arith.addf %82, %81 : vector<16x32xf32>
    %84 = arith.divf %82, %83 : vector<16x32xf32>
    %85 = vector.extract_strided_slice %48 {offsets = [0, 32], sizes = [16, 32], strides = [1, 1]} : vector<16x96xf32> to vector<16x32xf32>
    %86 = vector.extract_strided_slice %40 {offsets = [0, 32], sizes = [16, 32], strides = [1, 1]} : vector<16x96xf32> to vector<16x32xf32>
    %87 = arith.addf %85, %86 : vector<16x32xf32>
    %88 = arith.negf %87 : vector<16x32xf32>
    %89 = math.exp %88 : vector<16x32xf32>
    %cst_43 = arith.constant 1.000000e+00 : f32
    %90 = vector.broadcast %cst_43 : f32 to vector<16x32xf32>
    %91 = arith.addf %90, %89 : vector<16x32xf32>
    %92 = arith.divf %90, %91 : vector<16x32xf32>
    %93 = vector.extract_strided_slice %48 {offsets = [0, 64], sizes = [16, 32], strides = [1, 1]} : vector<16x96xf32> to vector<16x32xf32>
    %94 = vector.extract_strided_slice %40 {offsets = [0, 64], sizes = [16, 32], strides = [1, 1]} : vector<16x96xf32> to vector<16x32xf32>
    %95 = vector.broadcast %30 : vector<1x32xf32> to vector<16x32xf32>
    %96 = arith.addf %94, %95 : vector<16x32xf32>
    %97 = arith.mulf %84, %96 : vector<16x32xf32>
    %98 = arith.addf %93, %97 : vector<16x32xf32>
    %99 = math.tanh %98 : vector<16x32xf32>
    %cst_44 = arith.constant 1.000000e+00 : f32
    %100 = vector.broadcast %cst_44 : f32 to vector<16x32xf32>
    %101 = arith.subf %100, %92 : vector<16x32xf32>
    %102 = arith.mulf %101, %99 : vector<16x32xf32>
    %103 = arith.mulf %92, %31 : vector<16x32xf32>
    %104 = arith.addf %102, %103 : vector<16x32xf32>
    %105 = arith.truncf %76 : vector<16x32xf32> to vector<16x32xbf16>
    %106 = arith.index_cast %33 : i32 to index
    %c0_45 = arith.constant 0 : index
    %107 = vector.load %arg5[%106, %c0_45] : memref<128x64xbf16, #tpu.memory_space<vmem>>, vector<16x32xbf16>
    tpu.vector_store %arg5[%106, %c0_45], %105 {strides = array<i32>} : memref<128x64xbf16, #tpu.memory_space<vmem>>, vector<16x32xbf16>,
    %108 = arith.truncf %104 : vector<16x32xf32> to vector<16x32xbf16>
    %109 = arith.index_cast %36 : i32 to index
    %c32 = arith.constant 32 : index
    %110 = vector.load %arg5[%109, %c32] : memref<128x64xbf16, #tpu.memory_space<vmem>>, vector<16x32xbf16>
    tpu.vector_store %arg5[%109, %c32], %108 {strides = array<i32>} : memref<128x64xbf16, #tpu.memory_space<vmem>>, vector<16x32xbf16>,
    %c1_i32 = arith.constant 1 : i32
    %c16_i32_46 = arith.constant 16 : i32
    %111 = arith.muli %c1_i32, %c16_i32_46 : i32
    %112 = tpu.assume_multiple %111, 16 : i32
    %c7_i32_47 = arith.constant 7 : i32
    %113 = arith.subi %c7_i32_47, %c1_i32 : i32
    %c16_i32_48 = arith.constant 16 : i32
    %114 = arith.muli %113, %c16_i32_48 : i32
    %115 = tpu.assume_multiple %114, 16 : i32
    %116 = arith.truncf %76 : vector<16x32xf32> to vector<16x32xbf16>
    %cst_49 = arith.constant dense<0.000000e+00> : vector<16x96xf32>
    %117 = tpu.matmul %116, %24, %cst_49 {dimension_numbers = #tpu.dot_dimension_numbers<[1], [0], [0], [1], [0, 0, 1, 1], [], []>} : vector<16x32xbf16>, vector<32x96xbf16>, vector<16x96xf32> -> vector<16x96xf32>
    %118 = arith.truncf %104 : vector<16x32xf32> to vector<16x32xbf16>
    %cst_50 = arith.constant dense<0.000000e+00> : vector<16x96xf32>
    %119 = tpu.matmul %118, %26, %cst_50 {dimension_numbers = #tpu.dot_dimension_numbers<[1], [0], [0], [1], [0, 0, 1, 1], [], []>} : vector<16x32xbf16>, vector<32x96xbf16>, vector<16x96xf32> -> vector<16x96xf32>
    %c0_51 = arith.constant 0 : index
    %120 = arith.index_cast %112 : i32 to index
    %c0_52 = arith.constant 0 : index
    %121 = vector.load %arg6[%c0_51, %120, %c0_52] : memref<2x128x96xbf16, #tpu.memory_space<vmem>>, vector<1x16x96xbf16>
    %122 = vector.shape_cast %121 : vector<1x16x96xbf16> to vector<16x96xbf16>
    %123 = arith.extf %122 : vector<16x96xbf16> to vector<16x96xf32>
    %c1_53 = arith.constant 1 : index
    %124 = arith.index_cast %115 : i32 to index
    %c0_54 = arith.constant 0 : index
    %125 = vector.load %arg6[%c1_53, %124, %c0_54] : memref<2x128x96xbf16, #tpu.memory_space<vmem>>, vector<1x16x96xbf16>
    %126 = vector.shape_cast %125 : vector<1x16x96xbf16> to vector<16x96xbf16>
    %127 = arith.extf %126 : vector<16x96xbf16> to vector<16x96xf32>
    %128 = vector.extract_strided_slice %123 {offsets = [0, 0], sizes = [16, 32], strides = [1, 1]} : vector<16x96xf32> to vector<16x32xf32>
    %129 = vector.extract_strided_slice %117 {offsets = [0, 0], sizes = [16, 32], strides = [1, 1]} : vector<16x96xf32> to vector<16x32xf32>
    %130 = arith.addf %128, %129 : vector<16x32xf32>
    %131 = arith.negf %130 : vector<16x32xf32>
    %132 = math.exp %131 : vector<16x32xf32>
    %cst_55 = arith.constant 1.000000e+00 : f32
    %133 = vector.broadcast %cst_55 : f32 to vector<16x32xf32>
    %134 = arith.addf %133, %132 : vector<16x32xf32>
    %135 = arith.divf %133, %134 : vector<16x32xf32>
    %136 = vector.extract_strided_slice %123 {offsets = [0, 32], sizes = [16, 32], strides = [1, 1]} : vector<16x96xf32> to vector<16x32xf32>
    %137 = vector.extract_strided_slice %117 {offsets = [0, 32], sizes = [16, 32], strides = [1, 1]} : vector<16x96xf32> to vector<16x32xf32>
    %138 = arith.addf %136, %137 : vector<16x32xf32>
    %139 = arith.negf %138 : vector<16x32xf32>
    %140 = math.exp %139 : vector<16x32xf32>
    %cst_56 = arith.constant 1.000000e+00 : f32
    %141 = vector.broadcast %cst_56 : f32 to vector<16x32xf32>
    %142 = arith.addf %141, %140 : vector<16x32xf32>
    %143 = arith.divf %141, %142 : vector<16x32xf32>
    %144 = vector.extract_strided_slice %123 {offsets = [0, 64], sizes = [16, 32], strides = [1, 1]} : vector<16x96xf32> to vector<16x32xf32>
    %145 = vector.extract_strided_slice %117 {offsets = [0, 64], sizes = [16, 32], strides = [1, 1]} : vector<16x96xf32> to vector<16x32xf32>
    %146 = vector.broadcast %28 : vector<1x32xf32> to vector<16x32xf32>
    %147 = arith.addf %145, %146 : vector<16x32xf32>
    %148 = arith.mulf %135, %147 : vector<16x32xf32>
    %149 = arith.addf %144, %148 : vector<16x32xf32>
    %150 = math.tanh %149 : vector<16x32xf32>
    %cst_57 = arith.constant 1.000000e+00 : f32
    %151 = vector.broadcast %cst_57 : f32 to vector<16x32xf32>
    %152 = arith.subf %151, %143 : vector<16x32xf32>
    %153 = arith.mulf %152, %150 : vector<16x32xf32>
    %154 = arith.mulf %143, %76 : vector<16x32xf32>
    %155 = arith.addf %153, %154 : vector<16x32xf32>
    %156 = vector.extract_strided_slice %127 {offsets = [0, 0], sizes = [16, 32], strides = [1, 1]} : vector<16x96xf32> to vector<16x32xf32>
    %157 = vector.extract_strided_slice %119 {offsets = [0, 0], sizes = [16, 32], strides = [1, 1]} : vector<16x96xf32> to vector<16x32xf32>
    %158 = arith.addf %156, %157 : vector<16x32xf32>
    %159 = arith.negf %158 : vector<16x32xf32>
    %160 = math.exp %159 : vector<16x32xf32>
    %cst_58 = arith.constant 1.000000e+00 : f32
    %161 = vector.broadcast %cst_58 : f32 to vector<16x32xf32>
    %162 = arith.addf %161, %160 : vector<16x32xf32>
    %163 = arith.divf %161, %162 : vector<16x32xf32>
    %164 = vector.extract_strided_slice %127 {offsets = [0, 32], sizes = [16, 32], strides = [1, 1]} : vector<16x96xf32> to vector<16x32xf32>
    %165 = vector.extract_strided_slice %119 {offsets = [0, 32], sizes = [16, 32], strides = [1, 1]} : vector<16x96xf32> to vector<16x32xf32>
    %166 = arith.addf %164, %165 : vector<16x32xf32>
    %167 = arith.negf %166 : vector<16x32xf32>
    %168 = math.exp %167 : vector<16x32xf32>
    %cst_59 = arith.constant 1.000000e+00 : f32
    %169 = vector.broadcast %cst_59 : f32 to vector<16x32xf32>
    %170 = arith.addf %169, %168 : vector<16x32xf32>
    %171 = arith.divf %169, %170 : vector<16x32xf32>
    %172 = vector.extract_strided_slice %127 {offsets = [0, 64], sizes = [16, 32], strides = [1, 1]} : vector<16x96xf32> to vector<16x32xf32>
    %173 = vector.extract_strided_slice %119 {offsets = [0, 64], sizes = [16, 32], strides = [1, 1]} : vector<16x96xf32> to vector<16x32xf32>
    %174 = vector.broadcast %30 : vector<1x32xf32> to vector<16x32xf32>
    %175 = arith.addf %173, %174 : vector<16x32xf32>
    %176 = arith.mulf %163, %175 : vector<16x32xf32>
    %177 = arith.addf %172, %176 : vector<16x32xf32>
    %178 = math.tanh %177 : vector<16x32xf32>
    %cst_60 = arith.constant 1.000000e+00 : f32
    %179 = vector.broadcast %cst_60 : f32 to vector<16x32xf32>
    %180 = arith.subf %179, %171 : vector<16x32xf32>
    %181 = arith.mulf %180, %178 : vector<16x32xf32>
    %182 = arith.mulf %171, %104 : vector<16x32xf32>
    %183 = arith.addf %181, %182 : vector<16x32xf32>
    %184 = arith.truncf %155 : vector<16x32xf32> to vector<16x32xbf16>
    %185 = arith.index_cast %112 : i32 to index
    %c0_61 = arith.constant 0 : index
    %186 = vector.load %arg5[%185, %c0_61] : memref<128x64xbf16, #tpu.memory_space<vmem>>, vector<16x32xbf16>
    tpu.vector_store %arg5[%185, %c0_61], %184 {strides = array<i32>} : memref<128x64xbf16, #tpu.memory_space<vmem>>, vector<16x32xbf16>,
    %187 = arith.truncf %183 : vector<16x32xf32> to vector<16x32xbf16>
    %188 = arith.index_cast %115 : i32 to index
    %c32_62 = arith.constant 32 : index
    %189 = vector.load %arg5[%188, %c32_62] : memref<128x64xbf16, #tpu.memory_space<vmem>>, vector<16x32xbf16>
    tpu.vector_store %arg5[%188, %c32_62], %187 {strides = array<i32>} : memref<128x64xbf16, #tpu.memory_space<vmem>>, vector<16x32xbf16>,
    %c2_i32 = arith.constant 2 : i32
    %c16_i32_63 = arith.constant 16 : i32
    %190 = arith.muli %c2_i32, %c16_i32_63 : i32
    %191 = tpu.assume_multiple %190, 16 : i32
    %c7_i32_64 = arith.constant 7 : i32
    %192 = arith.subi %c7_i32_64, %c2_i32 : i32
    %c16_i32_65 = arith.constant 16 : i32
    %193 = arith.muli %192, %c16_i32_65 : i32
    %194 = tpu.assume_multiple %193, 16 : i32
    %195 = arith.truncf %155 : vector<16x32xf32> to vector<16x32xbf16>
    %cst_66 = arith.constant dense<0.000000e+00> : vector<16x96xf32>
    %196 = tpu.matmul %195, %24, %cst_66 {dimension_numbers = #tpu.dot_dimension_numbers<[1], [0], [0], [1], [0, 0, 1, 1], [], []>} : vector<16x32xbf16>, vector<32x96xbf16>, vector<16x96xf32> -> vector<16x96xf32>
    %197 = arith.truncf %183 : vector<16x32xf32> to vector<16x32xbf16>
    %cst_67 = arith.constant dense<0.000000e+00> : vector<16x96xf32>
    %198 = tpu.matmul %197, %26, %cst_67 {dimension_numbers = #tpu.dot_dimension_numbers<[1], [0], [0], [1], [0, 0, 1, 1], [], []>} : vector<16x32xbf16>, vector<32x96xbf16>, vector<16x96xf32> -> vector<16x96xf32>
    %c0_68 = arith.constant 0 : index
    %199 = arith.index_cast %191 : i32 to index
    %c0_69 = arith.constant 0 : index
    %200 = vector.load %arg6[%c0_68, %199, %c0_69] : memref<2x128x96xbf16, #tpu.memory_space<vmem>>, vector<1x16x96xbf16>
    %201 = vector.shape_cast %200 : vector<1x16x96xbf16> to vector<16x96xbf16>
    %202 = arith.extf %201 : vector<16x96xbf16> to vector<16x96xf32>
    %c1_70 = arith.constant 1 : index
    %203 = arith.index_cast %194 : i32 to index
    %c0_71 = arith.constant 0 : index
    %204 = vector.load %arg6[%c1_70, %203, %c0_71] : memref<2x128x96xbf16, #tpu.memory_space<vmem>>, vector<1x16x96xbf16>
    %205 = vector.shape_cast %204 : vector<1x16x96xbf16> to vector<16x96xbf16>
    %206 = arith.extf %205 : vector<16x96xbf16> to vector<16x96xf32>
    %207 = vector.extract_strided_slice %202 {offsets = [0, 0], sizes = [16, 32], strides = [1, 1]} : vector<16x96xf32> to vector<16x32xf32>
    %208 = vector.extract_strided_slice %196 {offsets = [0, 0], sizes = [16, 32], strides = [1, 1]} : vector<16x96xf32> to vector<16x32xf32>
    %209 = arith.addf %207, %208 : vector<16x32xf32>
    %210 = arith.negf %209 : vector<16x32xf32>
    %211 = math.exp %210 : vector<16x32xf32>
    %cst_72 = arith.constant 1.000000e+00 : f32
    %212 = vector.broadcast %cst_72 : f32 to vector<16x32xf32>
    %213 = arith.addf %212, %211 : vector<16x32xf32>
    %214 = arith.divf %212, %213 : vector<16x32xf32>
    %215 = vector.extract_strided_slice %202 {offsets = [0, 32], sizes = [16, 32], strides = [1, 1]} : vector<16x96xf32> to vector<16x32xf32>
    %216 = vector.extract_strided_slice %196 {offsets = [0, 32], sizes = [16, 32], strides = [1, 1]} : vector<16x96xf32> to vector<16x32xf32>
    %217 = arith.addf %215, %216 : vector<16x32xf32>
    %218 = arith.negf %217 : vector<16x32xf32>
    %219 = math.exp %218 : vector<16x32xf32>
    %cst_73 = arith.constant 1.000000e+00 : f32
    %220 = vector.broadcast %cst_73 : f32 to vector<16x32xf32>
    %221 = arith.addf %220, %219 : vector<16x32xf32>
    %222 = arith.divf %220, %221 : vector<16x32xf32>
    %223 = vector.extract_strided_slice %202 {offsets = [0, 64], sizes = [16, 32], strides = [1, 1]} : vector<16x96xf32> to vector<16x32xf32>
    %224 = vector.extract_strided_slice %196 {offsets = [0, 64], sizes = [16, 32], strides = [1, 1]} : vector<16x96xf32> to vector<16x32xf32>
    %225 = vector.broadcast %28 : vector<1x32xf32> to vector<16x32xf32>
    %226 = arith.addf %224, %225 : vector<16x32xf32>
    %227 = arith.mulf %214, %226 : vector<16x32xf32>
    %228 = arith.addf %223, %227 : vector<16x32xf32>
    %229 = math.tanh %228 : vector<16x32xf32>
    %cst_74 = arith.constant 1.000000e+00 : f32
    %230 = vector.broadcast %cst_74 : f32 to vector<16x32xf32>
    %231 = arith.subf %230, %222 : vector<16x32xf32>
    %232 = arith.mulf %231, %229 : vector<16x32xf32>
    %233 = arith.mulf %222, %155 : vector<16x32xf32>
    %234 = arith.addf %232, %233 : vector<16x32xf32>
    %235 = vector.extract_strided_slice %206 {offsets = [0, 0], sizes = [16, 32], strides = [1, 1]} : vector<16x96xf32> to vector<16x32xf32>
    %236 = vector.extract_strided_slice %198 {offsets = [0, 0], sizes = [16, 32], strides = [1, 1]} : vector<16x96xf32> to vector<16x32xf32>
    %237 = arith.addf %235, %236 : vector<16x32xf32>
    %238 = arith.negf %237 : vector<16x32xf32>
    %239 = math.exp %238 : vector<16x32xf32>
    %cst_75 = arith.constant 1.000000e+00 : f32
    %240 = vector.broadcast %cst_75 : f32 to vector<16x32xf32>
    %241 = arith.addf %240, %239 : vector<16x32xf32>
    %242 = arith.divf %240, %241 : vector<16x32xf32>
    %243 = vector.extract_strided_slice %206 {offsets = [0, 32], sizes = [16, 32], strides = [1, 1]} : vector<16x96xf32> to vector<16x32xf32>
    %244 = vector.extract_strided_slice %198 {offsets = [0, 32], sizes = [16, 32], strides = [1, 1]} : vector<16x96xf32> to vector<16x32xf32>
    %245 = arith.addf %243, %244 : vector<16x32xf32>
    %246 = arith.negf %245 : vector<16x32xf32>
    %247 = math.exp %246 : vector<16x32xf32>
    %cst_76 = arith.constant 1.000000e+00 : f32
    %248 = vector.broadcast %cst_76 : f32 to vector<16x32xf32>
    %249 = arith.addf %248, %247 : vector<16x32xf32>
    %250 = arith.divf %248, %249 : vector<16x32xf32>
    %251 = vector.extract_strided_slice %206 {offsets = [0, 64], sizes = [16, 32], strides = [1, 1]} : vector<16x96xf32> to vector<16x32xf32>
    %252 = vector.extract_strided_slice %198 {offsets = [0, 64], sizes = [16, 32], strides = [1, 1]} : vector<16x96xf32> to vector<16x32xf32>
    %253 = vector.broadcast %30 : vector<1x32xf32> to vector<16x32xf32>
    %254 = arith.addf %252, %253 : vector<16x32xf32>
    %255 = arith.mulf %242, %254 : vector<16x32xf32>
    %256 = arith.addf %251, %255 : vector<16x32xf32>
    %257 = math.tanh %256 : vector<16x32xf32>
    %cst_77 = arith.constant 1.000000e+00 : f32
    %258 = vector.broadcast %cst_77 : f32 to vector<16x32xf32>
    %259 = arith.subf %258, %250 : vector<16x32xf32>
    %260 = arith.mulf %259, %257 : vector<16x32xf32>
    %261 = arith.mulf %250, %183 : vector<16x32xf32>
    %262 = arith.addf %260, %261 : vector<16x32xf32>
    %263 = arith.truncf %234 : vector<16x32xf32> to vector<16x32xbf16>
    %264 = arith.index_cast %191 : i32 to index
    %c0_78 = arith.constant 0 : index
    %265 = vector.load %arg5[%264, %c0_78] : memref<128x64xbf16, #tpu.memory_space<vmem>>, vector<16x32xbf16>
    tpu.vector_store %arg5[%264, %c0_78], %263 {strides = array<i32>} : memref<128x64xbf16, #tpu.memory_space<vmem>>, vector<16x32xbf16>,
    %266 = arith.truncf %262 : vector<16x32xf32> to vector<16x32xbf16>
    %267 = arith.index_cast %194 : i32 to index
    %c32_79 = arith.constant 32 : index
    %268 = vector.load %arg5[%267, %c32_79] : memref<128x64xbf16, #tpu.memory_space<vmem>>, vector<16x32xbf16>
    tpu.vector_store %arg5[%267, %c32_79], %266 {strides = array<i32>} : memref<128x64xbf16, #tpu.memory_space<vmem>>, vector<16x32xbf16>,
    %c3_i32 = arith.constant 3 : i32
    %c16_i32_80 = arith.constant 16 : i32
    %269 = arith.muli %c3_i32, %c16_i32_80 : i32
    %270 = tpu.assume_multiple %269, 16 : i32
    %c7_i32_81 = arith.constant 7 : i32
    %271 = arith.subi %c7_i32_81, %c3_i32 : i32
    %c16_i32_82 = arith.constant 16 : i32
    %272 = arith.muli %271, %c16_i32_82 : i32
    %273 = tpu.assume_multiple %272, 16 : i32
    %274 = arith.truncf %234 : vector<16x32xf32> to vector<16x32xbf16>
    %cst_83 = arith.constant dense<0.000000e+00> : vector<16x96xf32>
    %275 = tpu.matmul %274, %24, %cst_83 {dimension_numbers = #tpu.dot_dimension_numbers<[1], [0], [0], [1], [0, 0, 1, 1], [], []>} : vector<16x32xbf16>, vector<32x96xbf16>, vector<16x96xf32> -> vector<16x96xf32>
    %276 = arith.truncf %262 : vector<16x32xf32> to vector<16x32xbf16>
    %cst_84 = arith.constant dense<0.000000e+00> : vector<16x96xf32>
    %277 = tpu.matmul %276, %26, %cst_84 {dimension_numbers = #tpu.dot_dimension_numbers<[1], [0], [0], [1], [0, 0, 1, 1], [], []>} : vector<16x32xbf16>, vector<32x96xbf16>, vector<16x96xf32> -> vector<16x96xf32>
    %c0_85 = arith.constant 0 : index
    %278 = arith.index_cast %270 : i32 to index
    %c0_86 = arith.constant 0 : index
    %279 = vector.load %arg6[%c0_85, %278, %c0_86] : memref<2x128x96xbf16, #tpu.memory_space<vmem>>, vector<1x16x96xbf16>
    %280 = vector.shape_cast %279 : vector<1x16x96xbf16> to vector<16x96xbf16>
    %281 = arith.extf %280 : vector<16x96xbf16> to vector<16x96xf32>
    %c1_87 = arith.constant 1 : index
    %282 = arith.index_cast %273 : i32 to index
    %c0_88 = arith.constant 0 : index
    %283 = vector.load %arg6[%c1_87, %282, %c0_88] : memref<2x128x96xbf16, #tpu.memory_space<vmem>>, vector<1x16x96xbf16>
    %284 = vector.shape_cast %283 : vector<1x16x96xbf16> to vector<16x96xbf16>
    %285 = arith.extf %284 : vector<16x96xbf16> to vector<16x96xf32>
    %286 = vector.extract_strided_slice %281 {offsets = [0, 0], sizes = [16, 32], strides = [1, 1]} : vector<16x96xf32> to vector<16x32xf32>
    %287 = vector.extract_strided_slice %275 {offsets = [0, 0], sizes = [16, 32], strides = [1, 1]} : vector<16x96xf32> to vector<16x32xf32>
    %288 = arith.addf %286, %287 : vector<16x32xf32>
    %289 = arith.negf %288 : vector<16x32xf32>
    %290 = math.exp %289 : vector<16x32xf32>
    %cst_89 = arith.constant 1.000000e+00 : f32
    %291 = vector.broadcast %cst_89 : f32 to vector<16x32xf32>
    %292 = arith.addf %291, %290 : vector<16x32xf32>
    %293 = arith.divf %291, %292 : vector<16x32xf32>
    %294 = vector.extract_strided_slice %281 {offsets = [0, 32], sizes = [16, 32], strides = [1, 1]} : vector<16x96xf32> to vector<16x32xf32>
    %295 = vector.extract_strided_slice %275 {offsets = [0, 32], sizes = [16, 32], strides = [1, 1]} : vector<16x96xf32> to vector<16x32xf32>
    %296 = arith.addf %294, %295 : vector<16x32xf32>
    %297 = arith.negf %296 : vector<16x32xf32>
    %298 = math.exp %297 : vector<16x32xf32>
    %cst_90 = arith.constant 1.000000e+00 : f32
    %299 = vector.broadcast %cst_90 : f32 to vector<16x32xf32>
    %300 = arith.addf %299, %298 : vector<16x32xf32>
    %301 = arith.divf %299, %300 : vector<16x32xf32>
    %302 = vector.extract_strided_slice %281 {offsets = [0, 64], sizes = [16, 32], strides = [1, 1]} : vector<16x96xf32> to vector<16x32xf32>
    %303 = vector.extract_strided_slice %275 {offsets = [0, 64], sizes = [16, 32], strides = [1, 1]} : vector<16x96xf32> to vector<16x32xf32>
    %304 = vector.broadcast %28 : vector<1x32xf32> to vector<16x32xf32>
    %305 = arith.addf %303, %304 : vector<16x32xf32>
    %306 = arith.mulf %293, %305 : vector<16x32xf32>
    %307 = arith.addf %302, %306 : vector<16x32xf32>
    %308 = math.tanh %307 : vector<16x32xf32>
    %cst_91 = arith.constant 1.000000e+00 : f32
    %309 = vector.broadcast %cst_91 : f32 to vector<16x32xf32>
    %310 = arith.subf %309, %301 : vector<16x32xf32>
    %311 = arith.mulf %310, %308 : vector<16x32xf32>
    %312 = arith.mulf %301, %234 : vector<16x32xf32>
    %313 = arith.addf %311, %312 : vector<16x32xf32>
    %314 = vector.extract_strided_slice %285 {offsets = [0, 0], sizes = [16, 32], strides = [1, 1]} : vector<16x96xf32> to vector<16x32xf32>
    %315 = vector.extract_strided_slice %277 {offsets = [0, 0], sizes = [16, 32], strides = [1, 1]} : vector<16x96xf32> to vector<16x32xf32>
    %316 = arith.addf %314, %315 : vector<16x32xf32>
    %317 = arith.negf %316 : vector<16x32xf32>
    %318 = math.exp %317 : vector<16x32xf32>
    %cst_92 = arith.constant 1.000000e+00 : f32
    %319 = vector.broadcast %cst_92 : f32 to vector<16x32xf32>
    %320 = arith.addf %319, %318 : vector<16x32xf32>
    %321 = arith.divf %319, %320 : vector<16x32xf32>
    %322 = vector.extract_strided_slice %285 {offsets = [0, 32], sizes = [16, 32], strides = [1, 1]} : vector<16x96xf32> to vector<16x32xf32>
    %323 = vector.extract_strided_slice %277 {offsets = [0, 32], sizes = [16, 32], strides = [1, 1]} : vector<16x96xf32> to vector<16x32xf32>
    %324 = arith.addf %322, %323 : vector<16x32xf32>
    %325 = arith.negf %324 : vector<16x32xf32>
    %326 = math.exp %325 : vector<16x32xf32>
    %cst_93 = arith.constant 1.000000e+00 : f32
    %327 = vector.broadcast %cst_93 : f32 to vector<16x32xf32>
    %328 = arith.addf %327, %326 : vector<16x32xf32>
    %329 = arith.divf %327, %328 : vector<16x32xf32>
    %330 = vector.extract_strided_slice %285 {offsets = [0, 64], sizes = [16, 32], strides = [1, 1]} : vector<16x96xf32> to vector<16x32xf32>
    %331 = vector.extract_strided_slice %277 {offsets = [0, 64], sizes = [16, 32], strides = [1, 1]} : vector<16x96xf32> to vector<16x32xf32>
    %332 = vector.broadcast %30 : vector<1x32xf32> to vector<16x32xf32>
    %333 = arith.addf %331, %332 : vector<16x32xf32>
    %334 = arith.mulf %321, %333 : vector<16x32xf32>
    %335 = arith.addf %330, %334 : vector<16x32xf32>
    %336 = math.tanh %335 : vector<16x32xf32>
    %cst_94 = arith.constant 1.000000e+00 : f32
    %337 = vector.broadcast %cst_94 : f32 to vector<16x32xf32>
    %338 = arith.subf %337, %329 : vector<16x32xf32>
    %339 = arith.mulf %338, %336 : vector<16x32xf32>
    %340 = arith.mulf %329, %262 : vector<16x32xf32>
    %341 = arith.addf %339, %340 : vector<16x32xf32>
    %342 = arith.truncf %313 : vector<16x32xf32> to vector<16x32xbf16>
    %343 = arith.index_cast %270 : i32 to index
    %c0_95 = arith.constant 0 : index
    %344 = vector.load %arg5[%343, %c0_95] : memref<128x64xbf16, #tpu.memory_space<vmem>>, vector<16x32xbf16>
    tpu.vector_store %arg5[%343, %c0_95], %342 {strides = array<i32>} : memref<128x64xbf16, #tpu.memory_space<vmem>>, vector<16x32xbf16>,
    %345 = arith.truncf %341 : vector<16x32xf32> to vector<16x32xbf16>
    %346 = arith.index_cast %273 : i32 to index
    %c32_96 = arith.constant 32 : index
    %347 = vector.load %arg5[%346, %c32_96] : memref<128x64xbf16, #tpu.memory_space<vmem>>, vector<16x32xbf16>
    tpu.vector_store %arg5[%346, %c32_96], %345 {strides = array<i32>} : memref<128x64xbf16, #tpu.memory_space<vmem>>, vector<16x32xbf16>,
    %c4_i32 = arith.constant 4 : i32
    %c16_i32_97 = arith.constant 16 : i32
    %348 = arith.muli %c4_i32, %c16_i32_97 : i32
    %349 = tpu.assume_multiple %348, 16 : i32
    %c7_i32_98 = arith.constant 7 : i32
    %350 = arith.subi %c7_i32_98, %c4_i32 : i32
    %c16_i32_99 = arith.constant 16 : i32
    %351 = arith.muli %350, %c16_i32_99 : i32
    %352 = tpu.assume_multiple %351, 16 : i32
    %353 = arith.truncf %313 : vector<16x32xf32> to vector<16x32xbf16>
    %cst_100 = arith.constant dense<0.000000e+00> : vector<16x96xf32>
    %354 = tpu.matmul %353, %24, %cst_100 {dimension_numbers = #tpu.dot_dimension_numbers<[1], [0], [0], [1], [0, 0, 1, 1], [], []>} : vector<16x32xbf16>, vector<32x96xbf16>, vector<16x96xf32> -> vector<16x96xf32>
    %355 = arith.truncf %341 : vector<16x32xf32> to vector<16x32xbf16>
    %cst_101 = arith.constant dense<0.000000e+00> : vector<16x96xf32>
    %356 = tpu.matmul %355, %26, %cst_101 {dimension_numbers = #tpu.dot_dimension_numbers<[1], [0], [0], [1], [0, 0, 1, 1], [], []>} : vector<16x32xbf16>, vector<32x96xbf16>, vector<16x96xf32> -> vector<16x96xf32>
    %c0_102 = arith.constant 0 : index
    %357 = arith.index_cast %349 : i32 to index
    %c0_103 = arith.constant 0 : index
    %358 = vector.load %arg6[%c0_102, %357, %c0_103] : memref<2x128x96xbf16, #tpu.memory_space<vmem>>, vector<1x16x96xbf16>
    %359 = vector.shape_cast %358 : vector<1x16x96xbf16> to vector<16x96xbf16>
    %360 = arith.extf %359 : vector<16x96xbf16> to vector<16x96xf32>
    %c1_104 = arith.constant 1 : index
    %361 = arith.index_cast %352 : i32 to index
    %c0_105 = arith.constant 0 : index
    %362 = vector.load %arg6[%c1_104, %361, %c0_105] : memref<2x128x96xbf16, #tpu.memory_space<vmem>>, vector<1x16x96xbf16>
    %363 = vector.shape_cast %362 : vector<1x16x96xbf16> to vector<16x96xbf16>
    %364 = arith.extf %363 : vector<16x96xbf16> to vector<16x96xf32>
    %365 = vector.extract_strided_slice %360 {offsets = [0, 0], sizes = [16, 32], strides = [1, 1]} : vector<16x96xf32> to vector<16x32xf32>
    %366 = vector.extract_strided_slice %354 {offsets = [0, 0], sizes = [16, 32], strides = [1, 1]} : vector<16x96xf32> to vector<16x32xf32>
    %367 = arith.addf %365, %366 : vector<16x32xf32>
    %368 = arith.negf %367 : vector<16x32xf32>
    %369 = math.exp %368 : vector<16x32xf32>
    %cst_106 = arith.constant 1.000000e+00 : f32
    %370 = vector.broadcast %cst_106 : f32 to vector<16x32xf32>
    %371 = arith.addf %370, %369 : vector<16x32xf32>
    %372 = arith.divf %370, %371 : vector<16x32xf32>
    %373 = vector.extract_strided_slice %360 {offsets = [0, 32], sizes = [16, 32], strides = [1, 1]} : vector<16x96xf32> to vector<16x32xf32>
    %374 = vector.extract_strided_slice %354 {offsets = [0, 32], sizes = [16, 32], strides = [1, 1]} : vector<16x96xf32> to vector<16x32xf32>
    %375 = arith.addf %373, %374 : vector<16x32xf32>
    %376 = arith.negf %375 : vector<16x32xf32>
    %377 = math.exp %376 : vector<16x32xf32>
    %cst_107 = arith.constant 1.000000e+00 : f32
    %378 = vector.broadcast %cst_107 : f32 to vector<16x32xf32>
    %379 = arith.addf %378, %377 : vector<16x32xf32>
    %380 = arith.divf %378, %379 : vector<16x32xf32>
    %381 = vector.extract_strided_slice %360 {offsets = [0, 64], sizes = [16, 32], strides = [1, 1]} : vector<16x96xf32> to vector<16x32xf32>
    %382 = vector.extract_strided_slice %354 {offsets = [0, 64], sizes = [16, 32], strides = [1, 1]} : vector<16x96xf32> to vector<16x32xf32>
    %383 = vector.broadcast %28 : vector<1x32xf32> to vector<16x32xf32>
    %384 = arith.addf %382, %383 : vector<16x32xf32>
    %385 = arith.mulf %372, %384 : vector<16x32xf32>
    %386 = arith.addf %381, %385 : vector<16x32xf32>
    %387 = math.tanh %386 : vector<16x32xf32>
    %cst_108 = arith.constant 1.000000e+00 : f32
    %388 = vector.broadcast %cst_108 : f32 to vector<16x32xf32>
    %389 = arith.subf %388, %380 : vector<16x32xf32>
    %390 = arith.mulf %389, %387 : vector<16x32xf32>
    %391 = arith.mulf %380, %313 : vector<16x32xf32>
    %392 = arith.addf %390, %391 : vector<16x32xf32>
    %393 = vector.extract_strided_slice %364 {offsets = [0, 0], sizes = [16, 32], strides = [1, 1]} : vector<16x96xf32> to vector<16x32xf32>
    %394 = vector.extract_strided_slice %356 {offsets = [0, 0], sizes = [16, 32], strides = [1, 1]} : vector<16x96xf32> to vector<16x32xf32>
    %395 = arith.addf %393, %394 : vector<16x32xf32>
    %396 = arith.negf %395 : vector<16x32xf32>
    %397 = math.exp %396 : vector<16x32xf32>
    %cst_109 = arith.constant 1.000000e+00 : f32
    %398 = vector.broadcast %cst_109 : f32 to vector<16x32xf32>
    %399 = arith.addf %398, %397 : vector<16x32xf32>
    %400 = arith.divf %398, %399 : vector<16x32xf32>
    %401 = vector.extract_strided_slice %364 {offsets = [0, 32], sizes = [16, 32], strides = [1, 1]} : vector<16x96xf32> to vector<16x32xf32>
    %402 = vector.extract_strided_slice %356 {offsets = [0, 32], sizes = [16, 32], strides = [1, 1]} : vector<16x96xf32> to vector<16x32xf32>
    %403 = arith.addf %401, %402 : vector<16x32xf32>
    %404 = arith.negf %403 : vector<16x32xf32>
    %405 = math.exp %404 : vector<16x32xf32>
    %cst_110 = arith.constant 1.000000e+00 : f32
    %406 = vector.broadcast %cst_110 : f32 to vector<16x32xf32>
    %407 = arith.addf %406, %405 : vector<16x32xf32>
    %408 = arith.divf %406, %407 : vector<16x32xf32>
    %409 = vector.extract_strided_slice %364 {offsets = [0, 64], sizes = [16, 32], strides = [1, 1]} : vector<16x96xf32> to vector<16x32xf32>
    %410 = vector.extract_strided_slice %356 {offsets = [0, 64], sizes = [16, 32], strides = [1, 1]} : vector<16x96xf32> to vector<16x32xf32>
    %411 = vector.broadcast %30 : vector<1x32xf32> to vector<16x32xf32>
    %412 = arith.addf %410, %411 : vector<16x32xf32>
    %413 = arith.mulf %400, %412 : vector<16x32xf32>
    %414 = arith.addf %409, %413 : vector<16x32xf32>
    %415 = math.tanh %414 : vector<16x32xf32>
    %cst_111 = arith.constant 1.000000e+00 : f32
    %416 = vector.broadcast %cst_111 : f32 to vector<16x32xf32>
    %417 = arith.subf %416, %408 : vector<16x32xf32>
    %418 = arith.mulf %417, %415 : vector<16x32xf32>
    %419 = arith.mulf %408, %341 : vector<16x32xf32>
    %420 = arith.addf %418, %419 : vector<16x32xf32>
    %421 = arith.truncf %392 : vector<16x32xf32> to vector<16x32xbf16>
    %422 = arith.index_cast %349 : i32 to index
    %c0_112 = arith.constant 0 : index
    %423 = vector.load %arg5[%422, %c0_112] : memref<128x64xbf16, #tpu.memory_space<vmem>>, vector<16x32xbf16>
    tpu.vector_store %arg5[%422, %c0_112], %421 {strides = array<i32>} : memref<128x64xbf16, #tpu.memory_space<vmem>>, vector<16x32xbf16>,
    %424 = arith.truncf %420 : vector<16x32xf32> to vector<16x32xbf16>
    %425 = arith.index_cast %352 : i32 to index
    %c32_113 = arith.constant 32 : index
    %426 = vector.load %arg5[%425, %c32_113] : memref<128x64xbf16, #tpu.memory_space<vmem>>, vector<16x32xbf16>
    tpu.vector_store %arg5[%425, %c32_113], %424 {strides = array<i32>} : memref<128x64xbf16, #tpu.memory_space<vmem>>, vector<16x32xbf16>,
    %c5_i32 = arith.constant 5 : i32
    %c16_i32_114 = arith.constant 16 : i32
    %427 = arith.muli %c5_i32, %c16_i32_114 : i32
    %428 = tpu.assume_multiple %427, 16 : i32
    %c7_i32_115 = arith.constant 7 : i32
    %429 = arith.subi %c7_i32_115, %c5_i32 : i32
    %c16_i32_116 = arith.constant 16 : i32
    %430 = arith.muli %429, %c16_i32_116 : i32
    %431 = tpu.assume_multiple %430, 16 : i32
    %432 = arith.truncf %392 : vector<16x32xf32> to vector<16x32xbf16>
    %cst_117 = arith.constant dense<0.000000e+00> : vector<16x96xf32>
    %433 = tpu.matmul %432, %24, %cst_117 {dimension_numbers = #tpu.dot_dimension_numbers<[1], [0], [0], [1], [0, 0, 1, 1], [], []>} : vector<16x32xbf16>, vector<32x96xbf16>, vector<16x96xf32> -> vector<16x96xf32>
    %434 = arith.truncf %420 : vector<16x32xf32> to vector<16x32xbf16>
    %cst_118 = arith.constant dense<0.000000e+00> : vector<16x96xf32>
    %435 = tpu.matmul %434, %26, %cst_118 {dimension_numbers = #tpu.dot_dimension_numbers<[1], [0], [0], [1], [0, 0, 1, 1], [], []>} : vector<16x32xbf16>, vector<32x96xbf16>, vector<16x96xf32> -> vector<16x96xf32>
    %c0_119 = arith.constant 0 : index
    %436 = arith.index_cast %428 : i32 to index
    %c0_120 = arith.constant 0 : index
    %437 = vector.load %arg6[%c0_119, %436, %c0_120] : memref<2x128x96xbf16, #tpu.memory_space<vmem>>, vector<1x16x96xbf16>
    %438 = vector.shape_cast %437 : vector<1x16x96xbf16> to vector<16x96xbf16>
    %439 = arith.extf %438 : vector<16x96xbf16> to vector<16x96xf32>
    %c1_121 = arith.constant 1 : index
    %440 = arith.index_cast %431 : i32 to index
    %c0_122 = arith.constant 0 : index
    %441 = vector.load %arg6[%c1_121, %440, %c0_122] : memref<2x128x96xbf16, #tpu.memory_space<vmem>>, vector<1x16x96xbf16>
    %442 = vector.shape_cast %441 : vector<1x16x96xbf16> to vector<16x96xbf16>
    %443 = arith.extf %442 : vector<16x96xbf16> to vector<16x96xf32>
    %444 = vector.extract_strided_slice %439 {offsets = [0, 0], sizes = [16, 32], strides = [1, 1]} : vector<16x96xf32> to vector<16x32xf32>
    %445 = vector.extract_strided_slice %433 {offsets = [0, 0], sizes = [16, 32], strides = [1, 1]} : vector<16x96xf32> to vector<16x32xf32>
    %446 = arith.addf %444, %445 : vector<16x32xf32>
    %447 = arith.negf %446 : vector<16x32xf32>
    %448 = math.exp %447 : vector<16x32xf32>
    %cst_123 = arith.constant 1.000000e+00 : f32
    %449 = vector.broadcast %cst_123 : f32 to vector<16x32xf32>
    %450 = arith.addf %449, %448 : vector<16x32xf32>
    %451 = arith.divf %449, %450 : vector<16x32xf32>
    %452 = vector.extract_strided_slice %439 {offsets = [0, 32], sizes = [16, 32], strides = [1, 1]} : vector<16x96xf32> to vector<16x32xf32>
    %453 = vector.extract_strided_slice %433 {offsets = [0, 32], sizes = [16, 32], strides = [1, 1]} : vector<16x96xf32> to vector<16x32xf32>
    %454 = arith.addf %452, %453 : vector<16x32xf32>
    %455 = arith.negf %454 : vector<16x32xf32>
    %456 = math.exp %455 : vector<16x32xf32>
    %cst_124 = arith.constant 1.000000e+00 : f32
    %457 = vector.broadcast %cst_124 : f32 to vector<16x32xf32>
    %458 = arith.addf %457, %456 : vector<16x32xf32>
    %459 = arith.divf %457, %458 : vector<16x32xf32>
    %460 = vector.extract_strided_slice %439 {offsets = [0, 64], sizes = [16, 32], strides = [1, 1]} : vector<16x96xf32> to vector<16x32xf32>
    %461 = vector.extract_strided_slice %433 {offsets = [0, 64], sizes = [16, 32], strides = [1, 1]} : vector<16x96xf32> to vector<16x32xf32>
    %462 = vector.broadcast %28 : vector<1x32xf32> to vector<16x32xf32>
    %463 = arith.addf %461, %462 : vector<16x32xf32>
    %464 = arith.mulf %451, %463 : vector<16x32xf32>
    %465 = arith.addf %460, %464 : vector<16x32xf32>
    %466 = math.tanh %465 : vector<16x32xf32>
    %cst_125 = arith.constant 1.000000e+00 : f32
    %467 = vector.broadcast %cst_125 : f32 to vector<16x32xf32>
    %468 = arith.subf %467, %459 : vector<16x32xf32>
    %469 = arith.mulf %468, %466 : vector<16x32xf32>
    %470 = arith.mulf %459, %392 : vector<16x32xf32>
    %471 = arith.addf %469, %470 : vector<16x32xf32>
    %472 = vector.extract_strided_slice %443 {offsets = [0, 0], sizes = [16, 32], strides = [1, 1]} : vector<16x96xf32> to vector<16x32xf32>
    %473 = vector.extract_strided_slice %435 {offsets = [0, 0], sizes = [16, 32], strides = [1, 1]} : vector<16x96xf32> to vector<16x32xf32>
    %474 = arith.addf %472, %473 : vector<16x32xf32>
    %475 = arith.negf %474 : vector<16x32xf32>
    %476 = math.exp %475 : vector<16x32xf32>
    %cst_126 = arith.constant 1.000000e+00 : f32
    %477 = vector.broadcast %cst_126 : f32 to vector<16x32xf32>
    %478 = arith.addf %477, %476 : vector<16x32xf32>
    %479 = arith.divf %477, %478 : vector<16x32xf32>
    %480 = vector.extract_strided_slice %443 {offsets = [0, 32], sizes = [16, 32], strides = [1, 1]} : vector<16x96xf32> to vector<16x32xf32>
    %481 = vector.extract_strided_slice %435 {offsets = [0, 32], sizes = [16, 32], strides = [1, 1]} : vector<16x96xf32> to vector<16x32xf32>
    %482 = arith.addf %480, %481 : vector<16x32xf32>
    %483 = arith.negf %482 : vector<16x32xf32>
    %484 = math.exp %483 : vector<16x32xf32>
    %cst_127 = arith.constant 1.000000e+00 : f32
    %485 = vector.broadcast %cst_127 : f32 to vector<16x32xf32>
    %486 = arith.addf %485, %484 : vector<16x32xf32>
    %487 = arith.divf %485, %486 : vector<16x32xf32>
    %488 = vector.extract_strided_slice %443 {offsets = [0, 64], sizes = [16, 32], strides = [1, 1]} : vector<16x96xf32> to vector<16x32xf32>
    %489 = vector.extract_strided_slice %435 {offsets = [0, 64], sizes = [16, 32], strides = [1, 1]} : vector<16x96xf32> to vector<16x32xf32>
    %490 = vector.broadcast %30 : vector<1x32xf32> to vector<16x32xf32>
    %491 = arith.addf %489, %490 : vector<16x32xf32>
    %492 = arith.mulf %479, %491 : vector<16x32xf32>
    %493 = arith.addf %488, %492 : vector<16x32xf32>
    %494 = math.tanh %493 : vector<16x32xf32>
    %cst_128 = arith.constant 1.000000e+00 : f32
    %495 = vector.broadcast %cst_128 : f32 to vector<16x32xf32>
    %496 = arith.subf %495, %487 : vector<16x32xf32>
    %497 = arith.mulf %496, %494 : vector<16x32xf32>
    %498 = arith.mulf %487, %420 : vector<16x32xf32>
    %499 = arith.addf %497, %498 : vector<16x32xf32>
    %500 = arith.truncf %471 : vector<16x32xf32> to vector<16x32xbf16>
    %501 = arith.index_cast %428 : i32 to index
    %c0_129 = arith.constant 0 : index
    %502 = vector.load %arg5[%501, %c0_129] : memref<128x64xbf16, #tpu.memory_space<vmem>>, vector<16x32xbf16>
    tpu.vector_store %arg5[%501, %c0_129], %500 {strides = array<i32>} : memref<128x64xbf16, #tpu.memory_space<vmem>>, vector<16x32xbf16>,
    %503 = arith.truncf %499 : vector<16x32xf32> to vector<16x32xbf16>
    %504 = arith.index_cast %431 : i32 to index
    %c32_130 = arith.constant 32 : index
    %505 = vector.load %arg5[%504, %c32_130] : memref<128x64xbf16, #tpu.memory_space<vmem>>, vector<16x32xbf16>
    tpu.vector_store %arg5[%504, %c32_130], %503 {strides = array<i32>} : memref<128x64xbf16, #tpu.memory_space<vmem>>, vector<16x32xbf16>,
    %c6_i32 = arith.constant 6 : i32
    %c16_i32_131 = arith.constant 16 : i32
    %506 = arith.muli %c6_i32, %c16_i32_131 : i32
    %507 = tpu.assume_multiple %506, 16 : i32
    %c7_i32_132 = arith.constant 7 : i32
    %508 = arith.subi %c7_i32_132, %c6_i32 : i32
    %c16_i32_133 = arith.constant 16 : i32
    %509 = arith.muli %508, %c16_i32_133 : i32
    %510 = tpu.assume_multiple %509, 16 : i32
    %511 = arith.truncf %471 : vector<16x32xf32> to vector<16x32xbf16>
    %cst_134 = arith.constant dense<0.000000e+00> : vector<16x96xf32>
    %512 = tpu.matmul %511, %24, %cst_134 {dimension_numbers = #tpu.dot_dimension_numbers<[1], [0], [0], [1], [0, 0, 1, 1], [], []>} : vector<16x32xbf16>, vector<32x96xbf16>, vector<16x96xf32> -> vector<16x96xf32>
    %513 = arith.truncf %499 : vector<16x32xf32> to vector<16x32xbf16>
    %cst_135 = arith.constant dense<0.000000e+00> : vector<16x96xf32>
    %514 = tpu.matmul %513, %26, %cst_135 {dimension_numbers = #tpu.dot_dimension_numbers<[1], [0], [0], [1], [0, 0, 1, 1], [], []>} : vector<16x32xbf16>, vector<32x96xbf16>, vector<16x96xf32> -> vector<16x96xf32>
    %c0_136 = arith.constant 0 : index
    %515 = arith.index_cast %507 : i32 to index
    %c0_137 = arith.constant 0 : index
    %516 = vector.load %arg6[%c0_136, %515, %c0_137] : memref<2x128x96xbf16, #tpu.memory_space<vmem>>, vector<1x16x96xbf16>
    %517 = vector.shape_cast %516 : vector<1x16x96xbf16> to vector<16x96xbf16>
    %518 = arith.extf %517 : vector<16x96xbf16> to vector<16x96xf32>
    %c1_138 = arith.constant 1 : index
    %519 = arith.index_cast %510 : i32 to index
    %c0_139 = arith.constant 0 : index
    %520 = vector.load %arg6[%c1_138, %519, %c0_139] : memref<2x128x96xbf16, #tpu.memory_space<vmem>>, vector<1x16x96xbf16>
    %521 = vector.shape_cast %520 : vector<1x16x96xbf16> to vector<16x96xbf16>
    %522 = arith.extf %521 : vector<16x96xbf16> to vector<16x96xf32>
    %523 = vector.extract_strided_slice %518 {offsets = [0, 0], sizes = [16, 32], strides = [1, 1]} : vector<16x96xf32> to vector<16x32xf32>
    %524 = vector.extract_strided_slice %512 {offsets = [0, 0], sizes = [16, 32], strides = [1, 1]} : vector<16x96xf32> to vector<16x32xf32>
    %525 = arith.addf %523, %524 : vector<16x32xf32>
    %526 = arith.negf %525 : vector<16x32xf32>
    %527 = math.exp %526 : vector<16x32xf32>
    %cst_140 = arith.constant 1.000000e+00 : f32
    %528 = vector.broadcast %cst_140 : f32 to vector<16x32xf32>
    %529 = arith.addf %528, %527 : vector<16x32xf32>
    %530 = arith.divf %528, %529 : vector<16x32xf32>
    %531 = vector.extract_strided_slice %518 {offsets = [0, 32], sizes = [16, 32], strides = [1, 1]} : vector<16x96xf32> to vector<16x32xf32>
    %532 = vector.extract_strided_slice %512 {offsets = [0, 32], sizes = [16, 32], strides = [1, 1]} : vector<16x96xf32> to vector<16x32xf32>
    %533 = arith.addf %531, %532 : vector<16x32xf32>
    %534 = arith.negf %533 : vector<16x32xf32>
    %535 = math.exp %534 : vector<16x32xf32>
    %cst_141 = arith.constant 1.000000e+00 : f32
    %536 = vector.broadcast %cst_141 : f32 to vector<16x32xf32>
    %537 = arith.addf %536, %535 : vector<16x32xf32>
    %538 = arith.divf %536, %537 : vector<16x32xf32>
    %539 = vector.extract_strided_slice %518 {offsets = [0, 64], sizes = [16, 32], strides = [1, 1]} : vector<16x96xf32> to vector<16x32xf32>
    %540 = vector.extract_strided_slice %512 {offsets = [0, 64], sizes = [16, 32], strides = [1, 1]} : vector<16x96xf32> to vector<16x32xf32>
    %541 = vector.broadcast %28 : vector<1x32xf32> to vector<16x32xf32>
    %542 = arith.addf %540, %541 : vector<16x32xf32>
    %543 = arith.mulf %530, %542 : vector<16x32xf32>
    %544 = arith.addf %539, %543 : vector<16x32xf32>
    %545 = math.tanh %544 : vector<16x32xf32>
    %cst_142 = arith.constant 1.000000e+00 : f32
    %546 = vector.broadcast %cst_142 : f32 to vector<16x32xf32>
    %547 = arith.subf %546, %538 : vector<16x32xf32>
    %548 = arith.mulf %547, %545 : vector<16x32xf32>
    %549 = arith.mulf %538, %471 : vector<16x32xf32>
    %550 = arith.addf %548, %549 : vector<16x32xf32>
    %551 = vector.extract_strided_slice %522 {offsets = [0, 0], sizes = [16, 32], strides = [1, 1]} : vector<16x96xf32> to vector<16x32xf32>
    %552 = vector.extract_strided_slice %514 {offsets = [0, 0], sizes = [16, 32], strides = [1, 1]} : vector<16x96xf32> to vector<16x32xf32>
    %553 = arith.addf %551, %552 : vector<16x32xf32>
    %554 = arith.negf %553 : vector<16x32xf32>
    %555 = math.exp %554 : vector<16x32xf32>
    %cst_143 = arith.constant 1.000000e+00 : f32
    %556 = vector.broadcast %cst_143 : f32 to vector<16x32xf32>
    %557 = arith.addf %556, %555 : vector<16x32xf32>
    %558 = arith.divf %556, %557 : vector<16x32xf32>
    %559 = vector.extract_strided_slice %522 {offsets = [0, 32], sizes = [16, 32], strides = [1, 1]} : vector<16x96xf32> to vector<16x32xf32>
    %560 = vector.extract_strided_slice %514 {offsets = [0, 32], sizes = [16, 32], strides = [1, 1]} : vector<16x96xf32> to vector<16x32xf32>
    %561 = arith.addf %559, %560 : vector<16x32xf32>
    %562 = arith.negf %561 : vector<16x32xf32>
    %563 = math.exp %562 : vector<16x32xf32>
    %cst_144 = arith.constant 1.000000e+00 : f32
    %564 = vector.broadcast %cst_144 : f32 to vector<16x32xf32>
    %565 = arith.addf %564, %563 : vector<16x32xf32>
    %566 = arith.divf %564, %565 : vector<16x32xf32>
    %567 = vector.extract_strided_slice %522 {offsets = [0, 64], sizes = [16, 32], strides = [1, 1]} : vector<16x96xf32> to vector<16x32xf32>
    %568 = vector.extract_strided_slice %514 {offsets = [0, 64], sizes = [16, 32], strides = [1, 1]} : vector<16x96xf32> to vector<16x32xf32>
    %569 = vector.broadcast %30 : vector<1x32xf32> to vector<16x32xf32>
    %570 = arith.addf %568, %569 : vector<16x32xf32>
    %571 = arith.mulf %558, %570 : vector<16x32xf32>
    %572 = arith.addf %567, %571 : vector<16x32xf32>
    %573 = math.tanh %572 : vector<16x32xf32>
    %cst_145 = arith.constant 1.000000e+00 : f32
    %574 = vector.broadcast %cst_145 : f32 to vector<16x32xf32>
    %575 = arith.subf %574, %566 : vector<16x32xf32>
    %576 = arith.mulf %575, %573 : vector<16x32xf32>
    %577 = arith.mulf %566, %499 : vector<16x32xf32>
    %578 = arith.addf %576, %577 : vector<16x32xf32>
    %579 = arith.truncf %550 : vector<16x32xf32> to vector<16x32xbf16>
    %580 = arith.index_cast %507 : i32 to index
    %c0_146 = arith.constant 0 : index
    %581 = vector.load %arg5[%580, %c0_146] : memref<128x64xbf16, #tpu.memory_space<vmem>>, vector<16x32xbf16>
    tpu.vector_store %arg5[%580, %c0_146], %579 {strides = array<i32>} : memref<128x64xbf16, #tpu.memory_space<vmem>>, vector<16x32xbf16>,
    %582 = arith.truncf %578 : vector<16x32xf32> to vector<16x32xbf16>
    %583 = arith.index_cast %510 : i32 to index
    %c32_147 = arith.constant 32 : index
    %584 = vector.load %arg5[%583, %c32_147] : memref<128x64xbf16, #tpu.memory_space<vmem>>, vector<16x32xbf16>
    tpu.vector_store %arg5[%583, %c32_147], %582 {strides = array<i32>} : memref<128x64xbf16, #tpu.memory_space<vmem>>, vector<16x32xbf16>,
    %c7_i32_148 = arith.constant 7 : i32
    %c16_i32_149 = arith.constant 16 : i32
    %585 = arith.muli %c7_i32_148, %c16_i32_149 : i32
    %586 = tpu.assume_multiple %585, 16 : i32
    %c7_i32_150 = arith.constant 7 : i32
    %587 = arith.subi %c7_i32_150, %c7_i32_148 : i32
    %c16_i32_151 = arith.constant 16 : i32
    %588 = arith.muli %587, %c16_i32_151 : i32
    %589 = tpu.assume_multiple %588, 16 : i32
    %590 = arith.truncf %550 : vector<16x32xf32> to vector<16x32xbf16>
    %cst_152 = arith.constant dense<0.000000e+00> : vector<16x96xf32>
    %591 = tpu.matmul %590, %24, %cst_152 {dimension_numbers = #tpu.dot_dimension_numbers<[1], [0], [0], [1], [0, 0, 1, 1], [], []>} : vector<16x32xbf16>, vector<32x96xbf16>, vector<16x96xf32> -> vector<16x96xf32>
    %592 = arith.truncf %578 : vector<16x32xf32> to vector<16x32xbf16>
    %cst_153 = arith.constant dense<0.000000e+00> : vector<16x96xf32>
    %593 = tpu.matmul %592, %26, %cst_153 {dimension_numbers = #tpu.dot_dimension_numbers<[1], [0], [0], [1], [0, 0, 1, 1], [], []>} : vector<16x32xbf16>, vector<32x96xbf16>, vector<16x96xf32> -> vector<16x96xf32>
    %c0_154 = arith.constant 0 : index
    %594 = arith.index_cast %586 : i32 to index
    %c0_155 = arith.constant 0 : index
    %595 = vector.load %arg6[%c0_154, %594, %c0_155] : memref<2x128x96xbf16, #tpu.memory_space<vmem>>, vector<1x16x96xbf16>
    %596 = vector.shape_cast %595 : vector<1x16x96xbf16> to vector<16x96xbf16>
    %597 = arith.extf %596 : vector<16x96xbf16> to vector<16x96xf32>
    %c1_156 = arith.constant 1 : index
    %598 = arith.index_cast %589 : i32 to index
    %c0_157 = arith.constant 0 : index
    %599 = vector.load %arg6[%c1_156, %598, %c0_157] : memref<2x128x96xbf16, #tpu.memory_space<vmem>>, vector<1x16x96xbf16>
    %600 = vector.shape_cast %599 : vector<1x16x96xbf16> to vector<16x96xbf16>
    %601 = arith.extf %600 : vector<16x96xbf16> to vector<16x96xf32>
    %602 = vector.extract_strided_slice %597 {offsets = [0, 0], sizes = [16, 32], strides = [1, 1]} : vector<16x96xf32> to vector<16x32xf32>
    %603 = vector.extract_strided_slice %591 {offsets = [0, 0], sizes = [16, 32], strides = [1, 1]} : vector<16x96xf32> to vector<16x32xf32>
    %604 = arith.addf %602, %603 : vector<16x32xf32>
    %605 = arith.negf %604 : vector<16x32xf32>
    %606 = math.exp %605 : vector<16x32xf32>
    %cst_158 = arith.constant 1.000000e+00 : f32
    %607 = vector.broadcast %cst_158 : f32 to vector<16x32xf32>
    %608 = arith.addf %607, %606 : vector<16x32xf32>
    %609 = arith.divf %607, %608 : vector<16x32xf32>
    %610 = vector.extract_strided_slice %597 {offsets = [0, 32], sizes = [16, 32], strides = [1, 1]} : vector<16x96xf32> to vector<16x32xf32>
    %611 = vector.extract_strided_slice %591 {offsets = [0, 32], sizes = [16, 32], strides = [1, 1]} : vector<16x96xf32> to vector<16x32xf32>
    %612 = arith.addf %610, %611 : vector<16x32xf32>
    %613 = arith.negf %612 : vector<16x32xf32>
    %614 = math.exp %613 : vector<16x32xf32>
    %cst_159 = arith.constant 1.000000e+00 : f32
    %615 = vector.broadcast %cst_159 : f32 to vector<16x32xf32>
    %616 = arith.addf %615, %614 : vector<16x32xf32>
    %617 = arith.divf %615, %616 : vector<16x32xf32>
    %618 = vector.extract_strided_slice %597 {offsets = [0, 64], sizes = [16, 32], strides = [1, 1]} : vector<16x96xf32> to vector<16x32xf32>
    %619 = vector.extract_strided_slice %591 {offsets = [0, 64], sizes = [16, 32], strides = [1, 1]} : vector<16x96xf32> to vector<16x32xf32>
    %620 = vector.broadcast %28 : vector<1x32xf32> to vector<16x32xf32>
    %621 = arith.addf %619, %620 : vector<16x32xf32>
    %622 = arith.mulf %609, %621 : vector<16x32xf32>
    %623 = arith.addf %618, %622 : vector<16x32xf32>
    %624 = math.tanh %623 : vector<16x32xf32>
    %cst_160 = arith.constant 1.000000e+00 : f32
    %625 = vector.broadcast %cst_160 : f32 to vector<16x32xf32>
    %626 = arith.subf %625, %617 : vector<16x32xf32>
    %627 = arith.mulf %626, %624 : vector<16x32xf32>
    %628 = arith.mulf %617, %550 : vector<16x32xf32>
    %629 = arith.addf %627, %628 : vector<16x32xf32>
    %630 = vector.extract_strided_slice %601 {offsets = [0, 0], sizes = [16, 32], strides = [1, 1]} : vector<16x96xf32> to vector<16x32xf32>
    %631 = vector.extract_strided_slice %593 {offsets = [0, 0], sizes = [16, 32], strides = [1, 1]} : vector<16x96xf32> to vector<16x32xf32>
    %632 = arith.addf %630, %631 : vector<16x32xf32>
    %633 = arith.negf %632 : vector<16x32xf32>
    %634 = math.exp %633 : vector<16x32xf32>
    %cst_161 = arith.constant 1.000000e+00 : f32
    %635 = vector.broadcast %cst_161 : f32 to vector<16x32xf32>
    %636 = arith.addf %635, %634 : vector<16x32xf32>
    %637 = arith.divf %635, %636 : vector<16x32xf32>
    %638 = vector.extract_strided_slice %601 {offsets = [0, 32], sizes = [16, 32], strides = [1, 1]} : vector<16x96xf32> to vector<16x32xf32>
    %639 = vector.extract_strided_slice %593 {offsets = [0, 32], sizes = [16, 32], strides = [1, 1]} : vector<16x96xf32> to vector<16x32xf32>
    %640 = arith.addf %638, %639 : vector<16x32xf32>
    %641 = arith.negf %640 : vector<16x32xf32>
    %642 = math.exp %641 : vector<16x32xf32>
    %cst_162 = arith.constant 1.000000e+00 : f32
    %643 = vector.broadcast %cst_162 : f32 to vector<16x32xf32>
    %644 = arith.addf %643, %642 : vector<16x32xf32>
    %645 = arith.divf %643, %644 : vector<16x32xf32>
    %646 = vector.extract_strided_slice %601 {offsets = [0, 64], sizes = [16, 32], strides = [1, 1]} : vector<16x96xf32> to vector<16x32xf32>
    %647 = vector.extract_strided_slice %593 {offsets = [0, 64], sizes = [16, 32], strides = [1, 1]} : vector<16x96xf32> to vector<16x32xf32>
    %648 = vector.broadcast %30 : vector<1x32xf32> to vector<16x32xf32>
    %649 = arith.addf %647, %648 : vector<16x32xf32>
    %650 = arith.mulf %637, %649 : vector<16x32xf32>
    %651 = arith.addf %646, %650 : vector<16x32xf32>
    %652 = math.tanh %651 : vector<16x32xf32>
    %cst_163 = arith.constant 1.000000e+00 : f32
    %653 = vector.broadcast %cst_163 : f32 to vector<16x32xf32>
    %654 = arith.subf %653, %645 : vector<16x32xf32>
    %655 = arith.mulf %654, %652 : vector<16x32xf32>
    %656 = arith.mulf %645, %578 : vector<16x32xf32>
    %657 = arith.addf %655, %656 : vector<16x32xf32>
    %658 = arith.truncf %629 : vector<16x32xf32> to vector<16x32xbf16>
    %659 = arith.index_cast %586 : i32 to index
    %c0_164 = arith.constant 0 : index
    %660 = vector.load %arg5[%659, %c0_164] : memref<128x64xbf16, #tpu.memory_space<vmem>>, vector<16x32xbf16>
    tpu.vector_store %arg5[%659, %c0_164], %658 {strides = array<i32>} : memref<128x64xbf16, #tpu.memory_space<vmem>>, vector<16x32xbf16>,
    %661 = arith.truncf %657 : vector<16x32xf32> to vector<16x32xbf16>
    %662 = arith.index_cast %589 : i32 to index
    %c32_165 = arith.constant 32 : index
    %663 = vector.load %arg5[%662, %c32_165] : memref<128x64xbf16, #tpu.memory_space<vmem>>, vector<16x32xbf16>
    tpu.vector_store %arg5[%662, %c32_165], %661 {strides = array<i32>} : memref<128x64xbf16, #tpu.memory_space<vmem>>, vector<16x32xbf16>,
    %c8_i32 = arith.constant 8 : i32
    return
  }
}

module attributes {stable_mosaic.version = 11 : i64} {
  func.func @_bigru_layer_kernel(%arg0: memref<128x64xbf16, #tpu.memory_space<vmem>>, %arg1: memref<2x64x96xbf16, #tpu.memory_space<vmem>>, %arg2: memref<2x1x96xf32, #tpu.memory_space<vmem>>, %arg3: memref<2x32x96xbf16, #tpu.memory_space<vmem>>, %arg4: memref<2x1x32xf32, #tpu.memory_space<vmem>>, %arg5: memref<32x2xbf16, #tpu.memory_space<vmem>>, %arg6: memref<32x2xbf16, #tpu.memory_space<vmem>>, %arg7: memref<1x2xf32, #tpu.memory_space<vmem>>, %arg8: memref<128x64xbf16, #tpu.memory_space<vmem>>, %arg9: memref<16x2xf32, #tpu.memory_space<vmem>>, %arg10: memref<2x128x96xbf16, #tpu.memory_space<vmem>>) attributes {dimension_semantics = [], scalar_prefetch = 0 : i64, scratch_operands = 1 : i64, tpu.core_type = #tpu.core_type<tc>} {
    %c0 = arith.constant 0 : index
    %c0_0 = arith.constant 0 : index
    %0 = vector.load %arg0[%c0, %c0_0] : memref<128x64xbf16, #tpu.memory_space<vmem>>, vector<128x64xbf16>
    %c0_1 = arith.constant 0 : index
    %c0_2 = arith.constant 0 : index
    %c0_3 = arith.constant 0 : index
    %1 = vector.load %arg1[%c0_1, %c0_2, %c0_3] : memref<2x64x96xbf16, #tpu.memory_space<vmem>>, vector<1x64x96xbf16>
    %2 = vector.shape_cast %1 : vector<1x64x96xbf16> to vector<64x96xbf16>
    %cst = arith.constant dense<0.000000e+00> : vector<128x96xf32>
    %3 = tpu.matmul %0, %2, %cst {dimension_numbers = #tpu.dot_dimension_numbers<[1], [0], [0], [1], [0, 0, 1, 1], [], []>} : vector<128x64xbf16>, vector<64x96xbf16>, vector<128x96xf32> -> vector<128x96xf32>
    %c0_4 = arith.constant 0 : index
    %c0_5 = arith.constant 0 : index
    %c0_6 = arith.constant 0 : index
    %4 = vector.load %arg2[%c0_4, %c0_5, %c0_6] : memref<2x1x96xf32, #tpu.memory_space<vmem>>, vector<1x1x96xf32>
    %5 = vector.shape_cast %4 : vector<1x1x96xf32> to vector<1x96xf32>
    %6 = vector.broadcast %5 : vector<1x96xf32> to vector<128x96xf32>
    %7 = arith.addf %3, %6 : vector<128x96xf32>
    %8 = arith.truncf %7 : vector<128x96xf32> to vector<128x96xbf16>
    %c0_7 = arith.constant 0 : index
    %c0_8 = arith.constant 0 : index
    %c0_9 = arith.constant 0 : index
    %9 = vector.load %arg10[%c0_7, %c0_8, %c0_9] : memref<2x128x96xbf16, #tpu.memory_space<vmem>>, vector<1x128x96xbf16>
    %10 = vector.shape_cast %9 : vector<1x128x96xbf16> to vector<128x96xbf16>
    %11 = vector.shape_cast %8 : vector<128x96xbf16> to vector<1x128x96xbf16>
    tpu.vector_store %arg10[%c0_7, %c0_8, %c0_9], %11 {strides = array<i32>} : memref<2x128x96xbf16, #tpu.memory_space<vmem>>, vector<1x128x96xbf16>,
    %c1 = arith.constant 1 : index
    %c0_10 = arith.constant 0 : index
    %c0_11 = arith.constant 0 : index
    %12 = vector.load %arg1[%c1, %c0_10, %c0_11] : memref<2x64x96xbf16, #tpu.memory_space<vmem>>, vector<1x64x96xbf16>
    %13 = vector.shape_cast %12 : vector<1x64x96xbf16> to vector<64x96xbf16>
    %cst_12 = arith.constant dense<0.000000e+00> : vector<128x96xf32>
    %14 = tpu.matmul %0, %13, %cst_12 {dimension_numbers = #tpu.dot_dimension_numbers<[1], [0], [0], [1], [0, 0, 1, 1], [], []>} : vector<128x64xbf16>, vector<64x96xbf16>, vector<128x96xf32> -> vector<128x96xf32>
    %c1_13 = arith.constant 1 : index
    %c0_14 = arith.constant 0 : index
    %c0_15 = arith.constant 0 : index
    %15 = vector.load %arg2[%c1_13, %c0_14, %c0_15] : memref<2x1x96xf32, #tpu.memory_space<vmem>>, vector<1x1x96xf32>
    %16 = vector.shape_cast %15 : vector<1x1x96xf32> to vector<1x96xf32>
    %17 = vector.broadcast %16 : vector<1x96xf32> to vector<128x96xf32>
    %18 = arith.addf %14, %17 : vector<128x96xf32>
    %19 = arith.truncf %18 : vector<128x96xf32> to vector<128x96xbf16>
    %c1_16 = arith.constant 1 : index
    %c0_17 = arith.constant 0 : index
    %c0_18 = arith.constant 0 : index
    %20 = vector.load %arg10[%c1_16, %c0_17, %c0_18] : memref<2x128x96xbf16, #tpu.memory_space<vmem>>, vector<1x128x96xbf16>
    %21 = vector.shape_cast %20 : vector<1x128x96xbf16> to vector<128x96xbf16>
    %22 = vector.shape_cast %19 : vector<128x96xbf16> to vector<1x128x96xbf16>
    tpu.vector_store %arg10[%c1_16, %c0_17, %c0_18], %22 {strides = array<i32>} : memref<2x128x96xbf16, #tpu.memory_space<vmem>>, vector<1x128x96xbf16>,
    %c0_19 = arith.constant 0 : index
    %c0_20 = arith.constant 0 : index
    %c0_21 = arith.constant 0 : index
    %23 = vector.load %arg3[%c0_19, %c0_20, %c0_21] : memref<2x32x96xbf16, #tpu.memory_space<vmem>>, vector<1x32x96xbf16>
    %24 = vector.shape_cast %23 : vector<1x32x96xbf16> to vector<32x96xbf16>
    %c1_22 = arith.constant 1 : index
    %c0_23 = arith.constant 0 : index
    %c0_24 = arith.constant 0 : index
    %25 = vector.load %arg3[%c1_22, %c0_23, %c0_24] : memref<2x32x96xbf16, #tpu.memory_space<vmem>>, vector<1x32x96xbf16>
    %26 = vector.shape_cast %25 : vector<1x32x96xbf16> to vector<32x96xbf16>
    %c0_25 = arith.constant 0 : index
    %c0_26 = arith.constant 0 : index
    %c0_27 = arith.constant 0 : index
    %27 = vector.load %arg4[%c0_25, %c0_26, %c0_27] : memref<2x1x32xf32, #tpu.memory_space<vmem>>, vector<1x1x32xf32>
    %28 = vector.shape_cast %27 : vector<1x1x32xf32> to vector<1x32xf32>
    %c1_28 = arith.constant 1 : index
    %c0_29 = arith.constant 0 : index
    %c0_30 = arith.constant 0 : index
    %29 = vector.load %arg4[%c1_28, %c0_29, %c0_30] : memref<2x1x32xf32, #tpu.memory_space<vmem>>, vector<1x1x32xf32>
    %30 = vector.shape_cast %29 : vector<1x1x32xf32> to vector<1x32xf32>
    %cst_31 = arith.constant 0.000000e+00 : f32
    %31 = vector.broadcast %cst_31 : f32 to vector<16x32xf32>
    %c0_i32 = arith.constant 0 : i32
    %c16_i32 = arith.constant 16 : i32
    %32 = arith.muli %c0_i32, %c16_i32 : i32
    %33 = tpu.assume_multiple %32, 16 : i32
    %c7_i32 = arith.constant 7 : i32
    %34 = arith.subi %c7_i32, %c0_i32 : i32
    %c16_i32_32 = arith.constant 16 : i32
    %35 = arith.muli %34, %c16_i32_32 : i32
    %36 = tpu.assume_multiple %35, 16 : i32
    %37 = arith.truncf %31 : vector<16x32xf32> to vector<16x32xbf16>
    %cst_33 = arith.constant dense<0.000000e+00> : vector<16x96xf32>
    %38 = tpu.matmul %37, %24, %cst_33 {dimension_numbers = #tpu.dot_dimension_numbers<[1], [0], [0], [1], [0, 0, 1, 1], [], []>} : vector<16x32xbf16>, vector<32x96xbf16>, vector<16x96xf32> -> vector<16x96xf32>
    %39 = arith.truncf %31 : vector<16x32xf32> to vector<16x32xbf16>
    %cst_34 = arith.constant dense<0.000000e+00> : vector<16x96xf32>
    %40 = tpu.matmul %39, %26, %cst_34 {dimension_numbers = #tpu.dot_dimension_numbers<[1], [0], [0], [1], [0, 0, 1, 1], [], []>} : vector<16x32xbf16>, vector<32x96xbf16>, vector<16x96xf32> -> vector<16x96xf32>
    %c0_35 = arith.constant 0 : index
    %41 = arith.index_cast %33 : i32 to index
    %c0_36 = arith.constant 0 : index
    %42 = vector.load %arg10[%c0_35, %41, %c0_36] : memref<2x128x96xbf16, #tpu.memory_space<vmem>>, vector<1x16x96xbf16>
    %43 = vector.shape_cast %42 : vector<1x16x96xbf16> to vector<16x96xbf16>
    %44 = arith.extf %43 : vector<16x96xbf16> to vector<16x96xf32>
    %c1_37 = arith.constant 1 : index
    %45 = arith.index_cast %36 : i32 to index
    %c0_38 = arith.constant 0 : index
    %46 = vector.load %arg10[%c1_37, %45, %c0_38] : memref<2x128x96xbf16, #tpu.memory_space<vmem>>, vector<1x16x96xbf16>
    %47 = vector.shape_cast %46 : vector<1x16x96xbf16> to vector<16x96xbf16>
    %48 = arith.extf %47 : vector<16x96xbf16> to vector<16x96xf32>
    %49 = vector.extract_strided_slice %44 {offsets = [0, 0], sizes = [16, 32], strides = [1, 1]} : vector<16x96xf32> to vector<16x32xf32>
    %50 = vector.extract_strided_slice %38 {offsets = [0, 0], sizes = [16, 32], strides = [1, 1]} : vector<16x96xf32> to vector<16x32xf32>
    %51 = arith.addf %49, %50 : vector<16x32xf32>
    %52 = arith.negf %51 : vector<16x32xf32>
    %53 = math.exp %52 : vector<16x32xf32>
    %cst_39 = arith.constant 1.000000e+00 : f32
    %54 = vector.broadcast %cst_39 : f32 to vector<16x32xf32>
    %55 = arith.addf %54, %53 : vector<16x32xf32>
    %56 = arith.divf %54, %55 : vector<16x32xf32>
    %57 = vector.extract_strided_slice %44 {offsets = [0, 32], sizes = [16, 32], strides = [1, 1]} : vector<16x96xf32> to vector<16x32xf32>
    %58 = vector.extract_strided_slice %38 {offsets = [0, 32], sizes = [16, 32], strides = [1, 1]} : vector<16x96xf32> to vector<16x32xf32>
    %59 = arith.addf %57, %58 : vector<16x32xf32>
    %60 = arith.negf %59 : vector<16x32xf32>
    %61 = math.exp %60 : vector<16x32xf32>
    %cst_40 = arith.constant 1.000000e+00 : f32
    %62 = vector.broadcast %cst_40 : f32 to vector<16x32xf32>
    %63 = arith.addf %62, %61 : vector<16x32xf32>
    %64 = arith.divf %62, %63 : vector<16x32xf32>
    %65 = vector.extract_strided_slice %44 {offsets = [0, 64], sizes = [16, 32], strides = [1, 1]} : vector<16x96xf32> to vector<16x32xf32>
    %66 = vector.extract_strided_slice %38 {offsets = [0, 64], sizes = [16, 32], strides = [1, 1]} : vector<16x96xf32> to vector<16x32xf32>
    %67 = vector.broadcast %28 : vector<1x32xf32> to vector<16x32xf32>
    %68 = arith.addf %66, %67 : vector<16x32xf32>
    %69 = arith.mulf %56, %68 : vector<16x32xf32>
    %70 = arith.addf %65, %69 : vector<16x32xf32>
    %71 = math.tanh %70 : vector<16x32xf32>
    %cst_41 = arith.constant 1.000000e+00 : f32
    %72 = vector.broadcast %cst_41 : f32 to vector<16x32xf32>
    %73 = arith.subf %72, %64 : vector<16x32xf32>
    %74 = arith.mulf %73, %71 : vector<16x32xf32>
    %75 = arith.mulf %64, %31 : vector<16x32xf32>
    %76 = arith.addf %74, %75 : vector<16x32xf32>
    %77 = vector.extract_strided_slice %48 {offsets = [0, 0], sizes = [16, 32], strides = [1, 1]} : vector<16x96xf32> to vector<16x32xf32>
    %78 = vector.extract_strided_slice %40 {offsets = [0, 0], sizes = [16, 32], strides = [1, 1]} : vector<16x96xf32> to vector<16x32xf32>
    %79 = arith.addf %77, %78 : vector<16x32xf32>
    %80 = arith.negf %79 : vector<16x32xf32>
    %81 = math.exp %80 : vector<16x32xf32>
    %cst_42 = arith.constant 1.000000e+00 : f32
    %82 = vector.broadcast %cst_42 : f32 to vector<16x32xf32>
    %83 = arith.addf %82, %81 : vector<16x32xf32>
    %84 = arith.divf %82, %83 : vector<16x32xf32>
    %85 = vector.extract_strided_slice %48 {offsets = [0, 32], sizes = [16, 32], strides = [1, 1]} : vector<16x96xf32> to vector<16x32xf32>
    %86 = vector.extract_strided_slice %40 {offsets = [0, 32], sizes = [16, 32], strides = [1, 1]} : vector<16x96xf32> to vector<16x32xf32>
    %87 = arith.addf %85, %86 : vector<16x32xf32>
    %88 = arith.negf %87 : vector<16x32xf32>
    %89 = math.exp %88 : vector<16x32xf32>
    %cst_43 = arith.constant 1.000000e+00 : f32
    %90 = vector.broadcast %cst_43 : f32 to vector<16x32xf32>
    %91 = arith.addf %90, %89 : vector<16x32xf32>
    %92 = arith.divf %90, %91 : vector<16x32xf32>
    %93 = vector.extract_strided_slice %48 {offsets = [0, 64], sizes = [16, 32], strides = [1, 1]} : vector<16x96xf32> to vector<16x32xf32>
    %94 = vector.extract_strided_slice %40 {offsets = [0, 64], sizes = [16, 32], strides = [1, 1]} : vector<16x96xf32> to vector<16x32xf32>
    %95 = vector.broadcast %30 : vector<1x32xf32> to vector<16x32xf32>
    %96 = arith.addf %94, %95 : vector<16x32xf32>
    %97 = arith.mulf %84, %96 : vector<16x32xf32>
    %98 = arith.addf %93, %97 : vector<16x32xf32>
    %99 = math.tanh %98 : vector<16x32xf32>
    %cst_44 = arith.constant 1.000000e+00 : f32
    %100 = vector.broadcast %cst_44 : f32 to vector<16x32xf32>
    %101 = arith.subf %100, %92 : vector<16x32xf32>
    %102 = arith.mulf %101, %99 : vector<16x32xf32>
    %103 = arith.mulf %92, %31 : vector<16x32xf32>
    %104 = arith.addf %102, %103 : vector<16x32xf32>
    %105 = arith.truncf %76 : vector<16x32xf32> to vector<16x32xbf16>
    %106 = arith.index_cast %33 : i32 to index
    %c0_45 = arith.constant 0 : index
    %107 = vector.load %arg8[%106, %c0_45] : memref<128x64xbf16, #tpu.memory_space<vmem>>, vector<16x32xbf16>
    tpu.vector_store %arg8[%106, %c0_45], %105 {strides = array<i32>} : memref<128x64xbf16, #tpu.memory_space<vmem>>, vector<16x32xbf16>,
    %108 = arith.truncf %104 : vector<16x32xf32> to vector<16x32xbf16>
    %109 = arith.index_cast %36 : i32 to index
    %c32 = arith.constant 32 : index
    %110 = vector.load %arg8[%109, %c32] : memref<128x64xbf16, #tpu.memory_space<vmem>>, vector<16x32xbf16>
    tpu.vector_store %arg8[%109, %c32], %108 {strides = array<i32>} : memref<128x64xbf16, #tpu.memory_space<vmem>>, vector<16x32xbf16>,
    %c1_i32 = arith.constant 1 : i32
    %c16_i32_46 = arith.constant 16 : i32
    %111 = arith.muli %c1_i32, %c16_i32_46 : i32
    %112 = tpu.assume_multiple %111, 16 : i32
    %c7_i32_47 = arith.constant 7 : i32
    %113 = arith.subi %c7_i32_47, %c1_i32 : i32
    %c16_i32_48 = arith.constant 16 : i32
    %114 = arith.muli %113, %c16_i32_48 : i32
    %115 = tpu.assume_multiple %114, 16 : i32
    %116 = arith.truncf %76 : vector<16x32xf32> to vector<16x32xbf16>
    %cst_49 = arith.constant dense<0.000000e+00> : vector<16x96xf32>
    %117 = tpu.matmul %116, %24, %cst_49 {dimension_numbers = #tpu.dot_dimension_numbers<[1], [0], [0], [1], [0, 0, 1, 1], [], []>} : vector<16x32xbf16>, vector<32x96xbf16>, vector<16x96xf32> -> vector<16x96xf32>
    %118 = arith.truncf %104 : vector<16x32xf32> to vector<16x32xbf16>
    %cst_50 = arith.constant dense<0.000000e+00> : vector<16x96xf32>
    %119 = tpu.matmul %118, %26, %cst_50 {dimension_numbers = #tpu.dot_dimension_numbers<[1], [0], [0], [1], [0, 0, 1, 1], [], []>} : vector<16x32xbf16>, vector<32x96xbf16>, vector<16x96xf32> -> vector<16x96xf32>
    %c0_51 = arith.constant 0 : index
    %120 = arith.index_cast %112 : i32 to index
    %c0_52 = arith.constant 0 : index
    %121 = vector.load %arg10[%c0_51, %120, %c0_52] : memref<2x128x96xbf16, #tpu.memory_space<vmem>>, vector<1x16x96xbf16>
    %122 = vector.shape_cast %121 : vector<1x16x96xbf16> to vector<16x96xbf16>
    %123 = arith.extf %122 : vector<16x96xbf16> to vector<16x96xf32>
    %c1_53 = arith.constant 1 : index
    %124 = arith.index_cast %115 : i32 to index
    %c0_54 = arith.constant 0 : index
    %125 = vector.load %arg10[%c1_53, %124, %c0_54] : memref<2x128x96xbf16, #tpu.memory_space<vmem>>, vector<1x16x96xbf16>
    %126 = vector.shape_cast %125 : vector<1x16x96xbf16> to vector<16x96xbf16>
    %127 = arith.extf %126 : vector<16x96xbf16> to vector<16x96xf32>
    %128 = vector.extract_strided_slice %123 {offsets = [0, 0], sizes = [16, 32], strides = [1, 1]} : vector<16x96xf32> to vector<16x32xf32>
    %129 = vector.extract_strided_slice %117 {offsets = [0, 0], sizes = [16, 32], strides = [1, 1]} : vector<16x96xf32> to vector<16x32xf32>
    %130 = arith.addf %128, %129 : vector<16x32xf32>
    %131 = arith.negf %130 : vector<16x32xf32>
    %132 = math.exp %131 : vector<16x32xf32>
    %cst_55 = arith.constant 1.000000e+00 : f32
    %133 = vector.broadcast %cst_55 : f32 to vector<16x32xf32>
    %134 = arith.addf %133, %132 : vector<16x32xf32>
    %135 = arith.divf %133, %134 : vector<16x32xf32>
    %136 = vector.extract_strided_slice %123 {offsets = [0, 32], sizes = [16, 32], strides = [1, 1]} : vector<16x96xf32> to vector<16x32xf32>
    %137 = vector.extract_strided_slice %117 {offsets = [0, 32], sizes = [16, 32], strides = [1, 1]} : vector<16x96xf32> to vector<16x32xf32>
    %138 = arith.addf %136, %137 : vector<16x32xf32>
    %139 = arith.negf %138 : vector<16x32xf32>
    %140 = math.exp %139 : vector<16x32xf32>
    %cst_56 = arith.constant 1.000000e+00 : f32
    %141 = vector.broadcast %cst_56 : f32 to vector<16x32xf32>
    %142 = arith.addf %141, %140 : vector<16x32xf32>
    %143 = arith.divf %141, %142 : vector<16x32xf32>
    %144 = vector.extract_strided_slice %123 {offsets = [0, 64], sizes = [16, 32], strides = [1, 1]} : vector<16x96xf32> to vector<16x32xf32>
    %145 = vector.extract_strided_slice %117 {offsets = [0, 64], sizes = [16, 32], strides = [1, 1]} : vector<16x96xf32> to vector<16x32xf32>
    %146 = vector.broadcast %28 : vector<1x32xf32> to vector<16x32xf32>
    %147 = arith.addf %145, %146 : vector<16x32xf32>
    %148 = arith.mulf %135, %147 : vector<16x32xf32>
    %149 = arith.addf %144, %148 : vector<16x32xf32>
    %150 = math.tanh %149 : vector<16x32xf32>
    %cst_57 = arith.constant 1.000000e+00 : f32
    %151 = vector.broadcast %cst_57 : f32 to vector<16x32xf32>
    %152 = arith.subf %151, %143 : vector<16x32xf32>
    %153 = arith.mulf %152, %150 : vector<16x32xf32>
    %154 = arith.mulf %143, %76 : vector<16x32xf32>
    %155 = arith.addf %153, %154 : vector<16x32xf32>
    %156 = vector.extract_strided_slice %127 {offsets = [0, 0], sizes = [16, 32], strides = [1, 1]} : vector<16x96xf32> to vector<16x32xf32>
    %157 = vector.extract_strided_slice %119 {offsets = [0, 0], sizes = [16, 32], strides = [1, 1]} : vector<16x96xf32> to vector<16x32xf32>
    %158 = arith.addf %156, %157 : vector<16x32xf32>
    %159 = arith.negf %158 : vector<16x32xf32>
    %160 = math.exp %159 : vector<16x32xf32>
    %cst_58 = arith.constant 1.000000e+00 : f32
    %161 = vector.broadcast %cst_58 : f32 to vector<16x32xf32>
    %162 = arith.addf %161, %160 : vector<16x32xf32>
    %163 = arith.divf %161, %162 : vector<16x32xf32>
    %164 = vector.extract_strided_slice %127 {offsets = [0, 32], sizes = [16, 32], strides = [1, 1]} : vector<16x96xf32> to vector<16x32xf32>
    %165 = vector.extract_strided_slice %119 {offsets = [0, 32], sizes = [16, 32], strides = [1, 1]} : vector<16x96xf32> to vector<16x32xf32>
    %166 = arith.addf %164, %165 : vector<16x32xf32>
    %167 = arith.negf %166 : vector<16x32xf32>
    %168 = math.exp %167 : vector<16x32xf32>
    %cst_59 = arith.constant 1.000000e+00 : f32
    %169 = vector.broadcast %cst_59 : f32 to vector<16x32xf32>
    %170 = arith.addf %169, %168 : vector<16x32xf32>
    %171 = arith.divf %169, %170 : vector<16x32xf32>
    %172 = vector.extract_strided_slice %127 {offsets = [0, 64], sizes = [16, 32], strides = [1, 1]} : vector<16x96xf32> to vector<16x32xf32>
    %173 = vector.extract_strided_slice %119 {offsets = [0, 64], sizes = [16, 32], strides = [1, 1]} : vector<16x96xf32> to vector<16x32xf32>
    %174 = vector.broadcast %30 : vector<1x32xf32> to vector<16x32xf32>
    %175 = arith.addf %173, %174 : vector<16x32xf32>
    %176 = arith.mulf %163, %175 : vector<16x32xf32>
    %177 = arith.addf %172, %176 : vector<16x32xf32>
    %178 = math.tanh %177 : vector<16x32xf32>
    %cst_60 = arith.constant 1.000000e+00 : f32
    %179 = vector.broadcast %cst_60 : f32 to vector<16x32xf32>
    %180 = arith.subf %179, %171 : vector<16x32xf32>
    %181 = arith.mulf %180, %178 : vector<16x32xf32>
    %182 = arith.mulf %171, %104 : vector<16x32xf32>
    %183 = arith.addf %181, %182 : vector<16x32xf32>
    %184 = arith.truncf %155 : vector<16x32xf32> to vector<16x32xbf16>
    %185 = arith.index_cast %112 : i32 to index
    %c0_61 = arith.constant 0 : index
    %186 = vector.load %arg8[%185, %c0_61] : memref<128x64xbf16, #tpu.memory_space<vmem>>, vector<16x32xbf16>
    tpu.vector_store %arg8[%185, %c0_61], %184 {strides = array<i32>} : memref<128x64xbf16, #tpu.memory_space<vmem>>, vector<16x32xbf16>,
    %187 = arith.truncf %183 : vector<16x32xf32> to vector<16x32xbf16>
    %188 = arith.index_cast %115 : i32 to index
    %c32_62 = arith.constant 32 : index
    %189 = vector.load %arg8[%188, %c32_62] : memref<128x64xbf16, #tpu.memory_space<vmem>>, vector<16x32xbf16>
    tpu.vector_store %arg8[%188, %c32_62], %187 {strides = array<i32>} : memref<128x64xbf16, #tpu.memory_space<vmem>>, vector<16x32xbf16>,
    %c2_i32 = arith.constant 2 : i32
    %c16_i32_63 = arith.constant 16 : i32
    %190 = arith.muli %c2_i32, %c16_i32_63 : i32
    %191 = tpu.assume_multiple %190, 16 : i32
    %c7_i32_64 = arith.constant 7 : i32
    %192 = arith.subi %c7_i32_64, %c2_i32 : i32
    %c16_i32_65 = arith.constant 16 : i32
    %193 = arith.muli %192, %c16_i32_65 : i32
    %194 = tpu.assume_multiple %193, 16 : i32
    %195 = arith.truncf %155 : vector<16x32xf32> to vector<16x32xbf16>
    %cst_66 = arith.constant dense<0.000000e+00> : vector<16x96xf32>
    %196 = tpu.matmul %195, %24, %cst_66 {dimension_numbers = #tpu.dot_dimension_numbers<[1], [0], [0], [1], [0, 0, 1, 1], [], []>} : vector<16x32xbf16>, vector<32x96xbf16>, vector<16x96xf32> -> vector<16x96xf32>
    %197 = arith.truncf %183 : vector<16x32xf32> to vector<16x32xbf16>
    %cst_67 = arith.constant dense<0.000000e+00> : vector<16x96xf32>
    %198 = tpu.matmul %197, %26, %cst_67 {dimension_numbers = #tpu.dot_dimension_numbers<[1], [0], [0], [1], [0, 0, 1, 1], [], []>} : vector<16x32xbf16>, vector<32x96xbf16>, vector<16x96xf32> -> vector<16x96xf32>
    %c0_68 = arith.constant 0 : index
    %199 = arith.index_cast %191 : i32 to index
    %c0_69 = arith.constant 0 : index
    %200 = vector.load %arg10[%c0_68, %199, %c0_69] : memref<2x128x96xbf16, #tpu.memory_space<vmem>>, vector<1x16x96xbf16>
    %201 = vector.shape_cast %200 : vector<1x16x96xbf16> to vector<16x96xbf16>
    %202 = arith.extf %201 : vector<16x96xbf16> to vector<16x96xf32>
    %c1_70 = arith.constant 1 : index
    %203 = arith.index_cast %194 : i32 to index
    %c0_71 = arith.constant 0 : index
    %204 = vector.load %arg10[%c1_70, %203, %c0_71] : memref<2x128x96xbf16, #tpu.memory_space<vmem>>, vector<1x16x96xbf16>
    %205 = vector.shape_cast %204 : vector<1x16x96xbf16> to vector<16x96xbf16>
    %206 = arith.extf %205 : vector<16x96xbf16> to vector<16x96xf32>
    %207 = vector.extract_strided_slice %202 {offsets = [0, 0], sizes = [16, 32], strides = [1, 1]} : vector<16x96xf32> to vector<16x32xf32>
    %208 = vector.extract_strided_slice %196 {offsets = [0, 0], sizes = [16, 32], strides = [1, 1]} : vector<16x96xf32> to vector<16x32xf32>
    %209 = arith.addf %207, %208 : vector<16x32xf32>
    %210 = arith.negf %209 : vector<16x32xf32>
    %211 = math.exp %210 : vector<16x32xf32>
    %cst_72 = arith.constant 1.000000e+00 : f32
    %212 = vector.broadcast %cst_72 : f32 to vector<16x32xf32>
    %213 = arith.addf %212, %211 : vector<16x32xf32>
    %214 = arith.divf %212, %213 : vector<16x32xf32>
    %215 = vector.extract_strided_slice %202 {offsets = [0, 32], sizes = [16, 32], strides = [1, 1]} : vector<16x96xf32> to vector<16x32xf32>
    %216 = vector.extract_strided_slice %196 {offsets = [0, 32], sizes = [16, 32], strides = [1, 1]} : vector<16x96xf32> to vector<16x32xf32>
    %217 = arith.addf %215, %216 : vector<16x32xf32>
    %218 = arith.negf %217 : vector<16x32xf32>
    %219 = math.exp %218 : vector<16x32xf32>
    %cst_73 = arith.constant 1.000000e+00 : f32
    %220 = vector.broadcast %cst_73 : f32 to vector<16x32xf32>
    %221 = arith.addf %220, %219 : vector<16x32xf32>
    %222 = arith.divf %220, %221 : vector<16x32xf32>
    %223 = vector.extract_strided_slice %202 {offsets = [0, 64], sizes = [16, 32], strides = [1, 1]} : vector<16x96xf32> to vector<16x32xf32>
    %224 = vector.extract_strided_slice %196 {offsets = [0, 64], sizes = [16, 32], strides = [1, 1]} : vector<16x96xf32> to vector<16x32xf32>
    %225 = vector.broadcast %28 : vector<1x32xf32> to vector<16x32xf32>
    %226 = arith.addf %224, %225 : vector<16x32xf32>
    %227 = arith.mulf %214, %226 : vector<16x32xf32>
    %228 = arith.addf %223, %227 : vector<16x32xf32>
    %229 = math.tanh %228 : vector<16x32xf32>
    %cst_74 = arith.constant 1.000000e+00 : f32
    %230 = vector.broadcast %cst_74 : f32 to vector<16x32xf32>
    %231 = arith.subf %230, %222 : vector<16x32xf32>
    %232 = arith.mulf %231, %229 : vector<16x32xf32>
    %233 = arith.mulf %222, %155 : vector<16x32xf32>
    %234 = arith.addf %232, %233 : vector<16x32xf32>
    %235 = vector.extract_strided_slice %206 {offsets = [0, 0], sizes = [16, 32], strides = [1, 1]} : vector<16x96xf32> to vector<16x32xf32>
    %236 = vector.extract_strided_slice %198 {offsets = [0, 0], sizes = [16, 32], strides = [1, 1]} : vector<16x96xf32> to vector<16x32xf32>
    %237 = arith.addf %235, %236 : vector<16x32xf32>
    %238 = arith.negf %237 : vector<16x32xf32>
    %239 = math.exp %238 : vector<16x32xf32>
    %cst_75 = arith.constant 1.000000e+00 : f32
    %240 = vector.broadcast %cst_75 : f32 to vector<16x32xf32>
    %241 = arith.addf %240, %239 : vector<16x32xf32>
    %242 = arith.divf %240, %241 : vector<16x32xf32>
    %243 = vector.extract_strided_slice %206 {offsets = [0, 32], sizes = [16, 32], strides = [1, 1]} : vector<16x96xf32> to vector<16x32xf32>
    %244 = vector.extract_strided_slice %198 {offsets = [0, 32], sizes = [16, 32], strides = [1, 1]} : vector<16x96xf32> to vector<16x32xf32>
    %245 = arith.addf %243, %244 : vector<16x32xf32>
    %246 = arith.negf %245 : vector<16x32xf32>
    %247 = math.exp %246 : vector<16x32xf32>
    %cst_76 = arith.constant 1.000000e+00 : f32
    %248 = vector.broadcast %cst_76 : f32 to vector<16x32xf32>
    %249 = arith.addf %248, %247 : vector<16x32xf32>
    %250 = arith.divf %248, %249 : vector<16x32xf32>
    %251 = vector.extract_strided_slice %206 {offsets = [0, 64], sizes = [16, 32], strides = [1, 1]} : vector<16x96xf32> to vector<16x32xf32>
    %252 = vector.extract_strided_slice %198 {offsets = [0, 64], sizes = [16, 32], strides = [1, 1]} : vector<16x96xf32> to vector<16x32xf32>
    %253 = vector.broadcast %30 : vector<1x32xf32> to vector<16x32xf32>
    %254 = arith.addf %252, %253 : vector<16x32xf32>
    %255 = arith.mulf %242, %254 : vector<16x32xf32>
    %256 = arith.addf %251, %255 : vector<16x32xf32>
    %257 = math.tanh %256 : vector<16x32xf32>
    %cst_77 = arith.constant 1.000000e+00 : f32
    %258 = vector.broadcast %cst_77 : f32 to vector<16x32xf32>
    %259 = arith.subf %258, %250 : vector<16x32xf32>
    %260 = arith.mulf %259, %257 : vector<16x32xf32>
    %261 = arith.mulf %250, %183 : vector<16x32xf32>
    %262 = arith.addf %260, %261 : vector<16x32xf32>
    %263 = arith.truncf %234 : vector<16x32xf32> to vector<16x32xbf16>
    %264 = arith.index_cast %191 : i32 to index
    %c0_78 = arith.constant 0 : index
    %265 = vector.load %arg8[%264, %c0_78] : memref<128x64xbf16, #tpu.memory_space<vmem>>, vector<16x32xbf16>
    tpu.vector_store %arg8[%264, %c0_78], %263 {strides = array<i32>} : memref<128x64xbf16, #tpu.memory_space<vmem>>, vector<16x32xbf16>,
    %266 = arith.truncf %262 : vector<16x32xf32> to vector<16x32xbf16>
    %267 = arith.index_cast %194 : i32 to index
    %c32_79 = arith.constant 32 : index
    %268 = vector.load %arg8[%267, %c32_79] : memref<128x64xbf16, #tpu.memory_space<vmem>>, vector<16x32xbf16>
    tpu.vector_store %arg8[%267, %c32_79], %266 {strides = array<i32>} : memref<128x64xbf16, #tpu.memory_space<vmem>>, vector<16x32xbf16>,
    %c3_i32 = arith.constant 3 : i32
    %c16_i32_80 = arith.constant 16 : i32
    %269 = arith.muli %c3_i32, %c16_i32_80 : i32
    %270 = tpu.assume_multiple %269, 16 : i32
    %c7_i32_81 = arith.constant 7 : i32
    %271 = arith.subi %c7_i32_81, %c3_i32 : i32
    %c16_i32_82 = arith.constant 16 : i32
    %272 = arith.muli %271, %c16_i32_82 : i32
    %273 = tpu.assume_multiple %272, 16 : i32
    %274 = arith.truncf %234 : vector<16x32xf32> to vector<16x32xbf16>
    %cst_83 = arith.constant dense<0.000000e+00> : vector<16x96xf32>
    %275 = tpu.matmul %274, %24, %cst_83 {dimension_numbers = #tpu.dot_dimension_numbers<[1], [0], [0], [1], [0, 0, 1, 1], [], []>} : vector<16x32xbf16>, vector<32x96xbf16>, vector<16x96xf32> -> vector<16x96xf32>
    %276 = arith.truncf %262 : vector<16x32xf32> to vector<16x32xbf16>
    %cst_84 = arith.constant dense<0.000000e+00> : vector<16x96xf32>
    %277 = tpu.matmul %276, %26, %cst_84 {dimension_numbers = #tpu.dot_dimension_numbers<[1], [0], [0], [1], [0, 0, 1, 1], [], []>} : vector<16x32xbf16>, vector<32x96xbf16>, vector<16x96xf32> -> vector<16x96xf32>
    %c0_85 = arith.constant 0 : index
    %278 = arith.index_cast %270 : i32 to index
    %c0_86 = arith.constant 0 : index
    %279 = vector.load %arg10[%c0_85, %278, %c0_86] : memref<2x128x96xbf16, #tpu.memory_space<vmem>>, vector<1x16x96xbf16>
    %280 = vector.shape_cast %279 : vector<1x16x96xbf16> to vector<16x96xbf16>
    %281 = arith.extf %280 : vector<16x96xbf16> to vector<16x96xf32>
    %c1_87 = arith.constant 1 : index
    %282 = arith.index_cast %273 : i32 to index
    %c0_88 = arith.constant 0 : index
    %283 = vector.load %arg10[%c1_87, %282, %c0_88] : memref<2x128x96xbf16, #tpu.memory_space<vmem>>, vector<1x16x96xbf16>
    %284 = vector.shape_cast %283 : vector<1x16x96xbf16> to vector<16x96xbf16>
    %285 = arith.extf %284 : vector<16x96xbf16> to vector<16x96xf32>
    %286 = vector.extract_strided_slice %281 {offsets = [0, 0], sizes = [16, 32], strides = [1, 1]} : vector<16x96xf32> to vector<16x32xf32>
    %287 = vector.extract_strided_slice %275 {offsets = [0, 0], sizes = [16, 32], strides = [1, 1]} : vector<16x96xf32> to vector<16x32xf32>
    %288 = arith.addf %286, %287 : vector<16x32xf32>
    %289 = arith.negf %288 : vector<16x32xf32>
    %290 = math.exp %289 : vector<16x32xf32>
    %cst_89 = arith.constant 1.000000e+00 : f32
    %291 = vector.broadcast %cst_89 : f32 to vector<16x32xf32>
    %292 = arith.addf %291, %290 : vector<16x32xf32>
    %293 = arith.divf %291, %292 : vector<16x32xf32>
    %294 = vector.extract_strided_slice %281 {offsets = [0, 32], sizes = [16, 32], strides = [1, 1]} : vector<16x96xf32> to vector<16x32xf32>
    %295 = vector.extract_strided_slice %275 {offsets = [0, 32], sizes = [16, 32], strides = [1, 1]} : vector<16x96xf32> to vector<16x32xf32>
    %296 = arith.addf %294, %295 : vector<16x32xf32>
    %297 = arith.negf %296 : vector<16x32xf32>
    %298 = math.exp %297 : vector<16x32xf32>
    %cst_90 = arith.constant 1.000000e+00 : f32
    %299 = vector.broadcast %cst_90 : f32 to vector<16x32xf32>
    %300 = arith.addf %299, %298 : vector<16x32xf32>
    %301 = arith.divf %299, %300 : vector<16x32xf32>
    %302 = vector.extract_strided_slice %281 {offsets = [0, 64], sizes = [16, 32], strides = [1, 1]} : vector<16x96xf32> to vector<16x32xf32>
    %303 = vector.extract_strided_slice %275 {offsets = [0, 64], sizes = [16, 32], strides = [1, 1]} : vector<16x96xf32> to vector<16x32xf32>
    %304 = vector.broadcast %28 : vector<1x32xf32> to vector<16x32xf32>
    %305 = arith.addf %303, %304 : vector<16x32xf32>
    %306 = arith.mulf %293, %305 : vector<16x32xf32>
    %307 = arith.addf %302, %306 : vector<16x32xf32>
    %308 = math.tanh %307 : vector<16x32xf32>
    %cst_91 = arith.constant 1.000000e+00 : f32
    %309 = vector.broadcast %cst_91 : f32 to vector<16x32xf32>
    %310 = arith.subf %309, %301 : vector<16x32xf32>
    %311 = arith.mulf %310, %308 : vector<16x32xf32>
    %312 = arith.mulf %301, %234 : vector<16x32xf32>
    %313 = arith.addf %311, %312 : vector<16x32xf32>
    %314 = vector.extract_strided_slice %285 {offsets = [0, 0], sizes = [16, 32], strides = [1, 1]} : vector<16x96xf32> to vector<16x32xf32>
    %315 = vector.extract_strided_slice %277 {offsets = [0, 0], sizes = [16, 32], strides = [1, 1]} : vector<16x96xf32> to vector<16x32xf32>
    %316 = arith.addf %314, %315 : vector<16x32xf32>
    %317 = arith.negf %316 : vector<16x32xf32>
    %318 = math.exp %317 : vector<16x32xf32>
    %cst_92 = arith.constant 1.000000e+00 : f32
    %319 = vector.broadcast %cst_92 : f32 to vector<16x32xf32>
    %320 = arith.addf %319, %318 : vector<16x32xf32>
    %321 = arith.divf %319, %320 : vector<16x32xf32>
    %322 = vector.extract_strided_slice %285 {offsets = [0, 32], sizes = [16, 32], strides = [1, 1]} : vector<16x96xf32> to vector<16x32xf32>
    %323 = vector.extract_strided_slice %277 {offsets = [0, 32], sizes = [16, 32], strides = [1, 1]} : vector<16x96xf32> to vector<16x32xf32>
    %324 = arith.addf %322, %323 : vector<16x32xf32>
    %325 = arith.negf %324 : vector<16x32xf32>
    %326 = math.exp %325 : vector<16x32xf32>
    %cst_93 = arith.constant 1.000000e+00 : f32
    %327 = vector.broadcast %cst_93 : f32 to vector<16x32xf32>
    %328 = arith.addf %327, %326 : vector<16x32xf32>
    %329 = arith.divf %327, %328 : vector<16x32xf32>
    %330 = vector.extract_strided_slice %285 {offsets = [0, 64], sizes = [16, 32], strides = [1, 1]} : vector<16x96xf32> to vector<16x32xf32>
    %331 = vector.extract_strided_slice %277 {offsets = [0, 64], sizes = [16, 32], strides = [1, 1]} : vector<16x96xf32> to vector<16x32xf32>
    %332 = vector.broadcast %30 : vector<1x32xf32> to vector<16x32xf32>
    %333 = arith.addf %331, %332 : vector<16x32xf32>
    %334 = arith.mulf %321, %333 : vector<16x32xf32>
    %335 = arith.addf %330, %334 : vector<16x32xf32>
    %336 = math.tanh %335 : vector<16x32xf32>
    %cst_94 = arith.constant 1.000000e+00 : f32
    %337 = vector.broadcast %cst_94 : f32 to vector<16x32xf32>
    %338 = arith.subf %337, %329 : vector<16x32xf32>
    %339 = arith.mulf %338, %336 : vector<16x32xf32>
    %340 = arith.mulf %329, %262 : vector<16x32xf32>
    %341 = arith.addf %339, %340 : vector<16x32xf32>
    %342 = arith.truncf %313 : vector<16x32xf32> to vector<16x32xbf16>
    %343 = arith.index_cast %270 : i32 to index
    %c0_95 = arith.constant 0 : index
    %344 = vector.load %arg8[%343, %c0_95] : memref<128x64xbf16, #tpu.memory_space<vmem>>, vector<16x32xbf16>
    tpu.vector_store %arg8[%343, %c0_95], %342 {strides = array<i32>} : memref<128x64xbf16, #tpu.memory_space<vmem>>, vector<16x32xbf16>,
    %345 = arith.truncf %341 : vector<16x32xf32> to vector<16x32xbf16>
    %346 = arith.index_cast %273 : i32 to index
    %c32_96 = arith.constant 32 : index
    %347 = vector.load %arg8[%346, %c32_96] : memref<128x64xbf16, #tpu.memory_space<vmem>>, vector<16x32xbf16>
    tpu.vector_store %arg8[%346, %c32_96], %345 {strides = array<i32>} : memref<128x64xbf16, #tpu.memory_space<vmem>>, vector<16x32xbf16>,
    %c4_i32 = arith.constant 4 : i32
    %c16_i32_97 = arith.constant 16 : i32
    %348 = arith.muli %c4_i32, %c16_i32_97 : i32
    %349 = tpu.assume_multiple %348, 16 : i32
    %c7_i32_98 = arith.constant 7 : i32
    %350 = arith.subi %c7_i32_98, %c4_i32 : i32
    %c16_i32_99 = arith.constant 16 : i32
    %351 = arith.muli %350, %c16_i32_99 : i32
    %352 = tpu.assume_multiple %351, 16 : i32
    %353 = arith.truncf %313 : vector<16x32xf32> to vector<16x32xbf16>
    %cst_100 = arith.constant dense<0.000000e+00> : vector<16x96xf32>
    %354 = tpu.matmul %353, %24, %cst_100 {dimension_numbers = #tpu.dot_dimension_numbers<[1], [0], [0], [1], [0, 0, 1, 1], [], []>} : vector<16x32xbf16>, vector<32x96xbf16>, vector<16x96xf32> -> vector<16x96xf32>
    %355 = arith.truncf %341 : vector<16x32xf32> to vector<16x32xbf16>
    %cst_101 = arith.constant dense<0.000000e+00> : vector<16x96xf32>
    %356 = tpu.matmul %355, %26, %cst_101 {dimension_numbers = #tpu.dot_dimension_numbers<[1], [0], [0], [1], [0, 0, 1, 1], [], []>} : vector<16x32xbf16>, vector<32x96xbf16>, vector<16x96xf32> -> vector<16x96xf32>
    %c0_102 = arith.constant 0 : index
    %357 = arith.index_cast %349 : i32 to index
    %c0_103 = arith.constant 0 : index
    %358 = vector.load %arg10[%c0_102, %357, %c0_103] : memref<2x128x96xbf16, #tpu.memory_space<vmem>>, vector<1x16x96xbf16>
    %359 = vector.shape_cast %358 : vector<1x16x96xbf16> to vector<16x96xbf16>
    %360 = arith.extf %359 : vector<16x96xbf16> to vector<16x96xf32>
    %c1_104 = arith.constant 1 : index
    %361 = arith.index_cast %352 : i32 to index
    %c0_105 = arith.constant 0 : index
    %362 = vector.load %arg10[%c1_104, %361, %c0_105] : memref<2x128x96xbf16, #tpu.memory_space<vmem>>, vector<1x16x96xbf16>
    %363 = vector.shape_cast %362 : vector<1x16x96xbf16> to vector<16x96xbf16>
    %364 = arith.extf %363 : vector<16x96xbf16> to vector<16x96xf32>
    %365 = vector.extract_strided_slice %360 {offsets = [0, 0], sizes = [16, 32], strides = [1, 1]} : vector<16x96xf32> to vector<16x32xf32>
    %366 = vector.extract_strided_slice %354 {offsets = [0, 0], sizes = [16, 32], strides = [1, 1]} : vector<16x96xf32> to vector<16x32xf32>
    %367 = arith.addf %365, %366 : vector<16x32xf32>
    %368 = arith.negf %367 : vector<16x32xf32>
    %369 = math.exp %368 : vector<16x32xf32>
    %cst_106 = arith.constant 1.000000e+00 : f32
    %370 = vector.broadcast %cst_106 : f32 to vector<16x32xf32>
    %371 = arith.addf %370, %369 : vector<16x32xf32>
    %372 = arith.divf %370, %371 : vector<16x32xf32>
    %373 = vector.extract_strided_slice %360 {offsets = [0, 32], sizes = [16, 32], strides = [1, 1]} : vector<16x96xf32> to vector<16x32xf32>
    %374 = vector.extract_strided_slice %354 {offsets = [0, 32], sizes = [16, 32], strides = [1, 1]} : vector<16x96xf32> to vector<16x32xf32>
    %375 = arith.addf %373, %374 : vector<16x32xf32>
    %376 = arith.negf %375 : vector<16x32xf32>
    %377 = math.exp %376 : vector<16x32xf32>
    %cst_107 = arith.constant 1.000000e+00 : f32
    %378 = vector.broadcast %cst_107 : f32 to vector<16x32xf32>
    %379 = arith.addf %378, %377 : vector<16x32xf32>
    %380 = arith.divf %378, %379 : vector<16x32xf32>
    %381 = vector.extract_strided_slice %360 {offsets = [0, 64], sizes = [16, 32], strides = [1, 1]} : vector<16x96xf32> to vector<16x32xf32>
    %382 = vector.extract_strided_slice %354 {offsets = [0, 64], sizes = [16, 32], strides = [1, 1]} : vector<16x96xf32> to vector<16x32xf32>
    %383 = vector.broadcast %28 : vector<1x32xf32> to vector<16x32xf32>
    %384 = arith.addf %382, %383 : vector<16x32xf32>
    %385 = arith.mulf %372, %384 : vector<16x32xf32>
    %386 = arith.addf %381, %385 : vector<16x32xf32>
    %387 = math.tanh %386 : vector<16x32xf32>
    %cst_108 = arith.constant 1.000000e+00 : f32
    %388 = vector.broadcast %cst_108 : f32 to vector<16x32xf32>
    %389 = arith.subf %388, %380 : vector<16x32xf32>
    %390 = arith.mulf %389, %387 : vector<16x32xf32>
    %391 = arith.mulf %380, %313 : vector<16x32xf32>
    %392 = arith.addf %390, %391 : vector<16x32xf32>
    %393 = vector.extract_strided_slice %364 {offsets = [0, 0], sizes = [16, 32], strides = [1, 1]} : vector<16x96xf32> to vector<16x32xf32>
    %394 = vector.extract_strided_slice %356 {offsets = [0, 0], sizes = [16, 32], strides = [1, 1]} : vector<16x96xf32> to vector<16x32xf32>
    %395 = arith.addf %393, %394 : vector<16x32xf32>
    %396 = arith.negf %395 : vector<16x32xf32>
    %397 = math.exp %396 : vector<16x32xf32>
    %cst_109 = arith.constant 1.000000e+00 : f32
    %398 = vector.broadcast %cst_109 : f32 to vector<16x32xf32>
    %399 = arith.addf %398, %397 : vector<16x32xf32>
    %400 = arith.divf %398, %399 : vector<16x32xf32>
    %401 = vector.extract_strided_slice %364 {offsets = [0, 32], sizes = [16, 32], strides = [1, 1]} : vector<16x96xf32> to vector<16x32xf32>
    %402 = vector.extract_strided_slice %356 {offsets = [0, 32], sizes = [16, 32], strides = [1, 1]} : vector<16x96xf32> to vector<16x32xf32>
    %403 = arith.addf %401, %402 : vector<16x32xf32>
    %404 = arith.negf %403 : vector<16x32xf32>
    %405 = math.exp %404 : vector<16x32xf32>
    %cst_110 = arith.constant 1.000000e+00 : f32
    %406 = vector.broadcast %cst_110 : f32 to vector<16x32xf32>
    %407 = arith.addf %406, %405 : vector<16x32xf32>
    %408 = arith.divf %406, %407 : vector<16x32xf32>
    %409 = vector.extract_strided_slice %364 {offsets = [0, 64], sizes = [16, 32], strides = [1, 1]} : vector<16x96xf32> to vector<16x32xf32>
    %410 = vector.extract_strided_slice %356 {offsets = [0, 64], sizes = [16, 32], strides = [1, 1]} : vector<16x96xf32> to vector<16x32xf32>
    %411 = vector.broadcast %30 : vector<1x32xf32> to vector<16x32xf32>
    %412 = arith.addf %410, %411 : vector<16x32xf32>
    %413 = arith.mulf %400, %412 : vector<16x32xf32>
    %414 = arith.addf %409, %413 : vector<16x32xf32>
    %415 = math.tanh %414 : vector<16x32xf32>
    %cst_111 = arith.constant 1.000000e+00 : f32
    %416 = vector.broadcast %cst_111 : f32 to vector<16x32xf32>
    %417 = arith.subf %416, %408 : vector<16x32xf32>
    %418 = arith.mulf %417, %415 : vector<16x32xf32>
    %419 = arith.mulf %408, %341 : vector<16x32xf32>
    %420 = arith.addf %418, %419 : vector<16x32xf32>
    %421 = arith.truncf %392 : vector<16x32xf32> to vector<16x32xbf16>
    %422 = arith.index_cast %349 : i32 to index
    %c0_112 = arith.constant 0 : index
    %423 = vector.load %arg8[%422, %c0_112] : memref<128x64xbf16, #tpu.memory_space<vmem>>, vector<16x32xbf16>
    tpu.vector_store %arg8[%422, %c0_112], %421 {strides = array<i32>} : memref<128x64xbf16, #tpu.memory_space<vmem>>, vector<16x32xbf16>,
    %424 = arith.truncf %420 : vector<16x32xf32> to vector<16x32xbf16>
    %425 = arith.index_cast %352 : i32 to index
    %c32_113 = arith.constant 32 : index
    %426 = vector.load %arg8[%425, %c32_113] : memref<128x64xbf16, #tpu.memory_space<vmem>>, vector<16x32xbf16>
    tpu.vector_store %arg8[%425, %c32_113], %424 {strides = array<i32>} : memref<128x64xbf16, #tpu.memory_space<vmem>>, vector<16x32xbf16>,
    %c5_i32 = arith.constant 5 : i32
    %c16_i32_114 = arith.constant 16 : i32
    %427 = arith.muli %c5_i32, %c16_i32_114 : i32
    %428 = tpu.assume_multiple %427, 16 : i32
    %c7_i32_115 = arith.constant 7 : i32
    %429 = arith.subi %c7_i32_115, %c5_i32 : i32
    %c16_i32_116 = arith.constant 16 : i32
    %430 = arith.muli %429, %c16_i32_116 : i32
    %431 = tpu.assume_multiple %430, 16 : i32
    %432 = arith.truncf %392 : vector<16x32xf32> to vector<16x32xbf16>
    %cst_117 = arith.constant dense<0.000000e+00> : vector<16x96xf32>
    %433 = tpu.matmul %432, %24, %cst_117 {dimension_numbers = #tpu.dot_dimension_numbers<[1], [0], [0], [1], [0, 0, 1, 1], [], []>} : vector<16x32xbf16>, vector<32x96xbf16>, vector<16x96xf32> -> vector<16x96xf32>
    %434 = arith.truncf %420 : vector<16x32xf32> to vector<16x32xbf16>
    %cst_118 = arith.constant dense<0.000000e+00> : vector<16x96xf32>
    %435 = tpu.matmul %434, %26, %cst_118 {dimension_numbers = #tpu.dot_dimension_numbers<[1], [0], [0], [1], [0, 0, 1, 1], [], []>} : vector<16x32xbf16>, vector<32x96xbf16>, vector<16x96xf32> -> vector<16x96xf32>
    %c0_119 = arith.constant 0 : index
    %436 = arith.index_cast %428 : i32 to index
    %c0_120 = arith.constant 0 : index
    %437 = vector.load %arg10[%c0_119, %436, %c0_120] : memref<2x128x96xbf16, #tpu.memory_space<vmem>>, vector<1x16x96xbf16>
    %438 = vector.shape_cast %437 : vector<1x16x96xbf16> to vector<16x96xbf16>
    %439 = arith.extf %438 : vector<16x96xbf16> to vector<16x96xf32>
    %c1_121 = arith.constant 1 : index
    %440 = arith.index_cast %431 : i32 to index
    %c0_122 = arith.constant 0 : index
    %441 = vector.load %arg10[%c1_121, %440, %c0_122] : memref<2x128x96xbf16, #tpu.memory_space<vmem>>, vector<1x16x96xbf16>
    %442 = vector.shape_cast %441 : vector<1x16x96xbf16> to vector<16x96xbf16>
    %443 = arith.extf %442 : vector<16x96xbf16> to vector<16x96xf32>
    %444 = vector.extract_strided_slice %439 {offsets = [0, 0], sizes = [16, 32], strides = [1, 1]} : vector<16x96xf32> to vector<16x32xf32>
    %445 = vector.extract_strided_slice %433 {offsets = [0, 0], sizes = [16, 32], strides = [1, 1]} : vector<16x96xf32> to vector<16x32xf32>
    %446 = arith.addf %444, %445 : vector<16x32xf32>
    %447 = arith.negf %446 : vector<16x32xf32>
    %448 = math.exp %447 : vector<16x32xf32>
    %cst_123 = arith.constant 1.000000e+00 : f32
    %449 = vector.broadcast %cst_123 : f32 to vector<16x32xf32>
    %450 = arith.addf %449, %448 : vector<16x32xf32>
    %451 = arith.divf %449, %450 : vector<16x32xf32>
    %452 = vector.extract_strided_slice %439 {offsets = [0, 32], sizes = [16, 32], strides = [1, 1]} : vector<16x96xf32> to vector<16x32xf32>
    %453 = vector.extract_strided_slice %433 {offsets = [0, 32], sizes = [16, 32], strides = [1, 1]} : vector<16x96xf32> to vector<16x32xf32>
    %454 = arith.addf %452, %453 : vector<16x32xf32>
    %455 = arith.negf %454 : vector<16x32xf32>
    %456 = math.exp %455 : vector<16x32xf32>
    %cst_124 = arith.constant 1.000000e+00 : f32
    %457 = vector.broadcast %cst_124 : f32 to vector<16x32xf32>
    %458 = arith.addf %457, %456 : vector<16x32xf32>
    %459 = arith.divf %457, %458 : vector<16x32xf32>
    %460 = vector.extract_strided_slice %439 {offsets = [0, 64], sizes = [16, 32], strides = [1, 1]} : vector<16x96xf32> to vector<16x32xf32>
    %461 = vector.extract_strided_slice %433 {offsets = [0, 64], sizes = [16, 32], strides = [1, 1]} : vector<16x96xf32> to vector<16x32xf32>
    %462 = vector.broadcast %28 : vector<1x32xf32> to vector<16x32xf32>
    %463 = arith.addf %461, %462 : vector<16x32xf32>
    %464 = arith.mulf %451, %463 : vector<16x32xf32>
    %465 = arith.addf %460, %464 : vector<16x32xf32>
    %466 = math.tanh %465 : vector<16x32xf32>
    %cst_125 = arith.constant 1.000000e+00 : f32
    %467 = vector.broadcast %cst_125 : f32 to vector<16x32xf32>
    %468 = arith.subf %467, %459 : vector<16x32xf32>
    %469 = arith.mulf %468, %466 : vector<16x32xf32>
    %470 = arith.mulf %459, %392 : vector<16x32xf32>
    %471 = arith.addf %469, %470 : vector<16x32xf32>
    %472 = vector.extract_strided_slice %443 {offsets = [0, 0], sizes = [16, 32], strides = [1, 1]} : vector<16x96xf32> to vector<16x32xf32>
    %473 = vector.extract_strided_slice %435 {offsets = [0, 0], sizes = [16, 32], strides = [1, 1]} : vector<16x96xf32> to vector<16x32xf32>
    %474 = arith.addf %472, %473 : vector<16x32xf32>
    %475 = arith.negf %474 : vector<16x32xf32>
    %476 = math.exp %475 : vector<16x32xf32>
    %cst_126 = arith.constant 1.000000e+00 : f32
    %477 = vector.broadcast %cst_126 : f32 to vector<16x32xf32>
    %478 = arith.addf %477, %476 : vector<16x32xf32>
    %479 = arith.divf %477, %478 : vector<16x32xf32>
    %480 = vector.extract_strided_slice %443 {offsets = [0, 32], sizes = [16, 32], strides = [1, 1]} : vector<16x96xf32> to vector<16x32xf32>
    %481 = vector.extract_strided_slice %435 {offsets = [0, 32], sizes = [16, 32], strides = [1, 1]} : vector<16x96xf32> to vector<16x32xf32>
    %482 = arith.addf %480, %481 : vector<16x32xf32>
    %483 = arith.negf %482 : vector<16x32xf32>
    %484 = math.exp %483 : vector<16x32xf32>
    %cst_127 = arith.constant 1.000000e+00 : f32
    %485 = vector.broadcast %cst_127 : f32 to vector<16x32xf32>
    %486 = arith.addf %485, %484 : vector<16x32xf32>
    %487 = arith.divf %485, %486 : vector<16x32xf32>
    %488 = vector.extract_strided_slice %443 {offsets = [0, 64], sizes = [16, 32], strides = [1, 1]} : vector<16x96xf32> to vector<16x32xf32>
    %489 = vector.extract_strided_slice %435 {offsets = [0, 64], sizes = [16, 32], strides = [1, 1]} : vector<16x96xf32> to vector<16x32xf32>
    %490 = vector.broadcast %30 : vector<1x32xf32> to vector<16x32xf32>
    %491 = arith.addf %489, %490 : vector<16x32xf32>
    %492 = arith.mulf %479, %491 : vector<16x32xf32>
    %493 = arith.addf %488, %492 : vector<16x32xf32>
    %494 = math.tanh %493 : vector<16x32xf32>
    %cst_128 = arith.constant 1.000000e+00 : f32
    %495 = vector.broadcast %cst_128 : f32 to vector<16x32xf32>
    %496 = arith.subf %495, %487 : vector<16x32xf32>
    %497 = arith.mulf %496, %494 : vector<16x32xf32>
    %498 = arith.mulf %487, %420 : vector<16x32xf32>
    %499 = arith.addf %497, %498 : vector<16x32xf32>
    %500 = arith.truncf %471 : vector<16x32xf32> to vector<16x32xbf16>
    %501 = arith.index_cast %428 : i32 to index
    %c0_129 = arith.constant 0 : index
    %502 = vector.load %arg8[%501, %c0_129] : memref<128x64xbf16, #tpu.memory_space<vmem>>, vector<16x32xbf16>
    tpu.vector_store %arg8[%501, %c0_129], %500 {strides = array<i32>} : memref<128x64xbf16, #tpu.memory_space<vmem>>, vector<16x32xbf16>,
    %503 = arith.truncf %499 : vector<16x32xf32> to vector<16x32xbf16>
    %504 = arith.index_cast %431 : i32 to index
    %c32_130 = arith.constant 32 : index
    %505 = vector.load %arg8[%504, %c32_130] : memref<128x64xbf16, #tpu.memory_space<vmem>>, vector<16x32xbf16>
    tpu.vector_store %arg8[%504, %c32_130], %503 {strides = array<i32>} : memref<128x64xbf16, #tpu.memory_space<vmem>>, vector<16x32xbf16>,
    %c6_i32 = arith.constant 6 : i32
    %c16_i32_131 = arith.constant 16 : i32
    %506 = arith.muli %c6_i32, %c16_i32_131 : i32
    %507 = tpu.assume_multiple %506, 16 : i32
    %c7_i32_132 = arith.constant 7 : i32
    %508 = arith.subi %c7_i32_132, %c6_i32 : i32
    %c16_i32_133 = arith.constant 16 : i32
    %509 = arith.muli %508, %c16_i32_133 : i32
    %510 = tpu.assume_multiple %509, 16 : i32
    %511 = arith.truncf %471 : vector<16x32xf32> to vector<16x32xbf16>
    %cst_134 = arith.constant dense<0.000000e+00> : vector<16x96xf32>
    %512 = tpu.matmul %511, %24, %cst_134 {dimension_numbers = #tpu.dot_dimension_numbers<[1], [0], [0], [1], [0, 0, 1, 1], [], []>} : vector<16x32xbf16>, vector<32x96xbf16>, vector<16x96xf32> -> vector<16x96xf32>
    %513 = arith.truncf %499 : vector<16x32xf32> to vector<16x32xbf16>
    %cst_135 = arith.constant dense<0.000000e+00> : vector<16x96xf32>
    %514 = tpu.matmul %513, %26, %cst_135 {dimension_numbers = #tpu.dot_dimension_numbers<[1], [0], [0], [1], [0, 0, 1, 1], [], []>} : vector<16x32xbf16>, vector<32x96xbf16>, vector<16x96xf32> -> vector<16x96xf32>
    %c0_136 = arith.constant 0 : index
    %515 = arith.index_cast %507 : i32 to index
    %c0_137 = arith.constant 0 : index
    %516 = vector.load %arg10[%c0_136, %515, %c0_137] : memref<2x128x96xbf16, #tpu.memory_space<vmem>>, vector<1x16x96xbf16>
    %517 = vector.shape_cast %516 : vector<1x16x96xbf16> to vector<16x96xbf16>
    %518 = arith.extf %517 : vector<16x96xbf16> to vector<16x96xf32>
    %c1_138 = arith.constant 1 : index
    %519 = arith.index_cast %510 : i32 to index
    %c0_139 = arith.constant 0 : index
    %520 = vector.load %arg10[%c1_138, %519, %c0_139] : memref<2x128x96xbf16, #tpu.memory_space<vmem>>, vector<1x16x96xbf16>
    %521 = vector.shape_cast %520 : vector<1x16x96xbf16> to vector<16x96xbf16>
    %522 = arith.extf %521 : vector<16x96xbf16> to vector<16x96xf32>
    %523 = vector.extract_strided_slice %518 {offsets = [0, 0], sizes = [16, 32], strides = [1, 1]} : vector<16x96xf32> to vector<16x32xf32>
    %524 = vector.extract_strided_slice %512 {offsets = [0, 0], sizes = [16, 32], strides = [1, 1]} : vector<16x96xf32> to vector<16x32xf32>
    %525 = arith.addf %523, %524 : vector<16x32xf32>
    %526 = arith.negf %525 : vector<16x32xf32>
    %527 = math.exp %526 : vector<16x32xf32>
    %cst_140 = arith.constant 1.000000e+00 : f32
    %528 = vector.broadcast %cst_140 : f32 to vector<16x32xf32>
    %529 = arith.addf %528, %527 : vector<16x32xf32>
    %530 = arith.divf %528, %529 : vector<16x32xf32>
    %531 = vector.extract_strided_slice %518 {offsets = [0, 32], sizes = [16, 32], strides = [1, 1]} : vector<16x96xf32> to vector<16x32xf32>
    %532 = vector.extract_strided_slice %512 {offsets = [0, 32], sizes = [16, 32], strides = [1, 1]} : vector<16x96xf32> to vector<16x32xf32>
    %533 = arith.addf %531, %532 : vector<16x32xf32>
    %534 = arith.negf %533 : vector<16x32xf32>
    %535 = math.exp %534 : vector<16x32xf32>
    %cst_141 = arith.constant 1.000000e+00 : f32
    %536 = vector.broadcast %cst_141 : f32 to vector<16x32xf32>
    %537 = arith.addf %536, %535 : vector<16x32xf32>
    %538 = arith.divf %536, %537 : vector<16x32xf32>
    %539 = vector.extract_strided_slice %518 {offsets = [0, 64], sizes = [16, 32], strides = [1, 1]} : vector<16x96xf32> to vector<16x32xf32>
    %540 = vector.extract_strided_slice %512 {offsets = [0, 64], sizes = [16, 32], strides = [1, 1]} : vector<16x96xf32> to vector<16x32xf32>
    %541 = vector.broadcast %28 : vector<1x32xf32> to vector<16x32xf32>
    %542 = arith.addf %540, %541 : vector<16x32xf32>
    %543 = arith.mulf %530, %542 : vector<16x32xf32>
    %544 = arith.addf %539, %543 : vector<16x32xf32>
    %545 = math.tanh %544 : vector<16x32xf32>
    %cst_142 = arith.constant 1.000000e+00 : f32
    %546 = vector.broadcast %cst_142 : f32 to vector<16x32xf32>
    %547 = arith.subf %546, %538 : vector<16x32xf32>
    %548 = arith.mulf %547, %545 : vector<16x32xf32>
    %549 = arith.mulf %538, %471 : vector<16x32xf32>
    %550 = arith.addf %548, %549 : vector<16x32xf32>
    %551 = vector.extract_strided_slice %522 {offsets = [0, 0], sizes = [16, 32], strides = [1, 1]} : vector<16x96xf32> to vector<16x32xf32>
    %552 = vector.extract_strided_slice %514 {offsets = [0, 0], sizes = [16, 32], strides = [1, 1]} : vector<16x96xf32> to vector<16x32xf32>
    %553 = arith.addf %551, %552 : vector<16x32xf32>
    %554 = arith.negf %553 : vector<16x32xf32>
    %555 = math.exp %554 : vector<16x32xf32>
    %cst_143 = arith.constant 1.000000e+00 : f32
    %556 = vector.broadcast %cst_143 : f32 to vector<16x32xf32>
    %557 = arith.addf %556, %555 : vector<16x32xf32>
    %558 = arith.divf %556, %557 : vector<16x32xf32>
    %559 = vector.extract_strided_slice %522 {offsets = [0, 32], sizes = [16, 32], strides = [1, 1]} : vector<16x96xf32> to vector<16x32xf32>
    %560 = vector.extract_strided_slice %514 {offsets = [0, 32], sizes = [16, 32], strides = [1, 1]} : vector<16x96xf32> to vector<16x32xf32>
    %561 = arith.addf %559, %560 : vector<16x32xf32>
    %562 = arith.negf %561 : vector<16x32xf32>
    %563 = math.exp %562 : vector<16x32xf32>
    %cst_144 = arith.constant 1.000000e+00 : f32
    %564 = vector.broadcast %cst_144 : f32 to vector<16x32xf32>
    %565 = arith.addf %564, %563 : vector<16x32xf32>
    %566 = arith.divf %564, %565 : vector<16x32xf32>
    %567 = vector.extract_strided_slice %522 {offsets = [0, 64], sizes = [16, 32], strides = [1, 1]} : vector<16x96xf32> to vector<16x32xf32>
    %568 = vector.extract_strided_slice %514 {offsets = [0, 64], sizes = [16, 32], strides = [1, 1]} : vector<16x96xf32> to vector<16x32xf32>
    %569 = vector.broadcast %30 : vector<1x32xf32> to vector<16x32xf32>
    %570 = arith.addf %568, %569 : vector<16x32xf32>
    %571 = arith.mulf %558, %570 : vector<16x32xf32>
    %572 = arith.addf %567, %571 : vector<16x32xf32>
    %573 = math.tanh %572 : vector<16x32xf32>
    %cst_145 = arith.constant 1.000000e+00 : f32
    %574 = vector.broadcast %cst_145 : f32 to vector<16x32xf32>
    %575 = arith.subf %574, %566 : vector<16x32xf32>
    %576 = arith.mulf %575, %573 : vector<16x32xf32>
    %577 = arith.mulf %566, %499 : vector<16x32xf32>
    %578 = arith.addf %576, %577 : vector<16x32xf32>
    %579 = arith.truncf %550 : vector<16x32xf32> to vector<16x32xbf16>
    %580 = arith.index_cast %507 : i32 to index
    %c0_146 = arith.constant 0 : index
    %581 = vector.load %arg8[%580, %c0_146] : memref<128x64xbf16, #tpu.memory_space<vmem>>, vector<16x32xbf16>
    tpu.vector_store %arg8[%580, %c0_146], %579 {strides = array<i32>} : memref<128x64xbf16, #tpu.memory_space<vmem>>, vector<16x32xbf16>,
    %582 = arith.truncf %578 : vector<16x32xf32> to vector<16x32xbf16>
    %583 = arith.index_cast %510 : i32 to index
    %c32_147 = arith.constant 32 : index
    %584 = vector.load %arg8[%583, %c32_147] : memref<128x64xbf16, #tpu.memory_space<vmem>>, vector<16x32xbf16>
    tpu.vector_store %arg8[%583, %c32_147], %582 {strides = array<i32>} : memref<128x64xbf16, #tpu.memory_space<vmem>>, vector<16x32xbf16>,
    %c7_i32_148 = arith.constant 7 : i32
    %c16_i32_149 = arith.constant 16 : i32
    %585 = arith.muli %c7_i32_148, %c16_i32_149 : i32
    %586 = tpu.assume_multiple %585, 16 : i32
    %c7_i32_150 = arith.constant 7 : i32
    %587 = arith.subi %c7_i32_150, %c7_i32_148 : i32
    %c16_i32_151 = arith.constant 16 : i32
    %588 = arith.muli %587, %c16_i32_151 : i32
    %589 = tpu.assume_multiple %588, 16 : i32
    %590 = arith.truncf %550 : vector<16x32xf32> to vector<16x32xbf16>
    %cst_152 = arith.constant dense<0.000000e+00> : vector<16x96xf32>
    %591 = tpu.matmul %590, %24, %cst_152 {dimension_numbers = #tpu.dot_dimension_numbers<[1], [0], [0], [1], [0, 0, 1, 1], [], []>} : vector<16x32xbf16>, vector<32x96xbf16>, vector<16x96xf32> -> vector<16x96xf32>
    %592 = arith.truncf %578 : vector<16x32xf32> to vector<16x32xbf16>
    %cst_153 = arith.constant dense<0.000000e+00> : vector<16x96xf32>
    %593 = tpu.matmul %592, %26, %cst_153 {dimension_numbers = #tpu.dot_dimension_numbers<[1], [0], [0], [1], [0, 0, 1, 1], [], []>} : vector<16x32xbf16>, vector<32x96xbf16>, vector<16x96xf32> -> vector<16x96xf32>
    %c0_154 = arith.constant 0 : index
    %594 = arith.index_cast %586 : i32 to index
    %c0_155 = arith.constant 0 : index
    %595 = vector.load %arg10[%c0_154, %594, %c0_155] : memref<2x128x96xbf16, #tpu.memory_space<vmem>>, vector<1x16x96xbf16>
    %596 = vector.shape_cast %595 : vector<1x16x96xbf16> to vector<16x96xbf16>
    %597 = arith.extf %596 : vector<16x96xbf16> to vector<16x96xf32>
    %c1_156 = arith.constant 1 : index
    %598 = arith.index_cast %589 : i32 to index
    %c0_157 = arith.constant 0 : index
    %599 = vector.load %arg10[%c1_156, %598, %c0_157] : memref<2x128x96xbf16, #tpu.memory_space<vmem>>, vector<1x16x96xbf16>
    %600 = vector.shape_cast %599 : vector<1x16x96xbf16> to vector<16x96xbf16>
    %601 = arith.extf %600 : vector<16x96xbf16> to vector<16x96xf32>
    %602 = vector.extract_strided_slice %597 {offsets = [0, 0], sizes = [16, 32], strides = [1, 1]} : vector<16x96xf32> to vector<16x32xf32>
    %603 = vector.extract_strided_slice %591 {offsets = [0, 0], sizes = [16, 32], strides = [1, 1]} : vector<16x96xf32> to vector<16x32xf32>
    %604 = arith.addf %602, %603 : vector<16x32xf32>
    %605 = arith.negf %604 : vector<16x32xf32>
    %606 = math.exp %605 : vector<16x32xf32>
    %cst_158 = arith.constant 1.000000e+00 : f32
    %607 = vector.broadcast %cst_158 : f32 to vector<16x32xf32>
    %608 = arith.addf %607, %606 : vector<16x32xf32>
    %609 = arith.divf %607, %608 : vector<16x32xf32>
    %610 = vector.extract_strided_slice %597 {offsets = [0, 32], sizes = [16, 32], strides = [1, 1]} : vector<16x96xf32> to vector<16x32xf32>
    %611 = vector.extract_strided_slice %591 {offsets = [0, 32], sizes = [16, 32], strides = [1, 1]} : vector<16x96xf32> to vector<16x32xf32>
    %612 = arith.addf %610, %611 : vector<16x32xf32>
    %613 = arith.negf %612 : vector<16x32xf32>
    %614 = math.exp %613 : vector<16x32xf32>
    %cst_159 = arith.constant 1.000000e+00 : f32
    %615 = vector.broadcast %cst_159 : f32 to vector<16x32xf32>
    %616 = arith.addf %615, %614 : vector<16x32xf32>
    %617 = arith.divf %615, %616 : vector<16x32xf32>
    %618 = vector.extract_strided_slice %597 {offsets = [0, 64], sizes = [16, 32], strides = [1, 1]} : vector<16x96xf32> to vector<16x32xf32>
    %619 = vector.extract_strided_slice %591 {offsets = [0, 64], sizes = [16, 32], strides = [1, 1]} : vector<16x96xf32> to vector<16x32xf32>
    %620 = vector.broadcast %28 : vector<1x32xf32> to vector<16x32xf32>
    %621 = arith.addf %619, %620 : vector<16x32xf32>
    %622 = arith.mulf %609, %621 : vector<16x32xf32>
    %623 = arith.addf %618, %622 : vector<16x32xf32>
    %624 = math.tanh %623 : vector<16x32xf32>
    %cst_160 = arith.constant 1.000000e+00 : f32
    %625 = vector.broadcast %cst_160 : f32 to vector<16x32xf32>
    %626 = arith.subf %625, %617 : vector<16x32xf32>
    %627 = arith.mulf %626, %624 : vector<16x32xf32>
    %628 = arith.mulf %617, %550 : vector<16x32xf32>
    %629 = arith.addf %627, %628 : vector<16x32xf32>
    %630 = vector.extract_strided_slice %601 {offsets = [0, 0], sizes = [16, 32], strides = [1, 1]} : vector<16x96xf32> to vector<16x32xf32>
    %631 = vector.extract_strided_slice %593 {offsets = [0, 0], sizes = [16, 32], strides = [1, 1]} : vector<16x96xf32> to vector<16x32xf32>
    %632 = arith.addf %630, %631 : vector<16x32xf32>
    %633 = arith.negf %632 : vector<16x32xf32>
    %634 = math.exp %633 : vector<16x32xf32>
    %cst_161 = arith.constant 1.000000e+00 : f32
    %635 = vector.broadcast %cst_161 : f32 to vector<16x32xf32>
    %636 = arith.addf %635, %634 : vector<16x32xf32>
    %637 = arith.divf %635, %636 : vector<16x32xf32>
    %638 = vector.extract_strided_slice %601 {offsets = [0, 32], sizes = [16, 32], strides = [1, 1]} : vector<16x96xf32> to vector<16x32xf32>
    %639 = vector.extract_strided_slice %593 {offsets = [0, 32], sizes = [16, 32], strides = [1, 1]} : vector<16x96xf32> to vector<16x32xf32>
    %640 = arith.addf %638, %639 : vector<16x32xf32>
    %641 = arith.negf %640 : vector<16x32xf32>
    %642 = math.exp %641 : vector<16x32xf32>
    %cst_162 = arith.constant 1.000000e+00 : f32
    %643 = vector.broadcast %cst_162 : f32 to vector<16x32xf32>
    %644 = arith.addf %643, %642 : vector<16x32xf32>
    %645 = arith.divf %643, %644 : vector<16x32xf32>
    %646 = vector.extract_strided_slice %601 {offsets = [0, 64], sizes = [16, 32], strides = [1, 1]} : vector<16x96xf32> to vector<16x32xf32>
    %647 = vector.extract_strided_slice %593 {offsets = [0, 64], sizes = [16, 32], strides = [1, 1]} : vector<16x96xf32> to vector<16x32xf32>
    %648 = vector.broadcast %30 : vector<1x32xf32> to vector<16x32xf32>
    %649 = arith.addf %647, %648 : vector<16x32xf32>
    %650 = arith.mulf %637, %649 : vector<16x32xf32>
    %651 = arith.addf %646, %650 : vector<16x32xf32>
    %652 = math.tanh %651 : vector<16x32xf32>
    %cst_163 = arith.constant 1.000000e+00 : f32
    %653 = vector.broadcast %cst_163 : f32 to vector<16x32xf32>
    %654 = arith.subf %653, %645 : vector<16x32xf32>
    %655 = arith.mulf %654, %652 : vector<16x32xf32>
    %656 = arith.mulf %645, %578 : vector<16x32xf32>
    %657 = arith.addf %655, %656 : vector<16x32xf32>
    %658 = arith.truncf %629 : vector<16x32xf32> to vector<16x32xbf16>
    %659 = arith.index_cast %586 : i32 to index
    %c0_164 = arith.constant 0 : index
    %660 = vector.load %arg8[%659, %c0_164] : memref<128x64xbf16, #tpu.memory_space<vmem>>, vector<16x32xbf16>
    tpu.vector_store %arg8[%659, %c0_164], %658 {strides = array<i32>} : memref<128x64xbf16, #tpu.memory_space<vmem>>, vector<16x32xbf16>,
    %661 = arith.truncf %657 : vector<16x32xf32> to vector<16x32xbf16>
    %662 = arith.index_cast %589 : i32 to index
    %c32_165 = arith.constant 32 : index
    %663 = vector.load %arg8[%662, %c32_165] : memref<128x64xbf16, #tpu.memory_space<vmem>>, vector<16x32xbf16>
    tpu.vector_store %arg8[%662, %c32_165], %661 {strides = array<i32>} : memref<128x64xbf16, #tpu.memory_space<vmem>>, vector<16x32xbf16>,
    %c8_i32 = arith.constant 8 : i32
    %c112 = arith.constant 112 : index
    %c32_166 = arith.constant 32 : index
    %664 = vector.load %arg8[%c112, %c32_166] : memref<128x64xbf16, #tpu.memory_space<vmem>>, vector<16x32xbf16>
    %665 = arith.truncf %629 : vector<16x32xf32> to vector<16x32xbf16>
    %c0_167 = arith.constant 0 : index
    %c0_168 = arith.constant 0 : index
    %666 = vector.load %arg5[%c0_167, %c0_168] : memref<32x2xbf16, #tpu.memory_space<vmem>>, vector<32x2xbf16>
    %cst_169 = arith.constant dense<0.000000e+00> : vector<16x2xf32>
    %667 = tpu.matmul %665, %666, %cst_169 {dimension_numbers = #tpu.dot_dimension_numbers<[1], [0], [0], [1], [0, 0, 1, 1], [], []>} : vector<16x32xbf16>, vector<32x2xbf16>, vector<16x2xf32> -> vector<16x2xf32>
    %c0_170 = arith.constant 0 : index
    %c0_171 = arith.constant 0 : index
    %668 = vector.load %arg6[%c0_170, %c0_171] : memref<32x2xbf16, #tpu.memory_space<vmem>>, vector<32x2xbf16>
    %cst_172 = arith.constant dense<0.000000e+00> : vector<16x2xf32>
    %669 = tpu.matmul %664, %668, %cst_172 {dimension_numbers = #tpu.dot_dimension_numbers<[1], [0], [0], [1], [0, 0, 1, 1], [], []>} : vector<16x32xbf16>, vector<32x2xbf16>, vector<16x2xf32> -> vector<16x2xf32>
    %670 = arith.addf %667, %669 : vector<16x2xf32>
    %c0_173 = arith.constant 0 : index
    %c0_174 = arith.constant 0 : index
    %671 = vector.load %arg7[%c0_173, %c0_174] : memref<1x2xf32, #tpu.memory_space<vmem>>, vector<1x2xf32>
    %672 = vector.broadcast %671 : vector<1x2xf32> to vector<16x2xf32>
    %673 = arith.addf %670, %672 : vector<16x2xf32>
    %c0_175 = arith.constant 0 : index
    %c0_176 = arith.constant 0 : index
    %674 = vector.load %arg9[%c0_175, %c0_176] : memref<16x2xf32, #tpu.memory_space<vmem>>, vector<16x2xf32>
    tpu.vector_store %arg9[%c0_175, %c0_176], %673 {strides = array<i32>} : memref<16x2xf32, #tpu.memory_space<vmem>>, vector<16x2xf32>,
    return
  }
}

</mosaic_0001>

<llo_original>
// kernel: bigru_forward.2
$region0: #{bigru_forward.2}
  #allocation0 [shape = 'u32[]', space=smem, size = 0x4, offset = 0x4, fixed_abs, tag = 'smem constant byte address 0x4 - core index']
  #allocation1 [shape = 'u32[72,128]{1,0:T(1,128)}', space=vmem, size = 0x9000, scoped, tag = 'internal scratch']
  #allocation2 [shape = 'bf16[2,128,96]{2,1,0:T(8,128)(2,1)}', space=vmem, size = 0x10000, scoped, tag = 'scratch operand']
  %s0 = inlined_call_operand.vmem [shape: bf16[128,16], index: 0, kind: input, shape index: {}]
  %s1 = inlined_call_operand.vmem [shape: bf16[2,16,96], index: 1, kind: input, shape index: {}]
  %s2 = inlined_call_operand.vmem [shape: f32[2,1,96], index: 2, kind: input, shape index: {}]
  %s3 = inlined_call_operand.vmem [shape: bf16[2,32,96], index: 3, kind: input, shape index: {}]
  %s4 = inlined_call_operand.vmem [shape: f32[2,1,32], index: 4, kind: input, shape index: {}]
  %s5 = inlined_call_operand.vmem [shape: bf16[128,64], index: 5, kind: output, shape index: {}]
  %s6 = sld [smem:[#allocation0]]
  $region30: #{bigru_forward.2} parent=0
    _
  %s8 = ssub.s32 1, %s6
  %s9 = scalar_select 0, %s8, %s6
  // Predicated region
  $region2: #{bigru_forward.2} parent=0 // pred_check
    _
  $region3: #{bigru_forward.2} parent=0 // pred_check_branch
    %11 = sbr.rel (0) target = $region5
  $region4: #{bigru_forward.2} parent=0 // pred_region
    _
  $region5: #{bigru_forward.2} parent=0 // pred_fallthru
    _
  // Predicated region
  $region6: #{bigru_forward.2} parent=0 // pred_check
    _
  $region7: #{bigru_forward.2} parent=0 // pred_check_branch
    %13 = sbr.rel (0) target = $region9
  $region8: #{bigru_forward.2} parent=0 // pred_region
    _
  $region9: #{bigru_forward.2} parent=0 // pred_fallthru
    _
  // Predicated region
  $region10: #{bigru_forward.2} parent=0 // pred_check
    _
  $region11: #{bigru_forward.2} parent=0 // pred_check_branch
    %15 = sbr.rel (0) target = $region13
  $region12: #{bigru_forward.2} parent=0 // pred_region
    _
  $region13: #{bigru_forward.2} parent=0 // pred_fallthru
    _
  // Predicated region
  $region14: #{bigru_forward.2} parent=0 // pred_check
    _
  $region15: #{bigru_forward.2} parent=0 // pred_check_branch
    %17 = sbr.rel (0) target = $region17
  $region16: #{bigru_forward.2} parent=0 // pred_region
    _
  $region17: #{bigru_forward.2} parent=0 // pred_fallthru
    _
  // Predicated region
  $region18: #{bigru_forward.2} parent=0 // pred_check
    _
  $region19: #{bigru_forward.2} parent=0 // pred_check_branch
    %19 = sbr.rel (0) target = $region21
  $region20: #{bigru_forward.2} parent=0 // pred_region
    _
  $region21: #{bigru_forward.2} parent=0 // pred_fallthru
    _
  %v21 = vld [vmem:[%s0] sm:$0xf]
  %v22 = vld [vmem:[%s0 + $0x4] sm:$0xf]
  %v23 = vld [vmem:[%s0 + $0x8] sm:$0xf]
  %v24 = vld [vmem:[%s0 + $0xc] sm:$0xf]
  %v25 = vld [vmem:[%s0 + $0x10] sm:$0xf]
  %v26 = vld [vmem:[%s0 + $0x14] sm:$0xf]
  %v27 = vld [vmem:[%s0 + $0x18] sm:$0xf]
  %v28 = vld [vmem:[%s0 + $0x1c] sm:$0xf]
  %v29 = vld [vmem:[%s0 + $0x20] sm:$0xf]
  %v30 = vld [vmem:[%s0 + $0x24] sm:$0xf]
  %v31 = vld [vmem:[%s0 + $0x28] sm:$0xf]
  %v32 = vld [vmem:[%s0 + $0x2c] sm:$0xf]
  %v33 = vld [vmem:[%s0 + $0x30] sm:$0xf]
  %v34 = vld [vmem:[%s0 + $0x34] sm:$0xf]
  %v35 = vld [vmem:[%s0 + $0x38] sm:$0xf]
  %v36 = vld [vmem:[%s0 + $0x3c] sm:$0xf]
  %v37 = vld [vmem:[%s1] sm:$0xf]
  %v38 = vld [vmem:[%s1 + $0x4] sm:$0xf]
  %v39 = vld [vmem:[%s2] sm:$0x1]
  %v41 = vperm.slane %v39, 0
  %v59 = vunpack.c.l.b16 %v21
  %v60 = vunpack.c.l.b16 %v22
  %v61 = vunpack.c.l.b16 %v23
  %v62 = vunpack.c.l.b16 %v24
  %v63 = vunpack.c.l.b16 %v25
  %v64 = vunpack.c.l.b16 %v26
  %v65 = vunpack.c.l.b16 %v27
  %v66 = vunpack.c.l.b16 %v28
  %v67 = vunpack.c.l.b16 %v29
  %v68 = vunpack.c.l.b16 %v30
  %v69 = vunpack.c.l.b16 %v31
  %v70 = vunpack.c.l.b16 %v32
  %v71 = vunpack.c.l.b16 %v33
  %v72 = vunpack.c.l.b16 %v34
  %v73 = vunpack.c.l.b16 %v35
  %v74 = vunpack.c.l.b16 %v36
  %v75 = vpack.c.b16 %v60, %v59
  %v76 = vpack.c.b16 %v62, %v61
  %v77 = vpack.c.b16 %v64, %v63
  %v78 = vpack.c.b16 %v66, %v65
  %v79 = vpack.c.b16 %v68, %v67
  %v80 = vpack.c.b16 %v70, %v69
  %v81 = vpack.c.b16 %v72, %v71
  %v82 = vpack.c.b16 %v74, %v73
  %v85 = vunpack.c.l.b16 %v37
  %v86 = vunpack.c.l.b16 %v38
  %v87 = vpack.c.b16 %v86, %v85
  %vm89 = vcmask 130048
  %v91 = vsel %vm89, %v75, 0
  %v94 = vsel %vm89, %v76, 0
  %v97 = vsel %vm89, %v77, 0
  %v100 = vsel %vm89, %v78, 0
  %v103 = vsel %vm89, %v79, 0
  %v106 = vsel %vm89, %v80, 0
  %v109 = vsel %vm89, %v81, 0
  %v112 = vsel %vm89, %v82, 0
  %114 = vmatpush.bf16.msra.mxu0 0
  %115 = vmatpush.bf16.msra.mxu0 0
  %116 = vmatpush.bf16.msra.mxu0 0
  %117 = vmatpush.bf16.msra.mxu0 0
  %118 = vmatpush.bf16.msra.mxu0 0
  %119 = vmatpush.bf16.msra.mxu0 0
  %120 = vmatpush.bf16.msra.mxu0 0
  %121 = vmatpush.bf16.msra.mxu0 %v87
  %122 = vmatmul.bf16.gmra.mxu0 %v91
  %v123 = vpop.f32.mrf.mxu0
  %v124 = vadd.f32 %v41, %v123
  %v125 = vpop.f32.mrf.mxu0
  %v126 = vadd.f32 %v41, %v125
  %127 = vmatmul.bf16.gmra.mxu0 %v94
  %v128 = vpop.f32.mrf.mxu0
  %v129 = vadd.f32 %v41, %v128
  %v130 = vpop.f32.mrf.mxu0
  %v131 = vadd.f32 %v41, %v130
  %132 = vmatmul.bf16.gmra.mxu0 %v97
  %v133 = vpop.f32.mrf.mxu0
  %v134 = vadd.f32 %v41, %v133
  %v135 = vpop.f32.mrf.mxu0
  %v136 = vadd.f32 %v41, %v135
  %137 = vmatmul.bf16.gmra.mxu0 %v100
  %v138 = vpop.f32.mrf.mxu0
  %v139 = vadd.f32 %v41, %v138
  %v140 = vpop.f32.mrf.mxu0
  %v141 = vadd.f32 %v41, %v140
  %142 = vmatmul.bf16.gmra.mxu0 %v103
  %v143 = vpop.f32.mrf.mxu0
  %v144 = vadd.f32 %v41, %v143
  %v145 = vpop.f32.mrf.mxu0
  %v146 = vadd.f32 %v41, %v145
  %147 = vmatmul.bf16.gmra.mxu0 %v106
  %v148 = vpop.f32.mrf.mxu0
  %v149 = vadd.f32 %v41, %v148
  %v150 = vpop.f32.mrf.mxu0
  %v151 = vadd.f32 %v41, %v150
  %152 = vmatmul.bf16.gmra.mxu0 %v109
  %v153 = vpop.f32.mrf.mxu0
  %v154 = vadd.f32 %v41, %v153
  %v155 = vpop.f32.mrf.mxu0
  %v156 = vadd.f32 %v41, %v155
  %157 = vmatmul.bf16.gmra.mxu0 %v112
  %v158 = vpop.f32.mrf.mxu0
  %v159 = vadd.f32 %v41, %v158
  %v160 = vpop.f32.mrf.mxu0
  %v161 = vadd.f32 %v41, %v160
  %162 = vdwg.mxu0
  %v163 = vpack.c.bf16 %v124, %v124
  %v164 = vpack.c.bf16 %v126, %v126
  %v165 = vpack.c.bf16 %v129, %v129
  %v166 = vpack.c.bf16 %v131, %v131
  %v167 = vpack.c.bf16 %v134, %v134
  %v168 = vpack.c.bf16 %v136, %v136
  %v169 = vpack.c.bf16 %v139, %v139
  %v170 = vpack.c.bf16 %v141, %v141
  %v171 = vpack.c.bf16 %v144, %v144
  %v172 = vpack.c.bf16 %v146, %v146
  %v173 = vpack.c.bf16 %v149, %v149
  %v174 = vpack.c.bf16 %v151, %v151
  %v175 = vpack.c.bf16 %v154, %v154
  %v176 = vpack.c.bf16 %v156, %v156
  %v177 = vpack.c.bf16 %v159, %v159
  %v178 = vpack.c.bf16 %v161, %v161
  %vm179 = vcmask 781312
  %180 = vst.msk [vmem:[#allocation2] sm:$0xf] %vm179, %v163
  %181 = vst.msk [vmem:[#allocation2 + $0x4] sm:$0xf] %vm179, %v164
  %182 = vst.msk [vmem:[#allocation2 + $0x8] sm:$0xf] %vm179, %v165
  %183 = vst.msk [vmem:[#allocation2 + $0xc] sm:$0xf] %vm179, %v166
  %184 = vst.msk [vmem:[#allocation2 + $0x10] sm:$0xf] %vm179, %v167
  %185 = vst.msk [vmem:[#allocation2 + $0x14] sm:$0xf] %vm179, %v168
  %186 = vst.msk [vmem:[#allocation2 + $0x18] sm:$0xf] %vm179, %v169
  %187 = vst.msk [vmem:[#allocation2 + $0x1c] sm:$0xf] %vm179, %v170
  %188 = vst.msk [vmem:[#allocation2 + $0x20] sm:$0xf] %vm179, %v171
  %189 = vst.msk [vmem:[#allocation2 + $0x24] sm:$0xf] %vm179, %v172
  %190 = vst.msk [vmem:[#allocation2 + $0x28] sm:$0xf] %vm179, %v173
  %191 = vst.msk [vmem:[#allocation2 + $0x2c] sm:$0xf] %vm179, %v174
  %192 = vst.msk [vmem:[#allocation2 + $0x30] sm:$0xf] %vm179, %v175
  %193 = vst.msk [vmem:[#allocation2 + $0x34] sm:$0xf] %vm179, %v176
  %194 = vst.msk [vmem:[#allocation2 + $0x38] sm:$0xf] %vm179, %v177
  %195 = vst.msk [vmem:[#allocation2 + $0x3c] sm:$0xf] %vm179, %v178
  %s196 = scalar_lea.vmem %s1, 8
  %v197 = vld [vmem:[%s196] sm:$0xf]
  %v198 = vld [vmem:[%s196 + $0x4] sm:$0xf]
  %s199 = scalar_lea.vmem %s2, 1
  %v200 = vld [vmem:[%s199] sm:$0x1]
  %v202 = vperm.slane %v200, 0
  %v206 = vunpack.c.l.b16 %v197
  %v207 = vunpack.c.l.b16 %v198
  %v208 = vpack.c.b16 %v207, %v206
  %210 = vmatpush.bf16.msra.mxu0 0
  %211 = vmatpush.bf16.msra.mxu0 0
  %212 = vmatpush.bf16.msra.mxu0 0
  %213 = vmatpush.bf16.msra.mxu0 0
  %214 = vmatpush.bf16.msra.mxu0 0
  %215 = vmatpush.bf16.msra.mxu0 0
  %216 = vmatpush.bf16.msra.mxu0 0
  %217 = vmatpush.bf16.msra.mxu0 %v208
  %218 = vmatmul.bf16.gmra.mxu0 %v91
  %v219 = vpop.f32.mrf.mxu0
  %v220 = vadd.f32 %v202, %v219
  %v221 = vpop.f32.mrf.mxu0
  %v222 = vadd.f32 %v202, %v221
  %223 = vmatmul.bf16.gmra.mxu0 %v94
  %v224 = vpop.f32.mrf.mxu0
  %v225 = vadd.f32 %v202, %v224
  %v226 = vpop.f32.mrf.mxu0
  %v227 = vadd.f32 %v202, %v226
  %228 = vmatmul.bf16.gmra.mxu0 %v97
  %v229 = vpop.f32.mrf.mxu0
  %v230 = vadd.f32 %v202, %v229
  %v231 = vpop.f32.mrf.mxu0
  %v232 = vadd.f32 %v202, %v231
  %233 = vmatmul.bf16.gmra.mxu0 %v100
  %v234 = vpop.f32.mrf.mxu0
  %v235 = vadd.f32 %v202, %v234
  %v236 = vpop.f32.mrf.mxu0
  %v237 = vadd.f32 %v202, %v236
  %238 = vmatmul.bf16.gmra.mxu0 %v103
  %v239 = vpop.f32.mrf.mxu0
  %v240 = vadd.f32 %v202, %v239
  %v241 = vpop.f32.mrf.mxu0
  %v242 = vadd.f32 %v202, %v241
  %243 = vmatmul.bf16.gmra.mxu0 %v106
  %v244 = vpop.f32.mrf.mxu0
  %v245 = vadd.f32 %v202, %v244
  %v246 = vpop.f32.mrf.mxu0
  %v247 = vadd.f32 %v202, %v246
  %248 = vmatmul.bf16.gmra.mxu0 %v109
  %v249 = vpop.f32.mrf.mxu0
  %v250 = vadd.f32 %v202, %v249
  %v251 = vpop.f32.mrf.mxu0
  %v252 = vadd.f32 %v202, %v251
  %253 = vmatmul.bf16.gmra.mxu0 %v112
  %v254 = vpop.f32.mrf.mxu0
  %v255 = vadd.f32 %v202, %v254
  %v256 = vpop.f32.mrf.mxu0
  %v257 = vadd.f32 %v202, %v256
  %258 = vdwg.mxu0
  %v259 = vpack.c.bf16 %v220, %v220
  %v260 = vpack.c.bf16 %v222, %v222
  %v261 = vpack.c.bf16 %v225, %v225
  %v262 = vpack.c.bf16 %v227, %v227
  %v263 = vpack.c.bf16 %v230, %v230
  %v264 = vpack.c.bf16 %v232, %v232
  %v265 = vpack.c.bf16 %v235, %v235
  %v266 = vpack.c.bf16 %v237, %v237
  %v267 = vpack.c.bf16 %v240, %v240
  %v268 = vpack.c.bf16 %v242, %v242
  %v269 = vpack.c.bf16 %v245, %v245
  %v270 = vpack.c.bf16 %v247, %v247
  %v271 = vpack.c.bf16 %v250, %v250
  %v272 = vpack.c.bf16 %v252, %v252
  %v273 = vpack.c.bf16 %v255, %v255
  %v274 = vpack.c.bf16 %v257, %v257
  %s275 = scalar_lea.vmem [#allocation2], 64
  %276 = vst.msk [vmem:[%s275] sm:$0xf] %vm179, %v259
  %277 = vst.msk [vmem:[%s275 + $0x4] sm:$0xf] %vm179, %v260
  %278 = vst.msk [vmem:[%s275 + $0x8] sm:$0xf] %vm179, %v261
  %279 = vst.msk [vmem:[%s275 + $0xc] sm:$0xf] %vm179, %v262
  %280 = vst.msk [vmem:[%s275 + $0x10] sm:$0xf] %vm179, %v263
  %281 = vst.msk [vmem:[%s275 + $0x14] sm:$0xf] %vm179, %v264
  %282 = vst.msk [vmem:[%s275 + $0x18] sm:$0xf] %vm179, %v265
  %283 = vst.msk [vmem:[%s275 + $0x1c] sm:$0xf] %vm179, %v266
  %284 = vst.msk [vmem:[%s275 + $0x20] sm:$0xf] %vm179, %v267
  %285 = vst.msk [vmem:[%s275 + $0x24] sm:$0xf] %vm179, %v268
  %286 = vst.msk [vmem:[%s275 + $0x28] sm:$0xf] %vm179, %v269
  %287 = vst.msk [vmem:[%s275 + $0x2c] sm:$0xf] %vm179, %v270
  %288 = vst.msk [vmem:[%s275 + $0x30] sm:$0xf] %vm179, %v271
  %289 = vst.msk [vmem:[%s275 + $0x34] sm:$0xf] %vm179, %v272
  %290 = vst.msk [vmem:[%s275 + $0x38] sm:$0xf] %vm179, %v273
  %291 = vst.msk [vmem:[%s275 + $0x3c] sm:$0xf] %vm179, %v274
  %v292 = vld [vmem:[%s3] sm:$0xf]
  %v293 = vld [vmem:[%s3 + $0x4] sm:$0xf]
  %v294 = vld [vmem:[%s3 + $0x8] sm:$0xf]
  %v295 = vld [vmem:[%s3 + $0xc] sm:$0xf]
  %s296 = scalar_lea.vmem %s3, 16
  %v297 = vld [vmem:[%s296] sm:$0xf]
  %v298 = vld [vmem:[%s296 + $0x4] sm:$0xf]
  %v299 = vld [vmem:[%s296 + $0x8] sm:$0xf]
  %v300 = vld [vmem:[%s296 + $0xc] sm:$0xf]
  %v301 = vld [vmem:[%s4] sm:$0x1]
  %s302 = scalar_lea.vmem %s4, 1
  %v303 = vld [vmem:[%s302] sm:$0x1]
  %v308 = vunpack.c.l.b16 %v292
  %v309 = vunpack.c.l.b16 %v293
  %v310 = vunpack.c.l.b16 %v294
  %v311 = vunpack.c.l.b16 %v295
  %v312 = vpack.c.b16 %v309, %v308
  %v313 = vpack.c.b16 %v311, %v310
  %vm316 = vcmask 261120
  %v318 = vsel %vm316, 0, 0
  %320 = vmatpush.bf16.msra.mxu0 0
  %321 = vmatpush.bf16.msra.mxu0 0
  %322 = vmatpush.bf16.msra.mxu0 0
  %323 = vmatpush.bf16.msra.mxu0 0
  %324 = vmatpush.bf16.msra.mxu0 0
  %325 = vmatpush.bf16.msra.mxu0 0
  %326 = vmatpush.bf16.msra.mxu0 %v313
  %327 = vmatpush.bf16.msra.mxu0 %v312
  %328 = vmatmul.bf16.gmra.mxu0 %v318
  %v329 = vpop.f32.mrf.mxu0
  %v330 = vadd.f32 0.0, %v329
  %v331 = vpop.f32.mrf.mxu0
  %v332 = vadd.f32 0.0, %v331
  %333 = vdwg.mxu0
  %v338 = vunpack.c.l.b16 %v297
  %v339 = vunpack.c.l.b16 %v298
  %v340 = vunpack.c.l.b16 %v299
  %v341 = vunpack.c.l.b16 %v300
  %v342 = vpack.c.b16 %v339, %v338
  %v343 = vpack.c.b16 %v341, %v340
  %346 = vmatpush.bf16.msra.mxu0 0
  %347 = vmatpush.bf16.msra.mxu0 0
  %348 = vmatpush.bf16.msra.mxu0 0
  %349 = vmatpush.bf16.msra.mxu0 0
  %350 = vmatpush.bf16.msra.mxu0 0
  %351 = vmatpush.bf16.msra.mxu0 0
  %352 = vmatpush.bf16.msra.mxu0 %v343
  %353 = vmatpush.bf16.msra.mxu0 %v342
  %354 = vmatmul.bf16.gmra.mxu0 %v318
  %v355 = vpop.f32.mrf.mxu0
  %v356 = vadd.f32 0.0, %v355
  %v357 = vpop.f32.mrf.mxu0
  %v358 = vadd.f32 0.0, %v357
  %359 = vdwg.mxu0
  %v360 = vld [vmem:[#allocation2] sm:$0xf]
  %v361 = vld [vmem:[#allocation2 + $0x4] sm:$0xf]
  %v362 = vunpack.c.l.bf16 %v360
  %v363 = vunpack.c.l.bf16 %v361
  %s364 = sadd.s32 14, 16
  %s365 = smul.addr %s364, 4
  %s366 = scalar_lea.vmem [#allocation2], %s365
  %v367 = vld [vmem:[%s366] sm:$0xf]
  %v368 = vld [vmem:[%s366 + $0x4] sm:$0xf]
  %v369 = vunpack.c.l.bf16 %v367
  %v370 = vunpack.c.l.bf16 %v368
  %v371 = vadd.f32 %v362, %v330
  %v372 = vadd.f32 %v363, %v332
  %v373 = vxor.u32 %v371, 2147483648
  %v374 = vxor.u32 %v372, 2147483648
  %v375 = vmul.f32 %v373, 1.442695
  %v376 = vpow.pop %v375
  %v377 = vmul.f32 %v374, 1.442695
  %v378 = vpow.pop %v377
  %v379 = vadd.f32 %v376, 1.0
  %v380 = vadd.f32 %v378, 1.0
  %v381 = vrcp.pop %v379
  %v382 = vmul.f32 %v379, %v381
  %v383 = vsub.f32 1.0, %v382
  %v384 = vmul.f32 %v381, %v383
  %v385 = vadd.f32 %v381, %v384
  %vm386 = vweird.f32 %v379
  %vm387 = vweird.f32 %v381
  %vm388 = vmor %vm386, %vm387
  %v389 = vsel %vm388, %v381, %v385
  %v390 = vand.u32 2147483647, %v379
  %vm391 = vcmp.eq.f32.partialorder %v390, 8.507059e+37
  %v392 = vand.u32 %v379, 2147483648
  %v393 = vor.u32 1.1754944e-38, %v392
  %v394 = vsel %vm391, %v393, %v389
  %v395 = vmul.f32 1.0, %v394
  %v396 = vrcp.pop %v380
  %v397 = vmul.f32 %v380, %v396
  %v398 = vsub.f32 1.0, %v397
  %v399 = vmul.f32 %v396, %v398
  %v400 = vadd.f32 %v396, %v399
  %vm401 = vweird.f32 %v380
  %vm402 = vweird.f32 %v396
  %vm403 = vmor %vm401, %vm402
  %v404 = vsel %vm403, %v396, %v400
  %v405 = vand.u32 2147483647, %v380
  %vm406 = vcmp.eq.f32.partialorder %v405, 8.507059e+37
  %v407 = vand.u32 %v380, 2147483648
  %v408 = vor.u32 1.1754944e-38, %v407
  %v409 = vsel %vm406, %v408, %v404
  %v410 = vmul.f32 1.0, %v409
  %v412 = vperm.slane %v301, 0
  %413 = vrot.lane.b32.xlu0 %v412, 64
  %v414 = vpop.permute.xlu0 %413
  %v416 = vadd.f32 %v330, %v414
  %v417 = vadd.f32 %v332, %v414
  %420 = vrot.lane.b32.xlu0 %v416, 64
  %v421 = vpop.permute.xlu0 %420
  %422 = vrot.lane.b32.xlu0 %v417, 64
  %v423 = vpop.permute.xlu0 %422
  %v426 = vmul.f32 %v395, %v421
  %v427 = vmul.f32 %v410, %v423
  %430 = vrot.lane.b32.xlu0 %v426, 64
  %v431 = vpop.permute.xlu0 %430
  %432 = vrot.lane.b32.xlu0 %v427, 64
  %v433 = vpop.permute.xlu0 %432
  %v436 = vadd.f32 %v362, %v431
  %v437 = vadd.f32 %v363, %v433
  %v438 = vtanh.pop %v436
  %v439 = vtanh.pop %v437
  %v440 = vsub.f32 1.0, %v395
  %v441 = vsub.f32 1.0, %v410
  %444 = vrot.lane.b32.xlu0 %v438, 96
  %v445 = vpop.permute.xlu0 %444
  %446 = vrot.lane.b32.xlu0 %v439, 96
  %v447 = vpop.permute.xlu0 %446
  %v450 = vmul.f32 %v440, %v445
  %v451 = vmul.f32 %v441, %v447
  %v452 = vmul.f32 %v395, 0.0
  %v453 = vmul.f32 %v410, 0.0
  %v454 = vadd.f32 %v450, %v452
  %v455 = vadd.f32 %v451, %v453
  %v456 = vadd.f32 %v369, %v356
  %v457 = vadd.f32 %v370, %v358
  %v458 = vxor.u32 %v456, 2147483648
  %v459 = vxor.u32 %v457, 2147483648
  %v460 = vmul.f32 %v458, 1.442695
  %v461 = vpow.pop %v460
  %v462 = vmul.f32 %v459, 1.442695
  %v463 = vpow.pop %v462
  %v464 = vadd.f32 %v461, 1.0
  %v465 = vadd.f32 %v463, 1.0
  %v466 = vrcp.pop %v464
  %v467 = vmul.f32 %v464, %v466
  %v468 = vsub.f32 1.0, %v467
  %v469 = vmul.f32 %v466, %v468
  %v470 = vadd.f32 %v466, %v469
  %vm471 = vweird.f32 %v464
  %vm472 = vweird.f32 %v466
  %vm473 = vmor %vm471, %vm472
  %v474 = vsel %vm473, %v466, %v470
  %v475 = vand.u32 2147483647, %v464
  %vm476 = vcmp.eq.f32.partialorder %v475, 8.507059e+37
  %v477 = vand.u32 %v464, 2147483648
  %v478 = vor.u32 1.1754944e-38, %v477
  %v479 = vsel %vm476, %v478, %v474
  %v480 = vmul.f32 1.0, %v479
  %v481 = vrcp.pop %v465
  %v482 = vmul.f32 %v465, %v481
  %v483 = vsub.f32 1.0, %v482
  %v484 = vmul.f32 %v481, %v483
  %v485 = vadd.f32 %v481, %v484
  %vm486 = vweird.f32 %v465
  %vm487 = vweird.f32 %v481
  %vm488 = vmor %vm486, %vm487
  %v489 = vsel %vm488, %v481, %v485
  %v490 = vand.u32 2147483647, %v465
  %vm491 = vcmp.eq.f32.partialorder %v490, 8.507059e+37
  %v492 = vand.u32 %v465, 2147483648
  %v493 = vor.u32 1.1754944e-38, %v492
  %v494 = vsel %vm491, %v493, %v489
  %v495 = vmul.f32 1.0, %v494
  %v497 = vperm.slane %v303, 0
  %498 = vrot.lane.b32.xlu0 %v497, 64
  %v499 = vpop.permute.xlu0 %498
  %v501 = vadd.f32 %v356, %v499
  %v502 = vadd.f32 %v358, %v499
  %505 = vrot.lane.b32.xlu0 %v501, 64
  %v506 = vpop.permute.xlu0 %505
  %507 = vrot.lane.b32.xlu0 %v502, 64
  %v508 = vpop.permute.xlu0 %507
  %v511 = vmul.f32 %v480, %v506
  %v512 = vmul.f32 %v495, %v508
  %515 = vrot.lane.b32.xlu0 %v511, 64
  %v516 = vpop.permute.xlu0 %515
  %517 = vrot.lane.b32.xlu0 %v512, 64
  %v518 = vpop.permute.xlu0 %517
  %v521 = vadd.f32 %v369, %v516
  %v522 = vadd.f32 %v370, %v518
  %v523 = vtanh.pop %v521
  %v524 = vtanh.pop %v522
  %v525 = vsub.f32 1.0, %v480
  %v526 = vsub.f32 1.0, %v495
  %529 = vrot.lane.b32.xlu0 %v523, 96
  %v530 = vpop.permute.xlu0 %529
  %531 = vrot.lane.b32.xlu0 %v524, 96
  %v532 = vpop.permute.xlu0 %531
  %v535 = vmul.f32 %v525, %v530
  %v536 = vmul.f32 %v526, %v532
  %v537 = vmul.f32 %v480, 0.0
  %v538 = vmul.f32 %v495, 0.0
  %v539 = vadd.f32 %v535, %v537
  %v540 = vadd.f32 %v536, %v538
  %v541 = vpack.c.bf16 %v454, %v454
  %v542 = vpack.c.bf16 %v455, %v455
  %545 = vrot.lane.b32.xlu0 %v541, 96
  %v546 = vpop.permute.xlu0 %545
  %547 = vrot.lane.b32.xlu0 %v542, 96
  %v548 = vpop.permute.xlu0 %547
  %vm551 = vcmask 257024
  %552 = vst.msk [vmem:[%s5] sm:$0xf] %vm551, %v546
  %553 = vst.msk [vmem:[%s5 + $0x4] sm:$0xf] %vm551, %v548
  %v554 = vpack.c.bf16 %v539, %v539
  %v555 = vpack.c.bf16 %v540, %v540
  %s556 = scalar_lea.vmem %s5, 56
  %vm557 = vcmask 519424
  %558 = vst.msk [vmem:[%s556] sm:$0xf] %vm557, %v554
  %559 = vst.msk [vmem:[%s556 + $0x4] sm:$0xf] %vm557, %v555
  %v560 = vunpack.c.l.b16 %v541
  %v561 = vunpack.c.l.b16 %v542
  %v562 = vpack.c.b16 %v561, %v560
  %563 = vrot.lane.b32.xlu0 %v562, 96
  %v564 = vpop.permute.xlu0 %563
  %v566 = vsel %vm316, %v564, 0
  %568 = vmatpush.bf16.msra.mxu0 0
  %569 = vmatpush.bf16.msra.mxu0 0
  %570 = vmatpush.bf16.msra.mxu0 0
  %571 = vmatpush.bf16.msra.mxu0 0
  %572 = vmatpush.bf16.msra.mxu0 0
  %573 = vmatpush.bf16.msra.mxu0 0
  %574 = vmatpush.bf16.msra.mxu0 %v313
  %575 = vmatpush.bf16.msra.mxu0 %v312
  %576 = vmatmul.bf16.gmra.mxu0 %v566
  %v577 = vpop.f32.mrf.mxu0
  %v578 = vadd.f32 0.0, %v577
  %v579 = vpop.f32.mrf.mxu0
  %v580 = vadd.f32 0.0, %v579
  %581 = vdwg.mxu0
  %v584 = vunpack.c.l.b16 %v554
  %v585 = vunpack.c.l.b16 %v555
  %v586 = vpack.c.b16 %v585, %v584
  %587 = vrot.lane.b32.xlu0 %v586, 96
  %v588 = vpop.permute.xlu0 %587
  %v590 = vsel %vm316, %v588, 0
  %592 = vmatpush.bf16.msra.mxu0 0
  %593 = vmatpush.bf16.msra.mxu0 0
  %594 = vmatpush.bf16.msra.mxu0 0
  %595 = vmatpush.bf16.msra.mxu0 0
  %596 = vmatpush.bf16.msra.mxu0 0
  %597 = vmatpush.bf16.msra.mxu0 0
  %598 = vmatpush.bf16.msra.mxu0 %v343
  %599 = vmatpush.bf16.msra.mxu0 %v342
  %600 = vmatmul.bf16.gmra.mxu0 %v590
  %v601 = vpop.f32.mrf.mxu0
  %v602 = vadd.f32 0.0, %v601
  %v603 = vpop.f32.mrf.mxu0
  %v604 = vadd.f32 0.0, %v603
  %605 = vdwg.mxu0
  %s606 = scalar_lea.vmem [#allocation2], 8
  %v607 = vld [vmem:[%s606] sm:$0xf]
  %v608 = vld [vmem:[%s606 + $0x4] sm:$0xf]
  %v609 = vunpack.c.l.bf16 %v607
  %v610 = vunpack.c.l.bf16 %v608
  %s611 = sadd.s32 12, 16
  %s612 = smul.addr %s611, 4
  %s613 = scalar_lea.vmem [#allocation2], %s612
  %v614 = vld [vmem:[%s613] sm:$0xf]
  %v615 = vld [vmem:[%s613 + $0x4] sm:$0xf]
  %v616 = vunpack.c.l.bf16 %v614
  %v617 = vunpack.c.l.bf16 %v615
  %v618 = vadd.f32 %v609, %v578
  %v619 = vadd.f32 %v610, %v580
  %v620 = vxor.u32 %v618, 2147483648
  %v621 = vxor.u32 %v619, 2147483648
  %v622 = vmul.f32 %v620, 1.442695
  %v623 = vpow.pop %v622
  %v624 = vmul.f32 %v621, 1.442695
  %v625 = vpow.pop %v624
  %v626 = vadd.f32 %v623, 1.0
  %v627 = vadd.f32 %v625, 1.0
  %v628 = vrcp.pop %v626
  %v629 = vmul.f32 %v626, %v628
  %v630 = vsub.f32 1.0, %v629
  %v631 = vmul.f32 %v628, %v630
  %v632 = vadd.f32 %v628, %v631
  %vm633 = vweird.f32 %v626
  %vm634 = vweird.f32 %v628
  %vm635 = vmor %vm633, %vm634
  %v636 = vsel %vm635, %v628, %v632
  %v637 = vand.u32 2147483647, %v626
  %vm638 = vcmp.eq.f32.partialorder %v637, 8.507059e+37
  %v639 = vand.u32 %v626, 2147483648
  %v640 = vor.u32 1.1754944e-38, %v639
  %v641 = vsel %vm638, %v640, %v636
  %v642 = vmul.f32 1.0, %v641
  %v643 = vrcp.pop %v627
  %v644 = vmul.f32 %v627, %v643
  %v645 = vsub.f32 1.0, %v644
  %v646 = vmul.f32 %v643, %v645
  %v647 = vadd.f32 %v643, %v646
  %vm648 = vweird.f32 %v627
  %vm649 = vweird.f32 %v643
  %vm650 = vmor %vm648, %vm649
  %v651 = vsel %vm650, %v643, %v647
  %v652 = vand.u32 2147483647, %v627
  %vm653 = vcmp.eq.f32.partialorder %v652, 8.507059e+37
  %v654 = vand.u32 %v627, 2147483648
  %v655 = vor.u32 1.1754944e-38, %v654
  %v656 = vsel %vm653, %v655, %v651
  %v657 = vmul.f32 1.0, %v656
  %v658 = vadd.f32 %v578, %v414
  %v659 = vadd.f32 %v580, %v414
  %662 = vrot.lane.b32.xlu0 %v658, 64
  %v663 = vpop.permute.xlu0 %662
  %664 = vrot.lane.b32.xlu0 %v659, 64
  %v665 = vpop.permute.xlu0 %664
  %v668 = vmul.f32 %v642, %v663
  %v669 = vmul.f32 %v657, %v665
  %672 = vrot.lane.b32.xlu0 %v668, 64
  %v673 = vpop.permute.xlu0 %672
  %674 = vrot.lane.b32.xlu0 %v669, 64
  %v675 = vpop.permute.xlu0 %674
  %v678 = vadd.f32 %v609, %v673
  %v679 = vadd.f32 %v610, %v675
  %v680 = vtanh.pop %v678
  %v681 = vtanh.pop %v679
  %v682 = vsub.f32 1.0, %v642
  %v683 = vsub.f32 1.0, %v657
  %686 = vrot.lane.b32.xlu0 %v680, 96
  %v687 = vpop.permute.xlu0 %686
  %688 = vrot.lane.b32.xlu0 %v681, 96
  %v689 = vpop.permute.xlu0 %688
  %v692 = vmul.f32 %v682, %v687
  %v693 = vmul.f32 %v683, %v689
  %v694 = vmul.f32 %v642, %v454
  %v695 = vmul.f32 %v657, %v455
  %v696 = vadd.f32 %v692, %v694
  %v697 = vadd.f32 %v693, %v695
  %v698 = vadd.f32 %v616, %v602
  %v699 = vadd.f32 %v617, %v604
  %v700 = vxor.u32 %v698, 2147483648
  %v701 = vxor.u32 %v699, 2147483648
  %v702 = vmul.f32 %v700, 1.442695
  %v703 = vpow.pop %v702
  %v704 = vmul.f32 %v701, 1.442695
  %v705 = vpow.pop %v704
  %v706 = vadd.f32 %v703, 1.0
  %v707 = vadd.f32 %v705, 1.0
  %v708 = vrcp.pop %v706
  %v709 = vmul.f32 %v706, %v708
  %v710 = vsub.f32 1.0, %v709
  %v711 = vmul.f32 %v708, %v710
  %v712 = vadd.f32 %v708, %v711
  %vm713 = vweird.f32 %v706
  %vm714 = vweird.f32 %v708
  %vm715 = vmor %vm713, %vm714
  %v716 = vsel %vm715, %v708, %v712
  %v717 = vand.u32 2147483647, %v706
  %vm718 = vcmp.eq.f32.partialorder %v717, 8.507059e+37
  %v719 = vand.u32 %v706, 2147483648
  %v720 = vor.u32 1.1754944e-38, %v719
  %v721 = vsel %vm718, %v720, %v716
  %v722 = vmul.f32 1.0, %v721
  %v723 = vrcp.pop %v707
  %v724 = vmul.f32 %v707, %v723
  %v725 = vsub.f32 1.0, %v724
  %v726 = vmul.f32 %v723, %v725
  %v727 = vadd.f32 %v723, %v726
  %vm728 = vweird.f32 %v707
  %vm729 = vweird.f32 %v723
  %vm730 = vmor %vm728, %vm729
  %v731 = vsel %vm730, %v723, %v727
  %v732 = vand.u32 2147483647, %v707
  %vm733 = vcmp.eq.f32.partialorder %v732, 8.507059e+37
  %v734 = vand.u32 %v707, 2147483648
  %v735 = vor.u32 1.1754944e-38, %v734
  %v736 = vsel %vm733, %v735, %v731
  %v737 = vmul.f32 1.0, %v736
  %v738 = vadd.f32 %v602, %v499
  %v739 = vadd.f32 %v604, %v499
  %742 = vrot.lane.b32.xlu0 %v738, 64
  %v743 = vpop.permute.xlu0 %742
  %744 = vrot.lane.b32.xlu0 %v739, 64
  %v745 = vpop.permute.xlu0 %744
  %v748 = vmul.f32 %v722, %v743
  %v749 = vmul.f32 %v737, %v745
  %752 = vrot.lane.b32.xlu0 %v748, 64
  %v753 = vpop.permute.xlu0 %752
  %754 = vrot.lane.b32.xlu0 %v749, 64
  %v755 = vpop.permute.xlu0 %754
  %v758 = vadd.f32 %v616, %v753
  %v759 = vadd.f32 %v617, %v755
  %v760 = vtanh.pop %v758
  %v761 = vtanh.pop %v759
  %v762 = vsub.f32 1.0, %v722
  %v763 = vsub.f32 1.0, %v737
  %766 = vrot.lane.b32.xlu0 %v760, 96
  %v767 = vpop.permute.xlu0 %766
  %768 = vrot.lane.b32.xlu0 %v761, 96
  %v769 = vpop.permute.xlu0 %768
  %v772 = vmul.f32 %v762, %v767
  %v773 = vmul.f32 %v763, %v769
  %v774 = vmul.f32 %v722, %v539
  %v775 = vmul.f32 %v737, %v540
  %v776 = vadd.f32 %v772, %v774
  %v777 = vadd.f32 %v773, %v775
  %v778 = vpack.c.bf16 %v696, %v696
  %v779 = vpack.c.bf16 %v697, %v697
  %782 = vrot.lane.b32.xlu0 %v778, 96
  %v783 = vpop.permute.xlu0 %782
  %784 = vrot.lane.b32.xlu0 %v779, 96
  %v785 = vpop.permute.xlu0 %784
  %s788 = scalar_lea.vmem %s5, 8
  %789 = vst.msk [vmem:[%s788] sm:$0xf] %vm551, %v783
  %790 = vst.msk [vmem:[%s788 + $0x4] sm:$0xf] %vm551, %v785
  %v791 = vpack.c.bf16 %v776, %v776
  %v792 = vpack.c.bf16 %v777, %v777
  %s793 = scalar_lea.vmem %s5, 48
  %794 = vst.msk [vmem:[%s793] sm:$0xf] %vm557, %v791
  %795 = vst.msk [vmem:[%s793 + $0x4] sm:$0xf] %vm557, %v792
  %v796 = vunpack.c.l.b16 %v778
  %v797 = vunpack.c.l.b16 %v779
  %v798 = vpack.c.b16 %v797, %v796
  %799 = vrot.lane.b32.xlu0 %v798, 96
  %v800 = vpop.permute.xlu0 %799
  %v802 = vsel %vm316, %v800, 0
  %804 = vmatpush.bf16.msra.mxu0 0
  %805 = vmatpush.bf16.msra.mxu0 0
  %806 = vmatpush.bf16.msra.mxu0 0
  %807 = vmatpush.bf16.msra.mxu0 0
  %808 = vmatpush.bf16.msra.mxu0 0
  %809 = vmatpush.bf16.msra.mxu0 0
  %810 = vmatpush.bf16.msra.mxu0 %v313
  %811 = vmatpush.bf16.msra.mxu0 %v312
  %812 = vmatmul.bf16.gmra.mxu0 %v802
  %v813 = vpop.f32.mrf.mxu0
  %v814 = vadd.f32 0.0, %v813
  %v815 = vpop.f32.mrf.mxu0
  %v816 = vadd.f32 0.0, %v815
  %817 = vdwg.mxu0
  %v820 = vunpack.c.l.b16 %v791
  %v821 = vunpack.c.l.b16 %v792
  %v822 = vpack.c.b16 %v821, %v820
  %823 = vrot.lane.b32.xlu0 %v822, 96
  %v824 = vpop.permute.xlu0 %823
  %v826 = vsel %vm316, %v824, 0
  %828 = vmatpush.bf16.msra.mxu0 0
  %829 = vmatpush.bf16.msra.mxu0 0
  %830 = vmatpush.bf16.msra.mxu0 0
  %831 = vmatpush.bf16.msra.mxu0 0
  %832 = vmatpush.bf16.msra.mxu0 0
  %833 = vmatpush.bf16.msra.mxu0 0
  %834 = vmatpush.bf16.msra.mxu0 %v343
  %835 = vmatpush.bf16.msra.mxu0 %v342
  %836 = vmatmul.bf16.gmra.mxu0 %v826
  %v837 = vpop.f32.mrf.mxu0
  %v838 = vadd.f32 0.0, %v837
  %v839 = vpop.f32.mrf.mxu0
  %v840 = vadd.f32 0.0, %v839
  %841 = vdwg.mxu0
  %s842 = scalar_lea.vmem [#allocation2], 16
  %v843 = vld [vmem:[%s842] sm:$0xf]
  %v844 = vld [vmem:[%s842 + $0x4] sm:$0xf]
  %v845 = vunpack.c.l.bf16 %v843
  %v846 = vunpack.c.l.bf16 %v844
  %s847 = sadd.s32 10, 16
  %s848 = smul.addr %s847, 4
  %s849 = scalar_lea.vmem [#allocation2], %s848
  %v850 = vld [vmem:[%s849] sm:$0xf]
  %v851 = vld [vmem:[%s849 + $0x4] sm:$0xf]
  %v852 = vunpack.c.l.bf16 %v850
  %v853 = vunpack.c.l.bf16 %v851
  %v854 = vadd.f32 %v845, %v814
  %v855 = vadd.f32 %v846, %v816
  %v856 = vxor.u32 %v854, 2147483648
  %v857 = vxor.u32 %v855, 2147483648
  %v858 = vmul.f32 %v856, 1.442695
  %v859 = vpow.pop %v858
  %v860 = vmul.f32 %v857, 1.442695
  %v861 = vpow.pop %v860
  %v862 = vadd.f32 %v859, 1.0
  %v863 = vadd.f32 %v861, 1.0
  %v864 = vrcp.pop %v862
  %v865 = vmul.f32 %v862, %v864
  %v866 = vsub.f32 1.0, %v865
  %v867 = vmul.f32 %v864, %v866
  %v868 = vadd.f32 %v864, %v867
  %vm869 = vweird.f32 %v862
  %vm870 = vweird.f32 %v864
  %vm871 = vmor %vm869, %vm870
  %v872 = vsel %vm871, %v864, %v868
  %v873 = vand.u32 2147483647, %v862
  %vm874 = vcmp.eq.f32.partialorder %v873, 8.507059e+37
  %v875 = vand.u32 %v862, 2147483648
  %v876 = vor.u32 1.1754944e-38, %v875
  %v877 = vsel %vm874, %v876, %v872
  %v878 = vmul.f32 1.0, %v877
  %v879 = vrcp.pop %v863
  %v880 = vmul.f32 %v863, %v879
  %v881 = vsub.f32 1.0, %v880
  %v882 = vmul.f32 %v879, %v881
  %v883 = vadd.f32 %v879, %v882
  %vm884 = vweird.f32 %v863
  %vm885 = vweird.f32 %v879
  %vm886 = vmor %vm884, %vm885
  %v887 = vsel %vm886, %v879, %v883
  %v888 = vand.u32 2147483647, %v863
  %vm889 = vcmp.eq.f32.partialorder %v888, 8.507059e+37
  %v890 = vand.u32 %v863, 2147483648
  %v891 = vor.u32 1.1754944e-38, %v890
  %v892 = vsel %vm889, %v891, %v887
  %v893 = vmul.f32 1.0, %v892
  %v894 = vadd.f32 %v814, %v414
  %v895 = vadd.f32 %v816, %v414
  %898 = vrot.lane.b32.xlu0 %v894, 64
  %v899 = vpop.permute.xlu0 %898
  %900 = vrot.lane.b32.xlu0 %v895, 64
  %v901 = vpop.permute.xlu0 %900
  %v904 = vmul.f32 %v878, %v899
  %v905 = vmul.f32 %v893, %v901
  %908 = vrot.lane.b32.xlu0 %v904, 64
  %v909 = vpop.permute.xlu0 %908
  %910 = vrot.lane.b32.xlu0 %v905, 64
  %v911 = vpop.permute.xlu0 %910
  %v914 = vadd.f32 %v845, %v909
  %v915 = vadd.f32 %v846, %v911
  %v916 = vtanh.pop %v914
  %v917 = vtanh.pop %v915
  %v918 = vsub.f32 1.0, %v878
  %v919 = vsub.f32 1.0, %v893
  %922 = vrot.lane.b32.xlu0 %v916, 96
  %v923 = vpop.permute.xlu0 %922
  %924 = vrot.lane.b32.xlu0 %v917, 96
  %v925 = vpop.permute.xlu0 %924
  %v928 = vmul.f32 %v918, %v923
  %v929 = vmul.f32 %v919, %v925
  %v930 = vmul.f32 %v878, %v696
  %v931 = vmul.f32 %v893, %v697
  %v932 = vadd.f32 %v928, %v930
  %v933 = vadd.f32 %v929, %v931
  %v934 = vadd.f32 %v852, %v838
  %v935 = vadd.f32 %v853, %v840
  %v936 = vxor.u32 %v934, 2147483648
  %v937 = vxor.u32 %v935, 2147483648
  %v938 = vmul.f32 %v936, 1.442695
  %v939 = vpow.pop %v938
  %v940 = vmul.f32 %v937, 1.442695
  %v941 = vpow.pop %v940
  %v942 = vadd.f32 %v939, 1.0
  %v943 = vadd.f32 %v941, 1.0
  %v944 = vrcp.pop %v942
  %v945 = vmul.f32 %v942, %v944
  %v946 = vsub.f32 1.0, %v945
  %v947 = vmul.f32 %v944, %v946
  %v948 = vadd.f32 %v944, %v947
  %vm949 = vweird.f32 %v942
  %vm950 = vweird.f32 %v944
  %vm951 = vmor %vm949, %vm950
  %v952 = vsel %vm951, %v944, %v948
  %v953 = vand.u32 2147483647, %v942
  %vm954 = vcmp.eq.f32.partialorder %v953, 8.507059e+37
  %v955 = vand.u32 %v942, 2147483648
  %v956 = vor.u32 1.1754944e-38, %v955
  %v957 = vsel %vm954, %v956, %v952
  %v958 = vmul.f32 1.0, %v957
  %v959 = vrcp.pop %v943
  %v960 = vmul.f32 %v943, %v959
  %v961 = vsub.f32 1.0, %v960
  %v962 = vmul.f32 %v959, %v961
  %v963 = vadd.f32 %v959, %v962
  %vm964 = vweird.f32 %v943
  %vm965 = vweird.f32 %v959
  %vm966 = vmor %vm964, %vm965
  %v967 = vsel %vm966, %v959, %v963
  %v968 = vand.u32 2147483647, %v943
  %vm969 = vcmp.eq.f32.partialorder %v968, 8.507059e+37
  %v970 = vand.u32 %v943, 2147483648
  %v971 = vor.u32 1.1754944e-38, %v970
  %v972 = vsel %vm969, %v971, %v967
  %v973 = vmul.f32 1.0, %v972
  %v974 = vadd.f32 %v838, %v499
  %v975 = vadd.f32 %v840, %v499
  %978 = vrot.lane.b32.xlu0 %v974, 64
  %v979 = vpop.permute.xlu0 %978
  %980 = vrot.lane.b32.xlu0 %v975, 64
  %v981 = vpop.permute.xlu0 %980
  %v984 = vmul.f32 %v958, %v979
  %v985 = vmul.f32 %v973, %v981
  %988 = vrot.lane.b32.xlu0 %v984, 64
  %v989 = vpop.permute.xlu0 %988
  %990 = vrot.lane.b32.xlu0 %v985, 64
  %v991 = vpop.permute.xlu0 %990
  %v994 = vadd.f32 %v852, %v989
  %v995 = vadd.f32 %v853, %v991
  %v996 = vtanh.pop %v994
  %v997 = vtanh.pop %v995
  %v998 = vsub.f32 1.0, %v958
  %v999 = vsub.f32 1.0, %v973
  %1002 = vrot.lane.b32.xlu0 %v996, 96
  %v1003 = vpop.permute.xlu0 %1002
  %1004 = vrot.lane.b32.xlu0 %v997, 96
  %v1005 = vpop.permute.xlu0 %1004
  %v1008 = vmul.f32 %v998, %v1003
  %v1009 = vmul.f32 %v999, %v1005
  %v1010 = vmul.f32 %v958, %v776
  %v1011 = vmul.f32 %v973, %v777
  %v1012 = vadd.f32 %v1008, %v1010
  %v1013 = vadd.f32 %v1009, %v1011
  %v1014 = vpack.c.bf16 %v932, %v932
  %v1015 = vpack.c.bf16 %v933, %v933
  %1018 = vrot.lane.b32.xlu0 %v1014, 96
  %v1019 = vpop.permute.xlu0 %1018
  %1020 = vrot.lane.b32.xlu0 %v1015, 96
  %v1021 = vpop.permute.xlu0 %1020
  %s1024 = scalar_lea.vmem %s5, 16
  %1025 = vst.msk [vmem:[%s1024] sm:$0xf] %vm551, %v1019
  %1026 = vst.msk [vmem:[%s1024 + $0x4] sm:$0xf] %vm551, %v1021
  %v1027 = vpack.c.bf16 %v1012, %v1012
  %v1028 = vpack.c.bf16 %v1013, %v1013
  %s1029 = scalar_lea.vmem %s5, 40
  %1030 = vst.msk [vmem:[%s1029] sm:$0xf] %vm557, %v1027
  %1031 = vst.msk [vmem:[%s1029 + $0x4] sm:$0xf] %vm557, %v1028
  %v1032 = vunpack.c.l.b16 %v1014
  %v1033 = vunpack.c.l.b16 %v1015
  %v1034 = vpack.c.b16 %v1033, %v1032
  %1035 = vrot.lane.b32.xlu0 %v1034, 96
  %v1036 = vpop.permute.xlu0 %1035
  %v1038 = vsel %vm316, %v1036, 0
  %1040 = vmatpush.bf16.msra.mxu0 0
  %1041 = vmatpush.bf16.msra.mxu0 0
  %1042 = vmatpush.bf16.msra.mxu0 0
  %1043 = vmatpush.bf16.msra.mxu0 0
  %1044 = vmatpush.bf16.msra.mxu0 0
  %1045 = vmatpush.bf16.msra.mxu0 0
  %1046 = vmatpush.bf16.msra.mxu0 %v313
  %1047 = vmatpush.bf16.msra.mxu0 %v312
  %1048 = vmatmul.bf16.gmra.mxu0 %v1038
  %v1049 = vpop.f32.mrf.mxu0
  %v1050 = vadd.f32 0.0, %v1049
  %v1051 = vpop.f32.mrf.mxu0
  %v1052 = vadd.f32 0.0, %v1051
  %1053 = vdwg.mxu0
  %v1056 = vunpack.c.l.b16 %v1027
  %v1057 = vunpack.c.l.b16 %v1028
  %v1058 = vpack.c.b16 %v1057, %v1056
  %1059 = vrot.lane.b32.xlu0 %v1058, 96
  %v1060 = vpop.permute.xlu0 %1059
  %v1062 = vsel %vm316, %v1060, 0
  %1064 = vmatpush.bf16.msra.mxu0 0
  %1065 = vmatpush.bf16.msra.mxu0 0
  %1066 = vmatpush.bf16.msra.mxu0 0
  %1067 = vmatpush.bf16.msra.mxu0 0
  %1068 = vmatpush.bf16.msra.mxu0 0
  %1069 = vmatpush.bf16.msra.mxu0 0
  %1070 = vmatpush.bf16.msra.mxu0 %v343
  %1071 = vmatpush.bf16.msra.mxu0 %v342
  %1072 = vmatmul.bf16.gmra.mxu0 %v1062
  %v1073 = vpop.f32.mrf.mxu0
  %v1074 = vadd.f32 0.0, %v1073
  %v1075 = vpop.f32.mrf.mxu0
  %v1076 = vadd.f32 0.0, %v1075
  %1077 = vdwg.mxu0
  %s1078 = scalar_lea.vmem [#allocation2], 24
  %v1079 = vld [vmem:[%s1078] sm:$0xf]
  %v1080 = vld [vmem:[%s1078 + $0x4] sm:$0xf]
  %v1081 = vunpack.c.l.bf16 %v1079
  %v1082 = vunpack.c.l.bf16 %v1080
  %s1083 = sadd.s32 8, 16
  %s1084 = smul.addr %s1083, 4
  %s1085 = scalar_lea.vmem [#allocation2], %s1084
  %v1086 = vld [vmem:[%s1085] sm:$0xf]
  %v1087 = vld [vmem:[%s1085 + $0x4] sm:$0xf]
  %v1088 = vunpack.c.l.bf16 %v1086
  %v1089 = vunpack.c.l.bf16 %v1087
  %v1090 = vadd.f32 %v1081, %v1050
  %v1091 = vadd.f32 %v1082, %v1052
  %v1092 = vxor.u32 %v1090, 2147483648
  %v1093 = vxor.u32 %v1091, 2147483648
  %v1094 = vmul.f32 %v1092, 1.442695
  %v1095 = vpow.pop %v1094
  %v1096 = vmul.f32 %v1093, 1.442695
  %v1097 = vpow.pop %v1096
  %v1098 = vadd.f32 %v1095, 1.0
  %v1099 = vadd.f32 %v1097, 1.0
  %v1100 = vrcp.pop %v1098
  %v1101 = vmul.f32 %v1098, %v1100
  %v1102 = vsub.f32 1.0, %v1101
  %v1103 = vmul.f32 %v1100, %v1102
  %v1104 = vadd.f32 %v1100, %v1103
  %vm1105 = vweird.f32 %v1098
  %vm1106 = vweird.f32 %v1100
  %vm1107 = vmor %vm1105, %vm1106
  %v1108 = vsel %vm1107, %v1100, %v1104
  %v1109 = vand.u32 2147483647, %v1098
  %vm1110 = vcmp.eq.f32.partialorder %v1109, 8.507059e+37
  %v1111 = vand.u32 %v1098, 2147483648
  %v1112 = vor.u32 1.1754944e-38, %v1111
  %v1113 = vsel %vm1110, %v1112, %v1108
  %v1114 = vmul.f32 1.0, %v1113
  %v1115 = vrcp.pop %v1099
  %v1116 = vmul.f32 %v1099, %v1115
  %v1117 = vsub.f32 1.0, %v1116
  %v1118 = vmul.f32 %v1115, %v1117
  %v1119 = vadd.f32 %v1115, %v1118
  %vm1120 = vweird.f32 %v1099
  %vm1121 = vweird.f32 %v1115
  %vm1122 = vmor %vm1120, %vm1121
  %v1123 = vsel %vm1122, %v1115, %v1119
  %v1124 = vand.u32 2147483647, %v1099
  %vm1125 = vcmp.eq.f32.partialorder %v1124, 8.507059e+37
  %v1126 = vand.u32 %v1099, 2147483648
  %v1127 = vor.u32 1.1754944e-38, %v1126
  %v1128 = vsel %vm1125, %v1127, %v1123
  %v1129 = vmul.f32 1.0, %v1128
  %v1130 = vadd.f32 %v1050, %v414
  %v1131 = vadd.f32 %v1052, %v414
  %1134 = vrot.lane.b32.xlu0 %v1130, 64
  %v1135 = vpop.permute.xlu0 %1134
  %1136 = vrot.lane.b32.xlu0 %v1131, 64
  %v1137 = vpop.permute.xlu0 %1136
  %v1140 = vmul.f32 %v1114, %v1135
  %v1141 = vmul.f32 %v1129, %v1137
  %1144 = vrot.lane.b32.xlu0 %v1140, 64
  %v1145 = vpop.permute.xlu0 %1144
  %1146 = vrot.lane.b32.xlu0 %v1141, 64
  %v1147 = vpop.permute.xlu0 %1146
  %v1150 = vadd.f32 %v1081, %v1145
  %v1151 = vadd.f32 %v1082, %v1147
  %v1152 = vtanh.pop %v1150
  %v1153 = vtanh.pop %v1151
  %v1154 = vsub.f32 1.0, %v1114
  %v1155 = vsub.f32 1.0, %v1129
  %1158 = vrot.lane.b32.xlu0 %v1152, 96
  %v1159 = vpop.permute.xlu0 %1158
  %1160 = vrot.lane.b32.xlu0 %v1153, 96
  %v1161 = vpop.permute.xlu0 %1160
  %v1164 = vmul.f32 %v1154, %v1159
  %v1165 = vmul.f32 %v1155, %v1161
  %v1166 = vmul.f32 %v1114, %v932
  %v1167 = vmul.f32 %v1129, %v933
  %v1168 = vadd.f32 %v1164, %v1166
  %v1169 = vadd.f32 %v1165, %v1167
  %v1170 = vadd.f32 %v1088, %v1074
  %v1171 = vadd.f32 %v1089, %v1076
  %v1172 = vxor.u32 %v1170, 2147483648
  %v1173 = vxor.u32 %v1171, 2147483648
  %v1174 = vmul.f32 %v1172, 1.442695
  %v1175 = vpow.pop %v1174
  %v1176 = vmul.f32 %v1173, 1.442695
  %v1177 = vpow.pop %v1176
  %v1178 = vadd.f32 %v1175, 1.0
  %v1179 = vadd.f32 %v1177, 1.0
  %v1180 = vrcp.pop %v1178
  %v1181 = vmul.f32 %v1178, %v1180
  %v1182 = vsub.f32 1.0, %v1181
  %v1183 = vmul.f32 %v1180, %v1182
  %v1184 = vadd.f32 %v1180, %v1183
  %vm1185 = vweird.f32 %v1178
  %vm1186 = vweird.f32 %v1180
  %vm1187 = vmor %vm1185, %vm1186
  %v1188 = vsel %vm1187, %v1180, %v1184
  %v1189 = vand.u32 2147483647, %v1178
  %vm1190 = vcmp.eq.f32.partialorder %v1189, 8.507059e+37
  %v1191 = vand.u32 %v1178, 2147483648
  %v1192 = vor.u32 1.1754944e-38, %v1191
  %v1193 = vsel %vm1190, %v1192, %v1188
  %v1194 = vmul.f32 1.0, %v1193
  %v1195 = vrcp.pop %v1179
  %v1196 = vmul.f32 %v1179, %v1195
  %v1197 = vsub.f32 1.0, %v1196
  %v1198 = vmul.f32 %v1195, %v1197
  %v1199 = vadd.f32 %v1195, %v1198
  %vm1200 = vweird.f32 %v1179
  %vm1201 = vweird.f32 %v1195
  %vm1202 = vmor %vm1200, %vm1201
  %v1203 = vsel %vm1202, %v1195, %v1199
  %v1204 = vand.u32 2147483647, %v1179
  %vm1205 = vcmp.eq.f32.partialorder %v1204, 8.507059e+37
  %v1206 = vand.u32 %v1179, 2147483648
  %v1207 = vor.u32 1.1754944e-38, %v1206
  %v1208 = vsel %vm1205, %v1207, %v1203
  %v1209 = vmul.f32 1.0, %v1208
  %v1210 = vadd.f32 %v1074, %v499
  %v1211 = vadd.f32 %v1076, %v499
  %1214 = vrot.lane.b32.xlu0 %v1210, 64
  %v1215 = vpop.permute.xlu0 %1214
  %1216 = vrot.lane.b32.xlu0 %v1211, 64
  %v1217 = vpop.permute.xlu0 %1216
  %v1220 = vmul.f32 %v1194, %v1215
  %v1221 = vmul.f32 %v1209, %v1217
  %1224 = vrot.lane.b32.xlu0 %v1220, 64
  %v1225 = vpop.permute.xlu0 %1224
  %1226 = vrot.lane.b32.xlu0 %v1221, 64
  %v1227 = vpop.permute.xlu0 %1226
  %v1230 = vadd.f32 %v1088, %v1225
  %v1231 = vadd.f32 %v1089, %v1227
  %v1232 = vtanh.pop %v1230
  %v1233 = vtanh.pop %v1231
  %v1234 = vsub.f32 1.0, %v1194
  %v1235 = vsub.f32 1.0, %v1209
  %1238 = vrot.lane.b32.xlu0 %v1232, 96
  %v1239 = vpop.permute.xlu0 %1238
  %1240 = vrot.lane.b32.xlu0 %v1233, 96
  %v1241 = vpop.permute.xlu0 %1240
  %v1244 = vmul.f32 %v1234, %v1239
  %v1245 = vmul.f32 %v1235, %v1241
  %v1246 = vmul.f32 %v1194, %v1012
  %v1247 = vmul.f32 %v1209, %v1013
  %v1248 = vadd.f32 %v1244, %v1246
  %v1249 = vadd.f32 %v1245, %v1247
  %v1250 = vpack.c.bf16 %v1168, %v1168
  %v1251 = vpack.c.bf16 %v1169, %v1169
  %1254 = vrot.lane.b32.xlu0 %v1250, 96
  %v1255 = vpop.permute.xlu0 %1254
  %1256 = vrot.lane.b32.xlu0 %v1251, 96
  %v1257 = vpop.permute.xlu0 %1256
  %s1260 = scalar_lea.vmem %s5, 24
  %1261 = vst.msk [vmem:[%s1260] sm:$0xf] %vm551, %v1255
  %1262 = vst.msk [vmem:[%s1260 + $0x4] sm:$0xf] %vm551, %v1257
  %v1263 = vpack.c.bf16 %v1248, %v1248
  %v1264 = vpack.c.bf16 %v1249, %v1249
  %s1265 = scalar_lea.vmem %s5, 32
  %1266 = vst.msk [vmem:[%s1265] sm:$0xf] %vm557, %v1263
  %1267 = vst.msk [vmem:[%s1265 + $0x4] sm:$0xf] %vm557, %v1264
  %v1268 = vunpack.c.l.b16 %v1250
  %v1269 = vunpack.c.l.b16 %v1251
  %v1270 = vpack.c.b16 %v1269, %v1268
  %1271 = vrot.lane.b32.xlu0 %v1270, 96
  %v1272 = vpop.permute.xlu0 %1271
  %v1274 = vsel %vm316, %v1272, 0
  %1276 = vmatpush.bf16.msra.mxu0 0
  %1277 = vmatpush.bf16.msra.mxu0 0
  %1278 = vmatpush.bf16.msra.mxu0 0
  %1279 = vmatpush.bf16.msra.mxu0 0
  %1280 = vmatpush.bf16.msra.mxu0 0
  %1281 = vmatpush.bf16.msra.mxu0 0
  %1282 = vmatpush.bf16.msra.mxu0 %v313
  %1283 = vmatpush.bf16.msra.mxu0 %v312
  %1284 = vmatmul.bf16.gmra.mxu0 %v1274
  %v1285 = vpop.f32.mrf.mxu0
  %v1286 = vadd.f32 0.0, %v1285
  %v1287 = vpop.f32.mrf.mxu0
  %v1288 = vadd.f32 0.0, %v1287
  %1289 = vdwg.mxu0
  %v1292 = vunpack.c.l.b16 %v1263
  %v1293 = vunpack.c.l.b16 %v1264
  %v1294 = vpack.c.b16 %v1293, %v1292
  %1295 = vrot.lane.b32.xlu0 %v1294, 96
  %v1296 = vpop.permute.xlu0 %1295
  %v1298 = vsel %vm316, %v1296, 0
  %1300 = vmatpush.bf16.msra.mxu0 0
  %1301 = vmatpush.bf16.msra.mxu0 0
  %1302 = vmatpush.bf16.msra.mxu0 0
  %1303 = vmatpush.bf16.msra.mxu0 0
  %1304 = vmatpush.bf16.msra.mxu0 0
  %1305 = vmatpush.bf16.msra.mxu0 0
  %1306 = vmatpush.bf16.msra.mxu0 %v343
  %1307 = vmatpush.bf16.msra.mxu0 %v342
  %1308 = vmatmul.bf16.gmra.mxu0 %v1298
  %v1309 = vpop.f32.mrf.mxu0
  %v1310 = vadd.f32 0.0, %v1309
  %v1311 = vpop.f32.mrf.mxu0
  %v1312 = vadd.f32 0.0, %v1311
  %1313 = vdwg.mxu0
  %s1314 = scalar_lea.vmem [#allocation2], 32
  %v1315 = vld [vmem:[%s1314] sm:$0xf]
  %v1316 = vld [vmem:[%s1314 + $0x4] sm:$0xf]
  %v1317 = vunpack.c.l.bf16 %v1315
  %v1318 = vunpack.c.l.bf16 %v1316
  %s1319 = sadd.s32 6, 16
  %s1320 = smul.addr %s1319, 4
  %s1321 = scalar_lea.vmem [#allocation2], %s1320
  %v1322 = vld [vmem:[%s1321] sm:$0xf]
  %v1323 = vld [vmem:[%s1321 + $0x4] sm:$0xf]
  %v1324 = vunpack.c.l.bf16 %v1322
  %v1325 = vunpack.c.l.bf16 %v1323
  %v1326 = vadd.f32 %v1317, %v1286
  %v1327 = vadd.f32 %v1318, %v1288
  %v1328 = vxor.u32 %v1326, 2147483648
  %v1329 = vxor.u32 %v1327, 2147483648
  %v1330 = vmul.f32 %v1328, 1.442695
  %v1331 = vpow.pop %v1330
  %v1332 = vmul.f32 %v1329, 1.442695
  %v1333 = vpow.pop %v1332
  %v1334 = vadd.f32 %v1331, 1.0
  %v1335 = vadd.f32 %v1333, 1.0
  %v1336 = vrcp.pop %v1334
  %v1337 = vmul.f32 %v1334, %v1336
  %v1338 = vsub.f32 1.0, %v1337
  %v1339 = vmul.f32 %v1336, %v1338
  %v1340 = vadd.f32 %v1336, %v1339
  %vm1341 = vweird.f32 %v1334
  %vm1342 = vweird.f32 %v1336
  %vm1343 = vmor %vm1341, %vm1342
  %v1344 = vsel %vm1343, %v1336, %v1340
  %v1345 = vand.u32 2147483647, %v1334
  %vm1346 = vcmp.eq.f32.partialorder %v1345, 8.507059e+37
  %v1347 = vand.u32 %v1334, 2147483648
  %v1348 = vor.u32 1.1754944e-38, %v1347
  %v1349 = vsel %vm1346, %v1348, %v1344
  %v1350 = vmul.f32 1.0, %v1349
  %v1351 = vrcp.pop %v1335
  %v1352 = vmul.f32 %v1335, %v1351
  %v1353 = vsub.f32 1.0, %v1352
  %v1354 = vmul.f32 %v1351, %v1353
  %v1355 = vadd.f32 %v1351, %v1354
  %vm1356 = vweird.f32 %v1335
  %vm1357 = vweird.f32 %v1351
  %vm1358 = vmor %vm1356, %vm1357
  %v1359 = vsel %vm1358, %v1351, %v1355
  %v1360 = vand.u32 2147483647, %v1335
  %vm1361 = vcmp.eq.f32.partialorder %v1360, 8.507059e+37
  %v1362 = vand.u32 %v1335, 2147483648
  %v1363 = vor.u32 1.1754944e-38, %v1362
  %v1364 = vsel %vm1361, %v1363, %v1359
  %v1365 = vmul.f32 1.0, %v1364
  %v1366 = vadd.f32 %v1286, %v414
  %v1367 = vadd.f32 %v1288, %v414
  %1370 = vrot.lane.b32.xlu0 %v1366, 64
  %v1371 = vpop.permute.xlu0 %1370
  %1372 = vrot.lane.b32.xlu0 %v1367, 64
  %v1373 = vpop.permute.xlu0 %1372
  %v1376 = vmul.f32 %v1350, %v1371
  %v1377 = vmul.f32 %v1365, %v1373
  %1380 = vrot.lane.b32.xlu0 %v1376, 64
  %v1381 = vpop.permute.xlu0 %1380
  %1382 = vrot.lane.b32.xlu0 %v1377, 64
  %v1383 = vpop.permute.xlu0 %1382
  %v1386 = vadd.f32 %v1317, %v1381
  %v1387 = vadd.f32 %v1318, %v1383
  %v1388 = vtanh.pop %v1386
  %v1389 = vtanh.pop %v1387
  %v1390 = vsub.f32 1.0, %v1350
  %v1391 = vsub.f32 1.0, %v1365
  %1394 = vrot.lane.b32.xlu0 %v1388, 96
  %v1395 = vpop.permute.xlu0 %1394
  %1396 = vrot.lane.b32.xlu0 %v1389, 96
  %v1397 = vpop.permute.xlu0 %1396
  %v1400 = vmul.f32 %v1390, %v1395
  %v1401 = vmul.f32 %v1391, %v1397
  %v1402 = vmul.f32 %v1350, %v1168
  %v1403 = vmul.f32 %v1365, %v1169
  %v1404 = vadd.f32 %v1400, %v1402
  %v1405 = vadd.f32 %v1401, %v1403
  %v1406 = vadd.f32 %v1324, %v1310
  %v1407 = vadd.f32 %v1325, %v1312
  %v1408 = vxor.u32 %v1406, 2147483648
  %v1409 = vxor.u32 %v1407, 2147483648
  %v1410 = vmul.f32 %v1408, 1.442695
  %v1411 = vpow.pop %v1410
  %v1412 = vmul.f32 %v1409, 1.442695
  %v1413 = vpow.pop %v1412
  %v1414 = vadd.f32 %v1411, 1.0
  %v1415 = vadd.f32 %v1413, 1.0
  %v1416 = vrcp.pop %v1414
  %v1417 = vmul.f32 %v1414, %v1416
  %v1418 = vsub.f32 1.0, %v1417
  %v1419 = vmul.f32 %v1416, %v1418
  %v1420 = vadd.f32 %v1416, %v1419
  %vm1421 = vweird.f32 %v1414
  %vm1422 = vweird.f32 %v1416
  %vm1423 = vmor %vm1421, %vm1422
  %v1424 = vsel %vm1423, %v1416, %v1420
  %v1425 = vand.u32 2147483647, %v1414
  %vm1426 = vcmp.eq.f32.partialorder %v1425, 8.507059e+37
  %v1427 = vand.u32 %v1414, 2147483648
  %v1428 = vor.u32 1.1754944e-38, %v1427
  %v1429 = vsel %vm1426, %v1428, %v1424
  %v1430 = vmul.f32 1.0, %v1429
  %v1431 = vrcp.pop %v1415
  %v1432 = vmul.f32 %v1415, %v1431
  %v1433 = vsub.f32 1.0, %v1432
  %v1434 = vmul.f32 %v1431, %v1433
  %v1435 = vadd.f32 %v1431, %v1434
  %vm1436 = vweird.f32 %v1415
  %vm1437 = vweird.f32 %v1431
  %vm1438 = vmor %vm1436, %vm1437
  %v1439 = vsel %vm1438, %v1431, %v1435
  %v1440 = vand.u32 2147483647, %v1415
  %vm1441 = vcmp.eq.f32.partialorder %v1440, 8.507059e+37
  %v1442 = vand.u32 %v1415, 2147483648
  %v1443 = vor.u32 1.1754944e-38, %v1442
  %v1444 = vsel %vm1441, %v1443, %v1439
  %v1445 = vmul.f32 1.0, %v1444
  %v1446 = vadd.f32 %v1310, %v499
  %v1447 = vadd.f32 %v1312, %v499
  %1450 = vrot.lane.b32.xlu0 %v1446, 64
  %v1451 = vpop.permute.xlu0 %1450
  %1452 = vrot.lane.b32.xlu0 %v1447, 64
  %v1453 = vpop.permute.xlu0 %1452
  %v1456 = vmul.f32 %v1430, %v1451
  %v1457 = vmul.f32 %v1445, %v1453
  %1460 = vrot.lane.b32.xlu0 %v1456, 64
  %v1461 = vpop.permute.xlu0 %1460
  %1462 = vrot.lane.b32.xlu0 %v1457, 64
  %v1463 = vpop.permute.xlu0 %1462
  %v1466 = vadd.f32 %v1324, %v1461
  %v1467 = vadd.f32 %v1325, %v1463
  %v1468 = vtanh.pop %v1466
  %v1469 = vtanh.pop %v1467
  %v1470 = vsub.f32 1.0, %v1430
  %v1471 = vsub.f32 1.0, %v1445
  %1474 = vrot.lane.b32.xlu0 %v1468, 96
  %v1475 = vpop.permute.xlu0 %1474
  %1476 = vrot.lane.b32.xlu0 %v1469, 96
  %v1477 = vpop.permute.xlu0 %1476
  %v1480 = vmul.f32 %v1470, %v1475
  %v1481 = vmul.f32 %v1471, %v1477
  %v1482 = vmul.f32 %v1430, %v1248
  %v1483 = vmul.f32 %v1445, %v1249
  %v1484 = vadd.f32 %v1480, %v1482
  %v1485 = vadd.f32 %v1481, %v1483
  %v1486 = vpack.c.bf16 %v1404, %v1404
  %v1487 = vpack.c.bf16 %v1405, %v1405
  %1490 = vrot.lane.b32.xlu0 %v1486, 96
  %v1491 = vpop.permute.xlu0 %1490
  %1492 = vrot.lane.b32.xlu0 %v1487, 96
  %v1493 = vpop.permute.xlu0 %1492
  %1496 = vst.msk [vmem:[%s1265] sm:$0xf] %vm551, %v1491
  %1497 = vst.msk [vmem:[%s1265 + $0x4] sm:$0xf] %vm551, %v1493
  %v1498 = vpack.c.bf16 %v1484, %v1484
  %v1499 = vpack.c.bf16 %v1485, %v1485
  %1500 = vst.msk [vmem:[%s1260] sm:$0xf] %vm557, %v1498
  %1501 = vst.msk [vmem:[%s1260 + $0x4] sm:$0xf] %vm557, %v1499
  %v1502 = vunpack.c.l.b16 %v1486
  %v1503 = vunpack.c.l.b16 %v1487
  %v1504 = vpack.c.b16 %v1503, %v1502
  %1505 = vrot.lane.b32.xlu0 %v1504, 96
  %v1506 = vpop.permute.xlu0 %1505
  %v1508 = vsel %vm316, %v1506, 0
  %1510 = vmatpush.bf16.msra.mxu0 0
  %1511 = vmatpush.bf16.msra.mxu0 0
  %1512 = vmatpush.bf16.msra.mxu0 0
  %1513 = vmatpush.bf16.msra.mxu0 0
  %1514 = vmatpush.bf16.msra.mxu0 0
  %1515 = vmatpush.bf16.msra.mxu0 0
  %1516 = vmatpush.bf16.msra.mxu0 %v313
  %1517 = vmatpush.bf16.msra.mxu0 %v312
  %1518 = vmatmul.bf16.gmra.mxu0 %v1508
  %v1519 = vpop.f32.mrf.mxu0
  %v1520 = vadd.f32 0.0, %v1519
  %v1521 = vpop.f32.mrf.mxu0
  %v1522 = vadd.f32 0.0, %v1521
  %1523 = vdwg.mxu0
  %v1526 = vunpack.c.l.b16 %v1498
  %v1527 = vunpack.c.l.b16 %v1499
  %v1528 = vpack.c.b16 %v1527, %v1526
  %1529 = vrot.lane.b32.xlu0 %v1528, 96
  %v1530 = vpop.permute.xlu0 %1529
  %v1532 = vsel %vm316, %v1530, 0
  %1534 = vmatpush.bf16.msra.mxu0 0
  %1535 = vmatpush.bf16.msra.mxu0 0
  %1536 = vmatpush.bf16.msra.mxu0 0
  %1537 = vmatpush.bf16.msra.mxu0 0
  %1538 = vmatpush.bf16.msra.mxu0 0
  %1539 = vmatpush.bf16.msra.mxu0 0
  %1540 = vmatpush.bf16.msra.mxu0 %v343
  %1541 = vmatpush.bf16.msra.mxu0 %v342
  %1542 = vmatmul.bf16.gmra.mxu0 %v1532
  %v1543 = vpop.f32.mrf.mxu0
  %v1544 = vadd.f32 0.0, %v1543
  %v1545 = vpop.f32.mrf.mxu0
  %v1546 = vadd.f32 0.0, %v1545
  %1547 = vdwg.mxu0
  %s1548 = scalar_lea.vmem [#allocation2], 40
  %v1549 = vld [vmem:[%s1548] sm:$0xf]
  %v1550 = vld [vmem:[%s1548 + $0x4] sm:$0xf]
  %v1551 = vunpack.c.l.bf16 %v1549
  %v1552 = vunpack.c.l.bf16 %v1550
  %s1553 = sadd.s32 4, 16
  %s1554 = smul.addr %s1553, 4
  %s1555 = scalar_lea.vmem [#allocation2], %s1554
  %v1556 = vld [vmem:[%s1555] sm:$0xf]
  %v1557 = vld [vmem:[%s1555 + $0x4] sm:$0xf]
  %v1558 = vunpack.c.l.bf16 %v1556
  %v1559 = vunpack.c.l.bf16 %v1557
  %v1560 = vadd.f32 %v1551, %v1520
  %v1561 = vadd.f32 %v1552, %v1522
  %v1562 = vxor.u32 %v1560, 2147483648
  %v1563 = vxor.u32 %v1561, 2147483648
  %v1564 = vmul.f32 %v1562, 1.442695
  %v1565 = vpow.pop %v1564
  %v1566 = vmul.f32 %v1563, 1.442695
  %v1567 = vpow.pop %v1566
  %v1568 = vadd.f32 %v1565, 1.0
  %v1569 = vadd.f32 %v1567, 1.0
  %v1570 = vrcp.pop %v1568
  %v1571 = vmul.f32 %v1568, %v1570
  %v1572 = vsub.f32 1.0, %v1571
  %v1573 = vmul.f32 %v1570, %v1572
  %v1574 = vadd.f32 %v1570, %v1573
  %vm1575 = vweird.f32 %v1568
  %vm1576 = vweird.f32 %v1570
  %vm1577 = vmor %vm1575, %vm1576
  %v1578 = vsel %vm1577, %v1570, %v1574
  %v1579 = vand.u32 2147483647, %v1568
  %vm1580 = vcmp.eq.f32.partialorder %v1579, 8.507059e+37
  %v1581 = vand.u32 %v1568, 2147483648
  %v1582 = vor.u32 1.1754944e-38, %v1581
  %v1583 = vsel %vm1580, %v1582, %v1578
  %v1584 = vmul.f32 1.0, %v1583
  %v1585 = vrcp.pop %v1569
  %v1586 = vmul.f32 %v1569, %v1585
  %v1587 = vsub.f32 1.0, %v1586
  %v1588 = vmul.f32 %v1585, %v1587
  %v1589 = vadd.f32 %v1585, %v1588
  %vm1590 = vweird.f32 %v1569
  %vm1591 = vweird.f32 %v1585
  %vm1592 = vmor %vm1590, %vm1591
  %v1593 = vsel %vm1592, %v1585, %v1589
  %v1594 = vand.u32 2147483647, %v1569
  %vm1595 = vcmp.eq.f32.partialorder %v1594, 8.507059e+37
  %v1596 = vand.u32 %v1569, 2147483648
  %v1597 = vor.u32 1.1754944e-38, %v1596
  %v1598 = vsel %vm1595, %v1597, %v1593
  %v1599 = vmul.f32 1.0, %v1598
  %v1600 = vadd.f32 %v1520, %v414
  %v1601 = vadd.f32 %v1522, %v414
  %1604 = vrot.lane.b32.xlu0 %v1600, 64
  %v1605 = vpop.permute.xlu0 %1604
  %1606 = vrot.lane.b32.xlu0 %v1601, 64
  %v1607 = vpop.permute.xlu0 %1606
  %v1610 = vmul.f32 %v1584, %v1605
  %v1611 = vmul.f32 %v1599, %v1607
  %1614 = vrot.lane.b32.xlu0 %v1610, 64
  %v1615 = vpop.permute.xlu0 %1614
  %1616 = vrot.lane.b32.xlu0 %v1611, 64
  %v1617 = vpop.permute.xlu0 %1616
  %v1620 = vadd.f32 %v1551, %v1615
  %v1621 = vadd.f32 %v1552, %v1617
  %v1622 = vtanh.pop %v1620
  %v1623 = vtanh.pop %v1621
  %v1624 = vsub.f32 1.0, %v1584
  %v1625 = vsub.f32 1.0, %v1599
  %1628 = vrot.lane.b32.xlu0 %v1622, 96
  %v1629 = vpop.permute.xlu0 %1628
  %1630 = vrot.lane.b32.xlu0 %v1623, 96
  %v1631 = vpop.permute.xlu0 %1630
  %v1634 = vmul.f32 %v1624, %v1629
  %v1635 = vmul.f32 %v1625, %v1631
  %v1636 = vmul.f32 %v1584, %v1404
  %v1637 = vmul.f32 %v1599, %v1405
  %v1638 = vadd.f32 %v1634, %v1636
  %v1639 = vadd.f32 %v1635, %v1637
  %v1640 = vadd.f32 %v1558, %v1544
  %v1641 = vadd.f32 %v1559, %v1546
  %v1642 = vxor.u32 %v1640, 2147483648
  %v1643 = vxor.u32 %v1641, 2147483648
  %v1644 = vmul.f32 %v1642, 1.442695
  %v1645 = vpow.pop %v1644
  %v1646 = vmul.f32 %v1643, 1.442695
  %v1647 = vpow.pop %v1646
  %v1648 = vadd.f32 %v1645, 1.0
  %v1649 = vadd.f32 %v1647, 1.0
  %v1650 = vrcp.pop %v1648
  %v1651 = vmul.f32 %v1648, %v1650
  %v1652 = vsub.f32 1.0, %v1651
  %v1653 = vmul.f32 %v1650, %v1652
  %v1654 = vadd.f32 %v1650, %v1653
  %vm1655 = vweird.f32 %v1648
  %vm1656 = vweird.f32 %v1650
  %vm1657 = vmor %vm1655, %vm1656
  %v1658 = vsel %vm1657, %v1650, %v1654
  %v1659 = vand.u32 2147483647, %v1648
  %vm1660 = vcmp.eq.f32.partialorder %v1659, 8.507059e+37
  %v1661 = vand.u32 %v1648, 2147483648
  %v1662 = vor.u32 1.1754944e-38, %v1661
  %v1663 = vsel %vm1660, %v1662, %v1658
  %v1664 = vmul.f32 1.0, %v1663
  %v1665 = vrcp.pop %v1649
  %v1666 = vmul.f32 %v1649, %v1665
  %v1667 = vsub.f32 1.0, %v1666
  %v1668 = vmul.f32 %v1665, %v1667
  %v1669 = vadd.f32 %v1665, %v1668
  %vm1670 = vweird.f32 %v1649
  %vm1671 = vweird.f32 %v1665
  %vm1672 = vmor %vm1670, %vm1671
  %v1673 = vsel %vm1672, %v1665, %v1669
  %v1674 = vand.u32 2147483647, %v1649
  %vm1675 = vcmp.eq.f32.partialorder %v1674, 8.507059e+37
  %v1676 = vand.u32 %v1649, 2147483648
  %v1677 = vor.u32 1.1754944e-38, %v1676
  %v1678 = vsel %vm1675, %v1677, %v1673
  %v1679 = vmul.f32 1.0, %v1678
  %v1680 = vadd.f32 %v1544, %v499
  %v1681 = vadd.f32 %v1546, %v499
  %1684 = vrot.lane.b32.xlu0 %v1680, 64
  %v1685 = vpop.permute.xlu0 %1684
  %1686 = vrot.lane.b32.xlu0 %v1681, 64
  %v1687 = vpop.permute.xlu0 %1686
  %v1690 = vmul.f32 %v1664, %v1685
  %v1691 = vmul.f32 %v1679, %v1687
  %1694 = vrot.lane.b32.xlu0 %v1690, 64
  %v1695 = vpop.permute.xlu0 %1694
  %1696 = vrot.lane.b32.xlu0 %v1691, 64
  %v1697 = vpop.permute.xlu0 %1696
  %v1700 = vadd.f32 %v1558, %v1695
  %v1701 = vadd.f32 %v1559, %v1697
  %v1702 = vtanh.pop %v1700
  %v1703 = vtanh.pop %v1701
  %v1704 = vsub.f32 1.0, %v1664
  %v1705 = vsub.f32 1.0, %v1679
  %1708 = vrot.lane.b32.xlu0 %v1702, 96
  %v1709 = vpop.permute.xlu0 %1708
  %1710 = vrot.lane.b32.xlu0 %v1703, 96
  %v1711 = vpop.permute.xlu0 %1710
  %v1714 = vmul.f32 %v1704, %v1709
  %v1715 = vmul.f32 %v1705, %v1711
  %v1716 = vmul.f32 %v1664, %v1484
  %v1717 = vmul.f32 %v1679, %v1485
  %v1718 = vadd.f32 %v1714, %v1716
  %v1719 = vadd.f32 %v1715, %v1717
  %v1720 = vpack.c.bf16 %v1638, %v1638
  %v1721 = vpack.c.bf16 %v1639, %v1639
  %1724 = vrot.lane.b32.xlu0 %v1720, 96
  %v1725 = vpop.permute.xlu0 %1724
  %1726 = vrot.lane.b32.xlu0 %v1721, 96
  %v1727 = vpop.permute.xlu0 %1726
  %1730 = vst.msk [vmem:[%s1029] sm:$0xf] %vm551, %v1725
  %1731 = vst.msk [vmem:[%s1029 + $0x4] sm:$0xf] %vm551, %v1727
  %v1732 = vpack.c.bf16 %v1718, %v1718
  %v1733 = vpack.c.bf16 %v1719, %v1719
  %1734 = vst.msk [vmem:[%s1024] sm:$0xf] %vm557, %v1732
  %1735 = vst.msk [vmem:[%s1024 + $0x4] sm:$0xf] %vm557, %v1733
  %v1736 = vunpack.c.l.b16 %v1720
  %v1737 = vunpack.c.l.b16 %v1721
  %v1738 = vpack.c.b16 %v1737, %v1736
  %1739 = vrot.lane.b32.xlu0 %v1738, 96
  %v1740 = vpop.permute.xlu0 %1739
  %v1742 = vsel %vm316, %v1740, 0
  %1744 = vmatpush.bf16.msra.mxu0 0
  %1745 = vmatpush.bf16.msra.mxu0 0
  %1746 = vmatpush.bf16.msra.mxu0 0
  %1747 = vmatpush.bf16.msra.mxu0 0
  %1748 = vmatpush.bf16.msra.mxu0 0
  %1749 = vmatpush.bf16.msra.mxu0 0
  %1750 = vmatpush.bf16.msra.mxu0 %v313
  %1751 = vmatpush.bf16.msra.mxu0 %v312
  %1752 = vmatmul.bf16.gmra.mxu0 %v1742
  %v1753 = vpop.f32.mrf.mxu0
  %v1754 = vadd.f32 0.0, %v1753
  %v1755 = vpop.f32.mrf.mxu0
  %v1756 = vadd.f32 0.0, %v1755
  %1757 = vdwg.mxu0
  %v1760 = vunpack.c.l.b16 %v1732
  %v1761 = vunpack.c.l.b16 %v1733
  %v1762 = vpack.c.b16 %v1761, %v1760
  %1763 = vrot.lane.b32.xlu0 %v1762, 96
  %v1764 = vpop.permute.xlu0 %1763
  %v1766 = vsel %vm316, %v1764, 0
  %1768 = vmatpush.bf16.msra.mxu0 0
  %1769 = vmatpush.bf16.msra.mxu0 0
  %1770 = vmatpush.bf16.msra.mxu0 0
  %1771 = vmatpush.bf16.msra.mxu0 0
  %1772 = vmatpush.bf16.msra.mxu0 0
  %1773 = vmatpush.bf16.msra.mxu0 0
  %1774 = vmatpush.bf16.msra.mxu0 %v343
  %1775 = vmatpush.bf16.msra.mxu0 %v342
  %1776 = vmatmul.bf16.gmra.mxu0 %v1766
  %v1777 = vpop.f32.mrf.mxu0
  %v1778 = vadd.f32 0.0, %v1777
  %v1779 = vpop.f32.mrf.mxu0
  %v1780 = vadd.f32 0.0, %v1779
  %1781 = vdwg.mxu0
  %s1782 = scalar_lea.vmem [#allocation2], 48
  %v1783 = vld [vmem:[%s1782] sm:$0xf]
  %v1784 = vld [vmem:[%s1782 + $0x4] sm:$0xf]
  %v1785 = vunpack.c.l.bf16 %v1783
  %v1786 = vunpack.c.l.bf16 %v1784
  %s1787 = sadd.s32 2, 16
  %s1788 = smul.addr %s1787, 4
  %s1789 = scalar_lea.vmem [#allocation2], %s1788
  %v1790 = vld [vmem:[%s1789] sm:$0xf]
  %v1791 = vld [vmem:[%s1789 + $0x4] sm:$0xf]
  %v1792 = vunpack.c.l.bf16 %v1790
  %v1793 = vunpack.c.l.bf16 %v1791
  %v1794 = vadd.f32 %v1785, %v1754
  %v1795 = vadd.f32 %v1786, %v1756
  %v1796 = vxor.u32 %v1794, 2147483648
  %v1797 = vxor.u32 %v1795, 2147483648
  %v1798 = vmul.f32 %v1796, 1.442695
  %v1799 = vpow.pop %v1798
  %v1800 = vmul.f32 %v1797, 1.442695
  %v1801 = vpow.pop %v1800
  %v1802 = vadd.f32 %v1799, 1.0
  %v1803 = vadd.f32 %v1801, 1.0
  %v1804 = vrcp.pop %v1802
  %v1805 = vmul.f32 %v1802, %v1804
  %v1806 = vsub.f32 1.0, %v1805
  %v1807 = vmul.f32 %v1804, %v1806
  %v1808 = vadd.f32 %v1804, %v1807
  %vm1809 = vweird.f32 %v1802
  %vm1810 = vweird.f32 %v1804
  %vm1811 = vmor %vm1809, %vm1810
  %v1812 = vsel %vm1811, %v1804, %v1808
  %v1813 = vand.u32 2147483647, %v1802
  %vm1814 = vcmp.eq.f32.partialorder %v1813, 8.507059e+37
  %v1815 = vand.u32 %v1802, 2147483648
  %v1816 = vor.u32 1.1754944e-38, %v1815
  %v1817 = vsel %vm1814, %v1816, %v1812
  %v1818 = vmul.f32 1.0, %v1817
  %v1819 = vrcp.pop %v1803
  %v1820 = vmul.f32 %v1803, %v1819
  %v1821 = vsub.f32 1.0, %v1820
  %v1822 = vmul.f32 %v1819, %v1821
  %v1823 = vadd.f32 %v1819, %v1822
  %vm1824 = vweird.f32 %v1803
  %vm1825 = vweird.f32 %v1819
  %vm1826 = vmor %vm1824, %vm1825
  %v1827 = vsel %vm1826, %v1819, %v1823
  %v1828 = vand.u32 2147483647, %v1803
  %vm1829 = vcmp.eq.f32.partialorder %v1828, 8.507059e+37
  %v1830 = vand.u32 %v1803, 2147483648
  %v1831 = vor.u32 1.1754944e-38, %v1830
  %v1832 = vsel %vm1829, %v1831, %v1827
  %v1833 = vmul.f32 1.0, %v1832
  %v1834 = vadd.f32 %v1754, %v414
  %v1835 = vadd.f32 %v1756, %v414
  %1838 = vrot.lane.b32.xlu0 %v1834, 64
  %v1839 = vpop.permute.xlu0 %1838
  %1840 = vrot.lane.b32.xlu0 %v1835, 64
  %v1841 = vpop.permute.xlu0 %1840
  %v1844 = vmul.f32 %v1818, %v1839
  %v1845 = vmul.f32 %v1833, %v1841
  %1848 = vrot.lane.b32.xlu0 %v1844, 64
  %v1849 = vpop.permute.xlu0 %1848
  %1850 = vrot.lane.b32.xlu0 %v1845, 64
  %v1851 = vpop.permute.xlu0 %1850
  %v1854 = vadd.f32 %v1785, %v1849
  %v1855 = vadd.f32 %v1786, %v1851
  %v1856 = vtanh.pop %v1854
  %v1857 = vtanh.pop %v1855
  %v1858 = vsub.f32 1.0, %v1818
  %v1859 = vsub.f32 1.0, %v1833
  %1862 = vrot.lane.b32.xlu0 %v1856, 96
  %v1863 = vpop.permute.xlu0 %1862
  %1864 = vrot.lane.b32.xlu0 %v1857, 96
  %v1865 = vpop.permute.xlu0 %1864
  %v1868 = vmul.f32 %v1858, %v1863
  %v1869 = vmul.f32 %v1859, %v1865
  %v1870 = vmul.f32 %v1818, %v1638
  %v1871 = vmul.f32 %v1833, %v1639
  %v1872 = vadd.f32 %v1868, %v1870
  %v1873 = vadd.f32 %v1869, %v1871
  %v1874 = vadd.f32 %v1792, %v1778
  %v1875 = vadd.f32 %v1793, %v1780
  %v1876 = vxor.u32 %v1874, 2147483648
  %v1877 = vxor.u32 %v1875, 2147483648
  %v1878 = vmul.f32 %v1876, 1.442695
  %v1879 = vpow.pop %v1878
  %v1880 = vmul.f32 %v1877, 1.442695
  %v1881 = vpow.pop %v1880
  %v1882 = vadd.f32 %v1879, 1.0
  %v1883 = vadd.f32 %v1881, 1.0
  %v1884 = vrcp.pop %v1882
  %v1885 = vmul.f32 %v1882, %v1884
  %v1886 = vsub.f32 1.0, %v1885
  %v1887 = vmul.f32 %v1884, %v1886
  %v1888 = vadd.f32 %v1884, %v1887
  %vm1889 = vweird.f32 %v1882
  %vm1890 = vweird.f32 %v1884
  %vm1891 = vmor %vm1889, %vm1890
  %v1892 = vsel %vm1891, %v1884, %v1888
  %v1893 = vand.u32 2147483647, %v1882
  %vm1894 = vcmp.eq.f32.partialorder %v1893, 8.507059e+37
  %v1895 = vand.u32 %v1882, 2147483648
  %v1896 = vor.u32 1.1754944e-38, %v1895
  %v1897 = vsel %vm1894, %v1896, %v1892
  %v1898 = vmul.f32 1.0, %v1897
  %v1899 = vrcp.pop %v1883
  %v1900 = vmul.f32 %v1883, %v1899
  %v1901 = vsub.f32 1.0, %v1900
  %v1902 = vmul.f32 %v1899, %v1901
  %v1903 = vadd.f32 %v1899, %v1902
  %vm1904 = vweird.f32 %v1883
  %vm1905 = vweird.f32 %v1899
  %vm1906 = vmor %vm1904, %vm1905
  %v1907 = vsel %vm1906, %v1899, %v1903
  %v1908 = vand.u32 2147483647, %v1883
  %vm1909 = vcmp.eq.f32.partialorder %v1908, 8.507059e+37
  %v1910 = vand.u32 %v1883, 2147483648
  %v1911 = vor.u32 1.1754944e-38, %v1910
  %v1912 = vsel %vm1909, %v1911, %v1907
  %v1913 = vmul.f32 1.0, %v1912
  %v1914 = vadd.f32 %v1778, %v499
  %v1915 = vadd.f32 %v1780, %v499
  %1918 = vrot.lane.b32.xlu0 %v1914, 64
  %v1919 = vpop.permute.xlu0 %1918
  %1920 = vrot.lane.b32.xlu0 %v1915, 64
  %v1921 = vpop.permute.xlu0 %1920
  %v1924 = vmul.f32 %v1898, %v1919
  %v1925 = vmul.f32 %v1913, %v1921
  %1928 = vrot.lane.b32.xlu0 %v1924, 64
  %v1929 = vpop.permute.xlu0 %1928
  %1930 = vrot.lane.b32.xlu0 %v1925, 64
  %v1931 = vpop.permute.xlu0 %1930
  %v1934 = vadd.f32 %v1792, %v1929
  %v1935 = vadd.f32 %v1793, %v1931
  %v1936 = vtanh.pop %v1934
  %v1937 = vtanh.pop %v1935
  %v1938 = vsub.f32 1.0, %v1898
  %v1939 = vsub.f32 1.0, %v1913
  %1942 = vrot.lane.b32.xlu0 %v1936, 96
  %v1943 = vpop.permute.xlu0 %1942
  %1944 = vrot.lane.b32.xlu0 %v1937, 96
  %v1945 = vpop.permute.xlu0 %1944
  %v1948 = vmul.f32 %v1938, %v1943
  %v1949 = vmul.f32 %v1939, %v1945
  %v1950 = vmul.f32 %v1898, %v1718
  %v1951 = vmul.f32 %v1913, %v1719
  %v1952 = vadd.f32 %v1948, %v1950
  %v1953 = vadd.f32 %v1949, %v1951
  %v1954 = vpack.c.bf16 %v1872, %v1872
  %v1955 = vpack.c.bf16 %v1873, %v1873
  %1958 = vrot.lane.b32.xlu0 %v1954, 96
  %v1959 = vpop.permute.xlu0 %1958
  %1960 = vrot.lane.b32.xlu0 %v1955, 96
  %v1961 = vpop.permute.xlu0 %1960
  %1964 = vst.msk [vmem:[%s793] sm:$0xf] %vm551, %v1959
  %1965 = vst.msk [vmem:[%s793 + $0x4] sm:$0xf] %vm551, %v1961
  %v1966 = vpack.c.bf16 %v1952, %v1952
  %v1967 = vpack.c.bf16 %v1953, %v1953
  %1968 = vst.msk [vmem:[%s788] sm:$0xf] %vm557, %v1966
  %1969 = vst.msk [vmem:[%s788 + $0x4] sm:$0xf] %vm557, %v1967
  %v1970 = vunpack.c.l.b16 %v1954
  %v1971 = vunpack.c.l.b16 %v1955
  %v1972 = vpack.c.b16 %v1971, %v1970
  %1973 = vrot.lane.b32.xlu0 %v1972, 96
  %v1974 = vpop.permute.xlu0 %1973
  %v1976 = vsel %vm316, %v1974, 0
  %1978 = vmatpush.bf16.msra.mxu0 0
  %1979 = vmatpush.bf16.msra.mxu0 0
  %1980 = vmatpush.bf16.msra.mxu0 0
  %1981 = vmatpush.bf16.msra.mxu0 0
  %1982 = vmatpush.bf16.msra.mxu0 0
  %1983 = vmatpush.bf16.msra.mxu0 0
  %1984 = vmatpush.bf16.msra.mxu0 %v313
  %1985 = vmatpush.bf16.msra.mxu0 %v312
  %1986 = vmatmul.bf16.gmra.mxu0 %v1976
  %v1987 = vpop.f32.mrf.mxu0
  %v1988 = vadd.f32 0.0, %v1987
  %v1989 = vpop.f32.mrf.mxu0
  %v1990 = vadd.f32 0.0, %v1989
  %1991 = vdwg.mxu0
  %v1994 = vunpack.c.l.b16 %v1966
  %v1995 = vunpack.c.l.b16 %v1967
  %v1996 = vpack.c.b16 %v1995, %v1994
  %1997 = vrot.lane.b32.xlu0 %v1996, 96
  %v1998 = vpop.permute.xlu0 %1997
  %v2000 = vsel %vm316, %v1998, 0
  %2002 = vmatpush.bf16.msra.mxu0 0
  %2003 = vmatpush.bf16.msra.mxu0 0
  %2004 = vmatpush.bf16.msra.mxu0 0
  %2005 = vmatpush.bf16.msra.mxu0 0
  %2006 = vmatpush.bf16.msra.mxu0 0
  %2007 = vmatpush.bf16.msra.mxu0 0
  %2008 = vmatpush.bf16.msra.mxu0 %v343
  %2009 = vmatpush.bf16.msra.mxu0 %v342
  %2010 = vmatmul.bf16.gmra.mxu0 %v2000
  %v2011 = vpop.f32.mrf.mxu0
  %v2012 = vadd.f32 0.0, %v2011
  %v2013 = vpop.f32.mrf.mxu0
  %v2014 = vadd.f32 0.0, %v2013
  %2015 = vdwg.mxu0
  %s2016 = scalar_lea.vmem [#allocation2], 56
  %v2017 = vld [vmem:[%s2016] sm:$0xf]
  %v2018 = vld [vmem:[%s2016 + $0x4] sm:$0xf]
  %v2019 = vunpack.c.l.bf16 %v2017
  %v2020 = vunpack.c.l.bf16 %v2018
  %s2021 = sadd.s32 0, 16
  %s2022 = smul.addr %s2021, 4
  %s2023 = scalar_lea.vmem [#allocation2], %s2022
  %v2024 = vld [vmem:[%s2023] sm:$0xf]
  %v2025 = vld [vmem:[%s2023 + $0x4] sm:$0xf]
  %v2026 = vunpack.c.l.bf16 %v2024
  %v2027 = vunpack.c.l.bf16 %v2025
  %v2028 = vadd.f32 %v2019, %v1988
  %v2029 = vadd.f32 %v2020, %v1990
  %v2030 = vxor.u32 %v2028, 2147483648
  %v2031 = vxor.u32 %v2029, 2147483648
  %v2032 = vmul.f32 %v2030, 1.442695
  %v2033 = vpow.pop %v2032
  %v2034 = vmul.f32 %v2031, 1.442695
  %v2035 = vpow.pop %v2034
  %v2036 = vadd.f32 %v2033, 1.0
  %v2037 = vadd.f32 %v2035, 1.0
  %v2038 = vrcp.pop %v2036
  %v2039 = vmul.f32 %v2036, %v2038
  %v2040 = vsub.f32 1.0, %v2039
  %v2041 = vmul.f32 %v2038, %v2040
  %v2042 = vadd.f32 %v2038, %v2041
  %vm2043 = vweird.f32 %v2036
  %vm2044 = vweird.f32 %v2038
  %vm2045 = vmor %vm2043, %vm2044
  %v2046 = vsel %vm2045, %v2038, %v2042
  %v2047 = vand.u32 2147483647, %v2036
  %vm2048 = vcmp.eq.f32.partialorder %v2047, 8.507059e+37
  %v2049 = vand.u32 %v2036, 2147483648
  %v2050 = vor.u32 1.1754944e-38, %v2049
  %v2051 = vsel %vm2048, %v2050, %v2046
  %v2052 = vmul.f32 1.0, %v2051
  %v2053 = vrcp.pop %v2037
  %v2054 = vmul.f32 %v2037, %v2053
  %v2055 = vsub.f32 1.0, %v2054
  %v2056 = vmul.f32 %v2053, %v2055
  %v2057 = vadd.f32 %v2053, %v2056
  %vm2058 = vweird.f32 %v2037
  %vm2059 = vweird.f32 %v2053
  %vm2060 = vmor %vm2058, %vm2059
  %v2061 = vsel %vm2060, %v2053, %v2057
  %v2062 = vand.u32 2147483647, %v2037
  %vm2063 = vcmp.eq.f32.partialorder %v2062, 8.507059e+37
  %v2064 = vand.u32 %v2037, 2147483648
  %v2065 = vor.u32 1.1754944e-38, %v2064
  %v2066 = vsel %vm2063, %v2065, %v2061
  %v2067 = vmul.f32 1.0, %v2066
  %v2068 = vadd.f32 %v1988, %v414
  %v2069 = vadd.f32 %v1990, %v414
  %2072 = vrot.lane.b32.xlu0 %v2068, 64
  %v2073 = vpop.permute.xlu0 %2072
  %2074 = vrot.lane.b32.xlu0 %v2069, 64
  %v2075 = vpop.permute.xlu0 %2074
  %v2078 = vmul.f32 %v2052, %v2073
  %v2079 = vmul.f32 %v2067, %v2075
  %2082 = vrot.lane.b32.xlu0 %v2078, 64
  %v2083 = vpop.permute.xlu0 %2082
  %2084 = vrot.lane.b32.xlu0 %v2079, 64
  %v2085 = vpop.permute.xlu0 %2084
  %v2088 = vadd.f32 %v2019, %v2083
  %v2089 = vadd.f32 %v2020, %v2085
  %v2090 = vtanh.pop %v2088
  %v2091 = vtanh.pop %v2089
  %v2092 = vsub.f32 1.0, %v2052
  %v2093 = vsub.f32 1.0, %v2067
  %2096 = vrot.lane.b32.xlu0 %v2090, 96
  %v2097 = vpop.permute.xlu0 %2096
  %2098 = vrot.lane.b32.xlu0 %v2091, 96
  %v2099 = vpop.permute.xlu0 %2098
  %v2102 = vmul.f32 %v2092, %v2097
  %v2103 = vmul.f32 %v2093, %v2099
  %v2104 = vmul.f32 %v2052, %v1872
  %v2105 = vmul.f32 %v2067, %v1873
  %v2106 = vadd.f32 %v2102, %v2104
  %v2107 = vadd.f32 %v2103, %v2105
  %v2108 = vadd.f32 %v2026, %v2012
  %v2109 = vadd.f32 %v2027, %v2014
  %v2110 = vxor.u32 %v2108, 2147483648
  %v2111 = vxor.u32 %v2109, 2147483648
  %v2112 = vmul.f32 %v2110, 1.442695
  %v2113 = vpow.pop %v2112
  %v2114 = vmul.f32 %v2111, 1.442695
  %v2115 = vpow.pop %v2114
  %v2116 = vadd.f32 %v2113, 1.0
  %v2117 = vadd.f32 %v2115, 1.0
  %v2118 = vrcp.pop %v2116
  %v2119 = vmul.f32 %v2116, %v2118
  %v2120 = vsub.f32 1.0, %v2119
  %v2121 = vmul.f32 %v2118, %v2120
  %v2122 = vadd.f32 %v2118, %v2121
  %vm2123 = vweird.f32 %v2116
  %vm2124 = vweird.f32 %v2118
  %vm2125 = vmor %vm2123, %vm2124
  %v2126 = vsel %vm2125, %v2118, %v2122
  %v2127 = vand.u32 2147483647, %v2116
  %vm2128 = vcmp.eq.f32.partialorder %v2127, 8.507059e+37
  %v2129 = vand.u32 %v2116, 2147483648
  %v2130 = vor.u32 1.1754944e-38, %v2129
  %v2131 = vsel %vm2128, %v2130, %v2126
  %v2132 = vmul.f32 1.0, %v2131
  %v2133 = vrcp.pop %v2117
  %v2134 = vmul.f32 %v2117, %v2133
  %v2135 = vsub.f32 1.0, %v2134
  %v2136 = vmul.f32 %v2133, %v2135
  %v2137 = vadd.f32 %v2133, %v2136
  %vm2138 = vweird.f32 %v2117
  %vm2139 = vweird.f32 %v2133
  %vm2140 = vmor %vm2138, %vm2139
  %v2141 = vsel %vm2140, %v2133, %v2137
  %v2142 = vand.u32 2147483647, %v2117
  %vm2143 = vcmp.eq.f32.partialorder %v2142, 8.507059e+37
  %v2144 = vand.u32 %v2117, 2147483648
  %v2145 = vor.u32 1.1754944e-38, %v2144
  %v2146 = vsel %vm2143, %v2145, %v2141
  %v2147 = vmul.f32 1.0, %v2146
  %v2148 = vadd.f32 %v2012, %v499
  %v2149 = vadd.f32 %v2014, %v499
  %2152 = vrot.lane.b32.xlu0 %v2148, 64
  %v2153 = vpop.permute.xlu0 %2152
  %2154 = vrot.lane.b32.xlu0 %v2149, 64
  %v2155 = vpop.permute.xlu0 %2154
  %v2158 = vmul.f32 %v2132, %v2153
  %v2159 = vmul.f32 %v2147, %v2155
  %2162 = vrot.lane.b32.xlu0 %v2158, 64
  %v2163 = vpop.permute.xlu0 %2162
  %2164 = vrot.lane.b32.xlu0 %v2159, 64
  %v2165 = vpop.permute.xlu0 %2164
  %v2168 = vadd.f32 %v2026, %v2163
  %v2169 = vadd.f32 %v2027, %v2165
  %v2170 = vtanh.pop %v2168
  %v2171 = vtanh.pop %v2169
  %v2172 = vsub.f32 1.0, %v2132
  %v2173 = vsub.f32 1.0, %v2147
  %2176 = vrot.lane.b32.xlu0 %v2170, 96
  %v2177 = vpop.permute.xlu0 %2176
  %2178 = vrot.lane.b32.xlu0 %v2171, 96
  %v2179 = vpop.permute.xlu0 %2178
  %v2182 = vmul.f32 %v2172, %v2177
  %v2183 = vmul.f32 %v2173, %v2179
  %v2184 = vmul.f32 %v2132, %v1952
  %v2185 = vmul.f32 %v2147, %v1953
  %v2186 = vadd.f32 %v2182, %v2184
  %v2187 = vadd.f32 %v2183, %v2185
  %v2188 = vpack.c.bf16 %v2106, %v2106
  %v2189 = vpack.c.bf16 %v2107, %v2107
  %2192 = vrot.lane.b32.xlu0 %v2188, 96
  %v2193 = vpop.permute.xlu0 %2192
  %2194 = vrot.lane.b32.xlu0 %v2189, 96
  %v2195 = vpop.permute.xlu0 %2194
  %2198 = vst.msk [vmem:[%s556] sm:$0xf] %vm551, %v2193
  %2199 = vst.msk [vmem:[%s556 + $0x4] sm:$0xf] %vm551, %v2195
  %v2200 = vpack.c.bf16 %v2186, %v2186
  %v2201 = vpack.c.bf16 %v2187, %v2187
  %2202 = vst.msk [vmem:[%s5] sm:$0xf] %vm557, %v2200
  %2203 = vst.msk [vmem:[%s5 + $0x4] sm:$0xf] %vm557, %v2201
  // Predicated region
  $region22: #{bigru_forward.2} parent=0 // pred_check
    _
  $region23: #{bigru_forward.2} parent=0 // pred_check_branch
    %2205 = sbr.rel (0) target = $region25
  $region24: #{bigru_forward.2} parent=0 // pred_region
    _
  $region25: #{bigru_forward.2} parent=0 // pred_fallthru
    _
  // Predicated region
  $region26: #{bigru_forward.2} parent=0 // pred_check
    _
  $region27: #{bigru_forward.2} parent=0 // pred_check_branch
    %2207 = sbr.rel (0) target = $region29
  $region28: #{bigru_forward.2} parent=0 // pred_region
    _
  $region29: #{bigru_forward.2} parent=0 // pred_fallthru
    _

// kernel: bigru_forward.3
$region0: #{bigru_forward.3}
  #allocation0 [shape = 'u32[]', space=smem, size = 0x4, offset = 0x4, fixed_abs, tag = 'smem constant byte address 0x4 - core index']
  #allocation1 [shape = 'u32[72,128]{1,0:T(1,128)}', space=vmem, size = 0x9000, scoped, tag = 'internal scratch']
  #allocation2 [shape = 'bf16[2,128,96]{2,1,0:T(8,128)(2,1)}', space=vmem, size = 0x10000, scoped, tag = 'scratch operand']
  %s0 = inlined_call_operand.vmem [shape: bf16[128,64], index: 0, kind: input, shape index: {}]
  %s1 = inlined_call_operand.vmem [shape: bf16[2,64,96], index: 1, kind: input, shape index: {}]
  %s2 = inlined_call_operand.vmem [shape: f32[2,1,96], index: 2, kind: input, shape index: {}]
  %s3 = inlined_call_operand.vmem [shape: bf16[2,32,96], index: 3, kind: input, shape index: {}]
  %s4 = inlined_call_operand.vmem [shape: f32[2,1,32], index: 4, kind: input, shape index: {}]
  %s5 = inlined_call_operand.vmem [shape: bf16[32,2], index: 5, kind: input, shape index: {}]
  %s6 = inlined_call_operand.vmem [shape: bf16[32,2], index: 6, kind: input, shape index: {}]
  %s7 = inlined_call_operand.vmem [shape: f32[1,2], index: 7, kind: input, shape index: {}]
  %s8 = inlined_call_operand.hbm [shape: bf16[128,64], index: 8, kind: output, shape index: {0}]
  %s9 = inlined_call_operand.vmem [shape: f32[16,2], index: 9, kind: output, shape index: {1}]
  %10 = xla_tuple %s8, %s9
  %s11 = sld [smem:[#allocation0]]
  $region50: #{bigru_forward.3} parent=0
    _
  %s13 = ssub.s32 1, %s11
  %s14 = scalar_select 0, %s13, %s11
  $region1: #{bigru_forward.3} parent=0
    #allocation3 [shape = 'u8[32768]{0}', space=vmem, size = 0x8000, scoped, tag = 'output window, operand 0, single buffered']
    #allocation4 [shape = 's32[1]{0}', space=sflag, size = 0x4, scoped, tag = 'scoped memory for bigru_forward.3']
    %15 = vsyncpa [#allocation4], 0
    // Predicated region
    $region2: #{bigru_forward.3} parent=1 // pred_check
      _
    $region3: #{bigru_forward.3} parent=1 // pred_check_branch
      %17 = sbr.rel (0) target = $region5
    $region4: #{bigru_forward.3} parent=1 // pred_region
      _
    $region5: #{bigru_forward.3} parent=1 // pred_fallthru
      _
    // Predicated region
    $region6: #{bigru_forward.3} parent=1 // pred_check
      _
    $region7: #{bigru_forward.3} parent=1 // pred_check_branch
      %19 = sbr.rel (0) target = $region9
    $region8: #{bigru_forward.3} parent=1 // pred_region
      _
    $region9: #{bigru_forward.3} parent=1 // pred_fallthru
      _
    // Predicated region
    $region10: #{bigru_forward.3} parent=1 // pred_check
      _
    $region11: #{bigru_forward.3} parent=1 // pred_check_branch
      %21 = sbr.rel (0) target = $region13
    $region12: #{bigru_forward.3} parent=1 // pred_region
      _
    $region13: #{bigru_forward.3} parent=1 // pred_fallthru
      _
    // Predicated region
    $region14: #{bigru_forward.3} parent=1 // pred_check
      _
    $region15: #{bigru_forward.3} parent=1 // pred_check_branch
      %23 = sbr.rel (0) target = $region17
    $region16: #{bigru_forward.3} parent=1 // pred_region
      _
    $region17: #{bigru_forward.3} parent=1 // pred_fallthru
      _
    // Predicated region
    $region18: #{bigru_forward.3} parent=1 // pred_check
      _
    $region19: #{bigru_forward.3} parent=1 // pred_check_branch
      %25 = sbr.rel (0) target = $region21
    $region20: #{bigru_forward.3} parent=1 // pred_region
      _
    $region21: #{bigru_forward.3} parent=1 // pred_fallthru
      _
    // Predicated region
    $region22: #{bigru_forward.3} parent=1 // pred_check
      _
    $region23: #{bigru_forward.3} parent=1 // pred_check_branch
      %27 = sbr.rel (0) target = $region25
    $region24: #{bigru_forward.3} parent=1 // pred_region
      _
    $region25: #{bigru_forward.3} parent=1 // pred_fallthru
      _
    // Predicated region
    $region26: #{bigru_forward.3} parent=1 // pred_check
      _
    $region27: #{bigru_forward.3} parent=1 // pred_check_branch
      %29 = sbr.rel (0) target = $region29
    $region28: #{bigru_forward.3} parent=1 // pred_region
      _
    $region29: #{bigru_forward.3} parent=1 // pred_fallthru
      _
    // Predicated region
    $region30: #{bigru_forward.3} parent=1 // pred_check
      _
    $region31: #{bigru_forward.3} parent=1 // pred_check_branch
      %31 = sbr.rel (0) target = $region33
    $region32: #{bigru_forward.3} parent=1 // pred_region
      _
    $region33: #{bigru_forward.3} parent=1 // pred_fallthru
      _
    %v33 = vld [vmem:[%s0] sm:$0xf]
    %v34 = vld [vmem:[%s0 + $0x4] sm:$0xf]
    %v35 = vld [vmem:[%s0 + $0x8] sm:$0xf]
    %v36 = vld [vmem:[%s0 + $0xc] sm:$0xf]
    %v37 = vld [vmem:[%s0 + $0x10] sm:$0xf]
    %v38 = vld [vmem:[%s0 + $0x14] sm:$0xf]
    %v39 = vld [vmem:[%s0 + $0x18] sm:$0xf]
    %v40 = vld [vmem:[%s0 + $0x1c] sm:$0xf]
    %v41 = vld [vmem:[%s0 + $0x20] sm:$0xf]
    %v42 = vld [vmem:[%s0 + $0x24] sm:$0xf]
    %v43 = vld [vmem:[%s0 + $0x28] sm:$0xf]
    %v44 = vld [vmem:[%s0 + $0x2c] sm:$0xf]
    %v45 = vld [vmem:[%s0 + $0x30] sm:$0xf]
    %v46 = vld [vmem:[%s0 + $0x34] sm:$0xf]
    %v47 = vld [vmem:[%s0 + $0x38] sm:$0xf]
    %v48 = vld [vmem:[%s0 + $0x3c] sm:$0xf]
    %v49 = vld [vmem:[%s1] sm:$0xf]
    %v50 = vld [vmem:[%s1 + $0x4] sm:$0xf]
    %v51 = vld [vmem:[%s1 + $0x8] sm:$0xf]
    %v52 = vld [vmem:[%s1 + $0xc] sm:$0xf]
    %v53 = vld [vmem:[%s1 + $0x10] sm:$0xf]
    %v54 = vld [vmem:[%s1 + $0x14] sm:$0xf]
    %v55 = vld [vmem:[%s1 + $0x18] sm:$0xf]
    %v56 = vld [vmem:[%s1 + $0x1c] sm:$0xf]
    %v57 = vld [vmem:[%s2] sm:$0x1]
    %v59 = vperm.slane %v57, 0
    %v77 = vunpack.c.l.b16 %v33
    %v78 = vunpack.c.l.b16 %v34
    %v79 = vunpack.c.l.b16 %v35
    %v80 = vunpack.c.l.b16 %v36
    %v81 = vunpack.c.l.b16 %v37
    %v82 = vunpack.c.l.b16 %v38
    %v83 = vunpack.c.l.b16 %v39
    %v84 = vunpack.c.l.b16 %v40
    %v85 = vunpack.c.l.b16 %v41
    %v86 = vunpack.c.l.b16 %v42
    %v87 = vunpack.c.l.b16 %v43
    %v88 = vunpack.c.l.b16 %v44
    %v89 = vunpack.c.l.b16 %v45
    %v90 = vunpack.c.l.b16 %v46
    %v91 = vunpack.c.l.b16 %v47
    %v92 = vunpack.c.l.b16 %v48
    %v93 = vpack.c.b16 %v78, %v77
    %v94 = vpack.c.b16 %v80, %v79
    %v95 = vpack.c.b16 %v82, %v81
    %v96 = vpack.c.b16 %v84, %v83
    %v97 = vpack.c.b16 %v86, %v85
    %v98 = vpack.c.b16 %v88, %v87
    %v99 = vpack.c.b16 %v90, %v89
    %v100 = vpack.c.b16 %v92, %v91
    %v109 = vunpack.c.l.b16 %v49
    %v110 = vunpack.c.l.b16 %v50
    %v111 = vunpack.c.l.b16 %v51
    %v112 = vunpack.c.l.b16 %v52
    %v113 = vunpack.c.l.b16 %v53
    %v114 = vunpack.c.l.b16 %v54
    %v115 = vunpack.c.l.b16 %v55
    %v116 = vunpack.c.l.b16 %v56
    %v117 = vpack.c.b16 %v110, %v109
    %v118 = vpack.c.b16 %v112, %v111
    %v119 = vpack.c.b16 %v114, %v113
    %v120 = vpack.c.b16 %v116, %v115
    %vm125 = vcmask 523264
    %v127 = vsel %vm125, %v93, 0
    %v130 = vsel %vm125, %v94, 0
    %v133 = vsel %vm125, %v95, 0
    %v136 = vsel %vm125, %v96, 0
    %v139 = vsel %vm125, %v97, 0
    %v142 = vsel %vm125, %v98, 0
    %v145 = vsel %vm125, %v99, 0
    %v148 = vsel %vm125, %v100, 0
    %150 = vmatpush.bf16.msra.mxu0 0
    %151 = vmatpush.bf16.msra.mxu0 0
    %152 = vmatpush.bf16.msra.mxu0 0
    %153 = vmatpush.bf16.msra.mxu0 0
    %154 = vmatpush.bf16.msra.mxu0 %v120
    %155 = vmatpush.bf16.msra.mxu0 %v119
    %156 = vmatpush.bf16.msra.mxu0 %v118
    %157 = vmatpush.bf16.msra.mxu0 %v117
    %158 = vmatmul.bf16.gmra.mxu0 %v127
    %v159 = vpop.f32.mrf.mxu0
    %v160 = vadd.f32 %v59, %v159
    %v161 = vpop.f32.mrf.mxu0
    %v162 = vadd.f32 %v59, %v161
    %163 = vmatmul.bf16.gmra.mxu0 %v130
    %v164 = vpop.f32.mrf.mxu0
    %v165 = vadd.f32 %v59, %v164
    %v166 = vpop.f32.mrf.mxu0
    %v167 = vadd.f32 %v59, %v166
    %168 = vmatmul.bf16.gmra.mxu0 %v133
    %v169 = vpop.f32.mrf.mxu0
    %v170 = vadd.f32 %v59, %v169
    %v171 = vpop.f32.mrf.mxu0
    %v172 = vadd.f32 %v59, %v171
    %173 = vmatmul.bf16.gmra.mxu0 %v136
    %v174 = vpop.f32.mrf.mxu0
    %v175 = vadd.f32 %v59, %v174
    %v176 = vpop.f32.mrf.mxu0
    %v177 = vadd.f32 %v59, %v176
    %178 = vmatmul.bf16.gmra.mxu0 %v139
    %v179 = vpop.f32.mrf.mxu0
    %v180 = vadd.f32 %v59, %v179
    %v181 = vpop.f32.mrf.mxu0
    %v182 = vadd.f32 %v59, %v181
    %183 = vmatmul.bf16.gmra.mxu0 %v142
    %v184 = vpop.f32.mrf.mxu0
    %v185 = vadd.f32 %v59, %v184
    %v186 = vpop.f32.mrf.mxu0
    %v187 = vadd.f32 %v59, %v186
    %188 = vmatmul.bf16.gmra.mxu0 %v145
    %v189 = vpop.f32.mrf.mxu0
    %v190 = vadd.f32 %v59, %v189
    %v191 = vpop.f32.mrf.mxu0
    %v192 = vadd.f32 %v59, %v191
    %193 = vmatmul.bf16.gmra.mxu0 %v148
    %v194 = vpop.f32.mrf.mxu0
    %v195 = vadd.f32 %v59, %v194
    %v196 = vpop.f32.mrf.mxu0
    %v197 = vadd.f32 %v59, %v196
    %198 = vdwg.mxu0
    %v199 = vpack.c.bf16 %v160, %v160
    %v200 = vpack.c.bf16 %v162, %v162
    %v201 = vpack.c.bf16 %v165, %v165
    %v202 = vpack.c.bf16 %v167, %v167
    %v203 = vpack.c.bf16 %v170, %v170
    %v204 = vpack.c.bf16 %v172, %v172
    %v205 = vpack.c.bf16 %v175, %v175
    %v206 = vpack.c.bf16 %v177, %v177
    %v207 = vpack.c.bf16 %v180, %v180
    %v208 = vpack.c.bf16 %v182, %v182
    %v209 = vpack.c.bf16 %v185, %v185
    %v210 = vpack.c.bf16 %v187, %v187
    %v211 = vpack.c.bf16 %v190, %v190
    %v212 = vpack.c.bf16 %v192, %v192
    %v213 = vpack.c.bf16 %v195, %v195
    %v214 = vpack.c.bf16 %v197, %v197
    %vm215 = vcmask 781312
    %216 = vst.msk [vmem:[#allocation2] sm:$0xf] %vm215, %v199
    %217 = vst.msk [vmem:[#allocation2 + $0x4] sm:$0xf] %vm215, %v200
    %218 = vst.msk [vmem:[#allocation2 + $0x8] sm:$0xf] %vm215, %v201
    %219 = vst.msk [vmem:[#allocation2 + $0xc] sm:$0xf] %vm215, %v202
    %220 = vst.msk [vmem:[#allocation2 + $0x10] sm:$0xf] %vm215, %v203
    %221 = vst.msk [vmem:[#allocation2 + $0x14] sm:$0xf] %vm215, %v204
    %222 = vst.msk [vmem:[#allocation2 + $0x18] sm:$0xf] %vm215, %v205
    %223 = vst.msk [vmem:[#allocation2 + $0x1c] sm:$0xf] %vm215, %v206
    %224 = vst.msk [vmem:[#allocation2 + $0x20] sm:$0xf] %vm215, %v207
    %225 = vst.msk [vmem:[#allocation2 + $0x24] sm:$0xf] %vm215, %v208
    %226 = vst.msk [vmem:[#allocation2 + $0x28] sm:$0xf] %vm215, %v209
    %227 = vst.msk [vmem:[#allocation2 + $0x2c] sm:$0xf] %vm215, %v210
    %228 = vst.msk [vmem:[#allocation2 + $0x30] sm:$0xf] %vm215, %v211
    %229 = vst.msk [vmem:[#allocation2 + $0x34] sm:$0xf] %vm215, %v212
    %230 = vst.msk [vmem:[#allocation2 + $0x38] sm:$0xf] %vm215, %v213
    %231 = vst.msk [vmem:[#allocation2 + $0x3c] sm:$0xf] %vm215, %v214
    %s232 = scalar_lea.vmem %s1, 32
    %v233 = vld [vmem:[%s232] sm:$0xf]
    %v234 = vld [vmem:[%s232 + $0x4] sm:$0xf]
    %v235 = vld [vmem:[%s232 + $0x8] sm:$0xf]
    %v236 = vld [vmem:[%s232 + $0xc] sm:$0xf]
    %v237 = vld [vmem:[%s232 + $0x10] sm:$0xf]
    %v238 = vld [vmem:[%s232 + $0x14] sm:$0xf]
    %v239 = vld [vmem:[%s232 + $0x18] sm:$0xf]
    %v240 = vld [vmem:[%s232 + $0x1c] sm:$0xf]
    %s241 = scalar_lea.vmem %s2, 1
    %v242 = vld [vmem:[%s241] sm:$0x1]
    %v244 = vperm.slane %v242, 0
    %v254 = vunpack.c.l.b16 %v233
    %v255 = vunpack.c.l.b16 %v234
    %v256 = vunpack.c.l.b16 %v235
    %v257 = vunpack.c.l.b16 %v236
    %v258 = vunpack.c.l.b16 %v237
    %v259 = vunpack.c.l.b16 %v238
    %v260 = vunpack.c.l.b16 %v239
    %v261 = vunpack.c.l.b16 %v240
    %v262 = vpack.c.b16 %v255, %v254
    %v263 = vpack.c.b16 %v257, %v256
    %v264 = vpack.c.b16 %v259, %v258
    %v265 = vpack.c.b16 %v261, %v260
    %270 = vmatpush.bf16.msra.mxu0 0
    %271 = vmatpush.bf16.msra.mxu0 0
    %272 = vmatpush.bf16.msra.mxu0 0
    %273 = vmatpush.bf16.msra.mxu0 0
    %274 = vmatpush.bf16.msra.mxu0 %v265
    %275 = vmatpush.bf16.msra.mxu0 %v264
    %276 = vmatpush.bf16.msra.mxu0 %v263
    %277 = vmatpush.bf16.msra.mxu0 %v262
    %278 = vmatmul.bf16.gmra.mxu0 %v127
    %v279 = vpop.f32.mrf.mxu0
    %v280 = vadd.f32 %v244, %v279
    %v281 = vpop.f32.mrf.mxu0
    %v282 = vadd.f32 %v244, %v281
    %283 = vmatmul.bf16.gmra.mxu0 %v130
    %v284 = vpop.f32.mrf.mxu0
    %v285 = vadd.f32 %v244, %v284
    %v286 = vpop.f32.mrf.mxu0
    %v287 = vadd.f32 %v244, %v286
    %288 = vmatmul.bf16.gmra.mxu0 %v133
    %v289 = vpop.f32.mrf.mxu0
    %v290 = vadd.f32 %v244, %v289
    %v291 = vpop.f32.mrf.mxu0
    %v292 = vadd.f32 %v244, %v291
    %293 = vmatmul.bf16.gmra.mxu0 %v136
    %v294 = vpop.f32.mrf.mxu0
    %v295 = vadd.f32 %v244, %v294
    %v296 = vpop.f32.mrf.mxu0
    %v297 = vadd.f32 %v244, %v296
    %298 = vmatmul.bf16.gmra.mxu0 %v139
    %v299 = vpop.f32.mrf.mxu0
    %v300 = vadd.f32 %v244, %v299
    %v301 = vpop.f32.mrf.mxu0
    %v302 = vadd.f32 %v244, %v301
    %303 = vmatmul.bf16.gmra.mxu0 %v142
    %v304 = vpop.f32.mrf.mxu0
    %v305 = vadd.f32 %v244, %v304
    %v306 = vpop.f32.mrf.mxu0
    %v307 = vadd.f32 %v244, %v306
    %308 = vmatmul.bf16.gmra.mxu0 %v145
    %v309 = vpop.f32.mrf.mxu0
    %v310 = vadd.f32 %v244, %v309
    %v311 = vpop.f32.mrf.mxu0
    %v312 = vadd.f32 %v244, %v311
    %313 = vmatmul.bf16.gmra.mxu0 %v148
    %v314 = vpop.f32.mrf.mxu0
    %v315 = vadd.f32 %v244, %v314
    %v316 = vpop.f32.mrf.mxu0
    %v317 = vadd.f32 %v244, %v316
    %318 = vdwg.mxu0
    %v319 = vpack.c.bf16 %v280, %v280
    %v320 = vpack.c.bf16 %v282, %v282
    %v321 = vpack.c.bf16 %v285, %v285
    %v322 = vpack.c.bf16 %v287, %v287
    %v323 = vpack.c.bf16 %v290, %v290
    %v324 = vpack.c.bf16 %v292, %v292
    %v325 = vpack.c.bf16 %v295, %v295
    %v326 = vpack.c.bf16 %v297, %v297
    %v327 = vpack.c.bf16 %v300, %v300
    %v328 = vpack.c.bf16 %v302, %v302
    %v329 = vpack.c.bf16 %v305, %v305
    %v330 = vpack.c.bf16 %v307, %v307
    %v331 = vpack.c.bf16 %v310, %v310
    %v332 = vpack.c.bf16 %v312, %v312
    %v333 = vpack.c.bf16 %v315, %v315
    %v334 = vpack.c.bf16 %v317, %v317
    %s335 = scalar_lea.vmem [#allocation2], 64
    %336 = vst.msk [vmem:[%s335] sm:$0xf] %vm215, %v319
    %337 = vst.msk [vmem:[%s335 + $0x4] sm:$0xf] %vm215, %v320
    %338 = vst.msk [vmem:[%s335 + $0x8] sm:$0xf] %vm215, %v321
    %339 = vst.msk [vmem:[%s335 + $0xc] sm:$0xf] %vm215, %v322
    %340 = vst.msk [vmem:[%s335 + $0x10] sm:$0xf] %vm215, %v323
    %341 = vst.msk [vmem:[%s335 + $0x14] sm:$0xf] %vm215, %v324
    %342 = vst.msk [vmem:[%s335 + $0x18] sm:$0xf] %vm215, %v325
    %343 = vst.msk [vmem:[%s335 + $0x1c] sm:$0xf] %vm215, %v326
    %344 = vst.msk [vmem:[%s335 + $0x20] sm:$0xf] %vm215, %v327
    %345 = vst.msk [vmem:[%s335 + $0x24] sm:$0xf] %vm215, %v328
    %346 = vst.msk [vmem:[%s335 + $0x28] sm:$0xf] %vm215, %v329
    %347 = vst.msk [vmem:[%s335 + $0x2c] sm:$0xf] %vm215, %v330
    %348 = vst.msk [vmem:[%s335 + $0x30] sm:$0xf] %vm215, %v331
    %349 = vst.msk [vmem:[%s335 + $0x34] sm:$0xf] %vm215, %v332
    %350 = vst.msk [vmem:[%s335 + $0x38] sm:$0xf] %vm215, %v333
    %351 = vst.msk [vmem:[%s335 + $0x3c] sm:$0xf] %vm215, %v334
    %v352 = vld [vmem:[%s3] sm:$0xf]
    %v353 = vld [vmem:[%s3 + $0x4] sm:$0xf]
    %v354 = vld [vmem:[%s3 + $0x8] sm:$0xf]
    %v355 = vld [vmem:[%s3 + $0xc] sm:$0xf]
    %s356 = scalar_lea.vmem %s3, 16
    %v357 = vld [vmem:[%s356] sm:$0xf]
    %v358 = vld [vmem:[%s356 + $0x4] sm:$0xf]
    %v359 = vld [vmem:[%s356 + $0x8] sm:$0xf]
    %v360 = vld [vmem:[%s356 + $0xc] sm:$0xf]
    %v361 = vld [vmem:[%s4] sm:$0x1]
    %s362 = scalar_lea.vmem %s4, 1
    %v363 = vld [vmem:[%s362] sm:$0x1]
    %v368 = vunpack.c.l.b16 %v352
    %v369 = vunpack.c.l.b16 %v353
    %v370 = vunpack.c.l.b16 %v354
    %v371 = vunpack.c.l.b16 %v355
    %v372 = vpack.c.b16 %v369, %v368
    %v373 = vpack.c.b16 %v371, %v370
    %vm376 = vcmask 261120
    %v378 = vsel %vm376, 0, 0
    %380 = vmatpush.bf16.msra.mxu0 0
    %381 = vmatpush.bf16.msra.mxu0 0
    %382 = vmatpush.bf16.msra.mxu0 0
    %383 = vmatpush.bf16.msra.mxu0 0
    %384 = vmatpush.bf16.msra.mxu0 0
    %385 = vmatpush.bf16.msra.mxu0 0
    %386 = vmatpush.bf16.msra.mxu0 %v373
    %387 = vmatpush.bf16.msra.mxu0 %v372
    %388 = vmatmul.bf16.gmra.mxu0 %v378
    %v389 = vpop.f32.mrf.mxu0
    %v390 = vadd.f32 0.0, %v389
    %v391 = vpop.f32.mrf.mxu0
    %v392 = vadd.f32 0.0, %v391
    %393 = vdwg.mxu0
    %v398 = vunpack.c.l.b16 %v357
    %v399 = vunpack.c.l.b16 %v358
    %v400 = vunpack.c.l.b16 %v359
    %v401 = vunpack.c.l.b16 %v360
    %v402 = vpack.c.b16 %v399, %v398
    %v403 = vpack.c.b16 %v401, %v400
    %406 = vmatpush.bf16.msra.mxu0 0
    %407 = vmatpush.bf16.msra.mxu0 0
    %408 = vmatpush.bf16.msra.mxu0 0
    %409 = vmatpush.bf16.msra.mxu0 0
    %410 = vmatpush.bf16.msra.mxu0 0
    %411 = vmatpush.bf16.msra.mxu0 0
    %412 = vmatpush.bf16.msra.mxu0 %v403
    %413 = vmatpush.bf16.msra.mxu0 %v402
    %414 = vmatmul.bf16.gmra.mxu0 %v378
    %v415 = vpop.f32.mrf.mxu0
    %v416 = vadd.f32 0.0, %v415
    %v417 = vpop.f32.mrf.mxu0
    %v418 = vadd.f32 0.0, %v417
    %419 = vdwg.mxu0
    %v420 = vld [vmem:[#allocation2] sm:$0xf]
    %v421 = vld [vmem:[#allocation2 + $0x4] sm:$0xf]
    %v422 = vunpack.c.l.bf16 %v420
    %v423 = vunpack.c.l.bf16 %v421
    %s424 = sadd.s32 14, 16
    %s425 = smul.addr %s424, 4
    %s426 = scalar_lea.vmem [#allocation2], %s425
    %v427 = vld [vmem:[%s426] sm:$0xf]
    %v428 = vld [vmem:[%s426 + $0x4] sm:$0xf]
    %v429 = vunpack.c.l.bf16 %v427
    %v430 = vunpack.c.l.bf16 %v428
    %v431 = vadd.f32 %v422, %v390
    %v432 = vadd.f32 %v423, %v392
    %v433 = vxor.u32 %v431, 2147483648
    %v434 = vxor.u32 %v432, 2147483648
    %v435 = vmul.f32 %v433, 1.442695
    %v436 = vpow.pop %v435
    %v437 = vmul.f32 %v434, 1.442695
    %v438 = vpow.pop %v437
    %v439 = vadd.f32 %v436, 1.0
    %v440 = vadd.f32 %v438, 1.0
    %v441 = vrcp.pop %v439
    %v442 = vmul.f32 %v439, %v441
    %v443 = vsub.f32 1.0, %v442
    %v444 = vmul.f32 %v441, %v443
    %v445 = vadd.f32 %v441, %v444
    %vm446 = vweird.f32 %v439
    %vm447 = vweird.f32 %v441
    %vm448 = vmor %vm446, %vm447
    %v449 = vsel %vm448, %v441, %v445
    %v450 = vand.u32 2147483647, %v439
    %vm451 = vcmp.eq.f32.partialorder %v450, 8.507059e+37
    %v452 = vand.u32 %v439, 2147483648
    %v453 = vor.u32 1.1754944e-38, %v452
    %v454 = vsel %vm451, %v453, %v449
    %v455 = vmul.f32 1.0, %v454
    %v456 = vrcp.pop %v440
    %v457 = vmul.f32 %v440, %v456
    %v458 = vsub.f32 1.0, %v457
    %v459 = vmul.f32 %v456, %v458
    %v460 = vadd.f32 %v456, %v459
    %vm461 = vweird.f32 %v440
    %vm462 = vweird.f32 %v456
    %vm463 = vmor %vm461, %vm462
    %v464 = vsel %vm463, %v456, %v460
    %v465 = vand.u32 2147483647, %v440
    %vm466 = vcmp.eq.f32.partialorder %v465, 8.507059e+37
    %v467 = vand.u32 %v440, 2147483648
    %v468 = vor.u32 1.1754944e-38, %v467
    %v469 = vsel %vm466, %v468, %v464
    %v470 = vmul.f32 1.0, %v469
    %v472 = vperm.slane %v361, 0
    %473 = vrot.lane.b32.xlu0 %v472, 64
    %v474 = vpop.permute.xlu0 %473
    %v476 = vadd.f32 %v390, %v474
    %v477 = vadd.f32 %v392, %v474
    %480 = vrot.lane.b32.xlu0 %v476, 64
    %v481 = vpop.permute.xlu0 %480
    %482 = vrot.lane.b32.xlu0 %v477, 64
    %v483 = vpop.permute.xlu0 %482
    %v486 = vmul.f32 %v455, %v481
    %v487 = vmul.f32 %v470, %v483
    %490 = vrot.lane.b32.xlu0 %v486, 64
    %v491 = vpop.permute.xlu0 %490
    %492 = vrot.lane.b32.xlu0 %v487, 64
    %v493 = vpop.permute.xlu0 %492
    %v496 = vadd.f32 %v422, %v491
    %v497 = vadd.f32 %v423, %v493
    %v498 = vtanh.pop %v496
    %v499 = vtanh.pop %v497
    %v500 = vsub.f32 1.0, %v455
    %v501 = vsub.f32 1.0, %v470
    %504 = vrot.lane.b32.xlu0 %v498, 96
    %v505 = vpop.permute.xlu0 %504
    %506 = vrot.lane.b32.xlu0 %v499, 96
    %v507 = vpop.permute.xlu0 %506
    %v510 = vmul.f32 %v500, %v505
    %v511 = vmul.f32 %v501, %v507
    %v512 = vmul.f32 %v455, 0.0
    %v513 = vmul.f32 %v470, 0.0
    %v514 = vadd.f32 %v510, %v512
    %v515 = vadd.f32 %v511, %v513
    %v516 = vadd.f32 %v429, %v416
    %v517 = vadd.f32 %v430, %v418
    %v518 = vxor.u32 %v516, 2147483648
    %v519 = vxor.u32 %v517, 2147483648
    %v520 = vmul.f32 %v518, 1.442695
    %v521 = vpow.pop %v520
    %v522 = vmul.f32 %v519, 1.442695
    %v523 = vpow.pop %v522
    %v524 = vadd.f32 %v521, 1.0
    %v525 = vadd.f32 %v523, 1.0
    %v526 = vrcp.pop %v524
    %v527 = vmul.f32 %v524, %v526
    %v528 = vsub.f32 1.0, %v527
    %v529 = vmul.f32 %v526, %v528
    %v530 = vadd.f32 %v526, %v529
    %vm531 = vweird.f32 %v524
    %vm532 = vweird.f32 %v526
    %vm533 = vmor %vm531, %vm532
    %v534 = vsel %vm533, %v526, %v530
    %v535 = vand.u32 2147483647, %v524
    %vm536 = vcmp.eq.f32.partialorder %v535, 8.507059e+37
    %v537 = vand.u32 %v524, 2147483648
    %v538 = vor.u32 1.1754944e-38, %v537
    %v539 = vsel %vm536, %v538, %v534
    %v540 = vmul.f32 1.0, %v539
    %v541 = vrcp.pop %v525
    %v542 = vmul.f32 %v525, %v541
    %v543 = vsub.f32 1.0, %v542
    %v544 = vmul.f32 %v541, %v543
    %v545 = vadd.f32 %v541, %v544
    %vm546 = vweird.f32 %v525
    %vm547 = vweird.f32 %v541
    %vm548 = vmor %vm546, %vm547
    %v549 = vsel %vm548, %v541, %v545
    %v550 = vand.u32 2147483647, %v525
    %vm551 = vcmp.eq.f32.partialorder %v550, 8.507059e+37
    %v552 = vand.u32 %v525, 2147483648
    %v553 = vor.u32 1.1754944e-38, %v552
    %v554 = vsel %vm551, %v553, %v549
    %v555 = vmul.f32 1.0, %v554
    %v557 = vperm.slane %v363, 0
    %558 = vrot.lane.b32.xlu0 %v557, 64
    %v559 = vpop.permute.xlu0 %558
    %v561 = vadd.f32 %v416, %v559
    %v562 = vadd.f32 %v418, %v559
    %565 = vrot.lane.b32.xlu0 %v561, 64
    %v566 = vpop.permute.xlu0 %565
    %567 = vrot.lane.b32.xlu0 %v562, 64
    %v568 = vpop.permute.xlu0 %567
    %v571 = vmul.f32 %v540, %v566
    %v572 = vmul.f32 %v555, %v568
    %575 = vrot.lane.b32.xlu0 %v571, 64
    %v576 = vpop.permute.xlu0 %575
    %577 = vrot.lane.b32.xlu0 %v572, 64
    %v578 = vpop.permute.xlu0 %577
    %v581 = vadd.f32 %v429, %v576
    %v582 = vadd.f32 %v430, %v578
    %v583 = vtanh.pop %v581
    %v584 = vtanh.pop %v582
    %v585 = vsub.f32 1.0, %v540
    %v586 = vsub.f32 1.0, %v555
    %589 = vrot.lane.b32.xlu0 %v583, 96
    %v590 = vpop.permute.xlu0 %589
    %591 = vrot.lane.b32.xlu0 %v584, 96
    %v592 = vpop.permute.xlu0 %591
    %v595 = vmul.f32 %v585, %v590
    %v596 = vmul.f32 %v586, %v592
    %v597 = vmul.f32 %v540, 0.0
    %v598 = vmul.f32 %v555, 0.0
    %v599 = vadd.f32 %v595, %v597
    %v600 = vadd.f32 %v596, %v598
    %v601 = vpack.c.bf16 %v514, %v514
    %v602 = vpack.c.bf16 %v515, %v515
    %605 = vrot.lane.b32.xlu0 %v601, 96
    %v606 = vpop.permute.xlu0 %605
    %607 = vrot.lane.b32.xlu0 %v602, 96
    %v608 = vpop.permute.xlu0 %607
    %vm611 = vcmask 257024
    %612 = vst.msk [vmem:[#allocation3] sm:$0xf] %vm611, %v606
    %613 = vst.msk [vmem:[#allocation3 + $0x4] sm:$0xf] %vm611, %v608
    %v614 = vpack.c.bf16 %v599, %v599
    %v615 = vpack.c.bf16 %v600, %v600
    %s616 = scalar_lea.vmem [#allocation3], 56
    %vm617 = vcmask 519424
    %618 = vst.msk [vmem:[%s616] sm:$0xf] %vm617, %v614
    %619 = vst.msk [vmem:[%s616 + $0x4] sm:$0xf] %vm617, %v615
    %v620 = vunpack.c.l.b16 %v601
    %v621 = vunpack.c.l.b16 %v602
    %v622 = vpack.c.b16 %v621, %v620
    %623 = vrot.lane.b32.xlu0 %v622, 96
    %v624 = vpop.permute.xlu0 %623
    %v626 = vsel %vm376, %v624, 0
    %628 = vmatpush.bf16.msra.mxu0 0
    %629 = vmatpush.bf16.msra.mxu0 0
    %630 = vmatpush.bf16.msra.mxu0 0
    %631 = vmatpush.bf16.msra.mxu0 0
    %632 = vmatpush.bf16.msra.mxu0 0
    %633 = vmatpush.bf16.msra.mxu0 0
    %634 = vmatpush.bf16.msra.mxu0 %v373
    %635 = vmatpush.bf16.msra.mxu0 %v372
    %636 = vmatmul.bf16.gmra.mxu0 %v626
    %v637 = vpop.f32.mrf.mxu0
    %v638 = vadd.f32 0.0, %v637
    %v639 = vpop.f32.mrf.mxu0
    %v640 = vadd.f32 0.0, %v639
    %641 = vdwg.mxu0
    %v644 = vunpack.c.l.b16 %v614
    %v645 = vunpack.c.l.b16 %v615
    %v646 = vpack.c.b16 %v645, %v644
    %647 = vrot.lane.b32.xlu0 %v646, 96
    %v648 = vpop.permute.xlu0 %647
    %v650 = vsel %vm376, %v648, 0
    %652 = vmatpush.bf16.msra.mxu0 0
    %653 = vmatpush.bf16.msra.mxu0 0
    %654 = vmatpush.bf16.msra.mxu0 0
    %655 = vmatpush.bf16.msra.mxu0 0
    %656 = vmatpush.bf16.msra.mxu0 0
    %657 = vmatpush.bf16.msra.mxu0 0
    %658 = vmatpush.bf16.msra.mxu0 %v403
    %659 = vmatpush.bf16.msra.mxu0 %v402
    %660 = vmatmul.bf16.gmra.mxu0 %v650
    %v661 = vpop.f32.mrf.mxu0
    %v662 = vadd.f32 0.0, %v661
    %v663 = vpop.f32.mrf.mxu0
    %v664 = vadd.f32 0.0, %v663
    %665 = vdwg.mxu0
    %s666 = scalar_lea.vmem [#allocation2], 8
    %v667 = vld [vmem:[%s666] sm:$0xf]
    %v668 = vld [vmem:[%s666 + $0x4] sm:$0xf]
    %v669 = vunpack.c.l.bf16 %v667
    %v670 = vunpack.c.l.bf16 %v668
    %s671 = sadd.s32 12, 16
    %s672 = smul.addr %s671, 4
    %s673 = scalar_lea.vmem [#allocation2], %s672
    %v674 = vld [vmem:[%s673] sm:$0xf]
    %v675 = vld [vmem:[%s673 + $0x4] sm:$0xf]
    %v676 = vunpack.c.l.bf16 %v674
    %v677 = vunpack.c.l.bf16 %v675
    %v678 = vadd.f32 %v669, %v638
    %v679 = vadd.f32 %v670, %v640
    %v680 = vxor.u32 %v678, 2147483648
    %v681 = vxor.u32 %v679, 2147483648
    %v682 = vmul.f32 %v680, 1.442695
    %v683 = vpow.pop %v682
    %v684 = vmul.f32 %v681, 1.442695
    %v685 = vpow.pop %v684
    %v686 = vadd.f32 %v683, 1.0
    %v687 = vadd.f32 %v685, 1.0
    %v688 = vrcp.pop %v686
    %v689 = vmul.f32 %v686, %v688
    %v690 = vsub.f32 1.0, %v689
    %v691 = vmul.f32 %v688, %v690
    %v692 = vadd.f32 %v688, %v691
    %vm693 = vweird.f32 %v686
    %vm694 = vweird.f32 %v688
    %vm695 = vmor %vm693, %vm694
    %v696 = vsel %vm695, %v688, %v692
    %v697 = vand.u32 2147483647, %v686
    %vm698 = vcmp.eq.f32.partialorder %v697, 8.507059e+37
    %v699 = vand.u32 %v686, 2147483648
    %v700 = vor.u32 1.1754944e-38, %v699
    %v701 = vsel %vm698, %v700, %v696
    %v702 = vmul.f32 1.0, %v701
    %v703 = vrcp.pop %v687
    %v704 = vmul.f32 %v687, %v703
    %v705 = vsub.f32 1.0, %v704
    %v706 = vmul.f32 %v703, %v705
    %v707 = vadd.f32 %v703, %v706
    %vm708 = vweird.f32 %v687
    %vm709 = vweird.f32 %v703
    %vm710 = vmor %vm708, %vm709
    %v711 = vsel %vm710, %v703, %v707
    %v712 = vand.u32 2147483647, %v687
    %vm713 = vcmp.eq.f32.partialorder %v712, 8.507059e+37
    %v714 = vand.u32 %v687, 2147483648
    %v715 = vor.u32 1.1754944e-38, %v714
    %v716 = vsel %vm713, %v715, %v711
    %v717 = vmul.f32 1.0, %v716
    %v718 = vadd.f32 %v638, %v474
    %v719 = vadd.f32 %v640, %v474
    %722 = vrot.lane.b32.xlu0 %v718, 64
    %v723 = vpop.permute.xlu0 %722
    %724 = vrot.lane.b32.xlu0 %v719, 64
    %v725 = vpop.permute.xlu0 %724
    %v728 = vmul.f32 %v702, %v723
    %v729 = vmul.f32 %v717, %v725
    %732 = vrot.lane.b32.xlu0 %v728, 64
    %v733 = vpop.permute.xlu0 %732
    %734 = vrot.lane.b32.xlu0 %v729, 64
    %v735 = vpop.permute.xlu0 %734
    %v738 = vadd.f32 %v669, %v733
    %v739 = vadd.f32 %v670, %v735
    %v740 = vtanh.pop %v738
    %v741 = vtanh.pop %v739
    %v742 = vsub.f32 1.0, %v702
    %v743 = vsub.f32 1.0, %v717
    %746 = vrot.lane.b32.xlu0 %v740, 96
    %v747 = vpop.permute.xlu0 %746
    %748 = vrot.lane.b32.xlu0 %v741, 96
    %v749 = vpop.permute.xlu0 %748
    %v752 = vmul.f32 %v742, %v747
    %v753 = vmul.f32 %v743, %v749
    %v754 = vmul.f32 %v702, %v514
    %v755 = vmul.f32 %v717, %v515
    %v756 = vadd.f32 %v752, %v754
    %v757 = vadd.f32 %v753, %v755
    %v758 = vadd.f32 %v676, %v662
    %v759 = vadd.f32 %v677, %v664
    %v760 = vxor.u32 %v758, 2147483648
    %v761 = vxor.u32 %v759, 2147483648
    %v762 = vmul.f32 %v760, 1.442695
    %v763 = vpow.pop %v762
    %v764 = vmul.f32 %v761, 1.442695
    %v765 = vpow.pop %v764
    %v766 = vadd.f32 %v763, 1.0
    %v767 = vadd.f32 %v765, 1.0
    %v768 = vrcp.pop %v766
    %v769 = vmul.f32 %v766, %v768
    %v770 = vsub.f32 1.0, %v769
    %v771 = vmul.f32 %v768, %v770
    %v772 = vadd.f32 %v768, %v771
    %vm773 = vweird.f32 %v766
    %vm774 = vweird.f32 %v768
    %vm775 = vmor %vm773, %vm774
    %v776 = vsel %vm775, %v768, %v772
    %v777 = vand.u32 2147483647, %v766
    %vm778 = vcmp.eq.f32.partialorder %v777, 8.507059e+37
    %v779 = vand.u32 %v766, 2147483648
    %v780 = vor.u32 1.1754944e-38, %v779
    %v781 = vsel %vm778, %v780, %v776
    %v782 = vmul.f32 1.0, %v781
    %v783 = vrcp.pop %v767
    %v784 = vmul.f32 %v767, %v783
    %v785 = vsub.f32 1.0, %v784
    %v786 = vmul.f32 %v783, %v785
    %v787 = vadd.f32 %v783, %v786
    %vm788 = vweird.f32 %v767
    %vm789 = vweird.f32 %v783
    %vm790 = vmor %vm788, %vm789
    %v791 = vsel %vm790, %v783, %v787
    %v792 = vand.u32 2147483647, %v767
    %vm793 = vcmp.eq.f32.partialorder %v792, 8.507059e+37
    %v794 = vand.u32 %v767, 2147483648
    %v795 = vor.u32 1.1754944e-38, %v794
    %v796 = vsel %vm793, %v795, %v791
    %v797 = vmul.f32 1.0, %v796
    %v798 = vadd.f32 %v662, %v559
    %v799 = vadd.f32 %v664, %v559
    %802 = vrot.lane.b32.xlu0 %v798, 64
    %v803 = vpop.permute.xlu0 %802
    %804 = vrot.lane.b32.xlu0 %v799, 64
    %v805 = vpop.permute.xlu0 %804
    %v808 = vmul.f32 %v782, %v803
    %v809 = vmul.f32 %v797, %v805
    %812 = vrot.lane.b32.xlu0 %v808, 64
    %v813 = vpop.permute.xlu0 %812
    %814 = vrot.lane.b32.xlu0 %v809, 64
    %v815 = vpop.permute.xlu0 %814
    %v818 = vadd.f32 %v676, %v813
    %v819 = vadd.f32 %v677, %v815
    %v820 = vtanh.pop %v818
    %v821 = vtanh.pop %v819
    %v822 = vsub.f32 1.0, %v782
    %v823 = vsub.f32 1.0, %v797
    %826 = vrot.lane.b32.xlu0 %v820, 96
    %v827 = vpop.permute.xlu0 %826
    %828 = vrot.lane.b32.xlu0 %v821, 96
    %v829 = vpop.permute.xlu0 %828
    %v832 = vmul.f32 %v822, %v827
    %v833 = vmul.f32 %v823, %v829
    %v834 = vmul.f32 %v782, %v599
    %v835 = vmul.f32 %v797, %v600
    %v836 = vadd.f32 %v832, %v834
    %v837 = vadd.f32 %v833, %v835
    %v838 = vpack.c.bf16 %v756, %v756
    %v839 = vpack.c.bf16 %v757, %v757
    %842 = vrot.lane.b32.xlu0 %v838, 96
    %v843 = vpop.permute.xlu0 %842
    %844 = vrot.lane.b32.xlu0 %v839, 96
    %v845 = vpop.permute.xlu0 %844
    %s848 = scalar_lea.vmem [#allocation3], 8
    %849 = vst.msk [vmem:[%s848] sm:$0xf] %vm611, %v843
    %850 = vst.msk [vmem:[%s848 + $0x4] sm:$0xf] %vm611, %v845
    %v851 = vpack.c.bf16 %v836, %v836
    %v852 = vpack.c.bf16 %v837, %v837
    %s853 = scalar_lea.vmem [#allocation3], 48
    %854 = vst.msk [vmem:[%s853] sm:$0xf] %vm617, %v851
    %855 = vst.msk [vmem:[%s853 + $0x4] sm:$0xf] %vm617, %v852
    %v856 = vunpack.c.l.b16 %v838
    %v857 = vunpack.c.l.b16 %v839
    %v858 = vpack.c.b16 %v857, %v856
    %859 = vrot.lane.b32.xlu0 %v858, 96
    %v860 = vpop.permute.xlu0 %859
    %v862 = vsel %vm376, %v860, 0
    %864 = vmatpush.bf16.msra.mxu0 0
    %865 = vmatpush.bf16.msra.mxu0 0
    %866 = vmatpush.bf16.msra.mxu0 0
    %867 = vmatpush.bf16.msra.mxu0 0
    %868 = vmatpush.bf16.msra.mxu0 0
    %869 = vmatpush.bf16.msra.mxu0 0
    %870 = vmatpush.bf16.msra.mxu0 %v373
    %871 = vmatpush.bf16.msra.mxu0 %v372
    %872 = vmatmul.bf16.gmra.mxu0 %v862
    %v873 = vpop.f32.mrf.mxu0
    %v874 = vadd.f32 0.0, %v873
    %v875 = vpop.f32.mrf.mxu0
    %v876 = vadd.f32 0.0, %v875
    %877 = vdwg.mxu0
    %v880 = vunpack.c.l.b16 %v851
    %v881 = vunpack.c.l.b16 %v852
    %v882 = vpack.c.b16 %v881, %v880
    %883 = vrot.lane.b32.xlu0 %v882, 96
    %v884 = vpop.permute.xlu0 %883
    %v886 = vsel %vm376, %v884, 0
    %888 = vmatpush.bf16.msra.mxu0 0
    %889 = vmatpush.bf16.msra.mxu0 0
    %890 = vmatpush.bf16.msra.mxu0 0
    %891 = vmatpush.bf16.msra.mxu0 0
    %892 = vmatpush.bf16.msra.mxu0 0
    %893 = vmatpush.bf16.msra.mxu0 0
    %894 = vmatpush.bf16.msra.mxu0 %v403
    %895 = vmatpush.bf16.msra.mxu0 %v402
    %896 = vmatmul.bf16.gmra.mxu0 %v886
    %v897 = vpop.f32.mrf.mxu0
    %v898 = vadd.f32 0.0, %v897
    %v899 = vpop.f32.mrf.mxu0
    %v900 = vadd.f32 0.0, %v899
    %901 = vdwg.mxu0
    %s902 = scalar_lea.vmem [#allocation2], 16
    %v903 = vld [vmem:[%s902] sm:$0xf]
    %v904 = vld [vmem:[%s902 + $0x4] sm:$0xf]
    %v905 = vunpack.c.l.bf16 %v903
    %v906 = vunpack.c.l.bf16 %v904
    %s907 = sadd.s32 10, 16
    %s908 = smul.addr %s907, 4
    %s909 = scalar_lea.vmem [#allocation2], %s908
    %v910 = vld [vmem:[%s909] sm:$0xf]
    %v911 = vld [vmem:[%s909 + $0x4] sm:$0xf]
    %v912 = vunpack.c.l.bf16 %v910
    %v913 = vunpack.c.l.bf16 %v911
    %v914 = vadd.f32 %v905, %v874
    %v915 = vadd.f32 %v906, %v876
    %v916 = vxor.u32 %v914, 2147483648
    %v917 = vxor.u32 %v915, 2147483648
    %v918 = vmul.f32 %v916, 1.442695
    %v919 = vpow.pop %v918
    %v920 = vmul.f32 %v917, 1.442695
    %v921 = vpow.pop %v920
    %v922 = vadd.f32 %v919, 1.0
    %v923 = vadd.f32 %v921, 1.0
    %v924 = vrcp.pop %v922
    %v925 = vmul.f32 %v922, %v924
    %v926 = vsub.f32 1.0, %v925
    %v927 = vmul.f32 %v924, %v926
    %v928 = vadd.f32 %v924, %v927
    %vm929 = vweird.f32 %v922
    %vm930 = vweird.f32 %v924
    %vm931 = vmor %vm929, %vm930
    %v932 = vsel %vm931, %v924, %v928
    %v933 = vand.u32 2147483647, %v922
    %vm934 = vcmp.eq.f32.partialorder %v933, 8.507059e+37
    %v935 = vand.u32 %v922, 2147483648
    %v936 = vor.u32 1.1754944e-38, %v935
    %v937 = vsel %vm934, %v936, %v932
    %v938 = vmul.f32 1.0, %v937
    %v939 = vrcp.pop %v923
    %v940 = vmul.f32 %v923, %v939
    %v941 = vsub.f32 1.0, %v940
    %v942 = vmul.f32 %v939, %v941
    %v943 = vadd.f32 %v939, %v942
    %vm944 = vweird.f32 %v923
    %vm945 = vweird.f32 %v939
    %vm946 = vmor %vm944, %vm945
    %v947 = vsel %vm946, %v939, %v943
    %v948 = vand.u32 2147483647, %v923
    %vm949 = vcmp.eq.f32.partialorder %v948, 8.507059e+37
    %v950 = vand.u32 %v923, 2147483648
    %v951 = vor.u32 1.1754944e-38, %v950
    %v952 = vsel %vm949, %v951, %v947
    %v953 = vmul.f32 1.0, %v952
    %v954 = vadd.f32 %v874, %v474
    %v955 = vadd.f32 %v876, %v474
    %958 = vrot.lane.b32.xlu0 %v954, 64
    %v959 = vpop.permute.xlu0 %958
    %960 = vrot.lane.b32.xlu0 %v955, 64
    %v961 = vpop.permute.xlu0 %960
    %v964 = vmul.f32 %v938, %v959
    %v965 = vmul.f32 %v953, %v961
    %968 = vrot.lane.b32.xlu0 %v964, 64
    %v969 = vpop.permute.xlu0 %968
    %970 = vrot.lane.b32.xlu0 %v965, 64
    %v971 = vpop.permute.xlu0 %970
    %v974 = vadd.f32 %v905, %v969
    %v975 = vadd.f32 %v906, %v971
    %v976 = vtanh.pop %v974
    %v977 = vtanh.pop %v975
    %v978 = vsub.f32 1.0, %v938
    %v979 = vsub.f32 1.0, %v953
    %982 = vrot.lane.b32.xlu0 %v976, 96
    %v983 = vpop.permute.xlu0 %982
    %984 = vrot.lane.b32.xlu0 %v977, 96
    %v985 = vpop.permute.xlu0 %984
    %v988 = vmul.f32 %v978, %v983
    %v989 = vmul.f32 %v979, %v985
    %v990 = vmul.f32 %v938, %v756
    %v991 = vmul.f32 %v953, %v757
    %v992 = vadd.f32 %v988, %v990
    %v993 = vadd.f32 %v989, %v991
    %v994 = vadd.f32 %v912, %v898
    %v995 = vadd.f32 %v913, %v900
    %v996 = vxor.u32 %v994, 2147483648
    %v997 = vxor.u32 %v995, 2147483648
    %v998 = vmul.f32 %v996, 1.442695
    %v999 = vpow.pop %v998
    %v1000 = vmul.f32 %v997, 1.442695
    %v1001 = vpow.pop %v1000
    %v1002 = vadd.f32 %v999, 1.0
    %v1003 = vadd.f32 %v1001, 1.0
    %v1004 = vrcp.pop %v1002
    %v1005 = vmul.f32 %v1002, %v1004
    %v1006 = vsub.f32 1.0, %v1005
    %v1007 = vmul.f32 %v1004, %v1006
    %v1008 = vadd.f32 %v1004, %v1007
    %vm1009 = vweird.f32 %v1002
    %vm1010 = vweird.f32 %v1004
    %vm1011 = vmor %vm1009, %vm1010
    %v1012 = vsel %vm1011, %v1004, %v1008
    %v1013 = vand.u32 2147483647, %v1002
    %vm1014 = vcmp.eq.f32.partialorder %v1013, 8.507059e+37
    %v1015 = vand.u32 %v1002, 2147483648
    %v1016 = vor.u32 1.1754944e-38, %v1015
    %v1017 = vsel %vm1014, %v1016, %v1012
    %v1018 = vmul.f32 1.0, %v1017
    %v1019 = vrcp.pop %v1003
    %v1020 = vmul.f32 %v1003, %v1019
    %v1021 = vsub.f32 1.0, %v1020
    %v1022 = vmul.f32 %v1019, %v1021
    %v1023 = vadd.f32 %v1019, %v1022
    %vm1024 = vweird.f32 %v1003
    %vm1025 = vweird.f32 %v1019
    %vm1026 = vmor %vm1024, %vm1025
    %v1027 = vsel %vm1026, %v1019, %v1023
    %v1028 = vand.u32 2147483647, %v1003
    %vm1029 = vcmp.eq.f32.partialorder %v1028, 8.507059e+37
    %v1030 = vand.u32 %v1003, 2147483648
    %v1031 = vor.u32 1.1754944e-38, %v1030
    %v1032 = vsel %vm1029, %v1031, %v1027
    %v1033 = vmul.f32 1.0, %v1032
    %v1034 = vadd.f32 %v898, %v559
    %v1035 = vadd.f32 %v900, %v559
    %1038 = vrot.lane.b32.xlu0 %v1034, 64
    %v1039 = vpop.permute.xlu0 %1038
    %1040 = vrot.lane.b32.xlu0 %v1035, 64
    %v1041 = vpop.permute.xlu0 %1040
    %v1044 = vmul.f32 %v1018, %v1039
    %v1045 = vmul.f32 %v1033, %v1041
    %1048 = vrot.lane.b32.xlu0 %v1044, 64
    %v1049 = vpop.permute.xlu0 %1048
    %1050 = vrot.lane.b32.xlu0 %v1045, 64
    %v1051 = vpop.permute.xlu0 %1050
    %v1054 = vadd.f32 %v912, %v1049
    %v1055 = vadd.f32 %v913, %v1051
    %v1056 = vtanh.pop %v1054
    %v1057 = vtanh.pop %v1055
    %v1058 = vsub.f32 1.0, %v1018
    %v1059 = vsub.f32 1.0, %v1033
    %1062 = vrot.lane.b32.xlu0 %v1056, 96
    %v1063 = vpop.permute.xlu0 %1062
    %1064 = vrot.lane.b32.xlu0 %v1057, 96
    %v1065 = vpop.permute.xlu0 %1064
    %v1068 = vmul.f32 %v1058, %v1063
    %v1069 = vmul.f32 %v1059, %v1065
    %v1070 = vmul.f32 %v1018, %v836
    %v1071 = vmul.f32 %v1033, %v837
    %v1072 = vadd.f32 %v1068, %v1070
    %v1073 = vadd.f32 %v1069, %v1071
    %v1074 = vpack.c.bf16 %v992, %v992
    %v1075 = vpack.c.bf16 %v993, %v993
    %1078 = vrot.lane.b32.xlu0 %v1074, 96
    %v1079 = vpop.permute.xlu0 %1078
    %1080 = vrot.lane.b32.xlu0 %v1075, 96
    %v1081 = vpop.permute.xlu0 %1080
    %s1084 = scalar_lea.vmem [#allocation3], 16
    %1085 = vst.msk [vmem:[%s1084] sm:$0xf] %vm611, %v1079
    %1086 = vst.msk [vmem:[%s1084 + $0x4] sm:$0xf] %vm611, %v1081
    %v1087 = vpack.c.bf16 %v1072, %v1072
    %v1088 = vpack.c.bf16 %v1073, %v1073
    %s1089 = scalar_lea.vmem [#allocation3], 40
    %1090 = vst.msk [vmem:[%s1089] sm:$0xf] %vm617, %v1087
    %1091 = vst.msk [vmem:[%s1089 + $0x4] sm:$0xf] %vm617, %v1088
    %v1092 = vunpack.c.l.b16 %v1074
    %v1093 = vunpack.c.l.b16 %v1075
    %v1094 = vpack.c.b16 %v1093, %v1092
    %1095 = vrot.lane.b32.xlu0 %v1094, 96
    %v1096 = vpop.permute.xlu0 %1095
    %v1098 = vsel %vm376, %v1096, 0
    %1100 = vmatpush.bf16.msra.mxu0 0
    %1101 = vmatpush.bf16.msra.mxu0 0
    %1102 = vmatpush.bf16.msra.mxu0 0
    %1103 = vmatpush.bf16.msra.mxu0 0
    %1104 = vmatpush.bf16.msra.mxu0 0
    %1105 = vmatpush.bf16.msra.mxu0 0
    %1106 = vmatpush.bf16.msra.mxu0 %v373
    %1107 = vmatpush.bf16.msra.mxu0 %v372
    %1108 = vmatmul.bf16.gmra.mxu0 %v1098
    %v1109 = vpop.f32.mrf.mxu0
    %v1110 = vadd.f32 0.0, %v1109
    %v1111 = vpop.f32.mrf.mxu0
    %v1112 = vadd.f32 0.0, %v1111
    %1113 = vdwg.mxu0
    %v1116 = vunpack.c.l.b16 %v1087
    %v1117 = vunpack.c.l.b16 %v1088
    %v1118 = vpack.c.b16 %v1117, %v1116
    %1119 = vrot.lane.b32.xlu0 %v1118, 96
    %v1120 = vpop.permute.xlu0 %1119
    %v1122 = vsel %vm376, %v1120, 0
    %1124 = vmatpush.bf16.msra.mxu0 0
    %1125 = vmatpush.bf16.msra.mxu0 0
    %1126 = vmatpush.bf16.msra.mxu0 0
    %1127 = vmatpush.bf16.msra.mxu0 0
    %1128 = vmatpush.bf16.msra.mxu0 0
    %1129 = vmatpush.bf16.msra.mxu0 0
    %1130 = vmatpush.bf16.msra.mxu0 %v403
    %1131 = vmatpush.bf16.msra.mxu0 %v402
    %1132 = vmatmul.bf16.gmra.mxu0 %v1122
    %v1133 = vpop.f32.mrf.mxu0
    %v1134 = vadd.f32 0.0, %v1133
    %v1135 = vpop.f32.mrf.mxu0
    %v1136 = vadd.f32 0.0, %v1135
    %1137 = vdwg.mxu0
    %s1138 = scalar_lea.vmem [#allocation2], 24
    %v1139 = vld [vmem:[%s1138] sm:$0xf]
    %v1140 = vld [vmem:[%s1138 + $0x4] sm:$0xf]
    %v1141 = vunpack.c.l.bf16 %v1139
    %v1142 = vunpack.c.l.bf16 %v1140
    %s1143 = sadd.s32 8, 16
    %s1144 = smul.addr %s1143, 4
    %s1145 = scalar_lea.vmem [#allocation2], %s1144
    %v1146 = vld [vmem:[%s1145] sm:$0xf]
    %v1147 = vld [vmem:[%s1145 + $0x4] sm:$0xf]
    %v1148 = vunpack.c.l.bf16 %v1146
    %v1149 = vunpack.c.l.bf16 %v1147
    %v1150 = vadd.f32 %v1141, %v1110
    %v1151 = vadd.f32 %v1142, %v1112
    %v1152 = vxor.u32 %v1150, 2147483648
    %v1153 = vxor.u32 %v1151, 2147483648
    %v1154 = vmul.f32 %v1152, 1.442695
    %v1155 = vpow.pop %v1154
    %v1156 = vmul.f32 %v1153, 1.442695
    %v1157 = vpow.pop %v1156
    %v1158 = vadd.f32 %v1155, 1.0
    %v1159 = vadd.f32 %v1157, 1.0
    %v1160 = vrcp.pop %v1158
    %v1161 = vmul.f32 %v1158, %v1160
    %v1162 = vsub.f32 1.0, %v1161
    %v1163 = vmul.f32 %v1160, %v1162
    %v1164 = vadd.f32 %v1160, %v1163
    %vm1165 = vweird.f32 %v1158
    %vm1166 = vweird.f32 %v1160
    %vm1167 = vmor %vm1165, %vm1166
    %v1168 = vsel %vm1167, %v1160, %v1164
    %v1169 = vand.u32 2147483647, %v1158
    %vm1170 = vcmp.eq.f32.partialorder %v1169, 8.507059e+37
    %v1171 = vand.u32 %v1158, 2147483648
    %v1172 = vor.u32 1.1754944e-38, %v1171
    %v1173 = vsel %vm1170, %v1172, %v1168
    %v1174 = vmul.f32 1.0, %v1173
    %v1175 = vrcp.pop %v1159
    %v1176 = vmul.f32 %v1159, %v1175
    %v1177 = vsub.f32 1.0, %v1176
    %v1178 = vmul.f32 %v1175, %v1177
    %v1179 = vadd.f32 %v1175, %v1178
    %vm1180 = vweird.f32 %v1159
    %vm1181 = vweird.f32 %v1175
    %vm1182 = vmor %vm1180, %vm1181
    %v1183 = vsel %vm1182, %v1175, %v1179
    %v1184 = vand.u32 2147483647, %v1159
    %vm1185 = vcmp.eq.f32.partialorder %v1184, 8.507059e+37
    %v1186 = vand.u32 %v1159, 2147483648
    %v1187 = vor.u32 1.1754944e-38, %v1186
    %v1188 = vsel %vm1185, %v1187, %v1183
    %v1189 = vmul.f32 1.0, %v1188
    %v1190 = vadd.f32 %v1110, %v474
    %v1191 = vadd.f32 %v1112, %v474
    %1194 = vrot.lane.b32.xlu0 %v1190, 64
    %v1195 = vpop.permute.xlu0 %1194
    %1196 = vrot.lane.b32.xlu0 %v1191, 64
    %v1197 = vpop.permute.xlu0 %1196
    %v1200 = vmul.f32 %v1174, %v1195
    %v1201 = vmul.f32 %v1189, %v1197
    %1204 = vrot.lane.b32.xlu0 %v1200, 64
    %v1205 = vpop.permute.xlu0 %1204
    %1206 = vrot.lane.b32.xlu0 %v1201, 64
    %v1207 = vpop.permute.xlu0 %1206
    %v1210 = vadd.f32 %v1141, %v1205
    %v1211 = vadd.f32 %v1142, %v1207
    %v1212 = vtanh.pop %v1210
    %v1213 = vtanh.pop %v1211
    %v1214 = vsub.f32 1.0, %v1174
    %v1215 = vsub.f32 1.0, %v1189
    %1218 = vrot.lane.b32.xlu0 %v1212, 96
    %v1219 = vpop.permute.xlu0 %1218
    %1220 = vrot.lane.b32.xlu0 %v1213, 96
    %v1221 = vpop.permute.xlu0 %1220
    %v1224 = vmul.f32 %v1214, %v1219
    %v1225 = vmul.f32 %v1215, %v1221
    %v1226 = vmul.f32 %v1174, %v992
    %v1227 = vmul.f32 %v1189, %v993
    %v1228 = vadd.f32 %v1224, %v1226
    %v1229 = vadd.f32 %v1225, %v1227
    %v1230 = vadd.f32 %v1148, %v1134
    %v1231 = vadd.f32 %v1149, %v1136
    %v1232 = vxor.u32 %v1230, 2147483648
    %v1233 = vxor.u32 %v1231, 2147483648
    %v1234 = vmul.f32 %v1232, 1.442695
    %v1235 = vpow.pop %v1234
    %v1236 = vmul.f32 %v1233, 1.442695
    %v1237 = vpow.pop %v1236
    %v1238 = vadd.f32 %v1235, 1.0
    %v1239 = vadd.f32 %v1237, 1.0
    %v1240 = vrcp.pop %v1238
    %v1241 = vmul.f32 %v1238, %v1240
    %v1242 = vsub.f32 1.0, %v1241
    %v1243 = vmul.f32 %v1240, %v1242
    %v1244 = vadd.f32 %v1240, %v1243
    %vm1245 = vweird.f32 %v1238
    %vm1246 = vweird.f32 %v1240
    %vm1247 = vmor %vm1245, %vm1246
    %v1248 = vsel %vm1247, %v1240, %v1244
    %v1249 = vand.u32 2147483647, %v1238
    %vm1250 = vcmp.eq.f32.partialorder %v1249, 8.507059e+37
    %v1251 = vand.u32 %v1238, 2147483648
    %v1252 = vor.u32 1.1754944e-38, %v1251
    %v1253 = vsel %vm1250, %v1252, %v1248
    %v1254 = vmul.f32 1.0, %v1253
    %v1255 = vrcp.pop %v1239
    %v1256 = vmul.f32 %v1239, %v1255
    %v1257 = vsub.f32 1.0, %v1256
    %v1258 = vmul.f32 %v1255, %v1257
    %v1259 = vadd.f32 %v1255, %v1258
    %vm1260 = vweird.f32 %v1239
    %vm1261 = vweird.f32 %v1255
    %vm1262 = vmor %vm1260, %vm1261
    %v1263 = vsel %vm1262, %v1255, %v1259
    %v1264 = vand.u32 2147483647, %v1239
    %vm1265 = vcmp.eq.f32.partialorder %v1264, 8.507059e+37
    %v1266 = vand.u32 %v1239, 2147483648
    %v1267 = vor.u32 1.1754944e-38, %v1266
    %v1268 = vsel %vm1265, %v1267, %v1263
    %v1269 = vmul.f32 1.0, %v1268
    %v1270 = vadd.f32 %v1134, %v559
    %v1271 = vadd.f32 %v1136, %v559
    %1274 = vrot.lane.b32.xlu0 %v1270, 64
    %v1275 = vpop.permute.xlu0 %1274
    %1276 = vrot.lane.b32.xlu0 %v1271, 64
    %v1277 = vpop.permute.xlu0 %1276
    %v1280 = vmul.f32 %v1254, %v1275
    %v1281 = vmul.f32 %v1269, %v1277
    %1284 = vrot.lane.b32.xlu0 %v1280, 64
    %v1285 = vpop.permute.xlu0 %1284
    %1286 = vrot.lane.b32.xlu0 %v1281, 64
    %v1287 = vpop.permute.xlu0 %1286
    %v1290 = vadd.f32 %v1148, %v1285
    %v1291 = vadd.f32 %v1149, %v1287
    %v1292 = vtanh.pop %v1290
    %v1293 = vtanh.pop %v1291
    %v1294 = vsub.f32 1.0, %v1254
    %v1295 = vsub.f32 1.0, %v1269
    %1298 = vrot.lane.b32.xlu0 %v1292, 96
    %v1299 = vpop.permute.xlu0 %1298
    %1300 = vrot.lane.b32.xlu0 %v1293, 96
    %v1301 = vpop.permute.xlu0 %1300
    %v1304 = vmul.f32 %v1294, %v1299
    %v1305 = vmul.f32 %v1295, %v1301
    %v1306 = vmul.f32 %v1254, %v1072
    %v1307 = vmul.f32 %v1269, %v1073
    %v1308 = vadd.f32 %v1304, %v1306
    %v1309 = vadd.f32 %v1305, %v1307
    %v1310 = vpack.c.bf16 %v1228, %v1228
    %v1311 = vpack.c.bf16 %v1229, %v1229
    %1314 = vrot.lane.b32.xlu0 %v1310, 96
    %v1315 = vpop.permute.xlu0 %1314
    %1316 = vrot.lane.b32.xlu0 %v1311, 96
    %v1317 = vpop.permute.xlu0 %1316
    %s1320 = scalar_lea.vmem [#allocation3], 24
    %1321 = vst.msk [vmem:[%s1320] sm:$0xf] %vm611, %v1315
    %1322 = vst.msk [vmem:[%s1320 + $0x4] sm:$0xf] %vm611, %v1317
    %v1323 = vpack.c.bf16 %v1308, %v1308
    %v1324 = vpack.c.bf16 %v1309, %v1309
    %s1325 = scalar_lea.vmem [#allocation3], 32
    %1326 = vst.msk [vmem:[%s1325] sm:$0xf] %vm617, %v1323
    %1327 = vst.msk [vmem:[%s1325 + $0x4] sm:$0xf] %vm617, %v1324
    %v1328 = vunpack.c.l.b16 %v1310
    %v1329 = vunpack.c.l.b16 %v1311
    %v1330 = vpack.c.b16 %v1329, %v1328
    %1331 = vrot.lane.b32.xlu0 %v1330, 96
    %v1332 = vpop.permute.xlu0 %1331
    %v1334 = vsel %vm376, %v1332, 0
    %1336 = vmatpush.bf16.msra.mxu0 0
    %1337 = vmatpush.bf16.msra.mxu0 0
    %1338 = vmatpush.bf16.msra.mxu0 0
    %1339 = vmatpush.bf16.msra.mxu0 0
    %1340 = vmatpush.bf16.msra.mxu0 0
    %1341 = vmatpush.bf16.msra.mxu0 0
    %1342 = vmatpush.bf16.msra.mxu0 %v373
    %1343 = vmatpush.bf16.msra.mxu0 %v372
    %1344 = vmatmul.bf16.gmra.mxu0 %v1334
    %v1345 = vpop.f32.mrf.mxu0
    %v1346 = vadd.f32 0.0, %v1345
    %v1347 = vpop.f32.mrf.mxu0
    %v1348 = vadd.f32 0.0, %v1347
    %1349 = vdwg.mxu0
    %v1352 = vunpack.c.l.b16 %v1323
    %v1353 = vunpack.c.l.b16 %v1324
    %v1354 = vpack.c.b16 %v1353, %v1352
    %1355 = vrot.lane.b32.xlu0 %v1354, 96
    %v1356 = vpop.permute.xlu0 %1355
    %v1358 = vsel %vm376, %v1356, 0
    %1360 = vmatpush.bf16.msra.mxu0 0
    %1361 = vmatpush.bf16.msra.mxu0 0
    %1362 = vmatpush.bf16.msra.mxu0 0
    %1363 = vmatpush.bf16.msra.mxu0 0
    %1364 = vmatpush.bf16.msra.mxu0 0
    %1365 = vmatpush.bf16.msra.mxu0 0
    %1366 = vmatpush.bf16.msra.mxu0 %v403
    %1367 = vmatpush.bf16.msra.mxu0 %v402
    %1368 = vmatmul.bf16.gmra.mxu0 %v1358
    %v1369 = vpop.f32.mrf.mxu0
    %v1370 = vadd.f32 0.0, %v1369
    %v1371 = vpop.f32.mrf.mxu0
    %v1372 = vadd.f32 0.0, %v1371
    %1373 = vdwg.mxu0
    %s1374 = scalar_lea.vmem [#allocation2], 32
    %v1375 = vld [vmem:[%s1374] sm:$0xf]
    %v1376 = vld [vmem:[%s1374 + $0x4] sm:$0xf]
    %v1377 = vunpack.c.l.bf16 %v1375
    %v1378 = vunpack.c.l.bf16 %v1376
    %s1379 = sadd.s32 6, 16
    %s1380 = smul.addr %s1379, 4
    %s1381 = scalar_lea.vmem [#allocation2], %s1380
    %v1382 = vld [vmem:[%s1381] sm:$0xf]
    %v1383 = vld [vmem:[%s1381 + $0x4] sm:$0xf]
    %v1384 = vunpack.c.l.bf16 %v1382
    %v1385 = vunpack.c.l.bf16 %v1383
    %v1386 = vadd.f32 %v1377, %v1346
    %v1387 = vadd.f32 %v1378, %v1348
    %v1388 = vxor.u32 %v1386, 2147483648
    %v1389 = vxor.u32 %v1387, 2147483648
    %v1390 = vmul.f32 %v1388, 1.442695
    %v1391 = vpow.pop %v1390
    %v1392 = vmul.f32 %v1389, 1.442695
    %v1393 = vpow.pop %v1392
    %v1394 = vadd.f32 %v1391, 1.0
    %v1395 = vadd.f32 %v1393, 1.0
    %v1396 = vrcp.pop %v1394
    %v1397 = vmul.f32 %v1394, %v1396
    %v1398 = vsub.f32 1.0, %v1397
    %v1399 = vmul.f32 %v1396, %v1398
    %v1400 = vadd.f32 %v1396, %v1399
    %vm1401 = vweird.f32 %v1394
    %vm1402 = vweird.f32 %v1396
    %vm1403 = vmor %vm1401, %vm1402
    %v1404 = vsel %vm1403, %v1396, %v1400
    %v1405 = vand.u32 2147483647, %v1394
    %vm1406 = vcmp.eq.f32.partialorder %v1405, 8.507059e+37
    %v1407 = vand.u32 %v1394, 2147483648
    %v1408 = vor.u32 1.1754944e-38, %v1407
    %v1409 = vsel %vm1406, %v1408, %v1404
    %v1410 = vmul.f32 1.0, %v1409
    %v1411 = vrcp.pop %v1395
    %v1412 = vmul.f32 %v1395, %v1411
    %v1413 = vsub.f32 1.0, %v1412
    %v1414 = vmul.f32 %v1411, %v1413
    %v1415 = vadd.f32 %v1411, %v1414
    %vm1416 = vweird.f32 %v1395
    %vm1417 = vweird.f32 %v1411
    %vm1418 = vmor %vm1416, %vm1417
    %v1419 = vsel %vm1418, %v1411, %v1415
    %v1420 = vand.u32 2147483647, %v1395
    %vm1421 = vcmp.eq.f32.partialorder %v1420, 8.507059e+37
    %v1422 = vand.u32 %v1395, 2147483648
    %v1423 = vor.u32 1.1754944e-38, %v1422
    %v1424 = vsel %vm1421, %v1423, %v1419
    %v1425 = vmul.f32 1.0, %v1424
    %v1426 = vadd.f32 %v1346, %v474
    %v1427 = vadd.f32 %v1348, %v474
    %1430 = vrot.lane.b32.xlu0 %v1426, 64
    %v1431 = vpop.permute.xlu0 %1430
    %1432 = vrot.lane.b32.xlu0 %v1427, 64
    %v1433 = vpop.permute.xlu0 %1432
    %v1436 = vmul.f32 %v1410, %v1431
    %v1437 = vmul.f32 %v1425, %v1433
    %1440 = vrot.lane.b32.xlu0 %v1436, 64
    %v1441 = vpop.permute.xlu0 %1440
    %1442 = vrot.lane.b32.xlu0 %v1437, 64
    %v1443 = vpop.permute.xlu0 %1442
    %v1446 = vadd.f32 %v1377, %v1441
    %v1447 = vadd.f32 %v1378, %v1443
    %v1448 = vtanh.pop %v1446
    %v1449 = vtanh.pop %v1447
    %v1450 = vsub.f32 1.0, %v1410
    %v1451 = vsub.f32 1.0, %v1425
    %1454 = vrot.lane.b32.xlu0 %v1448, 96
    %v1455 = vpop.permute.xlu0 %1454
    %1456 = vrot.lane.b32.xlu0 %v1449, 96
    %v1457 = vpop.permute.xlu0 %1456
    %v1460 = vmul.f32 %v1450, %v1455
    %v1461 = vmul.f32 %v1451, %v1457
    %v1462 = vmul.f32 %v1410, %v1228
    %v1463 = vmul.f32 %v1425, %v1229
    %v1464 = vadd.f32 %v1460, %v1462
    %v1465 = vadd.f32 %v1461, %v1463
    %v1466 = vadd.f32 %v1384, %v1370
    %v1467 = vadd.f32 %v1385, %v1372
    %v1468 = vxor.u32 %v1466, 2147483648
    %v1469 = vxor.u32 %v1467, 2147483648
    %v1470 = vmul.f32 %v1468, 1.442695
    %v1471 = vpow.pop %v1470
    %v1472 = vmul.f32 %v1469, 1.442695
    %v1473 = vpow.pop %v1472
    %v1474 = vadd.f32 %v1471, 1.0
    %v1475 = vadd.f32 %v1473, 1.0
    %v1476 = vrcp.pop %v1474
    %v1477 = vmul.f32 %v1474, %v1476
    %v1478 = vsub.f32 1.0, %v1477
    %v1479 = vmul.f32 %v1476, %v1478
    %v1480 = vadd.f32 %v1476, %v1479
    %vm1481 = vweird.f32 %v1474
    %vm1482 = vweird.f32 %v1476
    %vm1483 = vmor %vm1481, %vm1482
    %v1484 = vsel %vm1483, %v1476, %v1480
    %v1485 = vand.u32 2147483647, %v1474
    %vm1486 = vcmp.eq.f32.partialorder %v1485, 8.507059e+37
    %v1487 = vand.u32 %v1474, 2147483648
    %v1488 = vor.u32 1.1754944e-38, %v1487
    %v1489 = vsel %vm1486, %v1488, %v1484
    %v1490 = vmul.f32 1.0, %v1489
    %v1491 = vrcp.pop %v1475
    %v1492 = vmul.f32 %v1475, %v1491
    %v1493 = vsub.f32 1.0, %v1492
    %v1494 = vmul.f32 %v1491, %v1493
    %v1495 = vadd.f32 %v1491, %v1494
    %vm1496 = vweird.f32 %v1475
    %vm1497 = vweird.f32 %v1491
    %vm1498 = vmor %vm1496, %vm1497
    %v1499 = vsel %vm1498, %v1491, %v1495
    %v1500 = vand.u32 2147483647, %v1475
    %vm1501 = vcmp.eq.f32.partialorder %v1500, 8.507059e+37
    %v1502 = vand.u32 %v1475, 2147483648
    %v1503 = vor.u32 1.1754944e-38, %v1502
    %v1504 = vsel %vm1501, %v1503, %v1499
    %v1505 = vmul.f32 1.0, %v1504
    %v1506 = vadd.f32 %v1370, %v559
    %v1507 = vadd.f32 %v1372, %v559
    %1510 = vrot.lane.b32.xlu0 %v1506, 64
    %v1511 = vpop.permute.xlu0 %1510
    %1512 = vrot.lane.b32.xlu0 %v1507, 64
    %v1513 = vpop.permute.xlu0 %1512
    %v1516 = vmul.f32 %v1490, %v1511
    %v1517 = vmul.f32 %v1505, %v1513
    %1520 = vrot.lane.b32.xlu0 %v1516, 64
    %v1521 = vpop.permute.xlu0 %1520
    %1522 = vrot.lane.b32.xlu0 %v1517, 64
    %v1523 = vpop.permute.xlu0 %1522
    %v1526 = vadd.f32 %v1384, %v1521
    %v1527 = vadd.f32 %v1385, %v1523
    %v1528 = vtanh.pop %v1526
    %v1529 = vtanh.pop %v1527
    %v1530 = vsub.f32 1.0, %v1490
    %v1531 = vsub.f32 1.0, %v1505
    %1534 = vrot.lane.b32.xlu0 %v1528, 96
    %v1535 = vpop.permute.xlu0 %1534
    %1536 = vrot.lane.b32.xlu0 %v1529, 96
    %v1537 = vpop.permute.xlu0 %1536
    %v1540 = vmul.f32 %v1530, %v1535
    %v1541 = vmul.f32 %v1531, %v1537
    %v1542 = vmul.f32 %v1490, %v1308
    %v1543 = vmul.f32 %v1505, %v1309
    %v1544 = vadd.f32 %v1540, %v1542
    %v1545 = vadd.f32 %v1541, %v1543
    %v1546 = vpack.c.bf16 %v1464, %v1464
    %v1547 = vpack.c.bf16 %v1465, %v1465
    %1550 = vrot.lane.b32.xlu0 %v1546, 96
    %v1551 = vpop.permute.xlu0 %1550
    %1552 = vrot.lane.b32.xlu0 %v1547, 96
    %v1553 = vpop.permute.xlu0 %1552
    %1556 = vst.msk [vmem:[%s1325] sm:$0xf] %vm611, %v1551
    %1557 = vst.msk [vmem:[%s1325 + $0x4] sm:$0xf] %vm611, %v1553
    %v1558 = vpack.c.bf16 %v1544, %v1544
    %v1559 = vpack.c.bf16 %v1545, %v1545
    %1560 = vst.msk [vmem:[%s1320] sm:$0xf] %vm617, %v1558
    %1561 = vst.msk [vmem:[%s1320 + $0x4] sm:$0xf] %vm617, %v1559
    %v1562 = vunpack.c.l.b16 %v1546
    %v1563 = vunpack.c.l.b16 %v1547
    %v1564 = vpack.c.b16 %v1563, %v1562
    %1565 = vrot.lane.b32.xlu0 %v1564, 96
    %v1566 = vpop.permute.xlu0 %1565
    %v1568 = vsel %vm376, %v1566, 0
    %1570 = vmatpush.bf16.msra.mxu0 0
    %1571 = vmatpush.bf16.msra.mxu0 0
    %1572 = vmatpush.bf16.msra.mxu0 0
    %1573 = vmatpush.bf16.msra.mxu0 0
    %1574 = vmatpush.bf16.msra.mxu0 0
    %1575 = vmatpush.bf16.msra.mxu0 0
    %1576 = vmatpush.bf16.msra.mxu0 %v373
    %1577 = vmatpush.bf16.msra.mxu0 %v372
    %1578 = vmatmul.bf16.gmra.mxu0 %v1568
    %v1579 = vpop.f32.mrf.mxu0
    %v1580 = vadd.f32 0.0, %v1579
    %v1581 = vpop.f32.mrf.mxu0
    %v1582 = vadd.f32 0.0, %v1581
    %1583 = vdwg.mxu0
    %v1586 = vunpack.c.l.b16 %v1558
    %v1587 = vunpack.c.l.b16 %v1559
    %v1588 = vpack.c.b16 %v1587, %v1586
    %1589 = vrot.lane.b32.xlu0 %v1588, 96
    %v1590 = vpop.permute.xlu0 %1589
    %v1592 = vsel %vm376, %v1590, 0
    %1594 = vmatpush.bf16.msra.mxu0 0
    %1595 = vmatpush.bf16.msra.mxu0 0
    %1596 = vmatpush.bf16.msra.mxu0 0
    %1597 = vmatpush.bf16.msra.mxu0 0
    %1598 = vmatpush.bf16.msra.mxu0 0
    %1599 = vmatpush.bf16.msra.mxu0 0
    %1600 = vmatpush.bf16.msra.mxu0 %v403
    %1601 = vmatpush.bf16.msra.mxu0 %v402
    %1602 = vmatmul.bf16.gmra.mxu0 %v1592
    %v1603 = vpop.f32.mrf.mxu0
    %v1604 = vadd.f32 0.0, %v1603
    %v1605 = vpop.f32.mrf.mxu0
    %v1606 = vadd.f32 0.0, %v1605
    %1607 = vdwg.mxu0
    %s1608 = scalar_lea.vmem [#allocation2], 40
    %v1609 = vld [vmem:[%s1608] sm:$0xf]
    %v1610 = vld [vmem:[%s1608 + $0x4] sm:$0xf]
    %v1611 = vunpack.c.l.bf16 %v1609
    %v1612 = vunpack.c.l.bf16 %v1610
    %s1613 = sadd.s32 4, 16
    %s1614 = smul.addr %s1613, 4
    %s1615 = scalar_lea.vmem [#allocation2], %s1614
    %v1616 = vld [vmem:[%s1615] sm:$0xf]
    %v1617 = vld [vmem:[%s1615 + $0x4] sm:$0xf]
    %v1618 = vunpack.c.l.bf16 %v1616
    %v1619 = vunpack.c.l.bf16 %v1617
    %v1620 = vadd.f32 %v1611, %v1580
    %v1621 = vadd.f32 %v1612, %v1582
    %v1622 = vxor.u32 %v1620, 2147483648
    %v1623 = vxor.u32 %v1621, 2147483648
    %v1624 = vmul.f32 %v1622, 1.442695
    %v1625 = vpow.pop %v1624
    %v1626 = vmul.f32 %v1623, 1.442695
    %v1627 = vpow.pop %v1626
    %v1628 = vadd.f32 %v1625, 1.0
    %v1629 = vadd.f32 %v1627, 1.0
    %v1630 = vrcp.pop %v1628
    %v1631 = vmul.f32 %v1628, %v1630
    %v1632 = vsub.f32 1.0, %v1631
    %v1633 = vmul.f32 %v1630, %v1632
    %v1634 = vadd.f32 %v1630, %v1633
    %vm1635 = vweird.f32 %v1628
    %vm1636 = vweird.f32 %v1630
    %vm1637 = vmor %vm1635, %vm1636
    %v1638 = vsel %vm1637, %v1630, %v1634
    %v1639 = vand.u32 2147483647, %v1628
    %vm1640 = vcmp.eq.f32.partialorder %v1639, 8.507059e+37
    %v1641 = vand.u32 %v1628, 2147483648
    %v1642 = vor.u32 1.1754944e-38, %v1641
    %v1643 = vsel %vm1640, %v1642, %v1638
    %v1644 = vmul.f32 1.0, %v1643
    %v1645 = vrcp.pop %v1629
    %v1646 = vmul.f32 %v1629, %v1645
    %v1647 = vsub.f32 1.0, %v1646
    %v1648 = vmul.f32 %v1645, %v1647
    %v1649 = vadd.f32 %v1645, %v1648
    %vm1650 = vweird.f32 %v1629
    %vm1651 = vweird.f32 %v1645
    %vm1652 = vmor %vm1650, %vm1651
    %v1653 = vsel %vm1652, %v1645, %v1649
    %v1654 = vand.u32 2147483647, %v1629
    %vm1655 = vcmp.eq.f32.partialorder %v1654, 8.507059e+37
    %v1656 = vand.u32 %v1629, 2147483648
    %v1657 = vor.u32 1.1754944e-38, %v1656
    %v1658 = vsel %vm1655, %v1657, %v1653
    %v1659 = vmul.f32 1.0, %v1658
    %v1660 = vadd.f32 %v1580, %v474
    %v1661 = vadd.f32 %v1582, %v474
    %1664 = vrot.lane.b32.xlu0 %v1660, 64
    %v1665 = vpop.permute.xlu0 %1664
    %1666 = vrot.lane.b32.xlu0 %v1661, 64
    %v1667 = vpop.permute.xlu0 %1666
    %v1670 = vmul.f32 %v1644, %v1665
    %v1671 = vmul.f32 %v1659, %v1667
    %1674 = vrot.lane.b32.xlu0 %v1670, 64
    %v1675 = vpop.permute.xlu0 %1674
    %1676 = vrot.lane.b32.xlu0 %v1671, 64
    %v1677 = vpop.permute.xlu0 %1676
    %v1680 = vadd.f32 %v1611, %v1675
    %v1681 = vadd.f32 %v1612, %v1677
    %v1682 = vtanh.pop %v1680
    %v1683 = vtanh.pop %v1681
    %v1684 = vsub.f32 1.0, %v1644
    %v1685 = vsub.f32 1.0, %v1659
    %1688 = vrot.lane.b32.xlu0 %v1682, 96
    %v1689 = vpop.permute.xlu0 %1688
    %1690 = vrot.lane.b32.xlu0 %v1683, 96
    %v1691 = vpop.permute.xlu0 %1690
    %v1694 = vmul.f32 %v1684, %v1689
    %v1695 = vmul.f32 %v1685, %v1691
    %v1696 = vmul.f32 %v1644, %v1464
    %v1697 = vmul.f32 %v1659, %v1465
    %v1698 = vadd.f32 %v1694, %v1696
    %v1699 = vadd.f32 %v1695, %v1697
    %v1700 = vadd.f32 %v1618, %v1604
    %v1701 = vadd.f32 %v1619, %v1606
    %v1702 = vxor.u32 %v1700, 2147483648
    %v1703 = vxor.u32 %v1701, 2147483648
    %v1704 = vmul.f32 %v1702, 1.442695
    %v1705 = vpow.pop %v1704
    %v1706 = vmul.f32 %v1703, 1.442695
    %v1707 = vpow.pop %v1706
    %v1708 = vadd.f32 %v1705, 1.0
    %v1709 = vadd.f32 %v1707, 1.0
    %v1710 = vrcp.pop %v1708
    %v1711 = vmul.f32 %v1708, %v1710
    %v1712 = vsub.f32 1.0, %v1711
    %v1713 = vmul.f32 %v1710, %v1712
    %v1714 = vadd.f32 %v1710, %v1713
    %vm1715 = vweird.f32 %v1708
    %vm1716 = vweird.f32 %v1710
    %vm1717 = vmor %vm1715, %vm1716
    %v1718 = vsel %vm1717, %v1710, %v1714
    %v1719 = vand.u32 2147483647, %v1708
    %vm1720 = vcmp.eq.f32.partialorder %v1719, 8.507059e+37
    %v1721 = vand.u32 %v1708, 2147483648
    %v1722 = vor.u32 1.1754944e-38, %v1721
    %v1723 = vsel %vm1720, %v1722, %v1718
    %v1724 = vmul.f32 1.0, %v1723
    %v1725 = vrcp.pop %v1709
    %v1726 = vmul.f32 %v1709, %v1725
    %v1727 = vsub.f32 1.0, %v1726
    %v1728 = vmul.f32 %v1725, %v1727
    %v1729 = vadd.f32 %v1725, %v1728
    %vm1730 = vweird.f32 %v1709
    %vm1731 = vweird.f32 %v1725
    %vm1732 = vmor %vm1730, %vm1731
    %v1733 = vsel %vm1732, %v1725, %v1729
    %v1734 = vand.u32 2147483647, %v1709
    %vm1735 = vcmp.eq.f32.partialorder %v1734, 8.507059e+37
    %v1736 = vand.u32 %v1709, 2147483648
    %v1737 = vor.u32 1.1754944e-38, %v1736
    %v1738 = vsel %vm1735, %v1737, %v1733
    %v1739 = vmul.f32 1.0, %v1738
    %v1740 = vadd.f32 %v1604, %v559
    %v1741 = vadd.f32 %v1606, %v559
    %1744 = vrot.lane.b32.xlu0 %v1740, 64
    %v1745 = vpop.permute.xlu0 %1744
    %1746 = vrot.lane.b32.xlu0 %v1741, 64
    %v1747 = vpop.permute.xlu0 %1746
    %v1750 = vmul.f32 %v1724, %v1745
    %v1751 = vmul.f32 %v1739, %v1747
    %1754 = vrot.lane.b32.xlu0 %v1750, 64
    %v1755 = vpop.permute.xlu0 %1754
    %1756 = vrot.lane.b32.xlu0 %v1751, 64
    %v1757 = vpop.permute.xlu0 %1756
    %v1760 = vadd.f32 %v1618, %v1755
    %v1761 = vadd.f32 %v1619, %v1757
    %v1762 = vtanh.pop %v1760
    %v1763 = vtanh.pop %v1761
    %v1764 = vsub.f32 1.0, %v1724
    %v1765 = vsub.f32 1.0, %v1739
    %1768 = vrot.lane.b32.xlu0 %v1762, 96
    %v1769 = vpop.permute.xlu0 %1768
    %1770 = vrot.lane.b32.xlu0 %v1763, 96
    %v1771 = vpop.permute.xlu0 %1770
    %v1774 = vmul.f32 %v1764, %v1769
    %v1775 = vmul.f32 %v1765, %v1771
    %v1776 = vmul.f32 %v1724, %v1544
    %v1777 = vmul.f32 %v1739, %v1545
    %v1778 = vadd.f32 %v1774, %v1776
    %v1779 = vadd.f32 %v1775, %v1777
    %v1780 = vpack.c.bf16 %v1698, %v1698
    %v1781 = vpack.c.bf16 %v1699, %v1699
    %1784 = vrot.lane.b32.xlu0 %v1780, 96
    %v1785 = vpop.permute.xlu0 %1784
    %1786 = vrot.lane.b32.xlu0 %v1781, 96
    %v1787 = vpop.permute.xlu0 %1786
    %1790 = vst.msk [vmem:[%s1089] sm:$0xf] %vm611, %v1785
    %1791 = vst.msk [vmem:[%s1089 + $0x4] sm:$0xf] %vm611, %v1787
    %v1792 = vpack.c.bf16 %v1778, %v1778
    %v1793 = vpack.c.bf16 %v1779, %v1779
    %1794 = vst.msk [vmem:[%s1084] sm:$0xf] %vm617, %v1792
    %1795 = vst.msk [vmem:[%s1084 + $0x4] sm:$0xf] %vm617, %v1793
    %v1796 = vunpack.c.l.b16 %v1780
    %v1797 = vunpack.c.l.b16 %v1781
    %v1798 = vpack.c.b16 %v1797, %v1796
    %1799 = vrot.lane.b32.xlu0 %v1798, 96
    %v1800 = vpop.permute.xlu0 %1799
    %v1802 = vsel %vm376, %v1800, 0
    %1804 = vmatpush.bf16.msra.mxu0 0
    %1805 = vmatpush.bf16.msra.mxu0 0
    %1806 = vmatpush.bf16.msra.mxu0 0
    %1807 = vmatpush.bf16.msra.mxu0 0
    %1808 = vmatpush.bf16.msra.mxu0 0
    %1809 = vmatpush.bf16.msra.mxu0 0
    %1810 = vmatpush.bf16.msra.mxu0 %v373
    %1811 = vmatpush.bf16.msra.mxu0 %v372
    %1812 = vmatmul.bf16.gmra.mxu0 %v1802
    %v1813 = vpop.f32.mrf.mxu0
    %v1814 = vadd.f32 0.0, %v1813
    %v1815 = vpop.f32.mrf.mxu0
    %v1816 = vadd.f32 0.0, %v1815
    %1817 = vdwg.mxu0
    %v1820 = vunpack.c.l.b16 %v1792
    %v1821 = vunpack.c.l.b16 %v1793
    %v1822 = vpack.c.b16 %v1821, %v1820
    %1823 = vrot.lane.b32.xlu0 %v1822, 96
    %v1824 = vpop.permute.xlu0 %1823
    %v1826 = vsel %vm376, %v1824, 0
    %1828 = vmatpush.bf16.msra.mxu0 0
    %1829 = vmatpush.bf16.msra.mxu0 0
    %1830 = vmatpush.bf16.msra.mxu0 0
    %1831 = vmatpush.bf16.msra.mxu0 0
    %1832 = vmatpush.bf16.msra.mxu0 0
    %1833 = vmatpush.bf16.msra.mxu0 0
    %1834 = vmatpush.bf16.msra.mxu0 %v403
    %1835 = vmatpush.bf16.msra.mxu0 %v402
    %1836 = vmatmul.bf16.gmra.mxu0 %v1826
    %v1837 = vpop.f32.mrf.mxu0
    %v1838 = vadd.f32 0.0, %v1837
    %v1839 = vpop.f32.mrf.mxu0
    %v1840 = vadd.f32 0.0, %v1839
    %1841 = vdwg.mxu0
    %s1842 = scalar_lea.vmem [#allocation2], 48
    %v1843 = vld [vmem:[%s1842] sm:$0xf]
    %v1844 = vld [vmem:[%s1842 + $0x4] sm:$0xf]
    %v1845 = vunpack.c.l.bf16 %v1843
    %v1846 = vunpack.c.l.bf16 %v1844
    %s1847 = sadd.s32 2, 16
    %s1848 = smul.addr %s1847, 4
    %s1849 = scalar_lea.vmem [#allocation2], %s1848
    %v1850 = vld [vmem:[%s1849] sm:$0xf]
    %v1851 = vld [vmem:[%s1849 + $0x4] sm:$0xf]
    %v1852 = vunpack.c.l.bf16 %v1850
    %v1853 = vunpack.c.l.bf16 %v1851
    %v1854 = vadd.f32 %v1845, %v1814
    %v1855 = vadd.f32 %v1846, %v1816
    %v1856 = vxor.u32 %v1854, 2147483648
    %v1857 = vxor.u32 %v1855, 2147483648
    %v1858 = vmul.f32 %v1856, 1.442695
    %v1859 = vpow.pop %v1858
    %v1860 = vmul.f32 %v1857, 1.442695
    %v1861 = vpow.pop %v1860
    %v1862 = vadd.f32 %v1859, 1.0
    %v1863 = vadd.f32 %v1861, 1.0
    %v1864 = vrcp.pop %v1862
    %v1865 = vmul.f32 %v1862, %v1864
    %v1866 = vsub.f32 1.0, %v1865
    %v1867 = vmul.f32 %v1864, %v1866
    %v1868 = vadd.f32 %v1864, %v1867
    %vm1869 = vweird.f32 %v1862
    %vm1870 = vweird.f32 %v1864
    %vm1871 = vmor %vm1869, %vm1870
    %v1872 = vsel %vm1871, %v1864, %v1868
    %v1873 = vand.u32 2147483647, %v1862
    %vm1874 = vcmp.eq.f32.partialorder %v1873, 8.507059e+37
    %v1875 = vand.u32 %v1862, 2147483648
    %v1876 = vor.u32 1.1754944e-38, %v1875
    %v1877 = vsel %vm1874, %v1876, %v1872
    %v1878 = vmul.f32 1.0, %v1877
    %v1879 = vrcp.pop %v1863
    %v1880 = vmul.f32 %v1863, %v1879
    %v1881 = vsub.f32 1.0, %v1880
    %v1882 = vmul.f32 %v1879, %v1881
    %v1883 = vadd.f32 %v1879, %v1882
    %vm1884 = vweird.f32 %v1863
    %vm1885 = vweird.f32 %v1879
    %vm1886 = vmor %vm1884, %vm1885
    %v1887 = vsel %vm1886, %v1879, %v1883
    %v1888 = vand.u32 2147483647, %v1863
    %vm1889 = vcmp.eq.f32.partialorder %v1888, 8.507059e+37
    %v1890 = vand.u32 %v1863, 2147483648
    %v1891 = vor.u32 1.1754944e-38, %v1890
    %v1892 = vsel %vm1889, %v1891, %v1887
    %v1893 = vmul.f32 1.0, %v1892
    %v1894 = vadd.f32 %v1814, %v474
    %v1895 = vadd.f32 %v1816, %v474
    %1898 = vrot.lane.b32.xlu0 %v1894, 64
    %v1899 = vpop.permute.xlu0 %1898
    %1900 = vrot.lane.b32.xlu0 %v1895, 64
    %v1901 = vpop.permute.xlu0 %1900
    %v1904 = vmul.f32 %v1878, %v1899
    %v1905 = vmul.f32 %v1893, %v1901
    %1908 = vrot.lane.b32.xlu0 %v1904, 64
    %v1909 = vpop.permute.xlu0 %1908
    %1910 = vrot.lane.b32.xlu0 %v1905, 64
    %v1911 = vpop.permute.xlu0 %1910
    %v1914 = vadd.f32 %v1845, %v1909
    %v1915 = vadd.f32 %v1846, %v1911
    %v1916 = vtanh.pop %v1914
    %v1917 = vtanh.pop %v1915
    %v1918 = vsub.f32 1.0, %v1878
    %v1919 = vsub.f32 1.0, %v1893
    %1922 = vrot.lane.b32.xlu0 %v1916, 96
    %v1923 = vpop.permute.xlu0 %1922
    %1924 = vrot.lane.b32.xlu0 %v1917, 96
    %v1925 = vpop.permute.xlu0 %1924
    %v1928 = vmul.f32 %v1918, %v1923
    %v1929 = vmul.f32 %v1919, %v1925
    %v1930 = vmul.f32 %v1878, %v1698
    %v1931 = vmul.f32 %v1893, %v1699
    %v1932 = vadd.f32 %v1928, %v1930
    %v1933 = vadd.f32 %v1929, %v1931
    %v1934 = vadd.f32 %v1852, %v1838
    %v1935 = vadd.f32 %v1853, %v1840
    %v1936 = vxor.u32 %v1934, 2147483648
    %v1937 = vxor.u32 %v1935, 2147483648
    %v1938 = vmul.f32 %v1936, 1.442695
    %v1939 = vpow.pop %v1938
    %v1940 = vmul.f32 %v1937, 1.442695
    %v1941 = vpow.pop %v1940
    %v1942 = vadd.f32 %v1939, 1.0
    %v1943 = vadd.f32 %v1941, 1.0
    %v1944 = vrcp.pop %v1942
    %v1945 = vmul.f32 %v1942, %v1944
    %v1946 = vsub.f32 1.0, %v1945
    %v1947 = vmul.f32 %v1944, %v1946
    %v1948 = vadd.f32 %v1944, %v1947
    %vm1949 = vweird.f32 %v1942
    %vm1950 = vweird.f32 %v1944
    %vm1951 = vmor %vm1949, %vm1950
    %v1952 = vsel %vm1951, %v1944, %v1948
    %v1953 = vand.u32 2147483647, %v1942
    %vm1954 = vcmp.eq.f32.partialorder %v1953, 8.507059e+37
    %v1955 = vand.u32 %v1942, 2147483648
    %v1956 = vor.u32 1.1754944e-38, %v1955
    %v1957 = vsel %vm1954, %v1956, %v1952
    %v1958 = vmul.f32 1.0, %v1957
    %v1959 = vrcp.pop %v1943
    %v1960 = vmul.f32 %v1943, %v1959
    %v1961 = vsub.f32 1.0, %v1960
    %v1962 = vmul.f32 %v1959, %v1961
    %v1963 = vadd.f32 %v1959, %v1962
    %vm1964 = vweird.f32 %v1943
    %vm1965 = vweird.f32 %v1959
    %vm1966 = vmor %vm1964, %vm1965
    %v1967 = vsel %vm1966, %v1959, %v1963
    %v1968 = vand.u32 2147483647, %v1943
    %vm1969 = vcmp.eq.f32.partialorder %v1968, 8.507059e+37
    %v1970 = vand.u32 %v1943, 2147483648
    %v1971 = vor.u32 1.1754944e-38, %v1970
    %v1972 = vsel %vm1969, %v1971, %v1967
    %v1973 = vmul.f32 1.0, %v1972
    %v1974 = vadd.f32 %v1838, %v559
    %v1975 = vadd.f32 %v1840, %v559
    %1978 = vrot.lane.b32.xlu0 %v1974, 64
    %v1979 = vpop.permute.xlu0 %1978
    %1980 = vrot.lane.b32.xlu0 %v1975, 64
    %v1981 = vpop.permute.xlu0 %1980
    %v1984 = vmul.f32 %v1958, %v1979
    %v1985 = vmul.f32 %v1973, %v1981
    %1988 = vrot.lane.b32.xlu0 %v1984, 64
    %v1989 = vpop.permute.xlu0 %1988
    %1990 = vrot.lane.b32.xlu0 %v1985, 64
    %v1991 = vpop.permute.xlu0 %1990
    %v1994 = vadd.f32 %v1852, %v1989
    %v1995 = vadd.f32 %v1853, %v1991
    %v1996 = vtanh.pop %v1994
    %v1997 = vtanh.pop %v1995
    %v1998 = vsub.f32 1.0, %v1958
    %v1999 = vsub.f32 1.0, %v1973
    %2002 = vrot.lane.b32.xlu0 %v1996, 96
    %v2003 = vpop.permute.xlu0 %2002
    %2004 = vrot.lane.b32.xlu0 %v1997, 96
    %v2005 = vpop.permute.xlu0 %2004
    %v2008 = vmul.f32 %v1998, %v2003
    %v2009 = vmul.f32 %v1999, %v2005
    %v2010 = vmul.f32 %v1958, %v1778
    %v2011 = vmul.f32 %v1973, %v1779
    %v2012 = vadd.f32 %v2008, %v2010
    %v2013 = vadd.f32 %v2009, %v2011
    %v2014 = vpack.c.bf16 %v1932, %v1932
    %v2015 = vpack.c.bf16 %v1933, %v1933
    %2018 = vrot.lane.b32.xlu0 %v2014, 96
    %v2019 = vpop.permute.xlu0 %2018
    %2020 = vrot.lane.b32.xlu0 %v2015, 96
    %v2021 = vpop.permute.xlu0 %2020
    %2024 = vst.msk [vmem:[%s853] sm:$0xf] %vm611, %v2019
    %2025 = vst.msk [vmem:[%s853 + $0x4] sm:$0xf] %vm611, %v2021
    %v2026 = vpack.c.bf16 %v2012, %v2012
    %v2027 = vpack.c.bf16 %v2013, %v2013
    %2028 = vst.msk [vmem:[%s848] sm:$0xf] %vm617, %v2026
    %2029 = vst.msk [vmem:[%s848 + $0x4] sm:$0xf] %vm617, %v2027
    %v2030 = vunpack.c.l.b16 %v2014
    %v2031 = vunpack.c.l.b16 %v2015
    %v2032 = vpack.c.b16 %v2031, %v2030
    %2033 = vrot.lane.b32.xlu0 %v2032, 96
    %v2034 = vpop.permute.xlu0 %2033
    %v2036 = vsel %vm376, %v2034, 0
    %2038 = vmatpush.bf16.msra.mxu0 0
    %2039 = vmatpush.bf16.msra.mxu0 0
    %2040 = vmatpush.bf16.msra.mxu0 0
    %2041 = vmatpush.bf16.msra.mxu0 0
    %2042 = vmatpush.bf16.msra.mxu0 0
    %2043 = vmatpush.bf16.msra.mxu0 0
    %2044 = vmatpush.bf16.msra.mxu0 %v373
    %2045 = vmatpush.bf16.msra.mxu0 %v372
    %2046 = vmatmul.bf16.gmra.mxu0 %v2036
    %v2047 = vpop.f32.mrf.mxu0
    %v2048 = vadd.f32 0.0, %v2047
    %v2049 = vpop.f32.mrf.mxu0
    %v2050 = vadd.f32 0.0, %v2049
    %2051 = vdwg.mxu0
    %v2054 = vunpack.c.l.b16 %v2026
    %v2055 = vunpack.c.l.b16 %v2027
    %v2056 = vpack.c.b16 %v2055, %v2054
    %2057 = vrot.lane.b32.xlu0 %v2056, 96
    %v2058 = vpop.permute.xlu0 %2057
    %v2060 = vsel %vm376, %v2058, 0
    %2062 = vmatpush.bf16.msra.mxu0 0
    %2063 = vmatpush.bf16.msra.mxu0 0
    %2064 = vmatpush.bf16.msra.mxu0 0
    %2065 = vmatpush.bf16.msra.mxu0 0
    %2066 = vmatpush.bf16.msra.mxu0 0
    %2067 = vmatpush.bf16.msra.mxu0 0
    %2068 = vmatpush.bf16.msra.mxu0 %v403
    %2069 = vmatpush.bf16.msra.mxu0 %v402
    %2070 = vmatmul.bf16.gmra.mxu0 %v2060
    %v2071 = vpop.f32.mrf.mxu0
    %v2072 = vadd.f32 0.0, %v2071
    %v2073 = vpop.f32.mrf.mxu0
    %v2074 = vadd.f32 0.0, %v2073
    %2075 = vdwg.mxu0
    %s2076 = scalar_lea.vmem [#allocation2], 56
    %v2077 = vld [vmem:[%s2076] sm:$0xf]
    %v2078 = vld [vmem:[%s2076 + $0x4] sm:$0xf]
    %v2079 = vunpack.c.l.bf16 %v2077
    %v2080 = vunpack.c.l.bf16 %v2078
    %s2081 = sadd.s32 0, 16
    %s2082 = smul.addr %s2081, 4
    %s2083 = scalar_lea.vmem [#allocation2], %s2082
    %v2084 = vld [vmem:[%s2083] sm:$0xf]
    %v2085 = vld [vmem:[%s2083 + $0x4] sm:$0xf]
    %v2086 = vunpack.c.l.bf16 %v2084
    %v2087 = vunpack.c.l.bf16 %v2085
    %v2088 = vadd.f32 %v2079, %v2048
    %v2089 = vadd.f32 %v2080, %v2050
    %v2090 = vxor.u32 %v2088, 2147483648
    %v2091 = vxor.u32 %v2089, 2147483648
    %v2092 = vmul.f32 %v2090, 1.442695
    %v2093 = vpow.pop %v2092
    %v2094 = vmul.f32 %v2091, 1.442695
    %v2095 = vpow.pop %v2094
    %v2096 = vadd.f32 %v2093, 1.0
    %v2097 = vadd.f32 %v2095, 1.0
    %v2098 = vrcp.pop %v2096
    %v2099 = vmul.f32 %v2096, %v2098
    %v2100 = vsub.f32 1.0, %v2099
    %v2101 = vmul.f32 %v2098, %v2100
    %v2102 = vadd.f32 %v2098, %v2101
    %vm2103 = vweird.f32 %v2096
    %vm2104 = vweird.f32 %v2098
    %vm2105 = vmor %vm2103, %vm2104
    %v2106 = vsel %vm2105, %v2098, %v2102
    %v2107 = vand.u32 2147483647, %v2096
    %vm2108 = vcmp.eq.f32.partialorder %v2107, 8.507059e+37
    %v2109 = vand.u32 %v2096, 2147483648
    %v2110 = vor.u32 1.1754944e-38, %v2109
    %v2111 = vsel %vm2108, %v2110, %v2106
    %v2112 = vmul.f32 1.0, %v2111
    %v2113 = vrcp.pop %v2097
    %v2114 = vmul.f32 %v2097, %v2113
    %v2115 = vsub.f32 1.0, %v2114
    %v2116 = vmul.f32 %v2113, %v2115
    %v2117 = vadd.f32 %v2113, %v2116
    %vm2118 = vweird.f32 %v2097
    %vm2119 = vweird.f32 %v2113
    %vm2120 = vmor %vm2118, %vm2119
    %v2121 = vsel %vm2120, %v2113, %v2117
    %v2122 = vand.u32 2147483647, %v2097
    %vm2123 = vcmp.eq.f32.partialorder %v2122, 8.507059e+37
    %v2124 = vand.u32 %v2097, 2147483648
    %v2125 = vor.u32 1.1754944e-38, %v2124
    %v2126 = vsel %vm2123, %v2125, %v2121
    %v2127 = vmul.f32 1.0, %v2126
    %v2128 = vadd.f32 %v2048, %v474
    %v2129 = vadd.f32 %v2050, %v474
    %2132 = vrot.lane.b32.xlu0 %v2128, 64
    %v2133 = vpop.permute.xlu0 %2132
    %2134 = vrot.lane.b32.xlu0 %v2129, 64
    %v2135 = vpop.permute.xlu0 %2134
    %v2138 = vmul.f32 %v2112, %v2133
    %v2139 = vmul.f32 %v2127, %v2135
    %2142 = vrot.lane.b32.xlu0 %v2138, 64
    %v2143 = vpop.permute.xlu0 %2142
    %2144 = vrot.lane.b32.xlu0 %v2139, 64
    %v2145 = vpop.permute.xlu0 %2144
    %v2148 = vadd.f32 %v2079, %v2143
    %v2149 = vadd.f32 %v2080, %v2145
    %v2150 = vtanh.pop %v2148
    %v2151 = vtanh.pop %v2149
    %v2152 = vsub.f32 1.0, %v2112
    %v2153 = vsub.f32 1.0, %v2127
    %2156 = vrot.lane.b32.xlu0 %v2150, 96
    %v2157 = vpop.permute.xlu0 %2156
    %2158 = vrot.lane.b32.xlu0 %v2151, 96
    %v2159 = vpop.permute.xlu0 %2158
    %v2162 = vmul.f32 %v2152, %v2157
    %v2163 = vmul.f32 %v2153, %v2159
    %v2164 = vmul.f32 %v2112, %v1932
    %v2165 = vmul.f32 %v2127, %v1933
    %v2166 = vadd.f32 %v2162, %v2164
    %v2167 = vadd.f32 %v2163, %v2165
    %v2168 = vadd.f32 %v2086, %v2072
    %v2169 = vadd.f32 %v2087, %v2074
    %v2170 = vxor.u32 %v2168, 2147483648
    %v2171 = vxor.u32 %v2169, 2147483648
    %v2172 = vmul.f32 %v2170, 1.442695
    %v2173 = vpow.pop %v2172
    %v2174 = vmul.f32 %v2171, 1.442695
    %v2175 = vpow.pop %v2174
    %v2176 = vadd.f32 %v2173, 1.0
    %v2177 = vadd.f32 %v2175, 1.0
    %v2178 = vrcp.pop %v2176
    %v2179 = vmul.f32 %v2176, %v2178
    %v2180 = vsub.f32 1.0, %v2179
    %v2181 = vmul.f32 %v2178, %v2180
    %v2182 = vadd.f32 %v2178, %v2181
    %vm2183 = vweird.f32 %v2176
    %vm2184 = vweird.f32 %v2178
    %vm2185 = vmor %vm2183, %vm2184
    %v2186 = vsel %vm2185, %v2178, %v2182
    %v2187 = vand.u32 2147483647, %v2176
    %vm2188 = vcmp.eq.f32.partialorder %v2187, 8.507059e+37
    %v2189 = vand.u32 %v2176, 2147483648
    %v2190 = vor.u32 1.1754944e-38, %v2189
    %v2191 = vsel %vm2188, %v2190, %v2186
    %v2192 = vmul.f32 1.0, %v2191
    %v2193 = vrcp.pop %v2177
    %v2194 = vmul.f32 %v2177, %v2193
    %v2195 = vsub.f32 1.0, %v2194
    %v2196 = vmul.f32 %v2193, %v2195
    %v2197 = vadd.f32 %v2193, %v2196
    %vm2198 = vweird.f32 %v2177
    %vm2199 = vweird.f32 %v2193
    %vm2200 = vmor %vm2198, %vm2199
    %v2201 = vsel %vm2200, %v2193, %v2197
    %v2202 = vand.u32 2147483647, %v2177
    %vm2203 = vcmp.eq.f32.partialorder %v2202, 8.507059e+37
    %v2204 = vand.u32 %v2177, 2147483648
    %v2205 = vor.u32 1.1754944e-38, %v2204
    %v2206 = vsel %vm2203, %v2205, %v2201
    %v2207 = vmul.f32 1.0, %v2206
    %v2208 = vadd.f32 %v2072, %v559
    %v2209 = vadd.f32 %v2074, %v559
    %2212 = vrot.lane.b32.xlu0 %v2208, 64
    %v2213 = vpop.permute.xlu0 %2212
    %2214 = vrot.lane.b32.xlu0 %v2209, 64
    %v2215 = vpop.permute.xlu0 %2214
    %v2218 = vmul.f32 %v2192, %v2213
    %v2219 = vmul.f32 %v2207, %v2215
    %2222 = vrot.lane.b32.xlu0 %v2218, 64
    %v2223 = vpop.permute.xlu0 %2222
    %2224 = vrot.lane.b32.xlu0 %v2219, 64
    %v2225 = vpop.permute.xlu0 %2224
    %v2228 = vadd.f32 %v2086, %v2223
    %v2229 = vadd.f32 %v2087, %v2225
    %v2230 = vtanh.pop %v2228
    %v2231 = vtanh.pop %v2229
    %v2232 = vsub.f32 1.0, %v2192
    %v2233 = vsub.f32 1.0, %v2207
    %2236 = vrot.lane.b32.xlu0 %v2230, 96
    %v2237 = vpop.permute.xlu0 %2236
    %2238 = vrot.lane.b32.xlu0 %v2231, 96
    %v2239 = vpop.permute.xlu0 %2238
    %v2242 = vmul.f32 %v2232, %v2237
    %v2243 = vmul.f32 %v2233, %v2239
    %v2244 = vmul.f32 %v2192, %v2012
    %v2245 = vmul.f32 %v2207, %v2013
    %v2246 = vadd.f32 %v2242, %v2244
    %v2247 = vadd.f32 %v2243, %v2245
    %v2248 = vpack.c.bf16 %v2166, %v2166
    %v2249 = vpack.c.bf16 %v2167, %v2167
    %2252 = vrot.lane.b32.xlu0 %v2248, 96
    %v2253 = vpop.permute.xlu0 %2252
    %2254 = vrot.lane.b32.xlu0 %v2249, 96
    %v2255 = vpop.permute.xlu0 %2254
    %2258 = vst.msk [vmem:[%s616] sm:$0xf] %vm611, %v2253
    %2259 = vst.msk [vmem:[%s616 + $0x4] sm:$0xf] %vm611, %v2255
    %v2260 = vpack.c.bf16 %v2246, %v2246
    %v2261 = vpack.c.bf16 %v2247, %v2247
    %2262 = vst.msk [vmem:[#allocation3] sm:$0xf] %vm617, %v2260
    %2263 = vst.msk [vmem:[#allocation3 + $0x4] sm:$0xf] %vm617, %v2261
    %v2264 = vld [vmem:[#allocation3 + $0x38] sm:$0xf]
    %v2265 = vld [vmem:[#allocation3 + $0x3c] sm:$0xf]
    %v2266 = vld [vmem:[%s5] sm:$0xf]
    %v2267 = vld [vmem:[%s5 + $0x4] sm:$0xf]
    %v2268 = vld [vmem:[%s5 + $0x8] sm:$0xf]
    %v2269 = vld [vmem:[%s5 + $0xc] sm:$0xf]
    %v2270 = vld [vmem:[%s6] sm:$0xf]
    %v2271 = vld [vmem:[%s6 + $0x4] sm:$0xf]
    %v2272 = vld [vmem:[%s6 + $0x8] sm:$0xf]
    %v2273 = vld [vmem:[%s6 + $0xc] sm:$0xf]
    %v2276 = vunpack.c.l.b16 %v2264
    %v2277 = vunpack.c.l.b16 %v2265
    %v2278 = vpack.c.b16 %v2277, %v2276
    %2279 = vrot.lane.b32.xlu0 %v2278, 96
    %v2280 = vpop.permute.xlu0 %2279
    %v2285 = vunpack.c.l.b16 %v2270
    %v2286 = vunpack.c.l.b16 %v2271
    %v2287 = vunpack.c.l.b16 %v2272
    %v2288 = vunpack.c.l.b16 %v2273
    %v2289 = vpack.c.b16 %v2286, %v2285
    %v2290 = vpack.c.b16 %v2288, %v2287
    %v2294 = vsel %vm376, %v2280, 0
    %2296 = vmatpush.bf16.msra.mxu0 0
    %2297 = vmatpush.bf16.msra.mxu0 0
    %2298 = vmatpush.bf16.msra.mxu0 0
    %2299 = vmatpush.bf16.msra.mxu0 0
    %2300 = vmatpush.bf16.msra.mxu0 0
    %2301 = vmatpush.bf16.msra.mxu0 0
    %2302 = vmatpush.bf16.msra.mxu0 %v2290
    %2303 = vmatpush.bf16.msra.mxu0 %v2289
    %2304 = vmatmul.bf16.gmra.mxu0 %v2294
    %v2305 = vpop.f32.mrf.mxu0
    %v2306 = vadd.f32 0.0, %v2305
    %v2307 = vpop.f32.mrf.mxu0
    %v2308 = vadd.f32 0.0, %v2307
    %2309 = vdwg.mxu0
    %v2310 = vunpack.c.l.b16 %v2248
    %v2311 = vunpack.c.l.b16 %v2249
    %v2312 = vpack.c.b16 %v2311, %v2310
    %2313 = vrot.lane.b32.xlu0 %v2312, 96
    %v2314 = vpop.permute.xlu0 %2313
    %v2319 = vunpack.c.l.b16 %v2266
    %v2320 = vunpack.c.l.b16 %v2267
    %v2321 = vunpack.c.l.b16 %v2268
    %v2322 = vunpack.c.l.b16 %v2269
    %v2323 = vpack.c.b16 %v2320, %v2319
    %v2324 = vpack.c.b16 %v2322, %v2321
    %v2328 = vsel %vm376, %v2314, 0
    %2330 = vmatpush.bf16.msra.mxu0 0
    %2331 = vmatpush.bf16.msra.mxu0 0
    %2332 = vmatpush.bf16.msra.mxu0 0
    %2333 = vmatpush.bf16.msra.mxu0 0
    %2334 = vmatpush.bf16.msra.mxu0 0
    %2335 = vmatpush.bf16.msra.mxu0 0
    %2336 = vmatpush.bf16.msra.mxu0 %v2324
    %2337 = vmatpush.bf16.msra.mxu0 %v2323
    %2338 = vmatmul.bf16.gmra.mxu0 %v2328
    %v2339 = vpop.f32.mrf.mxu0
    %v2340 = vadd.f32 %v2306, %v2339
    %v2341 = vpop.f32.mrf.mxu0
    %v2342 = vadd.f32 %v2308, %v2341
    %2343 = vdwg.mxu0
    %v2344 = vld [vmem:[%s7] sm:$0x1]
    %v2346 = vperm.slane %v2344, 0
    %v2348 = vadd.f32 %v2340, %v2346
    %v2349 = vadd.f32 %v2342, %v2346
    %vm2350 = vcmask 15360
    %2351 = vst.msk [vmem:[%s9] sm:$0xff] %vm2350, %v2348
    %2352 = vst.msk [vmem:[%s9 + $0x8] sm:$0xff] %vm2350, %v2349
    // Predicated region
    $region34: #{bigru_forward.3} parent=1 // pred_check
      _
    $region35: #{bigru_forward.3} parent=1 // pred_check_branch
      %2354 = sbr.rel (0) target = $region37
    $region36: #{bigru_forward.3} parent=1 // pred_region
      %2356 = vsyncadd [#allocation4], 0
      %s2357 = sshll.u32 [#allocation3], 4
      %s2358 = int_to_ptr.vmem [resolvable:$true] %s2357
      %s2359 = sshll.u32 %s8, 4
      %s2360 = int_to_ptr.hbm [resolvable:$true] %s2359
      %2365 = dma.vmem_to_hbm [thread:$0]  %s2358, 1024, %s2360, [#allocation4], 64, 64, 4
    $region37: #{bigru_forward.3} parent=1 // pred_fallthru
      _
    // Predicated region
    $region38: #{bigru_forward.3} parent=1 // pred_check
      _
    $region39: #{bigru_forward.3} parent=1 // pred_check_branch
      %2367 = sbr.rel (0) target = $region41
    $region40: #{bigru_forward.3} parent=1 // pred_region
      _
    $region41: #{bigru_forward.3} parent=1 // pred_fallthru
      _
    // Predicated region
    $region42: #{bigru_forward.3} parent=1 // pred_check
      _
    $region43: #{bigru_forward.3} parent=1 // pred_check_branch
      %2369 = sbr.rel (0) target = $region45
    $region44: #{bigru_forward.3} parent=1 // pred_region
      %2371 = dma.done [#allocation4], 1024
    $region45: #{bigru_forward.3} parent=1 // pred_fallthru
      _
    // Predicated region
    $region46: #{bigru_forward.3} parent=1 // pred_check
      _
    $region47: #{bigru_forward.3} parent=1 // pred_check_branch
      %2373 = sbr.rel (0) target = $region49
    $region48: #{bigru_forward.3} parent=1 // pred_region
      _
    $region49: #{bigru_forward.3} parent=1 // pred_fallthru
      _
    %2374 = vsyncpa [#allocation4], 1

</llo_original>
